<compile_context>
chip_gen: v5e
topology: v5e:2x2
jax: 0.10.0
libtpu: 0.0.40
codegen_flags: <defaults>
</compile_context>

<pallas_src>
import functools

import jax
import jax.numpy as jnp
from jax.experimental import pallas as pl
from jax.experimental.pallas import tpu as pltpu


def _round_up(x, m):
    return ((x + m - 1) // m) * m


def _gru_generator_kernel(emb_ref, wih_ref, whh_ref, bih_ref, bhh_ref,
                          wout_ref, bout_ref, out_ref,
                          h_ref, gi0r_ref, gi0z_ref, gi0n_ref, hout_ref,
                          *, num_layers, seq_len, b_pad, alpha):
    """Whole-sequence GRU generator recurrence in one kernel invocation.

    emb_ref : (T*Bp, Hp)       time-major embedded inputs (rows t*Bp .. t*Bp+Bp-1)
    wih/whh : (L, 3, Hp, Hp)   gate-major [r, z, n] input/hidden weights
    bih/bhh : (L, 3, 1, Hp)    gate-major biases
    wout    : (Hp, Vp), bout: (1, Vp)
    out_ref : (T*Bp, Vp)
    scratch : h (L, Bp, Hp); gi0_{r,z,n}, hout (T*Bp, Hp)
    """
    L, T, Bp = num_layers, seq_len, b_pad

    # hidden_state=None in PyTorch -> zeros.
    h_ref[...] = jnp.zeros_like(h_ref)

    # Prologue: hoisted layer-0 input-side gate matmuls for ALL timesteps at once.
    x_all = emb_ref[...]                                                  # (T*Bp, Hp)
    gi0r_ref[...] = jnp.dot(x_all, wih_ref[0, 0],
                            preferred_element_type=jnp.float32) + bih_ref[0, 0]
    gi0z_ref[...] = jnp.dot(x_all, wih_ref[0, 1],
                            preferred_element_type=jnp.float32) + bih_ref[0, 1]
    gi0n_ref[...] = jnp.dot(x_all, wih_ref[0, 2],
                            preferred_element_type=jnp.float32) + bih_ref[0, 2]

    def gru_cell(gi_r, gi_z, gi_n, h_prev, l):
        gh_r = jnp.dot(h_prev, whh_ref[l, 0],
                       preferred_element_type=jnp.float32) + bhh_ref[l, 0]
        gh_z = jnp.dot(h_prev, whh_ref[l, 1],
                       preferred_element_type=jnp.float32) + bhh_ref[l, 1]
        gh_n = jnp.dot(h_prev, whh_ref[l, 2],
                       preferred_element_type=jnp.float32) + bhh_ref[l, 2]
        r = jax.nn.sigmoid(gi_r + gh_r)
        z = jax.nn.sigmoid(gi_z + gh_z)
        n = jnp.tanh(gi_n + r * gh_n)
        return (1.0 - z) * n + z * h_prev

    def step(t, carry):
        row = pl.multiple_of(t * Bp, Bp)
        rows = pl.ds(row, Bp)

        # Layer 0: input-side gates were precomputed in the prologue.
        h0 = h_ref[0]                                                     # (Bp, Hp)
        h_new = gru_cell(gi0r_ref[rows, :], gi0z_ref[rows, :], gi0n_ref[rows, :], h0, 0)
        h_ref[0] = h_new
        x_t = h_new

        # Layers 1..L-1: input gates depend on the previous layer's fresh output.
        for l in range(1, L):
            h_prev = h_ref[l]
            gi_r = jnp.dot(x_t, wih_ref[l, 0],
                           preferred_element_type=jnp.float32) + bih_ref[l, 0]
            gi_z = jnp.dot(x_t, wih_ref[l, 1],
                           preferred_element_type=jnp.float32) + bih_ref[l, 1]
            gi_n = jnp.dot(x_t, wih_ref[l, 2],
                           preferred_element_type=jnp.float32) + bih_ref[l, 2]
            h_new = gru_cell(gi_r, gi_z, gi_n, h_prev, l)
            h_ref[l] = h_new
            x_t = h_new

        hout_ref[rows, :] = x_t
        return carry

    jax.lax.fori_loop(0, T, step, 0, unroll=True)

    # Epilogue: one batched output projection + alpha temperature scaling.
    logits = jnp.dot(hout_ref[...], wout_ref[...],
                     preferred_element_type=jnp.float32) + bout_ref[...]
    out_ref[...] = (logits * alpha).astype(out_ref.dtype)


def generator_forward(x_ids, params, *, alpha_test):
    """Teacher-forced forward of Generator. x_ids: (B, T) int32. Returns (B, T, V)."""
    emb_table = params["embedding"]                # (V, H)
    wih, whh = params["w_ih"], params["w_hh"]      # (L, H, 3H), gate order [r, z, n]
    bih, bhh = params["b_ih"], params["b_hh"]      # (L, 1, 3H)
    wout, bout = params["w_out"], params["b_out"]  # (H, V), (1, V)

    B, T = x_ids.shape
    L, H, _ = wih.shape
    V = wout.shape[1]

    Bp = _round_up(max(B, 8), 8)      # full f32 sublane tile
    Hp = _round_up(H, 128)            # full lane tile
    Vp = _round_up(V, 128)

    # Embedding lookup (gather) is glue; done in plain JAX. Time-major + padded.
    emb = jnp.transpose(emb_table[x_ids], (1, 0, 2))                  # (T, B, H)
    emb = jnp.pad(emb, ((0, 0), (0, Bp - B), (0, Hp - H)))
    emb_flat = emb.reshape(T * Bp, Hp)

    # Gate-major, zero-padded weights / biases.
    def split_gates_w(w):  # (L, H, 3H) -> (L, 3, Hp, Hp)
        w = jnp.transpose(w.reshape(L, H, 3, H), (0, 2, 1, 3))        # (L, 3, H, H)
        return jnp.pad(w, ((0, 0), (0, 0), (0, Hp - H), (0, Hp - H)))

    def split_gates_b(b):  # (L, 1, 3H) -> (L, 3, 1, Hp)
        b = jnp.transpose(b.reshape(L, 1, 3, H), (0, 2, 1, 3))        # (L, 3, 1, H)
        return jnp.pad(b, ((0, 0), (0, 0), (0, 0), (0, Hp - H)))

    wih_g, whh_g = split_gates_w(wih), split_gates_w(whh)
    bih_g, bhh_g = split_gates_b(bih), split_gates_b(bhh)
    wout_p = jnp.pad(wout, ((0, Hp - H), (0, Vp - V)))
    bout_p = jnp.pad(bout, ((0, 0), (0, Vp - V)))

    kernel = functools.partial(_gru_generator_kernel,
                               num_layers=L, seq_len=T, b_pad=Bp, alpha=alpha_test)

    logits_flat = pl.pallas_call(
        kernel,
        out_shape=jax.ShapeDtypeStruct((T * Bp, Vp), jnp.float32),
        grid_spec=pltpu.PrefetchScalarGridSpec(
            num_scalar_prefetch=0,
            grid=(1,),                                  # single step: loop lives in-kernel
            in_specs=[
                pl.BlockSpec((T * Bp, Hp), lambda i: (0, 0)),         # embedded inputs
                pl.BlockSpec((L, 3, Hp, Hp), lambda i: (0, 0, 0, 0)),  # W_ih (gate-major)
                pl.BlockSpec((L, 3, Hp, Hp), lambda i: (0, 0, 0, 0)),  # W_hh
                pl.BlockSpec((L, 3, 1, Hp), lambda i: (0, 0, 0, 0)),   # b_ih
                pl.BlockSpec((L, 3, 1, Hp), lambda i: (0, 0, 0, 0)),   # b_hh
                pl.BlockSpec((Hp, Vp), lambda i: (0, 0)),              # W_out
                pl.BlockSpec((1, Vp), lambda i: (0, 0)),               # b_out
            ],
            out_specs=pl.BlockSpec((T * Bp, Vp), lambda i: (0, 0)),
            scratch_shapes=[
                pltpu.VMEM((L, Bp, Hp), jnp.float32),     # hidden-state carry
                pltpu.VMEM((T * Bp, Hp), jnp.float32),    # hoisted layer-0 gi_r
                pltpu.VMEM((T * Bp, Hp), jnp.float32),    # hoisted layer-0 gi_z
                pltpu.VMEM((T * Bp, Hp), jnp.float32),    # hoisted layer-0 gi_n
                pltpu.VMEM((T * Bp, Hp), jnp.float32),    # last-layer hidden outputs
            ]),
        compiler_params=pltpu.CompilerParams(
            dimension_semantics=("arbitrary",)),           # recurrence is sequential
    )(emb_flat, wih_g, whh_g, bih_g, bhh_g, wout_p, bout_p)

    logits = logits_flat.reshape(T, Bp, Vp)[:, :B, :V]     # drop padding
    return jnp.transpose(logits, (1, 0, 2))                # (B, T, V)


def _reference_forward(x_ids, params, *, alpha_test):
    """Pure-JAX reference (matches PyTorch GRU equations, eval mode)."""
    emb_table = params["embedding"]
    wih, whh = params["w_ih"], params["w_hh"]
    bih, bhh = params["b_ih"], params["b_hh"]
    wout, bout = params["w_out"], params["b_out"]
    B, T = x_ids.shape
    L, H, _ = wih.shape
    h = jnp.zeros((L, B, H), jnp.float32)
    outs = []
    for t in range(T):
        xt = emb_table[x_ids[:, t]]
        for l in range(L):
            gi = xt @ wih[l] + bih[l, 0]
            gh = h[l] @ whh[l] + bhh[l, 0]
            r = jax.nn.sigmoid(gi[:, :H] + gh[:, :H])
            z = jax.nn.sigmoid(gi[:, H:2 * H] + gh[:, H:2 * H])
            n = jnp.tanh(gi[:, 2 * H:] + r * gh[:, 2 * H:])
            hn = (1.0 - z) * n + z * h[l]
            h = h.at[l].set(hn)
            xt = hn
        outs.append((xt @ wout + bout[0]) * alpha_test)
    return jnp.stack(outs, axis=1)


def init_params(key, *, vocab_size, hidden_dim, num_layers):
    ks = jax.random.split(key, 7)
    s = 0.1
    return {
        "embedding": s * jax.random.normal(ks[0], (vocab_size, hidden_dim), jnp.float32),
        "w_ih": s * jax.random.normal(ks[1], (num_layers, hidden_dim, 3 * hidden_dim), jnp.float32),
        "w_hh": s * jax.random.normal(ks[2], (num_layers, hidden_dim, 3 * hidden_dim), jnp.float32),
        "b_ih": s * jax.random.normal(ks[3], (num_layers, 1, 3 * hidden_dim), jnp.float32),
        "b_hh": s * jax.random.normal(ks[4], (num_layers, 1, 3 * hidden_dim), jnp.float32),
        "w_out": s * jax.random.normal(ks[5], (hidden_dim, vocab_size), jnp.float32),
        "b_out": s * jax.random.normal(ks[6], (1, vocab_size), jnp.float32),
    }


if __name__ == "__main__":
    # Small args: vocab_size=32, hidden_dim_gen=32, num_layers_gen=2, rnn='GRU',
    # leak_info=False, var_dropout_p_gen inactive (eval), alpha_test=1.5.
    VOCAB, HIDDEN, LAYERS = 32, 32, 2
    B, T = 4, 8
    ALPHA_TEST = 1.5

    key = jax.random.PRNGKey(0)
    pkey, xkey = jax.random.split(key)
    params = init_params(pkey, vocab_size=VOCAB, hidden_dim=HIDDEN, num_layers=LAYERS)
    x_ids = jax.random.randint(xkey, (B, T), 0, VOCAB, dtype=jnp.int32)

    logits = generator_forward(x_ids, params, alpha_test=ALPHA_TEST)
    logits = jax.block_until_ready(logits)

    ref = _reference_forward(x_ids, params, alpha_test=ALPHA_TEST)
    assert logits.shape == (B, T, VOCAB)
    assert jnp.allclose(logits, ref, atol=1e-4, rtol=1e-4), "mismatch vs JAX reference"

    print("KERNEL_OK")
</pallas_src>

<mosaic_0001>
module attributes {stable_mosaic.version = 11 : i64} {
  func.func @_gru_generator_kernel(%arg0: i32, %arg1: memref<64x128xf32, #tpu.memory_space<vmem>>, %arg2: memref<2x3x128x128xf32, #tpu.memory_space<vmem>>, %arg3: memref<2x3x128x128xf32, #tpu.memory_space<vmem>>, %arg4: memref<2x3x1x128xf32, #tpu.memory_space<vmem>>, %arg5: memref<2x3x1x128xf32, #tpu.memory_space<vmem>>, %arg6: memref<128x128xf32, #tpu.memory_space<vmem>>, %arg7: memref<1x128xf32, #tpu.memory_space<vmem>>, %arg8: memref<64x128xf32, #tpu.memory_space<vmem>>, %arg9: memref<2x8x128xf32, #tpu.memory_space<vmem>>, %arg10: memref<64x128xf32, #tpu.memory_space<vmem>>, %arg11: memref<64x128xf32, #tpu.memory_space<vmem>>, %arg12: memref<64x128xf32, #tpu.memory_space<vmem>>, %arg13: memref<64x128xf32, #tpu.memory_space<vmem>>) attributes {dimension_semantics = [#tpu.dimension_semantics<arbitrary>], iteration_bounds = array<i64: 1>, scalar_prefetch = 0 : i64, scratch_operands = 5 : i64, tpu.core_type = #tpu.core_type<tc>, window_params = [{pipeline_mode = #tpu.pipeline_mode<synchronous>, transform_indices = @transform_0, window_bounds = array<i64: 64, 128>}, {pipeline_mode = #tpu.pipeline_mode<synchronous>, transform_indices = @transform_1, window_bounds = array<i64: 2, 3, 128, 128>}, {pipeline_mode = #tpu.pipeline_mode<synchronous>, transform_indices = @transform_2, window_bounds = array<i64: 2, 3, 128, 128>}, {pipeline_mode = #tpu.pipeline_mode<synchronous>, transform_indices = @transform_3, window_bounds = array<i64: 2, 3, 1, 128>}, {pipeline_mode = #tpu.pipeline_mode<synchronous>, transform_indices = @transform_4, window_bounds = array<i64: 2, 3, 1, 128>}, {pipeline_mode = #tpu.pipeline_mode<synchronous>, transform_indices = @transform_5, window_bounds = array<i64: 128, 128>}, {pipeline_mode = #tpu.pipeline_mode<synchronous>, transform_indices = @transform_6, window_bounds = array<i64: 1, 128>}, {pipeline_mode = #tpu.pipeline_mode<synchronous>, transform_indices = @transform_7, window_bounds = array<i64: 64, 128>}]} {
    %cst = arith.constant 0.000000e+00 : f32
    %0 = vector.broadcast %cst : f32 to vector<2x8x128xf32>
    %c0 = arith.constant 0 : index
    %c0_0 = arith.constant 0 : index
    %c0_1 = arith.constant 0 : index
    %1 = vector.load %arg9[%c0, %c0_0, %c0_1] : memref<2x8x128xf32, #tpu.memory_space<vmem>>, vector<2x8x128xf32>
    tpu.vector_store %arg9[%c0, %c0_0, %c0_1], %0 {strides = array<i32>} : memref<2x8x128xf32, #tpu.memory_space<vmem>>, vector<2x8x128xf32>,
    %c0_2 = arith.constant 0 : index
    %c0_3 = arith.constant 0 : index
    %2 = vector.load %arg1[%c0_2, %c0_3] : memref<64x128xf32, #tpu.memory_space<vmem>>, vector<64x128xf32>
    %c0_4 = arith.constant 0 : index
    %c0_5 = arith.constant 0 : index
    %c0_6 = arith.constant 0 : index
    %c0_7 = arith.constant 0 : index
    %3 = vector.load %arg2[%c0_4, %c0_5, %c0_6, %c0_7] : memref<2x3x128x128xf32, #tpu.memory_space<vmem>>, vector<1x1x128x128xf32>
    %4 = vector.shape_cast %3 : vector<1x1x128x128xf32> to vector<128x128xf32>
    %cst_8 = arith.constant dense<0.000000e+00> : vector<64x128xf32>
    %5 = tpu.matmul %2, %4, %cst_8 {dimension_numbers = #tpu.dot_dimension_numbers<[1], [0], [0], [1], [0, 0, 1, 1], [], []>} : vector<64x128xf32>, vector<128x128xf32>, vector<64x128xf32> -> vector<64x128xf32>
    %c0_9 = arith.constant 0 : index
    %c0_10 = arith.constant 0 : index
    %c0_11 = arith.constant 0 : index
    %c0_12 = arith.constant 0 : index
    %6 = vector.load %arg4[%c0_9, %c0_10, %c0_11, %c0_12] : memref<2x3x1x128xf32, #tpu.memory_space<vmem>>, vector<1x1x1x128xf32>
    %7 = vector.shape_cast %6 : vector<1x1x1x128xf32> to vector<1x128xf32>
    %8 = vector.broadcast %7 : vector<1x128xf32> to vector<64x128xf32>
    %9 = arith.addf %5, %8 : vector<64x128xf32>
    %c0_13 = arith.constant 0 : index
    %c0_14 = arith.constant 0 : index
    %10 = vector.load %arg10[%c0_13, %c0_14] : memref<64x128xf32, #tpu.memory_space<vmem>>, vector<64x128xf32>
    tpu.vector_store %arg10[%c0_13, %c0_14], %9 {strides = array<i32>} : memref<64x128xf32, #tpu.memory_space<vmem>>, vector<64x128xf32>,
    %c0_15 = arith.constant 0 : index
    %c1 = arith.constant 1 : index
    %c0_16 = arith.constant 0 : index
    %c0_17 = arith.constant 0 : index
    %11 = vector.load %arg2[%c0_15, %c1, %c0_16, %c0_17] : memref<2x3x128x128xf32, #tpu.memory_space<vmem>>, vector<1x1x128x128xf32>
    %12 = vector.shape_cast %11 : vector<1x1x128x128xf32> to vector<128x128xf32>
    %cst_18 = arith.constant dense<0.000000e+00> : vector<64x128xf32>
    %13 = tpu.matmul %2, %12, %cst_18 {dimension_numbers = #tpu.dot_dimension_numbers<[1], [0], [0], [1], [0, 0, 1, 1], [], []>} : vector<64x128xf32>, vector<128x128xf32>, vector<64x128xf32> -> vector<64x128xf32>
    %c0_19 = arith.constant 0 : index
    %c1_20 = arith.constant 1 : index
    %c0_21 = arith.constant 0 : index
    %c0_22 = arith.constant 0 : index
    %14 = vector.load %arg4[%c0_19, %c1_20, %c0_21, %c0_22] : memref<2x3x1x128xf32, #tpu.memory_space<vmem>>, vector<1x1x1x128xf32>
    %15 = vector.shape_cast %14 : vector<1x1x1x128xf32> to vector<1x128xf32>
    %16 = vector.broadcast %15 : vector<1x128xf32> to vector<64x128xf32>
    %17 = arith.addf %13, %16 : vector<64x128xf32>
    %c0_23 = arith.constant 0 : index
    %c0_24 = arith.constant 0 : index
    %18 = vector.load %arg11[%c0_23, %c0_24] : memref<64x128xf32, #tpu.memory_space<vmem>>, vector<64x128xf32>
    tpu.vector_store %arg11[%c0_23, %c0_24], %17 {strides = array<i32>} : memref<64x128xf32, #tpu.memory_space<vmem>>, vector<64x128xf32>,
    %c0_25 = arith.constant 0 : index
    %c2 = arith.constant 2 : index
    %c0_26 = arith.constant 0 : index
    %c0_27 = arith.constant 0 : index
    %19 = vector.load %arg2[%c0_25, %c2, %c0_26, %c0_27] : memref<2x3x128x128xf32, #tpu.memory_space<vmem>>, vector<1x1x128x128xf32>
    %20 = vector.shape_cast %19 : vector<1x1x128x128xf32> to vector<128x128xf32>
    %cst_28 = arith.constant dense<0.000000e+00> : vector<64x128xf32>
    %21 = tpu.matmul %2, %20, %cst_28 {dimension_numbers = #tpu.dot_dimension_numbers<[1], [0], [0], [1], [0, 0, 1, 1], [], []>} : vector<64x128xf32>, vector<128x128xf32>, vector<64x128xf32> -> vector<64x128xf32>
    %c0_29 = arith.constant 0 : index
    %c2_30 = arith.constant 2 : index
    %c0_31 = arith.constant 0 : index
    %c0_32 = arith.constant 0 : index
    %22 = vector.load %arg4[%c0_29, %c2_30, %c0_31, %c0_32] : memref<2x3x1x128xf32, #tpu.memory_space<vmem>>, vector<1x1x1x128xf32>
    %23 = vector.shape_cast %22 : vector<1x1x1x128xf32> to vector<1x128xf32>
    %24 = vector.broadcast %23 : vector<1x128xf32> to vector<64x128xf32>
    %25 = arith.addf %21, %24 : vector<64x128xf32>
    %c0_33 = arith.constant 0 : index
    %c0_34 = arith.constant 0 : index
    %26 = vector.load %arg12[%c0_33, %c0_34] : memref<64x128xf32, #tpu.memory_space<vmem>>, vector<64x128xf32>
    tpu.vector_store %arg12[%c0_33, %c0_34], %25 {strides = array<i32>} : memref<64x128xf32, #tpu.memory_space<vmem>>, vector<64x128xf32>,
    %c0_i32 = arith.constant 0 : i32
    %c8_i32 = arith.constant 8 : i32
    %27 = arith.muli %c0_i32, %c8_i32 : i32
    %28 = tpu.assume_multiple %27, 8 : i32
    %c0_35 = arith.constant 0 : index
    %c0_36 = arith.constant 0 : index
    %c0_37 = arith.constant 0 : index
    %29 = vector.load %arg9[%c0_35, %c0_36, %c0_37] : memref<2x8x128xf32, #tpu.memory_space<vmem>>, vector<1x8x128xf32>
    %30 = vector.shape_cast %29 : vector<1x8x128xf32> to vector<8x128xf32>
    %31 = arith.index_cast %28 : i32 to index
    %c0_38 = arith.constant 0 : index
    %32 = vector.load %arg10[%31, %c0_38] : memref<64x128xf32, #tpu.memory_space<vmem>>, vector<8x128xf32>
    %33 = arith.index_cast %28 : i32 to index
    %c0_39 = arith.constant 0 : index
    %34 = vector.load %arg11[%33, %c0_39] : memref<64x128xf32, #tpu.memory_space<vmem>>, vector<8x128xf32>
    %35 = arith.index_cast %28 : i32 to index
    %c0_40 = arith.constant 0 : index
    %36 = vector.load %arg12[%35, %c0_40] : memref<64x128xf32, #tpu.memory_space<vmem>>, vector<8x128xf32>
    %c0_41 = arith.constant 0 : index
    %c0_42 = arith.constant 0 : index
    %c0_43 = arith.constant 0 : index
    %c0_44 = arith.constant 0 : index
    %37 = vector.load %arg3[%c0_41, %c0_42, %c0_43, %c0_44] : memref<2x3x128x128xf32, #tpu.memory_space<vmem>>, vector<1x1x128x128xf32>
    %38 = vector.shape_cast %37 : vector<1x1x128x128xf32> to vector<128x128xf32>
    %cst_45 = arith.constant dense<0.000000e+00> : vector<8x128xf32>
    %39 = tpu.matmul %30, %38, %cst_45 {dimension_numbers = #tpu.dot_dimension_numbers<[1], [0], [0], [1], [0, 0, 1, 1], [], []>} : vector<8x128xf32>, vector<128x128xf32>, vector<8x128xf32> -> vector<8x128xf32>
    %c0_46 = arith.constant 0 : index
    %c0_47 = arith.constant 0 : index
    %c0_48 = arith.constant 0 : index
    %c0_49 = arith.constant 0 : index
    %40 = vector.load %arg5[%c0_46, %c0_47, %c0_48, %c0_49] : memref<2x3x1x128xf32, #tpu.memory_space<vmem>>, vector<1x1x1x128xf32>
    %41 = vector.shape_cast %40 : vector<1x1x1x128xf32> to vector<1x128xf32>
    %42 = vector.broadcast %41 : vector<1x128xf32> to vector<8x128xf32>
    %43 = arith.addf %39, %42 : vector<8x128xf32>
    %c0_50 = arith.constant 0 : index
    %c1_51 = arith.constant 1 : index
    %c0_52 = arith.constant 0 : index
    %c0_53 = arith.constant 0 : index
    %44 = vector.load %arg3[%c0_50, %c1_51, %c0_52, %c0_53] : memref<2x3x128x128xf32, #tpu.memory_space<vmem>>, vector<1x1x128x128xf32>
    %45 = vector.shape_cast %44 : vector<1x1x128x128xf32> to vector<128x128xf32>
    %cst_54 = arith.constant dense<0.000000e+00> : vector<8x128xf32>
    %46 = tpu.matmul %30, %45, %cst_54 {dimension_numbers = #tpu.dot_dimension_numbers<[1], [0], [0], [1], [0, 0, 1, 1], [], []>} : vector<8x128xf32>, vector<128x128xf32>, vector<8x128xf32> -> vector<8x128xf32>
    %c0_55 = arith.constant 0 : index
    %c1_56 = arith.constant 1 : index
    %c0_57 = arith.constant 0 : index
    %c0_58 = arith.constant 0 : index
    %47 = vector.load %arg5[%c0_55, %c1_56, %c0_57, %c0_58] : memref<2x3x1x128xf32, #tpu.memory_space<vmem>>, vector<1x1x1x128xf32>
    %48 = vector.shape_cast %47 : vector<1x1x1x128xf32> to vector<1x128xf32>
    %49 = vector.broadcast %48 : vector<1x128xf32> to vector<8x128xf32>
    %50 = arith.addf %46, %49 : vector<8x128xf32>
    %c0_59 = arith.constant 0 : index
    %c2_60 = arith.constant 2 : index
    %c0_61 = arith.constant 0 : index
    %c0_62 = arith.constant 0 : index
    %51 = vector.load %arg3[%c0_59, %c2_60, %c0_61, %c0_62] : memref<2x3x128x128xf32, #tpu.memory_space<vmem>>, vector<1x1x128x128xf32>
    %52 = vector.shape_cast %51 : vector<1x1x128x128xf32> to vector<128x128xf32>
    %cst_63 = arith.constant dense<0.000000e+00> : vector<8x128xf32>
    %53 = tpu.matmul %30, %52, %cst_63 {dimension_numbers = #tpu.dot_dimension_numbers<[1], [0], [0], [1], [0, 0, 1, 1], [], []>} : vector<8x128xf32>, vector<128x128xf32>, vector<8x128xf32> -> vector<8x128xf32>
    %c0_64 = arith.constant 0 : index
    %c2_65 = arith.constant 2 : index
    %c0_66 = arith.constant 0 : index
    %c0_67 = arith.constant 0 : index
    %54 = vector.load %arg5[%c0_64, %c2_65, %c0_66, %c0_67] : memref<2x3x1x128xf32, #tpu.memory_space<vmem>>, vector<1x1x1x128xf32>
    %55 = vector.shape_cast %54 : vector<1x1x1x128xf32> to vector<1x128xf32>
    %56 = vector.broadcast %55 : vector<1x128xf32> to vector<8x128xf32>
    %57 = arith.addf %53, %56 : vector<8x128xf32>
    %58 = arith.addf %32, %43 : vector<8x128xf32>
    %59 = arith.negf %58 : vector<8x128xf32>
    %60 = math.exp %59 : vector<8x128xf32>
    %cst_68 = arith.constant 1.000000e+00 : f32
    %61 = vector.broadcast %cst_68 : f32 to vector<8x128xf32>
    %62 = arith.addf %61, %60 : vector<8x128xf32>
    %63 = arith.divf %61, %62 : vector<8x128xf32>
    %64 = arith.addf %34, %50 : vector<8x128xf32>
    %65 = arith.negf %64 : vector<8x128xf32>
    %66 = math.exp %65 : vector<8x128xf32>
    %cst_69 = arith.constant 1.000000e+00 : f32
    %67 = vector.broadcast %cst_69 : f32 to vector<8x128xf32>
    %68 = arith.addf %67, %66 : vector<8x128xf32>
    %69 = arith.divf %67, %68 : vector<8x128xf32>
    %70 = arith.mulf %63, %57 : vector<8x128xf32>
    %71 = arith.addf %36, %70 : vector<8x128xf32>
    %72 = math.tanh %71 : vector<8x128xf32>
    %cst_70 = arith.constant 1.000000e+00 : f32
    %73 = vector.broadcast %cst_70 : f32 to vector<8x128xf32>
    %74 = arith.subf %73, %69 : vector<8x128xf32>
    %75 = arith.mulf %74, %72 : vector<8x128xf32>
    %76 = arith.mulf %69, %30 : vector<8x128xf32>
    %77 = arith.addf %75, %76 : vector<8x128xf32>
    %c0_71 = arith.constant 0 : index
    %c0_72 = arith.constant 0 : index
    %c0_73 = arith.constant 0 : index
    %78 = vector.load %arg9[%c0_71, %c0_72, %c0_73] : memref<2x8x128xf32, #tpu.memory_space<vmem>>, vector<1x8x128xf32>
    %79 = vector.shape_cast %78 : vector<1x8x128xf32> to vector<8x128xf32>
    %80 = vector.shape_cast %77 : vector<8x128xf32> to vector<1x8x128xf32>
    tpu.vector_store %arg9[%c0_71, %c0_72, %c0_73], %80 {strides = array<i32>} : memref<2x8x128xf32, #tpu.memory_space<vmem>>, vector<1x8x128xf32>,
    %c1_74 = arith.constant 1 : index
    %c0_75 = arith.constant 0 : index
    %c0_76 = arith.constant 0 : index
    %81 = vector.load %arg9[%c1_74, %c0_75, %c0_76] : memref<2x8x128xf32, #tpu.memory_space<vmem>>, vector<1x8x128xf32>
    %82 = vector.shape_cast %81 : vector<1x8x128xf32> to vector<8x128xf32>
    %c1_77 = arith.constant 1 : index
    %c0_78 = arith.constant 0 : index
    %c0_79 = arith.constant 0 : index
    %c0_80 = arith.constant 0 : index
    %83 = vector.load %arg2[%c1_77, %c0_78, %c0_79, %c0_80] : memref<2x3x128x128xf32, #tpu.memory_space<vmem>>, vector<1x1x128x128xf32>
    %84 = vector.shape_cast %83 : vector<1x1x128x128xf32> to vector<128x128xf32>
    %cst_81 = arith.constant dense<0.000000e+00> : vector<8x128xf32>
    %85 = tpu.matmul %77, %84, %cst_81 {dimension_numbers = #tpu.dot_dimension_numbers<[1], [0], [0], [1], [0, 0, 1, 1], [], []>} : vector<8x128xf32>, vector<128x128xf32>, vector<8x128xf32> -> vector<8x128xf32>
    %c1_82 = arith.constant 1 : index
    %c0_83 = arith.constant 0 : index
    %c0_84 = arith.constant 0 : index
    %c0_85 = arith.constant 0 : index
    %86 = vector.load %arg4[%c1_82, %c0_83, %c0_84, %c0_85] : memref<2x3x1x128xf32, #tpu.memory_space<vmem>>, vector<1x1x1x128xf32>
    %87 = vector.shape_cast %86 : vector<1x1x1x128xf32> to vector<1x128xf32>
    %88 = vector.broadcast %87 : vector<1x128xf32> to vector<8x128xf32>
    %89 = arith.addf %85, %88 : vector<8x128xf32>
    %c1_86 = arith.constant 1 : index
    %c1_87 = arith.constant 1 : index
    %c0_88 = arith.constant 0 : index
    %c0_89 = arith.constant 0 : index
    %90 = vector.load %arg2[%c1_86, %c1_87, %c0_88, %c0_89] : memref<2x3x128x128xf32, #tpu.memory_space<vmem>>, vector<1x1x128x128xf32>
    %91 = vector.shape_cast %90 : vector<1x1x128x128xf32> to vector<128x128xf32>
    %cst_90 = arith.constant dense<0.000000e+00> : vector<8x128xf32>
    %92 = tpu.matmul %77, %91, %cst_90 {dimension_numbers = #tpu.dot_dimension_numbers<[1], [0], [0], [1], [0, 0, 1, 1], [], []>} : vector<8x128xf32>, vector<128x128xf32>, vector<8x128xf32> -> vector<8x128xf32>
    %c1_91 = arith.constant 1 : index
    %c1_92 = arith.constant 1 : index
    %c0_93 = arith.constant 0 : index
    %c0_94 = arith.constant 0 : index
    %93 = vector.load %arg4[%c1_91, %c1_92, %c0_93, %c0_94] : memref<2x3x1x128xf32, #tpu.memory_space<vmem>>, vector<1x1x1x128xf32>
    %94 = vector.shape_cast %93 : vector<1x1x1x128xf32> to vector<1x128xf32>
    %95 = vector.broadcast %94 : vector<1x128xf32> to vector<8x128xf32>
    %96 = arith.addf %92, %95 : vector<8x128xf32>
    %c1_95 = arith.constant 1 : index
    %c2_96 = arith.constant 2 : index
    %c0_97 = arith.constant 0 : index
    %c0_98 = arith.constant 0 : index
    %97 = vector.load %arg2[%c1_95, %c2_96, %c0_97, %c0_98] : memref<2x3x128x128xf32, #tpu.memory_space<vmem>>, vector<1x1x128x128xf32>
    %98 = vector.shape_cast %97 : vector<1x1x128x128xf32> to vector<128x128xf32>
    %cst_99 = arith.constant dense<0.000000e+00> : vector<8x128xf32>
    %99 = tpu.matmul %77, %98, %cst_99 {dimension_numbers = #tpu.dot_dimension_numbers<[1], [0], [0], [1], [0, 0, 1, 1], [], []>} : vector<8x128xf32>, vector<128x128xf32>, vector<8x128xf32> -> vector<8x128xf32>
    %c1_100 = arith.constant 1 : index
    %c2_101 = arith.constant 2 : index
    %c0_102 = arith.constant 0 : index
    %c0_103 = arith.constant 0 : index
    %100 = vector.load %arg4[%c1_100, %c2_101, %c0_102, %c0_103] : memref<2x3x1x128xf32, #tpu.memory_space<vmem>>, vector<1x1x1x128xf32>
    %101 = vector.shape_cast %100 : vector<1x1x1x128xf32> to vector<1x128xf32>
    %102 = vector.broadcast %101 : vector<1x128xf32> to vector<8x128xf32>
    %103 = arith.addf %99, %102 : vector<8x128xf32>
    %c1_104 = arith.constant 1 : index
    %c0_105 = arith.constant 0 : index
    %c0_106 = arith.constant 0 : index
    %c0_107 = arith.constant 0 : index
    %104 = vector.load %arg3[%c1_104, %c0_105, %c0_106, %c0_107] : memref<2x3x128x128xf32, #tpu.memory_space<vmem>>, vector<1x1x128x128xf32>
    %105 = vector.shape_cast %104 : vector<1x1x128x128xf32> to vector<128x128xf32>
    %cst_108 = arith.constant dense<0.000000e+00> : vector<8x128xf32>
    %106 = tpu.matmul %82, %105, %cst_108 {dimension_numbers = #tpu.dot_dimension_numbers<[1], [0], [0], [1], [0, 0, 1, 1], [], []>} : vector<8x128xf32>, vector<128x128xf32>, vector<8x128xf32> -> vector<8x128xf32>
    %c1_109 = arith.constant 1 : index
    %c0_110 = arith.constant 0 : index
    %c0_111 = arith.constant 0 : index
    %c0_112 = arith.constant 0 : index
    %107 = vector.load %arg5[%c1_109, %c0_110, %c0_111, %c0_112] : memref<2x3x1x128xf32, #tpu.memory_space<vmem>>, vector<1x1x1x128xf32>
    %108 = vector.shape_cast %107 : vector<1x1x1x128xf32> to vector<1x128xf32>
    %109 = vector.broadcast %108 : vector<1x128xf32> to vector<8x128xf32>
    %110 = arith.addf %106, %109 : vector<8x128xf32>
    %c1_113 = arith.constant 1 : index
    %c1_114 = arith.constant 1 : index
    %c0_115 = arith.constant 0 : index
    %c0_116 = arith.constant 0 : index
    %111 = vector.load %arg3[%c1_113, %c1_114, %c0_115, %c0_116] : memref<2x3x128x128xf32, #tpu.memory_space<vmem>>, vector<1x1x128x128xf32>
    %112 = vector.shape_cast %111 : vector<1x1x128x128xf32> to vector<128x128xf32>
    %cst_117 = arith.constant dense<0.000000e+00> : vector<8x128xf32>
    %113 = tpu.matmul %82, %112, %cst_117 {dimension_numbers = #tpu.dot_dimension_numbers<[1], [0], [0], [1], [0, 0, 1, 1], [], []>} : vector<8x128xf32>, vector<128x128xf32>, vector<8x128xf32> -> vector<8x128xf32>
    %c1_118 = arith.constant 1 : index
    %c1_119 = arith.constant 1 : index
    %c0_120 = arith.constant 0 : index
    %c0_121 = arith.constant 0 : index
    %114 = vector.load %arg5[%c1_118, %c1_119, %c0_120, %c0_121] : memref<2x3x1x128xf32, #tpu.memory_space<vmem>>, vector<1x1x1x128xf32>
    %115 = vector.shape_cast %114 : vector<1x1x1x128xf32> to vector<1x128xf32>
    %116 = vector.broadcast %115 : vector<1x128xf32> to vector<8x128xf32>
    %117 = arith.addf %113, %116 : vector<8x128xf32>
    %c1_122 = arith.constant 1 : index
    %c2_123 = arith.constant 2 : index
    %c0_124 = arith.constant 0 : index
    %c0_125 = arith.constant 0 : index
    %118 = vector.load %arg3[%c1_122, %c2_123, %c0_124, %c0_125] : memref<2x3x128x128xf32, #tpu.memory_space<vmem>>, vector<1x1x128x128xf32>
    %119 = vector.shape_cast %118 : vector<1x1x128x128xf32> to vector<128x128xf32>
    %cst_126 = arith.constant dense<0.000000e+00> : vector<8x128xf32>
    %120 = tpu.matmul %82, %119, %cst_126 {dimension_numbers = #tpu.dot_dimension_numbers<[1], [0], [0], [1], [0, 0, 1, 1], [], []>} : vector<8x128xf32>, vector<128x128xf32>, vector<8x128xf32> -> vector<8x128xf32>
    %c1_127 = arith.constant 1 : index
    %c2_128 = arith.constant 2 : index
    %c0_129 = arith.constant 0 : index
    %c0_130 = arith.constant 0 : index
    %121 = vector.load %arg5[%c1_127, %c2_128, %c0_129, %c0_130] : memref<2x3x1x128xf32, #tpu.memory_space<vmem>>, vector<1x1x1x128xf32>
    %122 = vector.shape_cast %121 : vector<1x1x1x128xf32> to vector<1x128xf32>
    %123 = vector.broadcast %122 : vector<1x128xf32> to vector<8x128xf32>
    %124 = arith.addf %120, %123 : vector<8x128xf32>
    %125 = arith.addf %89, %110 : vector<8x128xf32>
    %126 = arith.negf %125 : vector<8x128xf32>
    %127 = math.exp %126 : vector<8x128xf32>
    %cst_131 = arith.constant 1.000000e+00 : f32
    %128 = vector.broadcast %cst_131 : f32 to vector<8x128xf32>
    %129 = arith.addf %128, %127 : vector<8x128xf32>
    %130 = arith.divf %128, %129 : vector<8x128xf32>
    %131 = arith.addf %96, %117 : vector<8x128xf32>
    %132 = arith.negf %131 : vector<8x128xf32>
    %133 = math.exp %132 : vector<8x128xf32>
    %cst_132 = arith.constant 1.000000e+00 : f32
    %134 = vector.broadcast %cst_132 : f32 to vector<8x128xf32>
    %135 = arith.addf %134, %133 : vector<8x128xf32>
    %136 = arith.divf %134, %135 : vector<8x128xf32>
    %137 = arith.mulf %130, %124 : vector<8x128xf32>
    %138 = arith.addf %103, %137 : vector<8x128xf32>
    %139 = math.tanh %138 : vector<8x128xf32>
    %cst_133 = arith.constant 1.000000e+00 : f32
    %140 = vector.broadcast %cst_133 : f32 to vector<8x128xf32>
    %141 = arith.subf %140, %136 : vector<8x128xf32>
    %142 = arith.mulf %141, %139 : vector<8x128xf32>
    %143 = arith.mulf %136, %82 : vector<8x128xf32>
    %144 = arith.addf %142, %143 : vector<8x128xf32>
    %c1_134 = arith.constant 1 : index
    %c0_135 = arith.constant 0 : index
    %c0_136 = arith.constant 0 : index
    %145 = vector.load %arg9[%c1_134, %c0_135, %c0_136] : memref<2x8x128xf32, #tpu.memory_space<vmem>>, vector<1x8x128xf32>
    %146 = vector.shape_cast %145 : vector<1x8x128xf32> to vector<8x128xf32>
    %147 = vector.shape_cast %144 : vector<8x128xf32> to vector<1x8x128xf32>
    tpu.vector_store %arg9[%c1_134, %c0_135, %c0_136], %147 {strides = array<i32>} : memref<2x8x128xf32, #tpu.memory_space<vmem>>, vector<1x8x128xf32>,
    %148 = arith.index_cast %28 : i32 to index
    %c0_137 = arith.constant 0 : index
    %149 = vector.load %arg13[%148, %c0_137] : memref<64x128xf32, #tpu.memory_space<vmem>>, vector<8x128xf32>
    tpu.vector_store %arg13[%148, %c0_137], %144 {strides = array<i32>} : memref<64x128xf32, #tpu.memory_space<vmem>>, vector<8x128xf32>,
    %c1_i32 = arith.constant 1 : i32
    %c8_i32_138 = arith.constant 8 : i32
    %150 = arith.muli %c1_i32, %c8_i32_138 : i32
    %151 = tpu.assume_multiple %150, 8 : i32
    %c0_139 = arith.constant 0 : index
    %c0_140 = arith.constant 0 : index
    %c0_141 = arith.constant 0 : index
    %152 = vector.load %arg9[%c0_139, %c0_140, %c0_141] : memref<2x8x128xf32, #tpu.memory_space<vmem>>, vector<1x8x128xf32>
    %153 = vector.shape_cast %152 : vector<1x8x128xf32> to vector<8x128xf32>
    %154 = arith.index_cast %151 : i32 to index
    %c0_142 = arith.constant 0 : index
    %155 = vector.load %arg10[%154, %c0_142] : memref<64x128xf32, #tpu.memory_space<vmem>>, vector<8x128xf32>
    %156 = arith.index_cast %151 : i32 to index
    %c0_143 = arith.constant 0 : index
    %157 = vector.load %arg11[%156, %c0_143] : memref<64x128xf32, #tpu.memory_space<vmem>>, vector<8x128xf32>
    %158 = arith.index_cast %151 : i32 to index
    %c0_144 = arith.constant 0 : index
    %159 = vector.load %arg12[%158, %c0_144] : memref<64x128xf32, #tpu.memory_space<vmem>>, vector<8x128xf32>
    %c0_145 = arith.constant 0 : index
    %c0_146 = arith.constant 0 : index
    %c0_147 = arith.constant 0 : index
    %c0_148 = arith.constant 0 : index
    %160 = vector.load %arg3[%c0_145, %c0_146, %c0_147, %c0_148] : memref<2x3x128x128xf32, #tpu.memory_space<vmem>>, vector<1x1x128x128xf32>
    %161 = vector.shape_cast %160 : vector<1x1x128x128xf32> to vector<128x128xf32>
    %cst_149 = arith.constant dense<0.000000e+00> : vector<8x128xf32>
    %162 = tpu.matmul %153, %161, %cst_149 {dimension_numbers = #tpu.dot_dimension_numbers<[1], [0], [0], [1], [0, 0, 1, 1], [], []>} : vector<8x128xf32>, vector<128x128xf32>, vector<8x128xf32> -> vector<8x128xf32>
    %c0_150 = arith.constant 0 : index
    %c0_151 = arith.constant 0 : index
    %c0_152 = arith.constant 0 : index
    %c0_153 = arith.constant 0 : index
    %163 = vector.load %arg5[%c0_150, %c0_151, %c0_152, %c0_153] : memref<2x3x1x128xf32, #tpu.memory_space<vmem>>, vector<1x1x1x128xf32>
    %164 = vector.shape_cast %163 : vector<1x1x1x128xf32> to vector<1x128xf32>
    %165 = vector.broadcast %164 : vector<1x128xf32> to vector<8x128xf32>
    %166 = arith.addf %162, %165 : vector<8x128xf32>
    %c0_154 = arith.constant 0 : index
    %c1_155 = arith.constant 1 : index
    %c0_156 = arith.constant 0 : index
    %c0_157 = arith.constant 0 : index
    %167 = vector.load %arg3[%c0_154, %c1_155, %c0_156, %c0_157] : memref<2x3x128x128xf32, #tpu.memory_space<vmem>>, vector<1x1x128x128xf32>
    %168 = vector.shape_cast %167 : vector<1x1x128x128xf32> to vector<128x128xf32>
    %cst_158 = arith.constant dense<0.000000e+00> : vector<8x128xf32>
    %169 = tpu.matmul %153, %168, %cst_158 {dimension_numbers = #tpu.dot_dimension_numbers<[1], [0], [0], [1], [0, 0, 1, 1], [], []>} : vector<8x128xf32>, vector<128x128xf32>, vector<8x128xf32> -> vector<8x128xf32>
    %c0_159 = arith.constant 0 : index
    %c1_160 = arith.constant 1 : index
    %c0_161 = arith.constant 0 : index
    %c0_162 = arith.constant 0 : index
    %170 = vector.load %arg5[%c0_159, %c1_160, %c0_161, %c0_162] : memref<2x3x1x128xf32, #tpu.memory_space<vmem>>, vector<1x1x1x128xf32>
    %171 = vector.shape_cast %170 : vector<1x1x1x128xf32> to vector<1x128xf32>
    %172 = vector.broadcast %171 : vector<1x128xf32> to vector<8x128xf32>
    %173 = arith.addf %169, %172 : vector<8x128xf32>
    %c0_163 = arith.constant 0 : index
    %c2_164 = arith.constant 2 : index
    %c0_165 = arith.constant 0 : index
    %c0_166 = arith.constant 0 : index
    %174 = vector.load %arg3[%c0_163, %c2_164, %c0_165, %c0_166] : memref<2x3x128x128xf32, #tpu.memory_space<vmem>>, vector<1x1x128x128xf32>
    %175 = vector.shape_cast %174 : vector<1x1x128x128xf32> to vector<128x128xf32>
    %cst_167 = arith.constant dense<0.000000e+00> : vector<8x128xf32>
    %176 = tpu.matmul %153, %175, %cst_167 {dimension_numbers = #tpu.dot_dimension_numbers<[1], [0], [0], [1], [0, 0, 1, 1], [], []>} : vector<8x128xf32>, vector<128x128xf32>, vector<8x128xf32> -> vector<8x128xf32>
    %c0_168 = arith.constant 0 : index
    %c2_169 = arith.constant 2 : index
    %c0_170 = arith.constant 0 : index
    %c0_171 = arith.constant 0 : index
    %177 = vector.load %arg5[%c0_168, %c2_169, %c0_170, %c0_171] : memref<2x3x1x128xf32, #tpu.memory_space<vmem>>, vector<1x1x1x128xf32>
    %178 = vector.shape_cast %177 : vector<1x1x1x128xf32> to vector<1x128xf32>
    %179 = vector.broadcast %178 : vector<1x128xf32> to vector<8x128xf32>
    %180 = arith.addf %176, %179 : vector<8x128xf32>
    %181 = arith.addf %155, %166 : vector<8x128xf32>
    %182 = arith.negf %181 : vector<8x128xf32>
    %183 = math.exp %182 : vector<8x128xf32>
    %cst_172 = arith.constant 1.000000e+00 : f32
    %184 = vector.broadcast %cst_172 : f32 to vector<8x128xf32>
    %185 = arith.addf %184, %183 : vector<8x128xf32>
    %186 = arith.divf %184, %185 : vector<8x128xf32>
    %187 = arith.addf %157, %173 : vector<8x128xf32>
    %188 = arith.negf %187 : vector<8x128xf32>
    %189 = math.exp %188 : vector<8x128xf32>
    %cst_173 = arith.constant 1.000000e+00 : f32
    %190 = vector.broadcast %cst_173 : f32 to vector<8x128xf32>
    %191 = arith.addf %190, %189 : vector<8x128xf32>
    %192 = arith.divf %190, %191 : vector<8x128xf32>
    %193 = arith.mulf %186, %180 : vector<8x128xf32>
    %194 = arith.addf %159, %193 : vector<8x128xf32>
    %195 = math.tanh %194 : vector<8x128xf32>
    %cst_174 = arith.constant 1.000000e+00 : f32
    %196 = vector.broadcast %cst_174 : f32 to vector<8x128xf32>
    %197 = arith.subf %196, %192 : vector<8x128xf32>
    %198 = arith.mulf %197, %195 : vector<8x128xf32>
    %199 = arith.mulf %192, %153 : vector<8x128xf32>
    %200 = arith.addf %198, %199 : vector<8x128xf32>
    %c0_175 = arith.constant 0 : index
    %c0_176 = arith.constant 0 : index
    %c0_177 = arith.constant 0 : index
    %201 = vector.load %arg9[%c0_175, %c0_176, %c0_177] : memref<2x8x128xf32, #tpu.memory_space<vmem>>, vector<1x8x128xf32>
    %202 = vector.shape_cast %201 : vector<1x8x128xf32> to vector<8x128xf32>
    %203 = vector.shape_cast %200 : vector<8x128xf32> to vector<1x8x128xf32>
    tpu.vector_store %arg9[%c0_175, %c0_176, %c0_177], %203 {strides = array<i32>} : memref<2x8x128xf32, #tpu.memory_space<vmem>>, vector<1x8x128xf32>,
    %c1_178 = arith.constant 1 : index
    %c0_179 = arith.constant 0 : index
    %c0_180 = arith.constant 0 : index
    %204 = vector.load %arg9[%c1_178, %c0_179, %c0_180] : memref<2x8x128xf32, #tpu.memory_space<vmem>>, vector<1x8x128xf32>
    %205 = vector.shape_cast %204 : vector<1x8x128xf32> to vector<8x128xf32>
    %c1_181 = arith.constant 1 : index
    %c0_182 = arith.constant 0 : index
    %c0_183 = arith.constant 0 : index
    %c0_184 = arith.constant 0 : index
    %206 = vector.load %arg2[%c1_181, %c0_182, %c0_183, %c0_184] : memref<2x3x128x128xf32, #tpu.memory_space<vmem>>, vector<1x1x128x128xf32>
    %207 = vector.shape_cast %206 : vector<1x1x128x128xf32> to vector<128x128xf32>
    %cst_185 = arith.constant dense<0.000000e+00> : vector<8x128xf32>
    %208 = tpu.matmul %200, %207, %cst_185 {dimension_numbers = #tpu.dot_dimension_numbers<[1], [0], [0], [1], [0, 0, 1, 1], [], []>} : vector<8x128xf32>, vector<128x128xf32>, vector<8x128xf32> -> vector<8x128xf32>
    %c1_186 = arith.constant 1 : index
    %c0_187 = arith.constant 0 : index
    %c0_188 = arith.constant 0 : index
    %c0_189 = arith.constant 0 : index
    %209 = vector.load %arg4[%c1_186, %c0_187, %c0_188, %c0_189] : memref<2x3x1x128xf32, #tpu.memory_space<vmem>>, vector<1x1x1x128xf32>
    %210 = vector.shape_cast %209 : vector<1x1x1x128xf32> to vector<1x128xf32>
    %211 = vector.broadcast %210 : vector<1x128xf32> to vector<8x128xf32>
    %212 = arith.addf %208, %211 : vector<8x128xf32>
    %c1_190 = arith.constant 1 : index
    %c1_191 = arith.constant 1 : index
    %c0_192 = arith.constant 0 : index
    %c0_193 = arith.constant 0 : index
    %213 = vector.load %arg2[%c1_190, %c1_191, %c0_192, %c0_193] : memref<2x3x128x128xf32, #tpu.memory_space<vmem>>, vector<1x1x128x128xf32>
    %214 = vector.shape_cast %213 : vector<1x1x128x128xf32> to vector<128x128xf32>
    %cst_194 = arith.constant dense<0.000000e+00> : vector<8x128xf32>
    %215 = tpu.matmul %200, %214, %cst_194 {dimension_numbers = #tpu.dot_dimension_numbers<[1], [0], [0], [1], [0, 0, 1, 1], [], []>} : vector<8x128xf32>, vector<128x128xf32>, vector<8x128xf32> -> vector<8x128xf32>
    %c1_195 = arith.constant 1 : index
    %c1_196 = arith.constant 1 : index
    %c0_197 = arith.constant 0 : index
    %c0_198 = arith.constant 0 : index
    %216 = vector.load %arg4[%c1_195, %c1_196, %c0_197, %c0_198] : memref<2x3x1x128xf32, #tpu.memory_space<vmem>>, vector<1x1x1x128xf32>
    %217 = vector.shape_cast %216 : vector<1x1x1x128xf32> to vector<1x128xf32>
    %218 = vector.broadcast %217 : vector<1x128xf32> to vector<8x128xf32>
    %219 = arith.addf %215, %218 : vector<8x128xf32>
    %c1_199 = arith.constant 1 : index
    %c2_200 = arith.constant 2 : index
    %c0_201 = arith.constant 0 : index
    %c0_202 = arith.constant 0 : index
    %220 = vector.load %arg2[%c1_199, %c2_200, %c0_201, %c0_202] : memref<2x3x128x128xf32, #tpu.memory_space<vmem>>, vector<1x1x128x128xf32>
    %221 = vector.shape_cast %220 : vector<1x1x128x128xf32> to vector<128x128xf32>
    %cst_203 = arith.constant dense<0.000000e+00> : vector<8x128xf32>
    %222 = tpu.matmul %200, %221, %cst_203 {dimension_numbers = #tpu.dot_dimension_numbers<[1], [0], [0], [1], [0, 0, 1, 1], [], []>} : vector<8x128xf32>, vector<128x128xf32>, vector<8x128xf32> -> vector<8x128xf32>
    %c1_204 = arith.constant 1 : index
    %c2_205 = arith.constant 2 : index
    %c0_206 = arith.constant 0 : index
    %c0_207 = arith.constant 0 : index
    %223 = vector.load %arg4[%c1_204, %c2_205, %c0_206, %c0_207] : memref<2x3x1x128xf32, #tpu.memory_space<vmem>>, vector<1x1x1x128xf32>
    %224 = vector.shape_cast %223 : vector<1x1x1x128xf32> to vector<1x128xf32>
    %225 = vector.broadcast %224 : vector<1x128xf32> to vector<8x128xf32>
    %226 = arith.addf %222, %225 : vector<8x128xf32>
    %c1_208 = arith.constant 1 : index
    %c0_209 = arith.constant 0 : index
    %c0_210 = arith.constant 0 : index
    %c0_211 = arith.constant 0 : index
    %227 = vector.load %arg3[%c1_208, %c0_209, %c0_210, %c0_211] : memref<2x3x128x128xf32, #tpu.memory_space<vmem>>, vector<1x1x128x128xf32>
    %228 = vector.shape_cast %227 : vector<1x1x128x128xf32> to vector<128x128xf32>
    %cst_212 = arith.constant dense<0.000000e+00> : vector<8x128xf32>
    %229 = tpu.matmul %205, %228, %cst_212 {dimension_numbers = #tpu.dot_dimension_numbers<[1], [0], [0], [1], [0, 0, 1, 1], [], []>} : vector<8x128xf32>, vector<128x128xf32>, vector<8x128xf32> -> vector<8x128xf32>
    %c1_213 = arith.constant 1 : index
    %c0_214 = arith.constant 0 : index
    %c0_215 = arith.constant 0 : index
    %c0_216 = arith.constant 0 : index
    %230 = vector.load %arg5[%c1_213, %c0_214, %c0_215, %c0_216] : memref<2x3x1x128xf32, #tpu.memory_space<vmem>>, vector<1x1x1x128xf32>
    %231 = vector.shape_cast %230 : vector<1x1x1x128xf32> to vector<1x128xf32>
    %232 = vector.broadcast %231 : vector<1x128xf32> to vector<8x128xf32>
    %233 = arith.addf %229, %232 : vector<8x128xf32>
    %c1_217 = arith.constant 1 : index
    %c1_218 = arith.constant 1 : index
    %c0_219 = arith.constant 0 : index
    %c0_220 = arith.constant 0 : index
    %234 = vector.load %arg3[%c1_217, %c1_218, %c0_219, %c0_220] : memref<2x3x128x128xf32, #tpu.memory_space<vmem>>, vector<1x1x128x128xf32>
    %235 = vector.shape_cast %234 : vector<1x1x128x128xf32> to vector<128x128xf32>
    %cst_221 = arith.constant dense<0.000000e+00> : vector<8x128xf32>
    %236 = tpu.matmul %205, %235, %cst_221 {dimension_numbers = #tpu.dot_dimension_numbers<[1], [0], [0], [1], [0, 0, 1, 1], [], []>} : vector<8x128xf32>, vector<128x128xf32>, vector<8x128xf32> -> vector<8x128xf32>
    %c1_222 = arith.constant 1 : index
    %c1_223 = arith.constant 1 : index
    %c0_224 = arith.constant 0 : index
    %c0_225 = arith.constant 0 : index
    %237 = vector.load %arg5[%c1_222, %c1_223, %c0_224, %c0_225] : memref<2x3x1x128xf32, #tpu.memory_space<vmem>>, vector<1x1x1x128xf32>
    %238 = vector.shape_cast %237 : vector<1x1x1x128xf32> to vector<1x128xf32>
    %239 = vector.broadcast %238 : vector<1x128xf32> to vector<8x128xf32>
    %240 = arith.addf %236, %239 : vector<8x128xf32>
    %c1_226 = arith.constant 1 : index
    %c2_227 = arith.constant 2 : index
    %c0_228 = arith.constant 0 : index
    %c0_229 = arith.constant 0 : index
    %241 = vector.load %arg3[%c1_226, %c2_227, %c0_228, %c0_229] : memref<2x3x128x128xf32, #tpu.memory_space<vmem>>, vector<1x1x128x128xf32>
    %242 = vector.shape_cast %241 : vector<1x1x128x128xf32> to vector<128x128xf32>
    %cst_230 = arith.constant dense<0.000000e+00> : vector<8x128xf32>
    %243 = tpu.matmul %205, %242, %cst_230 {dimension_numbers = #tpu.dot_dimension_numbers<[1], [0], [0], [1], [0, 0, 1, 1], [], []>} : vector<8x128xf32>, vector<128x128xf32>, vector<8x128xf32> -> vector<8x128xf32>
    %c1_231 = arith.constant 1 : index
    %c2_232 = arith.constant 2 : index
    %c0_233 = arith.constant 0 : index
    %c0_234 = arith.constant 0 : index
    %244 = vector.load %arg5[%c1_231, %c2_232, %c0_233, %c0_234] : memref<2x3x1x128xf32, #tpu.memory_space<vmem>>, vector<1x1x1x128xf32>
    %245 = vector.shape_cast %244 : vector<1x1x1x128xf32> to vector<1x128xf32>
    %246 = vector.broadcast %245 : vector<1x128xf32> to vector<8x128xf32>
    %247 = arith.addf %243, %246 : vector<8x128xf32>
    %248 = arith.addf %212, %233 : vector<8x128xf32>
    %249 = arith.negf %248 : vector<8x128xf32>
    %250 = math.exp %249 : vector<8x128xf32>
    %cst_235 = arith.constant 1.000000e+00 : f32
    %251 = vector.broadcast %cst_235 : f32 to vector<8x128xf32>
    %252 = arith.addf %251, %250 : vector<8x128xf32>
    %253 = arith.divf %251, %252 : vector<8x128xf32>
    %254 = arith.addf %219, %240 : vector<8x128xf32>
    %255 = arith.negf %254 : vector<8x128xf32>
    %256 = math.exp %255 : vector<8x128xf32>
    %cst_236 = arith.constant 1.000000e+00 : f32
    %257 = vector.broadcast %cst_236 : f32 to vector<8x128xf32>
    %258 = arith.addf %257, %256 : vector<8x128xf32>
    %259 = arith.divf %257, %258 : vector<8x128xf32>
    %260 = arith.mulf %253, %247 : vector<8x128xf32>
    %261 = arith.addf %226, %260 : vector<8x128xf32>
    %262 = math.tanh %261 : vector<8x128xf32>
    %cst_237 = arith.constant 1.000000e+00 : f32
    %263 = vector.broadcast %cst_237 : f32 to vector<8x128xf32>
    %264 = arith.subf %263, %259 : vector<8x128xf32>
    %265 = arith.mulf %264, %262 : vector<8x128xf32>
    %266 = arith.mulf %259, %205 : vector<8x128xf32>
    %267 = arith.addf %265, %266 : vector<8x128xf32>
    %c1_238 = arith.constant 1 : index
    %c0_239 = arith.constant 0 : index
    %c0_240 = arith.constant 0 : index
    %268 = vector.load %arg9[%c1_238, %c0_239, %c0_240] : memref<2x8x128xf32, #tpu.memory_space<vmem>>, vector<1x8x128xf32>
    %269 = vector.shape_cast %268 : vector<1x8x128xf32> to vector<8x128xf32>
    %270 = vector.shape_cast %267 : vector<8x128xf32> to vector<1x8x128xf32>
    tpu.vector_store %arg9[%c1_238, %c0_239, %c0_240], %270 {strides = array<i32>} : memref<2x8x128xf32, #tpu.memory_space<vmem>>, vector<1x8x128xf32>,
    %271 = arith.index_cast %151 : i32 to index
    %c0_241 = arith.constant 0 : index
    %272 = vector.load %arg13[%271, %c0_241] : memref<64x128xf32, #tpu.memory_space<vmem>>, vector<8x128xf32>
    tpu.vector_store %arg13[%271, %c0_241], %267 {strides = array<i32>} : memref<64x128xf32, #tpu.memory_space<vmem>>, vector<8x128xf32>,
    %c2_i32 = arith.constant 2 : i32
    %c8_i32_242 = arith.constant 8 : i32
    %273 = arith.muli %c2_i32, %c8_i32_242 : i32
    %274 = tpu.assume_multiple %273, 8 : i32
    %c0_243 = arith.constant 0 : index
    %c0_244 = arith.constant 0 : index
    %c0_245 = arith.constant 0 : index
    %275 = vector.load %arg9[%c0_243, %c0_244, %c0_245] : memref<2x8x128xf32, #tpu.memory_space<vmem>>, vector<1x8x128xf32>
    %276 = vector.shape_cast %275 : vector<1x8x128xf32> to vector<8x128xf32>
    %277 = arith.index_cast %274 : i32 to index
    %c0_246 = arith.constant 0 : index
    %278 = vector.load %arg10[%277, %c0_246] : memref<64x128xf32, #tpu.memory_space<vmem>>, vector<8x128xf32>
    %279 = arith.index_cast %274 : i32 to index
    %c0_247 = arith.constant 0 : index
    %280 = vector.load %arg11[%279, %c0_247] : memref<64x128xf32, #tpu.memory_space<vmem>>, vector<8x128xf32>
    %281 = arith.index_cast %274 : i32 to index
    %c0_248 = arith.constant 0 : index
    %282 = vector.load %arg12[%281, %c0_248] : memref<64x128xf32, #tpu.memory_space<vmem>>, vector<8x128xf32>
    %c0_249 = arith.constant 0 : index
    %c0_250 = arith.constant 0 : index
    %c0_251 = arith.constant 0 : index
    %c0_252 = arith.constant 0 : index
    %283 = vector.load %arg3[%c0_249, %c0_250, %c0_251, %c0_252] : memref<2x3x128x128xf32, #tpu.memory_space<vmem>>, vector<1x1x128x128xf32>
    %284 = vector.shape_cast %283 : vector<1x1x128x128xf32> to vector<128x128xf32>
    %cst_253 = arith.constant dense<0.000000e+00> : vector<8x128xf32>
    %285 = tpu.matmul %276, %284, %cst_253 {dimension_numbers = #tpu.dot_dimension_numbers<[1], [0], [0], [1], [0, 0, 1, 1], [], []>} : vector<8x128xf32>, vector<128x128xf32>, vector<8x128xf32> -> vector<8x128xf32>
    %c0_254 = arith.constant 0 : index
    %c0_255 = arith.constant 0 : index
    %c0_256 = arith.constant 0 : index
    %c0_257 = arith.constant 0 : index
    %286 = vector.load %arg5[%c0_254, %c0_255, %c0_256, %c0_257] : memref<2x3x1x128xf32, #tpu.memory_space<vmem>>, vector<1x1x1x128xf32>
    %287 = vector.shape_cast %286 : vector<1x1x1x128xf32> to vector<1x128xf32>
    %288 = vector.broadcast %287 : vector<1x128xf32> to vector<8x128xf32>
    %289 = arith.addf %285, %288 : vector<8x128xf32>
    %c0_258 = arith.constant 0 : index
    %c1_259 = arith.constant 1 : index
    %c0_260 = arith.constant 0 : index
    %c0_261 = arith.constant 0 : index
    %290 = vector.load %arg3[%c0_258, %c1_259, %c0_260, %c0_261] : memref<2x3x128x128xf32, #tpu.memory_space<vmem>>, vector<1x1x128x128xf32>
    %291 = vector.shape_cast %290 : vector<1x1x128x128xf32> to vector<128x128xf32>
    %cst_262 = arith.constant dense<0.000000e+00> : vector<8x128xf32>
    %292 = tpu.matmul %276, %291, %cst_262 {dimension_numbers = #tpu.dot_dimension_numbers<[1], [0], [0], [1], [0, 0, 1, 1], [], []>} : vector<8x128xf32>, vector<128x128xf32>, vector<8x128xf32> -> vector<8x128xf32>
    %c0_263 = arith.constant 0 : index
    %c1_264 = arith.constant 1 : index
    %c0_265 = arith.constant 0 : index
    %c0_266 = arith.constant 0 : index
    %293 = vector.load %arg5[%c0_263, %c1_264, %c0_265, %c0_266] : memref<2x3x1x128xf32, #tpu.memory_space<vmem>>, vector<1x1x1x128xf32>
    %294 = vector.shape_cast %293 : vector<1x1x1x128xf32> to vector<1x128xf32>
    %295 = vector.broadcast %294 : vector<1x128xf32> to vector<8x128xf32>
    %296 = arith.addf %292, %295 : vector<8x128xf32>
    %c0_267 = arith.constant 0 : index
    %c2_268 = arith.constant 2 : index
    %c0_269 = arith.constant 0 : index
    %c0_270 = arith.constant 0 : index
    %297 = vector.load %arg3[%c0_267, %c2_268, %c0_269, %c0_270] : memref<2x3x128x128xf32, #tpu.memory_space<vmem>>, vector<1x1x128x128xf32>
    %298 = vector.shape_cast %297 : vector<1x1x128x128xf32> to vector<128x128xf32>
    %cst_271 = arith.constant dense<0.000000e+00> : vector<8x128xf32>
    %299 = tpu.matmul %276, %298, %cst_271 {dimension_numbers = #tpu.dot_dimension_numbers<[1], [0], [0], [1], [0, 0, 1, 1], [], []>} : vector<8x128xf32>, vector<128x128xf32>, vector<8x128xf32> -> vector<8x128xf32>
    %c0_272 = arith.constant 0 : index
    %c2_273 = arith.constant 2 : index
    %c0_274 = arith.constant 0 : index
    %c0_275 = arith.constant 0 : index
    %300 = vector.load %arg5[%c0_272, %c2_273, %c0_274, %c0_275] : memref<2x3x1x128xf32, #tpu.memory_space<vmem>>, vector<1x1x1x128xf32>
    %301 = vector.shape_cast %300 : vector<1x1x1x128xf32> to vector<1x128xf32>
    %302 = vector.broadcast %301 : vector<1x128xf32> to vector<8x128xf32>
    %303 = arith.addf %299, %302 : vector<8x128xf32>
    %304 = arith.addf %278, %289 : vector<8x128xf32>
    %305 = arith.negf %304 : vector<8x128xf32>
    %306 = math.exp %305 : vector<8x128xf32>
    %cst_276 = arith.constant 1.000000e+00 : f32
    %307 = vector.broadcast %cst_276 : f32 to vector<8x128xf32>
    %308 = arith.addf %307, %306 : vector<8x128xf32>
    %309 = arith.divf %307, %308 : vector<8x128xf32>
    %310 = arith.addf %280, %296 : vector<8x128xf32>
    %311 = arith.negf %310 : vector<8x128xf32>
    %312 = math.exp %311 : vector<8x128xf32>
    %cst_277 = arith.constant 1.000000e+00 : f32
    %313 = vector.broadcast %cst_277 : f32 to vector<8x128xf32>
    %314 = arith.addf %313, %312 : vector<8x128xf32>
    %315 = arith.divf %313, %314 : vector<8x128xf32>
    %316 = arith.mulf %309, %303 : vector<8x128xf32>
    %317 = arith.addf %282, %316 : vector<8x128xf32>
    %318 = math.tanh %317 : vector<8x128xf32>
    %cst_278 = arith.constant 1.000000e+00 : f32
    %319 = vector.broadcast %cst_278 : f32 to vector<8x128xf32>
    %320 = arith.subf %319, %315 : vector<8x128xf32>
    %321 = arith.mulf %320, %318 : vector<8x128xf32>
    %322 = arith.mulf %315, %276 : vector<8x128xf32>
    %323 = arith.addf %321, %322 : vector<8x128xf32>
    %c0_279 = arith.constant 0 : index
    %c0_280 = arith.constant 0 : index
    %c0_281 = arith.constant 0 : index
    %324 = vector.load %arg9[%c0_279, %c0_280, %c0_281] : memref<2x8x128xf32, #tpu.memory_space<vmem>>, vector<1x8x128xf32>
    %325 = vector.shape_cast %324 : vector<1x8x128xf32> to vector<8x128xf32>
    %326 = vector.shape_cast %323 : vector<8x128xf32> to vector<1x8x128xf32>
    tpu.vector_store %arg9[%c0_279, %c0_280, %c0_281], %326 {strides = array<i32>} : memref<2x8x128xf32, #tpu.memory_space<vmem>>, vector<1x8x128xf32>,
    %c1_282 = arith.constant 1 : index
    %c0_283 = arith.constant 0 : index
    %c0_284 = arith.constant 0 : index
    %327 = vector.load %arg9[%c1_282, %c0_283, %c0_284] : memref<2x8x128xf32, #tpu.memory_space<vmem>>, vector<1x8x128xf32>
    %328 = vector.shape_cast %327 : vector<1x8x128xf32> to vector<8x128xf32>
    %c1_285 = arith.constant 1 : index
    %c0_286 = arith.constant 0 : index
    %c0_287 = arith.constant 0 : index
    %c0_288 = arith.constant 0 : index
    %329 = vector.load %arg2[%c1_285, %c0_286, %c0_287, %c0_288] : memref<2x3x128x128xf32, #tpu.memory_space<vmem>>, vector<1x1x128x128xf32>
    %330 = vector.shape_cast %329 : vector<1x1x128x128xf32> to vector<128x128xf32>
    %cst_289 = arith.constant dense<0.000000e+00> : vector<8x128xf32>
    %331 = tpu.matmul %323, %330, %cst_289 {dimension_numbers = #tpu.dot_dimension_numbers<[1], [0], [0], [1], [0, 0, 1, 1], [], []>} : vector<8x128xf32>, vector<128x128xf32>, vector<8x128xf32> -> vector<8x128xf32>
    %c1_290 = arith.constant 1 : index
    %c0_291 = arith.constant 0 : index
    %c0_292 = arith.constant 0 : index
    %c0_293 = arith.constant 0 : index
    %332 = vector.load %arg4[%c1_290, %c0_291, %c0_292, %c0_293] : memref<2x3x1x128xf32, #tpu.memory_space<vmem>>, vector<1x1x1x128xf32>
    %333 = vector.shape_cast %332 : vector<1x1x1x128xf32> to vector<1x128xf32>
    %334 = vector.broadcast %333 : vector<1x128xf32> to vector<8x128xf32>
    %335 = arith.addf %331, %334 : vector<8x128xf32>
    %c1_294 = arith.constant 1 : index
    %c1_295 = arith.constant 1 : index
    %c0_296 = arith.constant 0 : index
    %c0_297 = arith.constant 0 : index
    %336 = vector.load %arg2[%c1_294, %c1_295, %c0_296, %c0_297] : memref<2x3x128x128xf32, #tpu.memory_space<vmem>>, vector<1x1x128x128xf32>
    %337 = vector.shape_cast %336 : vector<1x1x128x128xf32> to vector<128x128xf32>
    %cst_298 = arith.constant dense<0.000000e+00> : vector<8x128xf32>
    %338 = tpu.matmul %323, %337, %cst_298 {dimension_numbers = #tpu.dot_dimension_numbers<[1], [0], [0], [1], [0, 0, 1, 1], [], []>} : vector<8x128xf32>, vector<128x128xf32>, vector<8x128xf32> -> vector<8x128xf32>
    %c1_299 = arith.constant 1 : index
    %c1_300 = arith.constant 1 : index
    %c0_301 = arith.constant 0 : index
    %c0_302 = arith.constant 0 : index
    %339 = vector.load %arg4[%c1_299, %c1_300, %c0_301, %c0_302] : memref<2x3x1x128xf32, #tpu.memory_space<vmem>>, vector<1x1x1x128xf32>
    %340 = vector.shape_cast %339 : vector<1x1x1x128xf32> to vector<1x128xf32>
    %341 = vector.broadcast %340 : vector<1x128xf32> to vector<8x128xf32>
    %342 = arith.addf %338, %341 : vector<8x128xf32>
    %c1_303 = arith.constant 1 : index
    %c2_304 = arith.constant 2 : index
    %c0_305 = arith.constant 0 : index
    %c0_306 = arith.constant 0 : index
    %343 = vector.load %arg2[%c1_303, %c2_304, %c0_305, %c0_306] : memref<2x3x128x128xf32, #tpu.memory_space<vmem>>, vector<1x1x128x128xf32>
    %344 = vector.shape_cast %343 : vector<1x1x128x128xf32> to vector<128x128xf32>
    %cst_307 = arith.constant dense<0.000000e+00> : vector<8x128xf32>
    %345 = tpu.matmul %323, %344, %cst_307 {dimension_numbers = #tpu.dot_dimension_numbers<[1], [0], [0], [1], [0, 0, 1, 1], [], []>} : vector<8x128xf32>, vector<128x128xf32>, vector<8x128xf32> -> vector<8x128xf32>
    %c1_308 = arith.constant 1 : index
    %c2_309 = arith.constant 2 : index
    %c0_310 = arith.constant 0 : index
    %c0_311 = arith.constant 0 : index
    %346 = vector.load %arg4[%c1_308, %c2_309, %c0_310, %c0_311] : memref<2x3x1x128xf32, #tpu.memory_space<vmem>>, vector<1x1x1x128xf32>
    %347 = vector.shape_cast %346 : vector<1x1x1x128xf32> to vector<1x128xf32>
    %348 = vector.broadcast %347 : vector<1x128xf32> to vector<8x128xf32>
    %349 = arith.addf %345, %348 : vector<8x128xf32>
    %c1_312 = arith.constant 1 : index
    %c0_313 = arith.constant 0 : index
    %c0_314 = arith.constant 0 : index
    %c0_315 = arith.constant 0 : index
    %350 = vector.load %arg3[%c1_312, %c0_313, %c0_314, %c0_315] : memref<2x3x128x128xf32, #tpu.memory_space<vmem>>, vector<1x1x128x128xf32>
    %351 = vector.shape_cast %350 : vector<1x1x128x128xf32> to vector<128x128xf32>
    %cst_316 = arith.constant dense<0.000000e+00> : vector<8x128xf32>
    %352 = tpu.matmul %328, %351, %cst_316 {dimension_numbers = #tpu.dot_dimension_numbers<[1], [0], [0], [1], [0, 0, 1, 1], [], []>} : vector<8x128xf32>, vector<128x128xf32>, vector<8x128xf32> -> vector<8x128xf32>
    %c1_317 = arith.constant 1 : index
    %c0_318 = arith.constant 0 : index
    %c0_319 = arith.constant 0 : index
    %c0_320 = arith.constant 0 : index
    %353 = vector.load %arg5[%c1_317, %c0_318, %c0_319, %c0_320] : memref<2x3x1x128xf32, #tpu.memory_space<vmem>>, vector<1x1x1x128xf32>
    %354 = vector.shape_cast %353 : vector<1x1x1x128xf32> to vector<1x128xf32>
    %355 = vector.broadcast %354 : vector<1x128xf32> to vector<8x128xf32>
    %356 = arith.addf %352, %355 : vector<8x128xf32>
    %c1_321 = arith.constant 1 : index
    %c1_322 = arith.constant 1 : index
    %c0_323 = arith.constant 0 : index
    %c0_324 = arith.constant 0 : index
    %357 = vector.load %arg3[%c1_321, %c1_322, %c0_323, %c0_324] : memref<2x3x128x128xf32, #tpu.memory_space<vmem>>, vector<1x1x128x128xf32>
    %358 = vector.shape_cast %357 : vector<1x1x128x128xf32> to vector<128x128xf32>
    %cst_325 = arith.constant dense<0.000000e+00> : vector<8x128xf32>
    %359 = tpu.matmul %328, %358, %cst_325 {dimension_numbers = #tpu.dot_dimension_numbers<[1], [0], [0], [1], [0, 0, 1, 1], [], []>} : vector<8x128xf32>, vector<128x128xf32>, vector<8x128xf32> -> vector<8x128xf32>
    %c1_326 = arith.constant 1 : index
    %c1_327 = arith.constant 1 : index
    %c0_328 = arith.constant 0 : index
    %c0_329 = arith.constant 0 : index
    %360 = vector.load %arg5[%c1_326, %c1_327, %c0_328, %c0_329] : memref<2x3x1x128xf32, #tpu.memory_space<vmem>>, vector<1x1x1x128xf32>
    %361 = vector.shape_cast %360 : vector<1x1x1x128xf32> to vector<1x128xf32>
    %362 = vector.broadcast %361 : vector<1x128xf32> to vector<8x128xf32>
    %363 = arith.addf %359, %362 : vector<8x128xf32>
    %c1_330 = arith.constant 1 : index
    %c2_331 = arith.constant 2 : index
    %c0_332 = arith.constant 0 : index
    %c0_333 = arith.constant 0 : index
    %364 = vector.load %arg3[%c1_330, %c2_331, %c0_332, %c0_333] : memref<2x3x128x128xf32, #tpu.memory_space<vmem>>, vector<1x1x128x128xf32>
    %365 = vector.shape_cast %364 : vector<1x1x128x128xf32> to vector<128x128xf32>
    %cst_334 = arith.constant dense<0.000000e+00> : vector<8x128xf32>
    %366 = tpu.matmul %328, %365, %cst_334 {dimension_numbers = #tpu.dot_dimension_numbers<[1], [0], [0], [1], [0, 0, 1, 1], [], []>} : vector<8x128xf32>, vector<128x128xf32>, vector<8x128xf32> -> vector<8x128xf32>
    %c1_335 = arith.constant 1 : index
    %c2_336 = arith.constant 2 : index
    %c0_337 = arith.constant 0 : index
    %c0_338 = arith.constant 0 : index
    %367 = vector.load %arg5[%c1_335, %c2_336, %c0_337, %c0_338] : memref<2x3x1x128xf32, #tpu.memory_space<vmem>>, vector<1x1x1x128xf32>
    %368 = vector.shape_cast %367 : vector<1x1x1x128xf32> to vector<1x128xf32>
    %369 = vector.broadcast %368 : vector<1x128xf32> to vector<8x128xf32>
    %370 = arith.addf %366, %369 : vector<8x128xf32>
    %371 = arith.addf %335, %356 : vector<8x128xf32>
    %372 = arith.negf %371 : vector<8x128xf32>
    %373 = math.exp %372 : vector<8x128xf32>
    %cst_339 = arith.constant 1.000000e+00 : f32
    %374 = vector.broadcast %cst_339 : f32 to vector<8x128xf32>
    %375 = arith.addf %374, %373 : vector<8x128xf32>
    %376 = arith.divf %374, %375 : vector<8x128xf32>
    %377 = arith.addf %342, %363 : vector<8x128xf32>
    %378 = arith.negf %377 : vector<8x128xf32>
    %379 = math.exp %378 : vector<8x128xf32>
    %cst_340 = arith.constant 1.000000e+00 : f32
    %380 = vector.broadcast %cst_340 : f32 to vector<8x128xf32>
    %381 = arith.addf %380, %379 : vector<8x128xf32>
    %382 = arith.divf %380, %381 : vector<8x128xf32>
    %383 = arith.mulf %376, %370 : vector<8x128xf32>
    %384 = arith.addf %349, %383 : vector<8x128xf32>
    %385 = math.tanh %384 : vector<8x128xf32>
    %cst_341 = arith.constant 1.000000e+00 : f32
    %386 = vector.broadcast %cst_341 : f32 to vector<8x128xf32>
    %387 = arith.subf %386, %382 : vector<8x128xf32>
    %388 = arith.mulf %387, %385 : vector<8x128xf32>
    %389 = arith.mulf %382, %328 : vector<8x128xf32>
    %390 = arith.addf %388, %389 : vector<8x128xf32>
    %c1_342 = arith.constant 1 : index
    %c0_343 = arith.constant 0 : index
    %c0_344 = arith.constant 0 : index
    %391 = vector.load %arg9[%c1_342, %c0_343, %c0_344] : memref<2x8x128xf32, #tpu.memory_space<vmem>>, vector<1x8x128xf32>
    %392 = vector.shape_cast %391 : vector<1x8x128xf32> to vector<8x128xf32>
    %393 = vector.shape_cast %390 : vector<8x128xf32> to vector<1x8x128xf32>
    tpu.vector_store %arg9[%c1_342, %c0_343, %c0_344], %393 {strides = array<i32>} : memref<2x8x128xf32, #tpu.memory_space<vmem>>, vector<1x8x128xf32>,
    %394 = arith.index_cast %274 : i32 to index
    %c0_345 = arith.constant 0 : index
    %395 = vector.load %arg13[%394, %c0_345] : memref<64x128xf32, #tpu.memory_space<vmem>>, vector<8x128xf32>
    tpu.vector_store %arg13[%394, %c0_345], %390 {strides = array<i32>} : memref<64x128xf32, #tpu.memory_space<vmem>>, vector<8x128xf32>,
    %c3_i32 = arith.constant 3 : i32
    %c8_i32_346 = arith.constant 8 : i32
    %396 = arith.muli %c3_i32, %c8_i32_346 : i32
    %397 = tpu.assume_multiple %396, 8 : i32
    %c0_347 = arith.constant 0 : index
    %c0_348 = arith.constant 0 : index
    %c0_349 = arith.constant 0 : index
    %398 = vector.load %arg9[%c0_347, %c0_348, %c0_349] : memref<2x8x128xf32, #tpu.memory_space<vmem>>, vector<1x8x128xf32>
    %399 = vector.shape_cast %398 : vector<1x8x128xf32> to vector<8x128xf32>
    %400 = arith.index_cast %397 : i32 to index
    %c0_350 = arith.constant 0 : index
    %401 = vector.load %arg10[%400, %c0_350] : memref<64x128xf32, #tpu.memory_space<vmem>>, vector<8x128xf32>
    %402 = arith.index_cast %397 : i32 to index
    %c0_351 = arith.constant 0 : index
    %403 = vector.load %arg11[%402, %c0_351] : memref<64x128xf32, #tpu.memory_space<vmem>>, vector<8x128xf32>
    %404 = arith.index_cast %397 : i32 to index
    %c0_352 = arith.constant 0 : index
    %405 = vector.load %arg12[%404, %c0_352] : memref<64x128xf32, #tpu.memory_space<vmem>>, vector<8x128xf32>
    %c0_353 = arith.constant 0 : index
    %c0_354 = arith.constant 0 : index
    %c0_355 = arith.constant 0 : index
    %c0_356 = arith.constant 0 : index
    %406 = vector.load %arg3[%c0_353, %c0_354, %c0_355, %c0_356] : memref<2x3x128x128xf32, #tpu.memory_space<vmem>>, vector<1x1x128x128xf32>
    %407 = vector.shape_cast %406 : vector<1x1x128x128xf32> to vector<128x128xf32>
    %cst_357 = arith.constant dense<0.000000e+00> : vector<8x128xf32>
    %408 = tpu.matmul %399, %407, %cst_357 {dimension_numbers = #tpu.dot_dimension_numbers<[1], [0], [0], [1], [0, 0, 1, 1], [], []>} : vector<8x128xf32>, vector<128x128xf32>, vector<8x128xf32> -> vector<8x128xf32>
    %c0_358 = arith.constant 0 : index
    %c0_359 = arith.constant 0 : index
    %c0_360 = arith.constant 0 : index
    %c0_361 = arith.constant 0 : index
    %409 = vector.load %arg5[%c0_358, %c0_359, %c0_360, %c0_361] : memref<2x3x1x128xf32, #tpu.memory_space<vmem>>, vector<1x1x1x128xf32>
    %410 = vector.shape_cast %409 : vector<1x1x1x128xf32> to vector<1x128xf32>
    %411 = vector.broadcast %410 : vector<1x128xf32> to vector<8x128xf32>
    %412 = arith.addf %408, %411 : vector<8x128xf32>
    %c0_362 = arith.constant 0 : index
    %c1_363 = arith.constant 1 : index
    %c0_364 = arith.constant 0 : index
    %c0_365 = arith.constant 0 : index
    %413 = vector.load %arg3[%c0_362, %c1_363, %c0_364, %c0_365] : memref<2x3x128x128xf32, #tpu.memory_space<vmem>>, vector<1x1x128x128xf32>
    %414 = vector.shape_cast %413 : vector<1x1x128x128xf32> to vector<128x128xf32>
    %cst_366 = arith.constant dense<0.000000e+00> : vector<8x128xf32>
    %415 = tpu.matmul %399, %414, %cst_366 {dimension_numbers = #tpu.dot_dimension_numbers<[1], [0], [0], [1], [0, 0, 1, 1], [], []>} : vector<8x128xf32>, vector<128x128xf32>, vector<8x128xf32> -> vector<8x128xf32>
    %c0_367 = arith.constant 0 : index
    %c1_368 = arith.constant 1 : index
    %c0_369 = arith.constant 0 : index
    %c0_370 = arith.constant 0 : index
    %416 = vector.load %arg5[%c0_367, %c1_368, %c0_369, %c0_370] : memref<2x3x1x128xf32, #tpu.memory_space<vmem>>, vector<1x1x1x128xf32>
    %417 = vector.shape_cast %416 : vector<1x1x1x128xf32> to vector<1x128xf32>
    %418 = vector.broadcast %417 : vector<1x128xf32> to vector<8x128xf32>
    %419 = arith.addf %415, %418 : vector<8x128xf32>
    %c0_371 = arith.constant 0 : index
    %c2_372 = arith.constant 2 : index
    %c0_373 = arith.constant 0 : index
    %c0_374 = arith.constant 0 : index
    %420 = vector.load %arg3[%c0_371, %c2_372, %c0_373, %c0_374] : memref<2x3x128x128xf32, #tpu.memory_space<vmem>>, vector<1x1x128x128xf32>
    %421 = vector.shape_cast %420 : vector<1x1x128x128xf32> to vector<128x128xf32>
    %cst_375 = arith.constant dense<0.000000e+00> : vector<8x128xf32>
    %422 = tpu.matmul %399, %421, %cst_375 {dimension_numbers = #tpu.dot_dimension_numbers<[1], [0], [0], [1], [0, 0, 1, 1], [], []>} : vector<8x128xf32>, vector<128x128xf32>, vector<8x128xf32> -> vector<8x128xf32>
    %c0_376 = arith.constant 0 : index
    %c2_377 = arith.constant 2 : index
    %c0_378 = arith.constant 0 : index
    %c0_379 = arith.constant 0 : index
    %423 = vector.load %arg5[%c0_376, %c2_377, %c0_378, %c0_379] : memref<2x3x1x128xf32, #tpu.memory_space<vmem>>, vector<1x1x1x128xf32>
    %424 = vector.shape_cast %423 : vector<1x1x1x128xf32> to vector<1x128xf32>
    %425 = vector.broadcast %424 : vector<1x128xf32> to vector<8x128xf32>
    %426 = arith.addf %422, %425 : vector<8x128xf32>
    %427 = arith.addf %401, %412 : vector<8x128xf32>
    %428 = arith.negf %427 : vector<8x128xf32>
    %429 = math.exp %428 : vector<8x128xf32>
    %cst_380 = arith.constant 1.000000e+00 : f32
    %430 = vector.broadcast %cst_380 : f32 to vector<8x128xf32>
    %431 = arith.addf %430, %429 : vector<8x128xf32>
    %432 = arith.divf %430, %431 : vector<8x128xf32>
    %433 = arith.addf %403, %419 : vector<8x128xf32>
    %434 = arith.negf %433 : vector<8x128xf32>
    %435 = math.exp %434 : vector<8x128xf32>
    %cst_381 = arith.constant 1.000000e+00 : f32
    %436 = vector.broadcast %cst_381 : f32 to vector<8x128xf32>
    %437 = arith.addf %436, %435 : vector<8x128xf32>
    %438 = arith.divf %436, %437 : vector<8x128xf32>
    %439 = arith.mulf %432, %426 : vector<8x128xf32>
    %440 = arith.addf %405, %439 : vector<8x128xf32>
    %441 = math.tanh %440 : vector<8x128xf32>
    %cst_382 = arith.constant 1.000000e+00 : f32
    %442 = vector.broadcast %cst_382 : f32 to vector<8x128xf32>
    %443 = arith.subf %442, %438 : vector<8x128xf32>
    %444 = arith.mulf %443, %441 : vector<8x128xf32>
    %445 = arith.mulf %438, %399 : vector<8x128xf32>
    %446 = arith.addf %444, %445 : vector<8x128xf32>
    %c0_383 = arith.constant 0 : index
    %c0_384 = arith.constant 0 : index
    %c0_385 = arith.constant 0 : index
    %447 = vector.load %arg9[%c0_383, %c0_384, %c0_385] : memref<2x8x128xf32, #tpu.memory_space<vmem>>, vector<1x8x128xf32>
    %448 = vector.shape_cast %447 : vector<1x8x128xf32> to vector<8x128xf32>
    %449 = vector.shape_cast %446 : vector<8x128xf32> to vector<1x8x128xf32>
    tpu.vector_store %arg9[%c0_383, %c0_384, %c0_385], %449 {strides = array<i32>} : memref<2x8x128xf32, #tpu.memory_space<vmem>>, vector<1x8x128xf32>,
    %c1_386 = arith.constant 1 : index
    %c0_387 = arith.constant 0 : index
    %c0_388 = arith.constant 0 : index
    %450 = vector.load %arg9[%c1_386, %c0_387, %c0_388] : memref<2x8x128xf32, #tpu.memory_space<vmem>>, vector<1x8x128xf32>
    %451 = vector.shape_cast %450 : vector<1x8x128xf32> to vector<8x128xf32>
    %c1_389 = arith.constant 1 : index
    %c0_390 = arith.constant 0 : index
    %c0_391 = arith.constant 0 : index
    %c0_392 = arith.constant 0 : index
    %452 = vector.load %arg2[%c1_389, %c0_390, %c0_391, %c0_392] : memref<2x3x128x128xf32, #tpu.memory_space<vmem>>, vector<1x1x128x128xf32>
    %453 = vector.shape_cast %452 : vector<1x1x128x128xf32> to vector<128x128xf32>
    %cst_393 = arith.constant dense<0.000000e+00> : vector<8x128xf32>
    %454 = tpu.matmul %446, %453, %cst_393 {dimension_numbers = #tpu.dot_dimension_numbers<[1], [0], [0], [1], [0, 0, 1, 1], [], []>} : vector<8x128xf32>, vector<128x128xf32>, vector<8x128xf32> -> vector<8x128xf32>
    %c1_394 = arith.constant 1 : index
    %c0_395 = arith.constant 0 : index
    %c0_396 = arith.constant 0 : index
    %c0_397 = arith.constant 0 : index
    %455 = vector.load %arg4[%c1_394, %c0_395, %c0_396, %c0_397] : memref<2x3x1x128xf32, #tpu.memory_space<vmem>>, vector<1x1x1x128xf32>
    %456 = vector.shape_cast %455 : vector<1x1x1x128xf32> to vector<1x128xf32>
    %457 = vector.broadcast %456 : vector<1x128xf32> to vector<8x128xf32>
    %458 = arith.addf %454, %457 : vector<8x128xf32>
    %c1_398 = arith.constant 1 : index
    %c1_399 = arith.constant 1 : index
    %c0_400 = arith.constant 0 : index
    %c0_401 = arith.constant 0 : index
    %459 = vector.load %arg2[%c1_398, %c1_399, %c0_400, %c0_401] : memref<2x3x128x128xf32, #tpu.memory_space<vmem>>, vector<1x1x128x128xf32>
    %460 = vector.shape_cast %459 : vector<1x1x128x128xf32> to vector<128x128xf32>
    %cst_402 = arith.constant dense<0.000000e+00> : vector<8x128xf32>
    %461 = tpu.matmul %446, %460, %cst_402 {dimension_numbers = #tpu.dot_dimension_numbers<[1], [0], [0], [1], [0, 0, 1, 1], [], []>} : vector<8x128xf32>, vector<128x128xf32>, vector<8x128xf32> -> vector<8x128xf32>
    %c1_403 = arith.constant 1 : index
    %c1_404 = arith.constant 1 : index
    %c0_405 = arith.constant 0 : index
    %c0_406 = arith.constant 0 : index
    %462 = vector.load %arg4[%c1_403, %c1_404, %c0_405, %c0_406] : memref<2x3x1x128xf32, #tpu.memory_space<vmem>>, vector<1x1x1x128xf32>
    %463 = vector.shape_cast %462 : vector<1x1x1x128xf32> to vector<1x128xf32>
    %464 = vector.broadcast %463 : vector<1x128xf32> to vector<8x128xf32>
    %465 = arith.addf %461, %464 : vector<8x128xf32>
    %c1_407 = arith.constant 1 : index
    %c2_408 = arith.constant 2 : index
    %c0_409 = arith.constant 0 : index
    %c0_410 = arith.constant 0 : index
    %466 = vector.load %arg2[%c1_407, %c2_408, %c0_409, %c0_410] : memref<2x3x128x128xf32, #tpu.memory_space<vmem>>, vector<1x1x128x128xf32>
    %467 = vector.shape_cast %466 : vector<1x1x128x128xf32> to vector<128x128xf32>
    %cst_411 = arith.constant dense<0.000000e+00> : vector<8x128xf32>
    %468 = tpu.matmul %446, %467, %cst_411 {dimension_numbers = #tpu.dot_dimension_numbers<[1], [0], [0], [1], [0, 0, 1, 1], [], []>} : vector<8x128xf32>, vector<128x128xf32>, vector<8x128xf32> -> vector<8x128xf32>
    %c1_412 = arith.constant 1 : index
    %c2_413 = arith.constant 2 : index
    %c0_414 = arith.constant 0 : index
    %c0_415 = arith.constant 0 : index
    %469 = vector.load %arg4[%c1_412, %c2_413, %c0_414, %c0_415] : memref<2x3x1x128xf32, #tpu.memory_space<vmem>>, vector<1x1x1x128xf32>
    %470 = vector.shape_cast %469 : vector<1x1x1x128xf32> to vector<1x128xf32>
    %471 = vector.broadcast %470 : vector<1x128xf32> to vector<8x128xf32>
    %472 = arith.addf %468, %471 : vector<8x128xf32>
    %c1_416 = arith.constant 1 : index
    %c0_417 = arith.constant 0 : index
    %c0_418 = arith.constant 0 : index
    %c0_419 = arith.constant 0 : index
    %473 = vector.load %arg3[%c1_416, %c0_417, %c0_418, %c0_419] : memref<2x3x128x128xf32, #tpu.memory_space<vmem>>, vector<1x1x128x128xf32>
    %474 = vector.shape_cast %473 : vector<1x1x128x128xf32> to vector<128x128xf32>
    %cst_420 = arith.constant dense<0.000000e+00> : vector<8x128xf32>
    %475 = tpu.matmul %451, %474, %cst_420 {dimension_numbers = #tpu.dot_dimension_numbers<[1], [0], [0], [1], [0, 0, 1, 1], [], []>} : vector<8x128xf32>, vector<128x128xf32>, vector<8x128xf32> -> vector<8x128xf32>
    %c1_421 = arith.constant 1 : index
    %c0_422 = arith.constant 0 : index
    %c0_423 = arith.constant 0 : index
    %c0_424 = arith.constant 0 : index
    %476 = vector.load %arg5[%c1_421, %c0_422, %c0_423, %c0_424] : memref<2x3x1x128xf32, #tpu.memory_space<vmem>>, vector<1x1x1x128xf32>
    %477 = vector.shape_cast %476 : vector<1x1x1x128xf32> to vector<1x128xf32>
    %478 = vector.broadcast %477 : vector<1x128xf32> to vector<8x128xf32>
    %479 = arith.addf %475, %478 : vector<8x128xf32>
    %c1_425 = arith.constant 1 : index
    %c1_426 = arith.constant 1 : index
    %c0_427 = arith.constant 0 : index
    %c0_428 = arith.constant 0 : index
    %480 = vector.load %arg3[%c1_425, %c1_426, %c0_427, %c0_428] : memref<2x3x128x128xf32, #tpu.memory_space<vmem>>, vector<1x1x128x128xf32>
    %481 = vector.shape_cast %480 : vector<1x1x128x128xf32> to vector<128x128xf32>
    %cst_429 = arith.constant dense<0.000000e+00> : vector<8x128xf32>
    %482 = tpu.matmul %451, %481, %cst_429 {dimension_numbers = #tpu.dot_dimension_numbers<[1], [0], [0], [1], [0, 0, 1, 1], [], []>} : vector<8x128xf32>, vector<128x128xf32>, vector<8x128xf32> -> vector<8x128xf32>
    %c1_430 = arith.constant 1 : index
    %c1_431 = arith.constant 1 : index
    %c0_432 = arith.constant 0 : index
    %c0_433 = arith.constant 0 : index
    %483 = vector.load %arg5[%c1_430, %c1_431, %c0_432, %c0_433] : memref<2x3x1x128xf32, #tpu.memory_space<vmem>>, vector<1x1x1x128xf32>
    %484 = vector.shape_cast %483 : vector<1x1x1x128xf32> to vector<1x128xf32>
    %485 = vector.broadcast %484 : vector<1x128xf32> to vector<8x128xf32>
    %486 = arith.addf %482, %485 : vector<8x128xf32>
    %c1_434 = arith.constant 1 : index
    %c2_435 = arith.constant 2 : index
    %c0_436 = arith.constant 0 : index
    %c0_437 = arith.constant 0 : index
    %487 = vector.load %arg3[%c1_434, %c2_435, %c0_436, %c0_437] : memref<2x3x128x128xf32, #tpu.memory_space<vmem>>, vector<1x1x128x128xf32>
    %488 = vector.shape_cast %487 : vector<1x1x128x128xf32> to vector<128x128xf32>
    %cst_438 = arith.constant dense<0.000000e+00> : vector<8x128xf32>
    %489 = tpu.matmul %451, %488, %cst_438 {dimension_numbers = #tpu.dot_dimension_numbers<[1], [0], [0], [1], [0, 0, 1, 1], [], []>} : vector<8x128xf32>, vector<128x128xf32>, vector<8x128xf32> -> vector<8x128xf32>
    %c1_439 = arith.constant 1 : index
    %c2_440 = arith.constant 2 : index
    %c0_441 = arith.constant 0 : index
    %c0_442 = arith.constant 0 : index
    %490 = vector.load %arg5[%c1_439, %c2_440, %c0_441, %c0_442] : memref<2x3x1x128xf32, #tpu.memory_space<vmem>>, vector<1x1x1x128xf32>
    %491 = vector.shape_cast %490 : vector<1x1x1x128xf32> to vector<1x128xf32>
    %492 = vector.broadcast %491 : vector<1x128xf32> to vector<8x128xf32>
    %493 = arith.addf %489, %492 : vector<8x128xf32>
    %494 = arith.addf %458, %479 : vector<8x128xf32>
    %495 = arith.negf %494 : vector<8x128xf32>
    %496 = math.exp %495 : vector<8x128xf32>
    %cst_443 = arith.constant 1.000000e+00 : f32
    %497 = vector.broadcast %cst_443 : f32 to vector<8x128xf32>
    %498 = arith.addf %497, %496 : vector<8x128xf32>
    %499 = arith.divf %497, %498 : vector<8x128xf32>
    %500 = arith.addf %465, %486 : vector<8x128xf32>
    %501 = arith.negf %500 : vector<8x128xf32>
    %502 = math.exp %501 : vector<8x128xf32>
    %cst_444 = arith.constant 1.000000e+00 : f32
    %503 = vector.broadcast %cst_444 : f32 to vector<8x128xf32>
    %504 = arith.addf %503, %502 : vector<8x128xf32>
    %505 = arith.divf %503, %504 : vector<8x128xf32>
    %506 = arith.mulf %499, %493 : vector<8x128xf32>
    %507 = arith.addf %472, %506 : vector<8x128xf32>
    %508 = math.tanh %507 : vector<8x128xf32>
    %cst_445 = arith.constant 1.000000e+00 : f32
    %509 = vector.broadcast %cst_445 : f32 to vector<8x128xf32>
    %510 = arith.subf %509, %505 : vector<8x128xf32>
    %511 = arith.mulf %510, %508 : vector<8x128xf32>
    %512 = arith.mulf %505, %451 : vector<8x128xf32>
    %513 = arith.addf %511, %512 : vector<8x128xf32>
    %c1_446 = arith.constant 1 : index
    %c0_447 = arith.constant 0 : index
    %c0_448 = arith.constant 0 : index
    %514 = vector.load %arg9[%c1_446, %c0_447, %c0_448] : memref<2x8x128xf32, #tpu.memory_space<vmem>>, vector<1x8x128xf32>
    %515 = vector.shape_cast %514 : vector<1x8x128xf32> to vector<8x128xf32>
    %516 = vector.shape_cast %513 : vector<8x128xf32> to vector<1x8x128xf32>
    tpu.vector_store %arg9[%c1_446, %c0_447, %c0_448], %516 {strides = array<i32>} : memref<2x8x128xf32, #tpu.memory_space<vmem>>, vector<1x8x128xf32>,
    %517 = arith.index_cast %397 : i32 to index
    %c0_449 = arith.constant 0 : index
    %518 = vector.load %arg13[%517, %c0_449] : memref<64x128xf32, #tpu.memory_space<vmem>>, vector<8x128xf32>
    tpu.vector_store %arg13[%517, %c0_449], %513 {strides = array<i32>} : memref<64x128xf32, #tpu.memory_space<vmem>>, vector<8x128xf32>,
    %c4_i32 = arith.constant 4 : i32
    %c8_i32_450 = arith.constant 8 : i32
    %519 = arith.muli %c4_i32, %c8_i32_450 : i32
    %520 = tpu.assume_multiple %519, 8 : i32
    %c0_451 = arith.constant 0 : index
    %c0_452 = arith.constant 0 : index
    %c0_453 = arith.constant 0 : index
    %521 = vector.load %arg9[%c0_451, %c0_452, %c0_453] : memref<2x8x128xf32, #tpu.memory_space<vmem>>, vector<1x8x128xf32>
    %522 = vector.shape_cast %521 : vector<1x8x128xf32> to vector<8x128xf32>
    %523 = arith.index_cast %520 : i32 to index
    %c0_454 = arith.constant 0 : index
    %524 = vector.load %arg10[%523, %c0_454] : memref<64x128xf32, #tpu.memory_space<vmem>>, vector<8x128xf32>
    %525 = arith.index_cast %520 : i32 to index
    %c0_455 = arith.constant 0 : index
    %526 = vector.load %arg11[%525, %c0_455] : memref<64x128xf32, #tpu.memory_space<vmem>>, vector<8x128xf32>
    %527 = arith.index_cast %520 : i32 to index
    %c0_456 = arith.constant 0 : index
    %528 = vector.load %arg12[%527, %c0_456] : memref<64x128xf32, #tpu.memory_space<vmem>>, vector<8x128xf32>
    %c0_457 = arith.constant 0 : index
    %c0_458 = arith.constant 0 : index
    %c0_459 = arith.constant 0 : index
    %c0_460 = arith.constant 0 : index
    %529 = vector.load %arg3[%c0_457, %c0_458, %c0_459, %c0_460] : memref<2x3x128x128xf32, #tpu.memory_space<vmem>>, vector<1x1x128x128xf32>
    %530 = vector.shape_cast %529 : vector<1x1x128x128xf32> to vector<128x128xf32>
    %cst_461 = arith.constant dense<0.000000e+00> : vector<8x128xf32>
    %531 = tpu.matmul %522, %530, %cst_461 {dimension_numbers = #tpu.dot_dimension_numbers<[1], [0], [0], [1], [0, 0, 1, 1], [], []>} : vector<8x128xf32>, vector<128x128xf32>, vector<8x128xf32> -> vector<8x128xf32>
    %c0_462 = arith.constant 0 : index
    %c0_463 = arith.constant 0 : index
    %c0_464 = arith.constant 0 : index
    %c0_465 = arith.constant 0 : index
    %532 = vector.load %arg5[%c0_462, %c0_463, %c0_464, %c0_465] : memref<2x3x1x128xf32, #tpu.memory_space<vmem>>, vector<1x1x1x128xf32>
    %533 = vector.shape_cast %532 : vector<1x1x1x128xf32> to vector<1x128xf32>
    %534 = vector.broadcast %533 : vector<1x128xf32> to vector<8x128xf32>
    %535 = arith.addf %531, %534 : vector<8x128xf32>
    %c0_466 = arith.constant 0 : index
    %c1_467 = arith.constant 1 : index
    %c0_468 = arith.constant 0 : index
    %c0_469 = arith.constant 0 : index
    %536 = vector.load %arg3[%c0_466, %c1_467, %c0_468, %c0_469] : memref<2x3x128x128xf32, #tpu.memory_space<vmem>>, vector<1x1x128x128xf32>
    %537 = vector.shape_cast %536 : vector<1x1x128x128xf32> to vector<128x128xf32>
    %cst_470 = arith.constant dense<0.000000e+00> : vector<8x128xf32>
    %538 = tpu.matmul %522, %537, %cst_470 {dimension_numbers = #tpu.dot_dimension_numbers<[1], [0], [0], [1], [0, 0, 1, 1], [], []>} : vector<8x128xf32>, vector<128x128xf32>, vector<8x128xf32> -> vector<8x128xf32>
    %c0_471 = arith.constant 0 : index
    %c1_472 = arith.constant 1 : index
    %c0_473 = arith.constant 0 : index
    %c0_474 = arith.constant 0 : index
    %539 = vector.load %arg5[%c0_471, %c1_472, %c0_473, %c0_474] : memref<2x3x1x128xf32, #tpu.memory_space<vmem>>, vector<1x1x1x128xf32>
    %540 = vector.shape_cast %539 : vector<1x1x1x128xf32> to vector<1x128xf32>
    %541 = vector.broadcast %540 : vector<1x128xf32> to vector<8x128xf32>
    %542 = arith.addf %538, %541 : vector<8x128xf32>
    %c0_475 = arith.constant 0 : index
    %c2_476 = arith.constant 2 : index
    %c0_477 = arith.constant 0 : index
    %c0_478 = arith.constant 0 : index
    %543 = vector.load %arg3[%c0_475, %c2_476, %c0_477, %c0_478] : memref<2x3x128x128xf32, #tpu.memory_space<vmem>>, vector<1x1x128x128xf32>
    %544 = vector.shape_cast %543 : vector<1x1x128x128xf32> to vector<128x128xf32>
    %cst_479 = arith.constant dense<0.000000e+00> : vector<8x128xf32>
    %545 = tpu.matmul %522, %544, %cst_479 {dimension_numbers = #tpu.dot_dimension_numbers<[1], [0], [0], [1], [0, 0, 1, 1], [], []>} : vector<8x128xf32>, vector<128x128xf32>, vector<8x128xf32> -> vector<8x128xf32>
    %c0_480 = arith.constant 0 : index
    %c2_481 = arith.constant 2 : index
    %c0_482 = arith.constant 0 : index
    %c0_483 = arith.constant 0 : index
    %546 = vector.load %arg5[%c0_480, %c2_481, %c0_482, %c0_483] : memref<2x3x1x128xf32, #tpu.memory_space<vmem>>, vector<1x1x1x128xf32>
    %547 = vector.shape_cast %546 : vector<1x1x1x128xf32> to vector<1x128xf32>
    %548 = vector.broadcast %547 : vector<1x128xf32> to vector<8x128xf32>
    %549 = arith.addf %545, %548 : vector<8x128xf32>
    %550 = arith.addf %524, %535 : vector<8x128xf32>
    %551 = arith.negf %550 : vector<8x128xf32>
    %552 = math.exp %551 : vector<8x128xf32>
    %cst_484 = arith.constant 1.000000e+00 : f32
    %553 = vector.broadcast %cst_484 : f32 to vector<8x128xf32>
    %554 = arith.addf %553, %552 : vector<8x128xf32>
    %555 = arith.divf %553, %554 : vector<8x128xf32>
    %556 = arith.addf %526, %542 : vector<8x128xf32>
    %557 = arith.negf %556 : vector<8x128xf32>
    %558 = math.exp %557 : vector<8x128xf32>
    %cst_485 = arith.constant 1.000000e+00 : f32
    %559 = vector.broadcast %cst_485 : f32 to vector<8x128xf32>
    %560 = arith.addf %559, %558 : vector<8x128xf32>
    %561 = arith.divf %559, %560 : vector<8x128xf32>
    %562 = arith.mulf %555, %549 : vector<8x128xf32>
    %563 = arith.addf %528, %562 : vector<8x128xf32>
    %564 = math.tanh %563 : vector<8x128xf32>
    %cst_486 = arith.constant 1.000000e+00 : f32
    %565 = vector.broadcast %cst_486 : f32 to vector<8x128xf32>
    %566 = arith.subf %565, %561 : vector<8x128xf32>
    %567 = arith.mulf %566, %564 : vector<8x128xf32>
    %568 = arith.mulf %561, %522 : vector<8x128xf32>
    %569 = arith.addf %567, %568 : vector<8x128xf32>
    %c0_487 = arith.constant 0 : index
    %c0_488 = arith.constant 0 : index
    %c0_489 = arith.constant 0 : index
    %570 = vector.load %arg9[%c0_487, %c0_488, %c0_489] : memref<2x8x128xf32, #tpu.memory_space<vmem>>, vector<1x8x128xf32>
    %571 = vector.shape_cast %570 : vector<1x8x128xf32> to vector<8x128xf32>
    %572 = vector.shape_cast %569 : vector<8x128xf32> to vector<1x8x128xf32>
    tpu.vector_store %arg9[%c0_487, %c0_488, %c0_489], %572 {strides = array<i32>} : memref<2x8x128xf32, #tpu.memory_space<vmem>>, vector<1x8x128xf32>,
    %c1_490 = arith.constant 1 : index
    %c0_491 = arith.constant 0 : index
    %c0_492 = arith.constant 0 : index
    %573 = vector.load %arg9[%c1_490, %c0_491, %c0_492] : memref<2x8x128xf32, #tpu.memory_space<vmem>>, vector<1x8x128xf32>
    %574 = vector.shape_cast %573 : vector<1x8x128xf32> to vector<8x128xf32>
    %c1_493 = arith.constant 1 : index
    %c0_494 = arith.constant 0 : index
    %c0_495 = arith.constant 0 : index
    %c0_496 = arith.constant 0 : index
    %575 = vector.load %arg2[%c1_493, %c0_494, %c0_495, %c0_496] : memref<2x3x128x128xf32, #tpu.memory_space<vmem>>, vector<1x1x128x128xf32>
    %576 = vector.shape_cast %575 : vector<1x1x128x128xf32> to vector<128x128xf32>
    %cst_497 = arith.constant dense<0.000000e+00> : vector<8x128xf32>
    %577 = tpu.matmul %569, %576, %cst_497 {dimension_numbers = #tpu.dot_dimension_numbers<[1], [0], [0], [1], [0, 0, 1, 1], [], []>} : vector<8x128xf32>, vector<128x128xf32>, vector<8x128xf32> -> vector<8x128xf32>
    %c1_498 = arith.constant 1 : index
    %c0_499 = arith.constant 0 : index
    %c0_500 = arith.constant 0 : index
    %c0_501 = arith.constant 0 : index
    %578 = vector.load %arg4[%c1_498, %c0_499, %c0_500, %c0_501] : memref<2x3x1x128xf32, #tpu.memory_space<vmem>>, vector<1x1x1x128xf32>
    %579 = vector.shape_cast %578 : vector<1x1x1x128xf32> to vector<1x128xf32>
    %580 = vector.broadcast %579 : vector<1x128xf32> to vector<8x128xf32>
    %581 = arith.addf %577, %580 : vector<8x128xf32>
    %c1_502 = arith.constant 1 : index
    %c1_503 = arith.constant 1 : index
    %c0_504 = arith.constant 0 : index
    %c0_505 = arith.constant 0 : index
    %582 = vector.load %arg2[%c1_502, %c1_503, %c0_504, %c0_505] : memref<2x3x128x128xf32, #tpu.memory_space<vmem>>, vector<1x1x128x128xf32>
    %583 = vector.shape_cast %582 : vector<1x1x128x128xf32> to vector<128x128xf32>
    %cst_506 = arith.constant dense<0.000000e+00> : vector<8x128xf32>
    %584 = tpu.matmul %569, %583, %cst_506 {dimension_numbers = #tpu.dot_dimension_numbers<[1], [0], [0], [1], [0, 0, 1, 1], [], []>} : vector<8x128xf32>, vector<128x128xf32>, vector<8x128xf32> -> vector<8x128xf32>
    %c1_507 = arith.constant 1 : index
    %c1_508 = arith.constant 1 : index
    %c0_509 = arith.constant 0 : index
    %c0_510 = arith.constant 0 : index
    %585 = vector.load %arg4[%c1_507, %c1_508, %c0_509, %c0_510] : memref<2x3x1x128xf32, #tpu.memory_space<vmem>>, vector<1x1x1x128xf32>
    %586 = vector.shape_cast %585 : vector<1x1x1x128xf32> to vector<1x128xf32>
    %587 = vector.broadcast %586 : vector<1x128xf32> to vector<8x128xf32>
    %588 = arith.addf %584, %587 : vector<8x128xf32>
    %c1_511 = arith.constant 1 : index
    %c2_512 = arith.constant 2 : index
    %c0_513 = arith.constant 0 : index
    %c0_514 = arith.constant 0 : index
    %589 = vector.load %arg2[%c1_511, %c2_512, %c0_513, %c0_514] : memref<2x3x128x128xf32, #tpu.memory_space<vmem>>, vector<1x1x128x128xf32>
    %590 = vector.shape_cast %589 : vector<1x1x128x128xf32> to vector<128x128xf32>
    %cst_515 = arith.constant dense<0.000000e+00> : vector<8x128xf32>
    %591 = tpu.matmul %569, %590, %cst_515 {dimension_numbers = #tpu.dot_dimension_numbers<[1], [0], [0], [1], [0, 0, 1, 1], [], []>} : vector<8x128xf32>, vector<128x128xf32>, vector<8x128xf32> -> vector<8x128xf32>
    %c1_516 = arith.constant 1 : index
    %c2_517 = arith.constant 2 : index
    %c0_518 = arith.constant 0 : index
    %c0_519 = arith.constant 0 : index
    %592 = vector.load %arg4[%c1_516, %c2_517, %c0_518, %c0_519] : memref<2x3x1x128xf32, #tpu.memory_space<vmem>>, vector<1x1x1x128xf32>
    %593 = vector.shape_cast %592 : vector<1x1x1x128xf32> to vector<1x128xf32>
    %594 = vector.broadcast %593 : vector<1x128xf32> to vector<8x128xf32>
    %595 = arith.addf %591, %594 : vector<8x128xf32>
    %c1_520 = arith.constant 1 : index
    %c0_521 = arith.constant 0 : index
    %c0_522 = arith.constant 0 : index
    %c0_523 = arith.constant 0 : index
    %596 = vector.load %arg3[%c1_520, %c0_521, %c0_522, %c0_523] : memref<2x3x128x128xf32, #tpu.memory_space<vmem>>, vector<1x1x128x128xf32>
    %597 = vector.shape_cast %596 : vector<1x1x128x128xf32> to vector<128x128xf32>
    %cst_524 = arith.constant dense<0.000000e+00> : vector<8x128xf32>
    %598 = tpu.matmul %574, %597, %cst_524 {dimension_numbers = #tpu.dot_dimension_numbers<[1], [0], [0], [1], [0, 0, 1, 1], [], []>} : vector<8x128xf32>, vector<128x128xf32>, vector<8x128xf32> -> vector<8x128xf32>
    %c1_525 = arith.constant 1 : index
    %c0_526 = arith.constant 0 : index
    %c0_527 = arith.constant 0 : index
    %c0_528 = arith.constant 0 : index
    %599 = vector.load %arg5[%c1_525, %c0_526, %c0_527, %c0_528] : memref<2x3x1x128xf32, #tpu.memory_space<vmem>>, vector<1x1x1x128xf32>
    %600 = vector.shape_cast %599 : vector<1x1x1x128xf32> to vector<1x128xf32>
    %601 = vector.broadcast %600 : vector<1x128xf32> to vector<8x128xf32>
    %602 = arith.addf %598, %601 : vector<8x128xf32>
    %c1_529 = arith.constant 1 : index
    %c1_530 = arith.constant 1 : index
    %c0_531 = arith.constant 0 : index
    %c0_532 = arith.constant 0 : index
    %603 = vector.load %arg3[%c1_529, %c1_530, %c0_531, %c0_532] : memref<2x3x128x128xf32, #tpu.memory_space<vmem>>, vector<1x1x128x128xf32>
    %604 = vector.shape_cast %603 : vector<1x1x128x128xf32> to vector<128x128xf32>
    %cst_533 = arith.constant dense<0.000000e+00> : vector<8x128xf32>
    %605 = tpu.matmul %574, %604, %cst_533 {dimension_numbers = #tpu.dot_dimension_numbers<[1], [0], [0], [1], [0, 0, 1, 1], [], []>} : vector<8x128xf32>, vector<128x128xf32>, vector<8x128xf32> -> vector<8x128xf32>
    %c1_534 = arith.constant 1 : index
    %c1_535 = arith.constant 1 : index
    %c0_536 = arith.constant 0 : index
    %c0_537 = arith.constant 0 : index
    %606 = vector.load %arg5[%c1_534, %c1_535, %c0_536, %c0_537] : memref<2x3x1x128xf32, #tpu.memory_space<vmem>>, vector<1x1x1x128xf32>
    %607 = vector.shape_cast %606 : vector<1x1x1x128xf32> to vector<1x128xf32>
    %608 = vector.broadcast %607 : vector<1x128xf32> to vector<8x128xf32>
    %609 = arith.addf %605, %608 : vector<8x128xf32>
    %c1_538 = arith.constant 1 : index
    %c2_539 = arith.constant 2 : index
    %c0_540 = arith.constant 0 : index
    %c0_541 = arith.constant 0 : index
    %610 = vector.load %arg3[%c1_538, %c2_539, %c0_540, %c0_541] : memref<2x3x128x128xf32, #tpu.memory_space<vmem>>, vector<1x1x128x128xf32>
    %611 = vector.shape_cast %610 : vector<1x1x128x128xf32> to vector<128x128xf32>
    %cst_542 = arith.constant dense<0.000000e+00> : vector<8x128xf32>
    %612 = tpu.matmul %574, %611, %cst_542 {dimension_numbers = #tpu.dot_dimension_numbers<[1], [0], [0], [1], [0, 0, 1, 1], [], []>} : vector<8x128xf32>, vector<128x128xf32>, vector<8x128xf32> -> vector<8x128xf32>
    %c1_543 = arith.constant 1 : index
    %c2_544 = arith.constant 2 : index
    %c0_545 = arith.constant 0 : index
    %c0_546 = arith.constant 0 : index
    %613 = vector.load %arg5[%c1_543, %c2_544, %c0_545, %c0_546] : memref<2x3x1x128xf32, #tpu.memory_space<vmem>>, vector<1x1x1x128xf32>
    %614 = vector.shape_cast %613 : vector<1x1x1x128xf32> to vector<1x128xf32>
    %615 = vector.broadcast %614 : vector<1x128xf32> to vector<8x128xf32>
    %616 = arith.addf %612, %615 : vector<8x128xf32>
    %617 = arith.addf %581, %602 : vector<8x128xf32>
    %618 = arith.negf %617 : vector<8x128xf32>
    %619 = math.exp %618 : vector<8x128xf32>
    %cst_547 = arith.constant 1.000000e+00 : f32
    %620 = vector.broadcast %cst_547 : f32 to vector<8x128xf32>
    %621 = arith.addf %620, %619 : vector<8x128xf32>
    %622 = arith.divf %620, %621 : vector<8x128xf32>
    %623 = arith.addf %588, %609 : vector<8x128xf32>
    %624 = arith.negf %623 : vector<8x128xf32>
    %625 = math.exp %624 : vector<8x128xf32>
    %cst_548 = arith.constant 1.000000e+00 : f32
    %626 = vector.broadcast %cst_548 : f32 to vector<8x128xf32>
    %627 = arith.addf %626, %625 : vector<8x128xf32>
    %628 = arith.divf %626, %627 : vector<8x128xf32>
    %629 = arith.mulf %622, %616 : vector<8x128xf32>
    %630 = arith.addf %595, %629 : vector<8x128xf32>
    %631 = math.tanh %630 : vector<8x128xf32>
    %cst_549 = arith.constant 1.000000e+00 : f32
    %632 = vector.broadcast %cst_549 : f32 to vector<8x128xf32>
    %633 = arith.subf %632, %628 : vector<8x128xf32>
    %634 = arith.mulf %633, %631 : vector<8x128xf32>
    %635 = arith.mulf %628, %574 : vector<8x128xf32>
    %636 = arith.addf %634, %635 : vector<8x128xf32>
    %c1_550 = arith.constant 1 : index
    %c0_551 = arith.constant 0 : index
    %c0_552 = arith.constant 0 : index
    %637 = vector.load %arg9[%c1_550, %c0_551, %c0_552] : memref<2x8x128xf32, #tpu.memory_space<vmem>>, vector<1x8x128xf32>
    %638 = vector.shape_cast %637 : vector<1x8x128xf32> to vector<8x128xf32>
    %639 = vector.shape_cast %636 : vector<8x128xf32> to vector<1x8x128xf32>
    tpu.vector_store %arg9[%c1_550, %c0_551, %c0_552], %639 {strides = array<i32>} : memref<2x8x128xf32, #tpu.memory_space<vmem>>, vector<1x8x128xf32>,
    %640 = arith.index_cast %520 : i32 to index
    %c0_553 = arith.constant 0 : index
    %641 = vector.load %arg13[%640, %c0_553] : memref<64x128xf32, #tpu.memory_space<vmem>>, vector<8x128xf32>
    tpu.vector_store %arg13[%640, %c0_553], %636 {strides = array<i32>} : memref<64x128xf32, #tpu.memory_space<vmem>>, vector<8x128xf32>,
    %c5_i32 = arith.constant 5 : i32
    %c8_i32_554 = arith.constant 8 : i32
    %642 = arith.muli %c5_i32, %c8_i32_554 : i32
    %643 = tpu.assume_multiple %642, 8 : i32
    %c0_555 = arith.constant 0 : index
    %c0_556 = arith.constant 0 : index
    %c0_557 = arith.constant 0 : index
    %644 = vector.load %arg9[%c0_555, %c0_556, %c0_557] : memref<2x8x128xf32, #tpu.memory_space<vmem>>, vector<1x8x128xf32>
    %645 = vector.shape_cast %644 : vector<1x8x128xf32> to vector<8x128xf32>
    %646 = arith.index_cast %643 : i32 to index
    %c0_558 = arith.constant 0 : index
    %647 = vector.load %arg10[%646, %c0_558] : memref<64x128xf32, #tpu.memory_space<vmem>>, vector<8x128xf32>
    %648 = arith.index_cast %643 : i32 to index
    %c0_559 = arith.constant 0 : index
    %649 = vector.load %arg11[%648, %c0_559] : memref<64x128xf32, #tpu.memory_space<vmem>>, vector<8x128xf32>
    %650 = arith.index_cast %643 : i32 to index
    %c0_560 = arith.constant 0 : index
    %651 = vector.load %arg12[%650, %c0_560] : memref<64x128xf32, #tpu.memory_space<vmem>>, vector<8x128xf32>
    %c0_561 = arith.constant 0 : index
    %c0_562 = arith.constant 0 : index
    %c0_563 = arith.constant 0 : index
    %c0_564 = arith.constant 0 : index
    %652 = vector.load %arg3[%c0_561, %c0_562, %c0_563, %c0_564] : memref<2x3x128x128xf32, #tpu.memory_space<vmem>>, vector<1x1x128x128xf32>
    %653 = vector.shape_cast %652 : vector<1x1x128x128xf32> to vector<128x128xf32>
    %cst_565 = arith.constant dense<0.000000e+00> : vector<8x128xf32>
    %654 = tpu.matmul %645, %653, %cst_565 {dimension_numbers = #tpu.dot_dimension_numbers<[1], [0], [0], [1], [0, 0, 1, 1], [], []>} : vector<8x128xf32>, vector<128x128xf32>, vector<8x128xf32> -> vector<8x128xf32>
    %c0_566 = arith.constant 0 : index
    %c0_567 = arith.constant 0 : index
    %c0_568 = arith.constant 0 : index
    %c0_569 = arith.constant 0 : index
    %655 = vector.load %arg5[%c0_566, %c0_567, %c0_568, %c0_569] : memref<2x3x1x128xf32, #tpu.memory_space<vmem>>, vector<1x1x1x128xf32>
    %656 = vector.shape_cast %655 : vector<1x1x1x128xf32> to vector<1x128xf32>
    %657 = vector.broadcast %656 : vector<1x128xf32> to vector<8x128xf32>
    %658 = arith.addf %654, %657 : vector<8x128xf32>
    %c0_570 = arith.constant 0 : index
    %c1_571 = arith.constant 1 : index
    %c0_572 = arith.constant 0 : index
    %c0_573 = arith.constant 0 : index
    %659 = vector.load %arg3[%c0_570, %c1_571, %c0_572, %c0_573] : memref<2x3x128x128xf32, #tpu.memory_space<vmem>>, vector<1x1x128x128xf32>
    %660 = vector.shape_cast %659 : vector<1x1x128x128xf32> to vector<128x128xf32>
    %cst_574 = arith.constant dense<0.000000e+00> : vector<8x128xf32>
    %661 = tpu.matmul %645, %660, %cst_574 {dimension_numbers = #tpu.dot_dimension_numbers<[1], [0], [0], [1], [0, 0, 1, 1], [], []>} : vector<8x128xf32>, vector<128x128xf32>, vector<8x128xf32> -> vector<8x128xf32>
    %c0_575 = arith.constant 0 : index
    %c1_576 = arith.constant 1 : index
    %c0_577 = arith.constant 0 : index
    %c0_578 = arith.constant 0 : index
    %662 = vector.load %arg5[%c0_575, %c1_576, %c0_577, %c0_578] : memref<2x3x1x128xf32, #tpu.memory_space<vmem>>, vector<1x1x1x128xf32>
    %663 = vector.shape_cast %662 : vector<1x1x1x128xf32> to vector<1x128xf32>
    %664 = vector.broadcast %663 : vector<1x128xf32> to vector<8x128xf32>
    %665 = arith.addf %661, %664 : vector<8x128xf32>
    %c0_579 = arith.constant 0 : index
    %c2_580 = arith.constant 2 : index
    %c0_581 = arith.constant 0 : index
    %c0_582 = arith.constant 0 : index
    %666 = vector.load %arg3[%c0_579, %c2_580, %c0_581, %c0_582] : memref<2x3x128x128xf32, #tpu.memory_space<vmem>>, vector<1x1x128x128xf32>
    %667 = vector.shape_cast %666 : vector<1x1x128x128xf32> to vector<128x128xf32>
    %cst_583 = arith.constant dense<0.000000e+00> : vector<8x128xf32>
    %668 = tpu.matmul %645, %667, %cst_583 {dimension_numbers = #tpu.dot_dimension_numbers<[1], [0], [0], [1], [0, 0, 1, 1], [], []>} : vector<8x128xf32>, vector<128x128xf32>, vector<8x128xf32> -> vector<8x128xf32>
    %c0_584 = arith.constant 0 : index
    %c2_585 = arith.constant 2 : index
    %c0_586 = arith.constant 0 : index
    %c0_587 = arith.constant 0 : index
    %669 = vector.load %arg5[%c0_584, %c2_585, %c0_586, %c0_587] : memref<2x3x1x128xf32, #tpu.memory_space<vmem>>, vector<1x1x1x128xf32>
    %670 = vector.shape_cast %669 : vector<1x1x1x128xf32> to vector<1x128xf32>
    %671 = vector.broadcast %670 : vector<1x128xf32> to vector<8x128xf32>
    %672 = arith.addf %668, %671 : vector<8x128xf32>
    %673 = arith.addf %647, %658 : vector<8x128xf32>
    %674 = arith.negf %673 : vector<8x128xf32>
    %675 = math.exp %674 : vector<8x128xf32>
    %cst_588 = arith.constant 1.000000e+00 : f32
    %676 = vector.broadcast %cst_588 : f32 to vector<8x128xf32>
    %677 = arith.addf %676, %675 : vector<8x128xf32>
    %678 = arith.divf %676, %677 : vector<8x128xf32>
    %679 = arith.addf %649, %665 : vector<8x128xf32>
    %680 = arith.negf %679 : vector<8x128xf32>
    %681 = math.exp %680 : vector<8x128xf32>
    %cst_589 = arith.constant 1.000000e+00 : f32
    %682 = vector.broadcast %cst_589 : f32 to vector<8x128xf32>
    %683 = arith.addf %682, %681 : vector<8x128xf32>
    %684 = arith.divf %682, %683 : vector<8x128xf32>
    %685 = arith.mulf %678, %672 : vector<8x128xf32>
    %686 = arith.addf %651, %685 : vector<8x128xf32>
    %687 = math.tanh %686 : vector<8x128xf32>
    %cst_590 = arith.constant 1.000000e+00 : f32
    %688 = vector.broadcast %cst_590 : f32 to vector<8x128xf32>
    %689 = arith.subf %688, %684 : vector<8x128xf32>
    %690 = arith.mulf %689, %687 : vector<8x128xf32>
    %691 = arith.mulf %684, %645 : vector<8x128xf32>
    %692 = arith.addf %690, %691 : vector<8x128xf32>
    %c0_591 = arith.constant 0 : index
    %c0_592 = arith.constant 0 : index
    %c0_593 = arith.constant 0 : index
    %693 = vector.load %arg9[%c0_591, %c0_592, %c0_593] : memref<2x8x128xf32, #tpu.memory_space<vmem>>, vector<1x8x128xf32>
    %694 = vector.shape_cast %693 : vector<1x8x128xf32> to vector<8x128xf32>
    %695 = vector.shape_cast %692 : vector<8x128xf32> to vector<1x8x128xf32>
    tpu.vector_store %arg9[%c0_591, %c0_592, %c0_593], %695 {strides = array<i32>} : memref<2x8x128xf32, #tpu.memory_space<vmem>>, vector<1x8x128xf32>,
    %c1_594 = arith.constant 1 : index
    %c0_595 = arith.constant 0 : index
    %c0_596 = arith.constant 0 : index
    %696 = vector.load %arg9[%c1_594, %c0_595, %c0_596] : memref<2x8x128xf32, #tpu.memory_space<vmem>>, vector<1x8x128xf32>
    %697 = vector.shape_cast %696 : vector<1x8x128xf32> to vector<8x128xf32>
    %c1_597 = arith.constant 1 : index
    %c0_598 = arith.constant 0 : index
    %c0_599 = arith.constant 0 : index
    %c0_600 = arith.constant 0 : index
    %698 = vector.load %arg2[%c1_597, %c0_598, %c0_599, %c0_600] : memref<2x3x128x128xf32, #tpu.memory_space<vmem>>, vector<1x1x128x128xf32>
    %699 = vector.shape_cast %698 : vector<1x1x128x128xf32> to vector<128x128xf32>
    %cst_601 = arith.constant dense<0.000000e+00> : vector<8x128xf32>
    %700 = tpu.matmul %692, %699, %cst_601 {dimension_numbers = #tpu.dot_dimension_numbers<[1], [0], [0], [1], [0, 0, 1, 1], [], []>} : vector<8x128xf32>, vector<128x128xf32>, vector<8x128xf32> -> vector<8x128xf32>
    %c1_602 = arith.constant 1 : index
    %c0_603 = arith.constant 0 : index
    %c0_604 = arith.constant 0 : index
    %c0_605 = arith.constant 0 : index
    %701 = vector.load %arg4[%c1_602, %c0_603, %c0_604, %c0_605] : memref<2x3x1x128xf32, #tpu.memory_space<vmem>>, vector<1x1x1x128xf32>
    %702 = vector.shape_cast %701 : vector<1x1x1x128xf32> to vector<1x128xf32>
    %703 = vector.broadcast %702 : vector<1x128xf32> to vector<8x128xf32>
    %704 = arith.addf %700, %703 : vector<8x128xf32>
    %c1_606 = arith.constant 1 : index
    %c1_607 = arith.constant 1 : index
    %c0_608 = arith.constant 0 : index
    %c0_609 = arith.constant 0 : index
    %705 = vector.load %arg2[%c1_606, %c1_607, %c0_608, %c0_609] : memref<2x3x128x128xf32, #tpu.memory_space<vmem>>, vector<1x1x128x128xf32>
    %706 = vector.shape_cast %705 : vector<1x1x128x128xf32> to vector<128x128xf32>
    %cst_610 = arith.constant dense<0.000000e+00> : vector<8x128xf32>
    %707 = tpu.matmul %692, %706, %cst_610 {dimension_numbers = #tpu.dot_dimension_numbers<[1], [0], [0], [1], [0, 0, 1, 1], [], []>} : vector<8x128xf32>, vector<128x128xf32>, vector<8x128xf32> -> vector<8x128xf32>
    %c1_611 = arith.constant 1 : index
    %c1_612 = arith.constant 1 : index
    %c0_613 = arith.constant 0 : index
    %c0_614 = arith.constant 0 : index
    %708 = vector.load %arg4[%c1_611, %c1_612, %c0_613, %c0_614] : memref<2x3x1x128xf32, #tpu.memory_space<vmem>>, vector<1x1x1x128xf32>
    %709 = vector.shape_cast %708 : vector<1x1x1x128xf32> to vector<1x128xf32>
    %710 = vector.broadcast %709 : vector<1x128xf32> to vector<8x128xf32>
    %711 = arith.addf %707, %710 : vector<8x128xf32>
    %c1_615 = arith.constant 1 : index
    %c2_616 = arith.constant 2 : index
    %c0_617 = arith.constant 0 : index
    %c0_618 = arith.constant 0 : index
    %712 = vector.load %arg2[%c1_615, %c2_616, %c0_617, %c0_618] : memref<2x3x128x128xf32, #tpu.memory_space<vmem>>, vector<1x1x128x128xf32>
    %713 = vector.shape_cast %712 : vector<1x1x128x128xf32> to vector<128x128xf32>
    %cst_619 = arith.constant dense<0.000000e+00> : vector<8x128xf32>
    %714 = tpu.matmul %692, %713, %cst_619 {dimension_numbers = #tpu.dot_dimension_numbers<[1], [0], [0], [1], [0, 0, 1, 1], [], []>} : vector<8x128xf32>, vector<128x128xf32>, vector<8x128xf32> -> vector<8x128xf32>
    %c1_620 = arith.constant 1 : index
    %c2_621 = arith.constant 2 : index
    %c0_622 = arith.constant 0 : index
    %c0_623 = arith.constant 0 : index
    %715 = vector.load %arg4[%c1_620, %c2_621, %c0_622, %c0_623] : memref<2x3x1x128xf32, #tpu.memory_space<vmem>>, vector<1x1x1x128xf32>
    %716 = vector.shape_cast %715 : vector<1x1x1x128xf32> to vector<1x128xf32>
    %717 = vector.broadcast %716 : vector<1x128xf32> to vector<8x128xf32>
    %718 = arith.addf %714, %717 : vector<8x128xf32>
    %c1_624 = arith.constant 1 : index
    %c0_625 = arith.constant 0 : index
    %c0_626 = arith.constant 0 : index
    %c0_627 = arith.constant 0 : index
    %719 = vector.load %arg3[%c1_624, %c0_625, %c0_626, %c0_627] : memref<2x3x128x128xf32, #tpu.memory_space<vmem>>, vector<1x1x128x128xf32>
    %720 = vector.shape_cast %719 : vector<1x1x128x128xf32> to vector<128x128xf32>
    %cst_628 = arith.constant dense<0.000000e+00> : vector<8x128xf32>
    %721 = tpu.matmul %697, %720, %cst_628 {dimension_numbers = #tpu.dot_dimension_numbers<[1], [0], [0], [1], [0, 0, 1, 1], [], []>} : vector<8x128xf32>, vector<128x128xf32>, vector<8x128xf32> -> vector<8x128xf32>
    %c1_629 = arith.constant 1 : index
    %c0_630 = arith.constant 0 : index
    %c0_631 = arith.constant 0 : index
    %c0_632 = arith.constant 0 : index
    %722 = vector.load %arg5[%c1_629, %c0_630, %c0_631, %c0_632] : memref<2x3x1x128xf32, #tpu.memory_space<vmem>>, vector<1x1x1x128xf32>
    %723 = vector.shape_cast %722 : vector<1x1x1x128xf32> to vector<1x128xf32>
    %724 = vector.broadcast %723 : vector<1x128xf32> to vector<8x128xf32>
    %725 = arith.addf %721, %724 : vector<8x128xf32>
    %c1_633 = arith.constant 1 : index
    %c1_634 = arith.constant 1 : index
    %c0_635 = arith.constant 0 : index
    %c0_636 = arith.constant 0 : index
    %726 = vector.load %arg3[%c1_633, %c1_634, %c0_635, %c0_636] : memref<2x3x128x128xf32, #tpu.memory_space<vmem>>, vector<1x1x128x128xf32>
    %727 = vector.shape_cast %726 : vector<1x1x128x128xf32> to vector<128x128xf32>
    %cst_637 = arith.constant dense<0.000000e+00> : vector<8x128xf32>
    %728 = tpu.matmul %697, %727, %cst_637 {dimension_numbers = #tpu.dot_dimension_numbers<[1], [0], [0], [1], [0, 0, 1, 1], [], []>} : vector<8x128xf32>, vector<128x128xf32>, vector<8x128xf32> -> vector<8x128xf32>
    %c1_638 = arith.constant 1 : index
    %c1_639 = arith.constant 1 : index
    %c0_640 = arith.constant 0 : index
    %c0_641 = arith.constant 0 : index
    %729 = vector.load %arg5[%c1_638, %c1_639, %c0_640, %c0_641] : memref<2x3x1x128xf32, #tpu.memory_space<vmem>>, vector<1x1x1x128xf32>
    %730 = vector.shape_cast %729 : vector<1x1x1x128xf32> to vector<1x128xf32>
    %731 = vector.broadcast %730 : vector<1x128xf32> to vector<8x128xf32>
    %732 = arith.addf %728, %731 : vector<8x128xf32>
    %c1_642 = arith.constant 1 : index
    %c2_643 = arith.constant 2 : index
    %c0_644 = arith.constant 0 : index
    %c0_645 = arith.constant 0 : index
    %733 = vector.load %arg3[%c1_642, %c2_643, %c0_644, %c0_645] : memref<2x3x128x128xf32, #tpu.memory_space<vmem>>, vector<1x1x128x128xf32>
    %734 = vector.shape_cast %733 : vector<1x1x128x128xf32> to vector<128x128xf32>
    %cst_646 = arith.constant dense<0.000000e+00> : vector<8x128xf32>
    %735 = tpu.matmul %697, %734, %cst_646 {dimension_numbers = #tpu.dot_dimension_numbers<[1], [0], [0], [1], [0, 0, 1, 1], [], []>} : vector<8x128xf32>, vector<128x128xf32>, vector<8x128xf32> -> vector<8x128xf32>
    %c1_647 = arith.constant 1 : index
    %c2_648 = arith.constant 2 : index
    %c0_649 = arith.constant 0 : index
    %c0_650 = arith.constant 0 : index
    %736 = vector.load %arg5[%c1_647, %c2_648, %c0_649, %c0_650] : memref<2x3x1x128xf32, #tpu.memory_space<vmem>>, vector<1x1x1x128xf32>
    %737 = vector.shape_cast %736 : vector<1x1x1x128xf32> to vector<1x128xf32>
    %738 = vector.broadcast %737 : vector<1x128xf32> to vector<8x128xf32>
    %739 = arith.addf %735, %738 : vector<8x128xf32>
    %740 = arith.addf %704, %725 : vector<8x128xf32>
    %741 = arith.negf %740 : vector<8x128xf32>
    %742 = math.exp %741 : vector<8x128xf32>
    %cst_651 = arith.constant 1.000000e+00 : f32
    %743 = vector.broadcast %cst_651 : f32 to vector<8x128xf32>
    %744 = arith.addf %743, %742 : vector<8x128xf32>
    %745 = arith.divf %743, %744 : vector<8x128xf32>
    %746 = arith.addf %711, %732 : vector<8x128xf32>
    %747 = arith.negf %746 : vector<8x128xf32>
    %748 = math.exp %747 : vector<8x128xf32>
    %cst_652 = arith.constant 1.000000e+00 : f32
    %749 = vector.broadcast %cst_652 : f32 to vector<8x128xf32>
    %750 = arith.addf %749, %748 : vector<8x128xf32>
    %751 = arith.divf %749, %750 : vector<8x128xf32>
    %752 = arith.mulf %745, %739 : vector<8x128xf32>
    %753 = arith.addf %718, %752 : vector<8x128xf32>
    %754 = math.tanh %753 : vector<8x128xf32>
    %cst_653 = arith.constant 1.000000e+00 : f32
    %755 = vector.broadcast %cst_653 : f32 to vector<8x128xf32>
    %756 = arith.subf %755, %751 : vector<8x128xf32>
    %757 = arith.mulf %756, %754 : vector<8x128xf32>
    %758 = arith.mulf %751, %697 : vector<8x128xf32>
    %759 = arith.addf %757, %758 : vector<8x128xf32>
    %c1_654 = arith.constant 1 : index
    %c0_655 = arith.constant 0 : index
    %c0_656 = arith.constant 0 : index
    %760 = vector.load %arg9[%c1_654, %c0_655, %c0_656] : memref<2x8x128xf32, #tpu.memory_space<vmem>>, vector<1x8x128xf32>
    %761 = vector.shape_cast %760 : vector<1x8x128xf32> to vector<8x128xf32>
    %762 = vector.shape_cast %759 : vector<8x128xf32> to vector<1x8x128xf32>
    tpu.vector_store %arg9[%c1_654, %c0_655, %c0_656], %762 {strides = array<i32>} : memref<2x8x128xf32, #tpu.memory_space<vmem>>, vector<1x8x128xf32>,
    %763 = arith.index_cast %643 : i32 to index
    %c0_657 = arith.constant 0 : index
    %764 = vector.load %arg13[%763, %c0_657] : memref<64x128xf32, #tpu.memory_space<vmem>>, vector<8x128xf32>
    tpu.vector_store %arg13[%763, %c0_657], %759 {strides = array<i32>} : memref<64x128xf32, #tpu.memory_space<vmem>>, vector<8x128xf32>,
    %c6_i32 = arith.constant 6 : i32
    %c8_i32_658 = arith.constant 8 : i32
    %765 = arith.muli %c6_i32, %c8_i32_658 : i32
    %766 = tpu.assume_multiple %765, 8 : i32
    %c0_659 = arith.constant 0 : index
    %c0_660 = arith.constant 0 : index
    %c0_661 = arith.constant 0 : index
    %767 = vector.load %arg9[%c0_659, %c0_660, %c0_661] : memref<2x8x128xf32, #tpu.memory_space<vmem>>, vector<1x8x128xf32>
    %768 = vector.shape_cast %767 : vector<1x8x128xf32> to vector<8x128xf32>
    %769 = arith.index_cast %766 : i32 to index
    %c0_662 = arith.constant 0 : index
    %770 = vector.load %arg10[%769, %c0_662] : memref<64x128xf32, #tpu.memory_space<vmem>>, vector<8x128xf32>
    %771 = arith.index_cast %766 : i32 to index
    %c0_663 = arith.constant 0 : index
    %772 = vector.load %arg11[%771, %c0_663] : memref<64x128xf32, #tpu.memory_space<vmem>>, vector<8x128xf32>
    %773 = arith.index_cast %766 : i32 to index
    %c0_664 = arith.constant 0 : index
    %774 = vector.load %arg12[%773, %c0_664] : memref<64x128xf32, #tpu.memory_space<vmem>>, vector<8x128xf32>
    %c0_665 = arith.constant 0 : index
    %c0_666 = arith.constant 0 : index
    %c0_667 = arith.constant 0 : index
    %c0_668 = arith.constant 0 : index
    %775 = vector.load %arg3[%c0_665, %c0_666, %c0_667, %c0_668] : memref<2x3x128x128xf32, #tpu.memory_space<vmem>>, vector<1x1x128x128xf32>
    %776 = vector.shape_cast %775 : vector<1x1x128x128xf32> to vector<128x128xf32>
    %cst_669 = arith.constant dense<0.000000e+00> : vector<8x128xf32>
    %777 = tpu.matmul %768, %776, %cst_669 {dimension_numbers = #tpu.dot_dimension_numbers<[1], [0], [0], [1], [0, 0, 1, 1], [], []>} : vector<8x128xf32>, vector<128x128xf32>, vector<8x128xf32> -> vector<8x128xf32>
    %c0_670 = arith.constant 0 : index
    %c0_671 = arith.constant 0 : index
    %c0_672 = arith.constant 0 : index
    %c0_673 = arith.constant 0 : index
    %778 = vector.load %arg5[%c0_670, %c0_671, %c0_672, %c0_673] : memref<2x3x1x128xf32, #tpu.memory_space<vmem>>, vector<1x1x1x128xf32>
    %779 = vector.shape_cast %778 : vector<1x1x1x128xf32> to vector<1x128xf32>
    %780 = vector.broadcast %779 : vector<1x128xf32> to vector<8x128xf32>
    %781 = arith.addf %777, %780 : vector<8x128xf32>
    %c0_674 = arith.constant 0 : index
    %c1_675 = arith.constant 1 : index
    %c0_676 = arith.constant 0 : index
    %c0_677 = arith.constant 0 : index
    %782 = vector.load %arg3[%c0_674, %c1_675, %c0_676, %c0_677] : memref<2x3x128x128xf32, #tpu.memory_space<vmem>>, vector<1x1x128x128xf32>
    %783 = vector.shape_cast %782 : vector<1x1x128x128xf32> to vector<128x128xf32>
    %cst_678 = arith.constant dense<0.000000e+00> : vector<8x128xf32>
    %784 = tpu.matmul %768, %783, %cst_678 {dimension_numbers = #tpu.dot_dimension_numbers<[1], [0], [0], [1], [0, 0, 1, 1], [], []>} : vector<8x128xf32>, vector<128x128xf32>, vector<8x128xf32> -> vector<8x128xf32>
    %c0_679 = arith.constant 0 : index
    %c1_680 = arith.constant 1 : index
    %c0_681 = arith.constant 0 : index
    %c0_682 = arith.constant 0 : index
    %785 = vector.load %arg5[%c0_679, %c1_680, %c0_681, %c0_682] : memref<2x3x1x128xf32, #tpu.memory_space<vmem>>, vector<1x1x1x128xf32>
    %786 = vector.shape_cast %785 : vector<1x1x1x128xf32> to vector<1x128xf32>
    %787 = vector.broadcast %786 : vector<1x128xf32> to vector<8x128xf32>
    %788 = arith.addf %784, %787 : vector<8x128xf32>
    %c0_683 = arith.constant 0 : index
    %c2_684 = arith.constant 2 : index
    %c0_685 = arith.constant 0 : index
    %c0_686 = arith.constant 0 : index
    %789 = vector.load %arg3[%c0_683, %c2_684, %c0_685, %c0_686] : memref<2x3x128x128xf32, #tpu.memory_space<vmem>>, vector<1x1x128x128xf32>
    %790 = vector.shape_cast %789 : vector<1x1x128x128xf32> to vector<128x128xf32>
    %cst_687 = arith.constant dense<0.000000e+00> : vector<8x128xf32>
    %791 = tpu.matmul %768, %790, %cst_687 {dimension_numbers = #tpu.dot_dimension_numbers<[1], [0], [0], [1], [0, 0, 1, 1], [], []>} : vector<8x128xf32>, vector<128x128xf32>, vector<8x128xf32> -> vector<8x128xf32>
    %c0_688 = arith.constant 0 : index
    %c2_689 = arith.constant 2 : index
    %c0_690 = arith.constant 0 : index
    %c0_691 = arith.constant 0 : index
    %792 = vector.load %arg5[%c0_688, %c2_689, %c0_690, %c0_691] : memref<2x3x1x128xf32, #tpu.memory_space<vmem>>, vector<1x1x1x128xf32>
    %793 = vector.shape_cast %792 : vector<1x1x1x128xf32> to vector<1x128xf32>
    %794 = vector.broadcast %793 : vector<1x128xf32> to vector<8x128xf32>
    %795 = arith.addf %791, %794 : vector<8x128xf32>
    %796 = arith.addf %770, %781 : vector<8x128xf32>
    %797 = arith.negf %796 : vector<8x128xf32>
    %798 = math.exp %797 : vector<8x128xf32>
    %cst_692 = arith.constant 1.000000e+00 : f32
    %799 = vector.broadcast %cst_692 : f32 to vector<8x128xf32>
    %800 = arith.addf %799, %798 : vector<8x128xf32>
    %801 = arith.divf %799, %800 : vector<8x128xf32>
    %802 = arith.addf %772, %788 : vector<8x128xf32>
    %803 = arith.negf %802 : vector<8x128xf32>
    %804 = math.exp %803 : vector<8x128xf32>
    %cst_693 = arith.constant 1.000000e+00 : f32
    %805 = vector.broadcast %cst_693 : f32 to vector<8x128xf32>
    %806 = arith.addf %805, %804 : vector<8x128xf32>
    %807 = arith.divf %805, %806 : vector<8x128xf32>
    %808 = arith.mulf %801, %795 : vector<8x128xf32>
    %809 = arith.addf %774, %808 : vector<8x128xf32>
    %810 = math.tanh %809 : vector<8x128xf32>
    %cst_694 = arith.constant 1.000000e+00 : f32
    %811 = vector.broadcast %cst_694 : f32 to vector<8x128xf32>
    %812 = arith.subf %811, %807 : vector<8x128xf32>
    %813 = arith.mulf %812, %810 : vector<8x128xf32>
    %814 = arith.mulf %807, %768 : vector<8x128xf32>
    %815 = arith.addf %813, %814 : vector<8x128xf32>
    %c0_695 = arith.constant 0 : index
    %c0_696 = arith.constant 0 : index
    %c0_697 = arith.constant 0 : index
    %816 = vector.load %arg9[%c0_695, %c0_696, %c0_697] : memref<2x8x128xf32, #tpu.memory_space<vmem>>, vector<1x8x128xf32>
    %817 = vector.shape_cast %816 : vector<1x8x128xf32> to vector<8x128xf32>
    %818 = vector.shape_cast %815 : vector<8x128xf32> to vector<1x8x128xf32>
    tpu.vector_store %arg9[%c0_695, %c0_696, %c0_697], %818 {strides = array<i32>} : memref<2x8x128xf32, #tpu.memory_space<vmem>>, vector<1x8x128xf32>,
    %c1_698 = arith.constant 1 : index
    %c0_699 = arith.constant 0 : index
    %c0_700 = arith.constant 0 : index
    %819 = vector.load %arg9[%c1_698, %c0_699, %c0_700] : memref<2x8x128xf32, #tpu.memory_space<vmem>>, vector<1x8x128xf32>
    %820 = vector.shape_cast %819 : vector<1x8x128xf32> to vector<8x128xf32>
    %c1_701 = arith.constant 1 : index
    %c0_702 = arith.constant 0 : index
    %c0_703 = arith.constant 0 : index
    %c0_704 = arith.constant 0 : index
    %821 = vector.load %arg2[%c1_701, %c0_702, %c0_703, %c0_704] : memref<2x3x128x128xf32, #tpu.memory_space<vmem>>, vector<1x1x128x128xf32>
    %822 = vector.shape_cast %821 : vector<1x1x128x128xf32> to vector<128x128xf32>
    %cst_705 = arith.constant dense<0.000000e+00> : vector<8x128xf32>
    %823 = tpu.matmul %815, %822, %cst_705 {dimension_numbers = #tpu.dot_dimension_numbers<[1], [0], [0], [1], [0, 0, 1, 1], [], []>} : vector<8x128xf32>, vector<128x128xf32>, vector<8x128xf32> -> vector<8x128xf32>
    %c1_706 = arith.constant 1 : index
    %c0_707 = arith.constant 0 : index
    %c0_708 = arith.constant 0 : index
    %c0_709 = arith.constant 0 : index
    %824 = vector.load %arg4[%c1_706, %c0_707, %c0_708, %c0_709] : memref<2x3x1x128xf32, #tpu.memory_space<vmem>>, vector<1x1x1x128xf32>
    %825 = vector.shape_cast %824 : vector<1x1x1x128xf32> to vector<1x128xf32>
    %826 = vector.broadcast %825 : vector<1x128xf32> to vector<8x128xf32>
    %827 = arith.addf %823, %826 : vector<8x128xf32>
    %c1_710 = arith.constant 1 : index
    %c1_711 = arith.constant 1 : index
    %c0_712 = arith.constant 0 : index
    %c0_713 = arith.constant 0 : index
    %828 = vector.load %arg2[%c1_710, %c1_711, %c0_712, %c0_713] : memref<2x3x128x128xf32, #tpu.memory_space<vmem>>, vector<1x1x128x128xf32>
    %829 = vector.shape_cast %828 : vector<1x1x128x128xf32> to vector<128x128xf32>
    %cst_714 = arith.constant dense<0.000000e+00> : vector<8x128xf32>
    %830 = tpu.matmul %815, %829, %cst_714 {dimension_numbers = #tpu.dot_dimension_numbers<[1], [0], [0], [1], [0, 0, 1, 1], [], []>} : vector<8x128xf32>, vector<128x128xf32>, vector<8x128xf32> -> vector<8x128xf32>
    %c1_715 = arith.constant 1 : index
    %c1_716 = arith.constant 1 : index
    %c0_717 = arith.constant 0 : index
    %c0_718 = arith.constant 0 : index
    %831 = vector.load %arg4[%c1_715, %c1_716, %c0_717, %c0_718] : memref<2x3x1x128xf32, #tpu.memory_space<vmem>>, vector<1x1x1x128xf32>
    %832 = vector.shape_cast %831 : vector<1x1x1x128xf32> to vector<1x128xf32>
    %833 = vector.broadcast %832 : vector<1x128xf32> to vector<8x128xf32>
    %834 = arith.addf %830, %833 : vector<8x128xf32>
    %c1_719 = arith.constant 1 : index
    %c2_720 = arith.constant 2 : index
    %c0_721 = arith.constant 0 : index
    %c0_722 = arith.constant 0 : index
    %835 = vector.load %arg2[%c1_719, %c2_720, %c0_721, %c0_722] : memref<2x3x128x128xf32, #tpu.memory_space<vmem>>, vector<1x1x128x128xf32>
    %836 = vector.shape_cast %835 : vector<1x1x128x128xf32> to vector<128x128xf32>
    %cst_723 = arith.constant dense<0.000000e+00> : vector<8x128xf32>
    %837 = tpu.matmul %815, %836, %cst_723 {dimension_numbers = #tpu.dot_dimension_numbers<[1], [0], [0], [1], [0, 0, 1, 1], [], []>} : vector<8x128xf32>, vector<128x128xf32>, vector<8x128xf32> -> vector<8x128xf32>
    %c1_724 = arith.constant 1 : index
    %c2_725 = arith.constant 2 : index
    %c0_726 = arith.constant 0 : index
    %c0_727 = arith.constant 0 : index
    %838 = vector.load %arg4[%c1_724, %c2_725, %c0_726, %c0_727] : memref<2x3x1x128xf32, #tpu.memory_space<vmem>>, vector<1x1x1x128xf32>
    %839 = vector.shape_cast %838 : vector<1x1x1x128xf32> to vector<1x128xf32>
    %840 = vector.broadcast %839 : vector<1x128xf32> to vector<8x128xf32>
    %841 = arith.addf %837, %840 : vector<8x128xf32>
    %c1_728 = arith.constant 1 : index
    %c0_729 = arith.constant 0 : index
    %c0_730 = arith.constant 0 : index
    %c0_731 = arith.constant 0 : index
    %842 = vector.load %arg3[%c1_728, %c0_729, %c0_730, %c0_731] : memref<2x3x128x128xf32, #tpu.memory_space<vmem>>, vector<1x1x128x128xf32>
    %843 = vector.shape_cast %842 : vector<1x1x128x128xf32> to vector<128x128xf32>
    %cst_732 = arith.constant dense<0.000000e+00> : vector<8x128xf32>
    %844 = tpu.matmul %820, %843, %cst_732 {dimension_numbers = #tpu.dot_dimension_numbers<[1], [0], [0], [1], [0, 0, 1, 1], [], []>} : vector<8x128xf32>, vector<128x128xf32>, vector<8x128xf32> -> vector<8x128xf32>
    %c1_733 = arith.constant 1 : index
    %c0_734 = arith.constant 0 : index
    %c0_735 = arith.constant 0 : index
    %c0_736 = arith.constant 0 : index
    %845 = vector.load %arg5[%c1_733, %c0_734, %c0_735, %c0_736] : memref<2x3x1x128xf32, #tpu.memory_space<vmem>>, vector<1x1x1x128xf32>
    %846 = vector.shape_cast %845 : vector<1x1x1x128xf32> to vector<1x128xf32>
    %847 = vector.broadcast %846 : vector<1x128xf32> to vector<8x128xf32>
    %848 = arith.addf %844, %847 : vector<8x128xf32>
    %c1_737 = arith.constant 1 : index
    %c1_738 = arith.constant 1 : index
    %c0_739 = arith.constant 0 : index
    %c0_740 = arith.constant 0 : index
    %849 = vector.load %arg3[%c1_737, %c1_738, %c0_739, %c0_740] : memref<2x3x128x128xf32, #tpu.memory_space<vmem>>, vector<1x1x128x128xf32>
    %850 = vector.shape_cast %849 : vector<1x1x128x128xf32> to vector<128x128xf32>
    %cst_741 = arith.constant dense<0.000000e+00> : vector<8x128xf32>
    %851 = tpu.matmul %820, %850, %cst_741 {dimension_numbers = #tpu.dot_dimension_numbers<[1], [0], [0], [1], [0, 0, 1, 1], [], []>} : vector<8x128xf32>, vector<128x128xf32>, vector<8x128xf32> -> vector<8x128xf32>
    %c1_742 = arith.constant 1 : index
    %c1_743 = arith.constant 1 : index
    %c0_744 = arith.constant 0 : index
    %c0_745 = arith.constant 0 : index
    %852 = vector.load %arg5[%c1_742, %c1_743, %c0_744, %c0_745] : memref<2x3x1x128xf32, #tpu.memory_space<vmem>>, vector<1x1x1x128xf32>
    %853 = vector.shape_cast %852 : vector<1x1x1x128xf32> to vector<1x128xf32>
    %854 = vector.broadcast %853 : vector<1x128xf32> to vector<8x128xf32>
    %855 = arith.addf %851, %854 : vector<8x128xf32>
    %c1_746 = arith.constant 1 : index
    %c2_747 = arith.constant 2 : index
    %c0_748 = arith.constant 0 : index
    %c0_749 = arith.constant 0 : index
    %856 = vector.load %arg3[%c1_746, %c2_747, %c0_748, %c0_749] : memref<2x3x128x128xf32, #tpu.memory_space<vmem>>, vector<1x1x128x128xf32>
    %857 = vector.shape_cast %856 : vector<1x1x128x128xf32> to vector<128x128xf32>
    %cst_750 = arith.constant dense<0.000000e+00> : vector<8x128xf32>
    %858 = tpu.matmul %820, %857, %cst_750 {dimension_numbers = #tpu.dot_dimension_numbers<[1], [0], [0], [1], [0, 0, 1, 1], [], []>} : vector<8x128xf32>, vector<128x128xf32>, vector<8x128xf32> -> vector<8x128xf32>
    %c1_751 = arith.constant 1 : index
    %c2_752 = arith.constant 2 : index
    %c0_753 = arith.constant 0 : index
    %c0_754 = arith.constant 0 : index
    %859 = vector.load %arg5[%c1_751, %c2_752, %c0_753, %c0_754] : memref<2x3x1x128xf32, #tpu.memory_space<vmem>>, vector<1x1x1x128xf32>
    %860 = vector.shape_cast %859 : vector<1x1x1x128xf32> to vector<1x128xf32>
    %861 = vector.broadcast %860 : vector<1x128xf32> to vector<8x128xf32>
    %862 = arith.addf %858, %861 : vector<8x128xf32>
    %863 = arith.addf %827, %848 : vector<8x128xf32>
    %864 = arith.negf %863 : vector<8x128xf32>
    %865 = math.exp %864 : vector<8x128xf32>
    %cst_755 = arith.constant 1.000000e+00 : f32
    %866 = vector.broadcast %cst_755 : f32 to vector<8x128xf32>
    %867 = arith.addf %866, %865 : vector<8x128xf32>
    %868 = arith.divf %866, %867 : vector<8x128xf32>
    %869 = arith.addf %834, %855 : vector<8x128xf32>
    %870 = arith.negf %869 : vector<8x128xf32>
    %871 = math.exp %870 : vector<8x128xf32>
    %cst_756 = arith.constant 1.000000e+00 : f32
    %872 = vector.broadcast %cst_756 : f32 to vector<8x128xf32>
    %873 = arith.addf %872, %871 : vector<8x128xf32>
    %874 = arith.divf %872, %873 : vector<8x128xf32>
    %875 = arith.mulf %868, %862 : vector<8x128xf32>
    %876 = arith.addf %841, %875 : vector<8x128xf32>
    %877 = math.tanh %876 : vector<8x128xf32>
    %cst_757 = arith.constant 1.000000e+00 : f32
    %878 = vector.broadcast %cst_757 : f32 to vector<8x128xf32>
    %879 = arith.subf %878, %874 : vector<8x128xf32>
    %880 = arith.mulf %879, %877 : vector<8x128xf32>
    %881 = arith.mulf %874, %820 : vector<8x128xf32>
    %882 = arith.addf %880, %881 : vector<8x128xf32>
    %c1_758 = arith.constant 1 : index
    %c0_759 = arith.constant 0 : index
    %c0_760 = arith.constant 0 : index
    %883 = vector.load %arg9[%c1_758, %c0_759, %c0_760] : memref<2x8x128xf32, #tpu.memory_space<vmem>>, vector<1x8x128xf32>
    %884 = vector.shape_cast %883 : vector<1x8x128xf32> to vector<8x128xf32>
    %885 = vector.shape_cast %882 : vector<8x128xf32> to vector<1x8x128xf32>
    tpu.vector_store %arg9[%c1_758, %c0_759, %c0_760], %885 {strides = array<i32>} : memref<2x8x128xf32, #tpu.memory_space<vmem>>, vector<1x8x128xf32>,
    %886 = arith.index_cast %766 : i32 to index
    %c0_761 = arith.constant 0 : index
    %887 = vector.load %arg13[%886, %c0_761] : memref<64x128xf32, #tpu.memory_space<vmem>>, vector<8x128xf32>
    tpu.vector_store %arg13[%886, %c0_761], %882 {strides = array<i32>} : memref<64x128xf32, #tpu.memory_space<vmem>>, vector<8x128xf32>,
    %c7_i32 = arith.constant 7 : i32
    %c8_i32_762 = arith.constant 8 : i32
    %888 = arith.muli %c7_i32, %c8_i32_762 : i32
    %889 = tpu.assume_multiple %888, 8 : i32
    %c0_763 = arith.constant 0 : index
    %c0_764 = arith.constant 0 : index
    %c0_765 = arith.constant 0 : index
    %890 = vector.load %arg9[%c0_763, %c0_764, %c0_765] : memref<2x8x128xf32, #tpu.memory_space<vmem>>, vector<1x8x128xf32>
    %891 = vector.shape_cast %890 : vector<1x8x128xf32> to vector<8x128xf32>
    %892 = arith.index_cast %889 : i32 to index
    %c0_766 = arith.constant 0 : index
    %893 = vector.load %arg10[%892, %c0_766] : memref<64x128xf32, #tpu.memory_space<vmem>>, vector<8x128xf32>
    %894 = arith.index_cast %889 : i32 to index
    %c0_767 = arith.constant 0 : index
    %895 = vector.load %arg11[%894, %c0_767] : memref<64x128xf32, #tpu.memory_space<vmem>>, vector<8x128xf32>
    %896 = arith.index_cast %889 : i32 to index
    %c0_768 = arith.constant 0 : index
    %897 = vector.load %arg12[%896, %c0_768] : memref<64x128xf32, #tpu.memory_space<vmem>>, vector<8x128xf32>
    %c0_769 = arith.constant 0 : index
    %c0_770 = arith.constant 0 : index
    %c0_771 = arith.constant 0 : index
    %c0_772 = arith.constant 0 : index
    %898 = vector.load %arg3[%c0_769, %c0_770, %c0_771, %c0_772] : memref<2x3x128x128xf32, #tpu.memory_space<vmem>>, vector<1x1x128x128xf32>
    %899 = vector.shape_cast %898 : vector<1x1x128x128xf32> to vector<128x128xf32>
    %cst_773 = arith.constant dense<0.000000e+00> : vector<8x128xf32>
    %900 = tpu.matmul %891, %899, %cst_773 {dimension_numbers = #tpu.dot_dimension_numbers<[1], [0], [0], [1], [0, 0, 1, 1], [], []>} : vector<8x128xf32>, vector<128x128xf32>, vector<8x128xf32> -> vector<8x128xf32>
    %c0_774 = arith.constant 0 : index
    %c0_775 = arith.constant 0 : index
    %c0_776 = arith.constant 0 : index
    %c0_777 = arith.constant 0 : index
    %901 = vector.load %arg5[%c0_774, %c0_775, %c0_776, %c0_777] : memref<2x3x1x128xf32, #tpu.memory_space<vmem>>, vector<1x1x1x128xf32>
    %902 = vector.shape_cast %901 : vector<1x1x1x128xf32> to vector<1x128xf32>
    %903 = vector.broadcast %902 : vector<1x128xf32> to vector<8x128xf32>
    %904 = arith.addf %900, %903 : vector<8x128xf32>
    %c0_778 = arith.constant 0 : index
    %c1_779 = arith.constant 1 : index
    %c0_780 = arith.constant 0 : index
    %c0_781 = arith.constant 0 : index
    %905 = vector.load %arg3[%c0_778, %c1_779, %c0_780, %c0_781] : memref<2x3x128x128xf32, #tpu.memory_space<vmem>>, vector<1x1x128x128xf32>
    %906 = vector.shape_cast %905 : vector<1x1x128x128xf32> to vector<128x128xf32>
    %cst_782 = arith.constant dense<0.000000e+00> : vector<8x128xf32>
    %907 = tpu.matmul %891, %906, %cst_782 {dimension_numbers = #tpu.dot_dimension_numbers<[1], [0], [0], [1], [0, 0, 1, 1], [], []>} : vector<8x128xf32>, vector<128x128xf32>, vector<8x128xf32> -> vector<8x128xf32>
    %c0_783 = arith.constant 0 : index
    %c1_784 = arith.constant 1 : index
    %c0_785 = arith.constant 0 : index
    %c0_786 = arith.constant 0 : index
    %908 = vector.load %arg5[%c0_783, %c1_784, %c0_785, %c0_786] : memref<2x3x1x128xf32, #tpu.memory_space<vmem>>, vector<1x1x1x128xf32>
    %909 = vector.shape_cast %908 : vector<1x1x1x128xf32> to vector<1x128xf32>
    %910 = vector.broadcast %909 : vector<1x128xf32> to vector<8x128xf32>
    %911 = arith.addf %907, %910 : vector<8x128xf32>
    %c0_787 = arith.constant 0 : index
    %c2_788 = arith.constant 2 : index
    %c0_789 = arith.constant 0 : index
    %c0_790 = arith.constant 0 : index
    %912 = vector.load %arg3[%c0_787, %c2_788, %c0_789, %c0_790] : memref<2x3x128x128xf32, #tpu.memory_space<vmem>>, vector<1x1x128x128xf32>
    %913 = vector.shape_cast %912 : vector<1x1x128x128xf32> to vector<128x128xf32>
    %cst_791 = arith.constant dense<0.000000e+00> : vector<8x128xf32>
    %914 = tpu.matmul %891, %913, %cst_791 {dimension_numbers = #tpu.dot_dimension_numbers<[1], [0], [0], [1], [0, 0, 1, 1], [], []>} : vector<8x128xf32>, vector<128x128xf32>, vector<8x128xf32> -> vector<8x128xf32>
    %c0_792 = arith.constant 0 : index
    %c2_793 = arith.constant 2 : index
    %c0_794 = arith.constant 0 : index
    %c0_795 = arith.constant 0 : index
    %915 = vector.load %arg5[%c0_792, %c2_793, %c0_794, %c0_795] : memref<2x3x1x128xf32, #tpu.memory_space<vmem>>, vector<1x1x1x128xf32>
    %916 = vector.shape_cast %915 : vector<1x1x1x128xf32> to vector<1x128xf32>
    %917 = vector.broadcast %916 : vector<1x128xf32> to vector<8x128xf32>
    %918 = arith.addf %914, %917 : vector<8x128xf32>
    %919 = arith.addf %893, %904 : vector<8x128xf32>
    %920 = arith.negf %919 : vector<8x128xf32>
    %921 = math.exp %920 : vector<8x128xf32>
    %cst_796 = arith.constant 1.000000e+00 : f32
    %922 = vector.broadcast %cst_796 : f32 to vector<8x128xf32>
    %923 = arith.addf %922, %921 : vector<8x128xf32>
    %924 = arith.divf %922, %923 : vector<8x128xf32>
    %925 = arith.addf %895, %911 : vector<8x128xf32>
    %926 = arith.negf %925 : vector<8x128xf32>
    %927 = math.exp %926 : vector<8x128xf32>
    %cst_797 = arith.constant 1.000000e+00 : f32
    %928 = vector.broadcast %cst_797 : f32 to vector<8x128xf32>
    %929 = arith.addf %928, %927 : vector<8x128xf32>
    %930 = arith.divf %928, %929 : vector<8x128xf32>
    %931 = arith.mulf %924, %918 : vector<8x128xf32>
    %932 = arith.addf %897, %931 : vector<8x128xf32>
    %933 = math.tanh %932 : vector<8x128xf32>
    %cst_798 = arith.constant 1.000000e+00 : f32
    %934 = vector.broadcast %cst_798 : f32 to vector<8x128xf32>
    %935 = arith.subf %934, %930 : vector<8x128xf32>
    %936 = arith.mulf %935, %933 : vector<8x128xf32>
    %937 = arith.mulf %930, %891 : vector<8x128xf32>
    %938 = arith.addf %936, %937 : vector<8x128xf32>
    %c0_799 = arith.constant 0 : index
    %c0_800 = arith.constant 0 : index
    %c0_801 = arith.constant 0 : index
    %939 = vector.load %arg9[%c0_799, %c0_800, %c0_801] : memref<2x8x128xf32, #tpu.memory_space<vmem>>, vector<1x8x128xf32>
    %940 = vector.shape_cast %939 : vector<1x8x128xf32> to vector<8x128xf32>
    %941 = vector.shape_cast %938 : vector<8x128xf32> to vector<1x8x128xf32>
    tpu.vector_store %arg9[%c0_799, %c0_800, %c0_801], %941 {strides = array<i32>} : memref<2x8x128xf32, #tpu.memory_space<vmem>>, vector<1x8x128xf32>,
    %c1_802 = arith.constant 1 : index
    %c0_803 = arith.constant 0 : index
    %c0_804 = arith.constant 0 : index
    %942 = vector.load %arg9[%c1_802, %c0_803, %c0_804] : memref<2x8x128xf32, #tpu.memory_space<vmem>>, vector<1x8x128xf32>
    %943 = vector.shape_cast %942 : vector<1x8x128xf32> to vector<8x128xf32>
    %c1_805 = arith.constant 1 : index
    %c0_806 = arith.constant 0 : index
    %c0_807 = arith.constant 0 : index
    %c0_808 = arith.constant 0 : index
    %944 = vector.load %arg2[%c1_805, %c0_806, %c0_807, %c0_808] : memref<2x3x128x128xf32, #tpu.memory_space<vmem>>, vector<1x1x128x128xf32>
    %945 = vector.shape_cast %944 : vector<1x1x128x128xf32> to vector<128x128xf32>
    %cst_809 = arith.constant dense<0.000000e+00> : vector<8x128xf32>
    %946 = tpu.matmul %938, %945, %cst_809 {dimension_numbers = #tpu.dot_dimension_numbers<[1], [0], [0], [1], [0, 0, 1, 1], [], []>} : vector<8x128xf32>, vector<128x128xf32>, vector<8x128xf32> -> vector<8x128xf32>
    %c1_810 = arith.constant 1 : index
    %c0_811 = arith.constant 0 : index
    %c0_812 = arith.constant 0 : index
    %c0_813 = arith.constant 0 : index
    %947 = vector.load %arg4[%c1_810, %c0_811, %c0_812, %c0_813] : memref<2x3x1x128xf32, #tpu.memory_space<vmem>>, vector<1x1x1x128xf32>
    %948 = vector.shape_cast %947 : vector<1x1x1x128xf32> to vector<1x128xf32>
    %949 = vector.broadcast %948 : vector<1x128xf32> to vector<8x128xf32>
    %950 = arith.addf %946, %949 : vector<8x128xf32>
    %c1_814 = arith.constant 1 : index
    %c1_815 = arith.constant 1 : index
    %c0_816 = arith.constant 0 : index
    %c0_817 = arith.constant 0 : index
    %951 = vector.load %arg2[%c1_814, %c1_815, %c0_816, %c0_817] : memref<2x3x128x128xf32, #tpu.memory_space<vmem>>, vector<1x1x128x128xf32>
    %952 = vector.shape_cast %951 : vector<1x1x128x128xf32> to vector<128x128xf32>
    %cst_818 = arith.constant dense<0.000000e+00> : vector<8x128xf32>
    %953 = tpu.matmul %938, %952, %cst_818 {dimension_numbers = #tpu.dot_dimension_numbers<[1], [0], [0], [1], [0, 0, 1, 1], [], []>} : vector<8x128xf32>, vector<128x128xf32>, vector<8x128xf32> -> vector<8x128xf32>
    %c1_819 = arith.constant 1 : index
    %c1_820 = arith.constant 1 : index
    %c0_821 = arith.constant 0 : index
    %c0_822 = arith.constant 0 : index
    %954 = vector.load %arg4[%c1_819, %c1_820, %c0_821, %c0_822] : memref<2x3x1x128xf32, #tpu.memory_space<vmem>>, vector<1x1x1x128xf32>
    %955 = vector.shape_cast %954 : vector<1x1x1x128xf32> to vector<1x128xf32>
    %956 = vector.broadcast %955 : vector<1x128xf32> to vector<8x128xf32>
    %957 = arith.addf %953, %956 : vector<8x128xf32>
    %c1_823 = arith.constant 1 : index
    %c2_824 = arith.constant 2 : index
    %c0_825 = arith.constant 0 : index
    %c0_826 = arith.constant 0 : index
    %958 = vector.load %arg2[%c1_823, %c2_824, %c0_825, %c0_826] : memref<2x3x128x128xf32, #tpu.memory_space<vmem>>, vector<1x1x128x128xf32>
    %959 = vector.shape_cast %958 : vector<1x1x128x128xf32> to vector<128x128xf32>
    %cst_827 = arith.constant dense<0.000000e+00> : vector<8x128xf32>
    %960 = tpu.matmul %938, %959, %cst_827 {dimension_numbers = #tpu.dot_dimension_numbers<[1], [0], [0], [1], [0, 0, 1, 1], [], []>} : vector<8x128xf32>, vector<128x128xf32>, vector<8x128xf32> -> vector<8x128xf32>
    %c1_828 = arith.constant 1 : index
    %c2_829 = arith.constant 2 : index
    %c0_830 = arith.constant 0 : index
    %c0_831 = arith.constant 0 : index
    %961 = vector.load %arg4[%c1_828, %c2_829, %c0_830, %c0_831] : memref<2x3x1x128xf32, #tpu.memory_space<vmem>>, vector<1x1x1x128xf32>
    %962 = vector.shape_cast %961 : vector<1x1x1x128xf32> to vector<1x128xf32>
    %963 = vector.broadcast %962 : vector<1x128xf32> to vector<8x128xf32>
    %964 = arith.addf %960, %963 : vector<8x128xf32>
    %c1_832 = arith.constant 1 : index
    %c0_833 = arith.constant 0 : index
    %c0_834 = arith.constant 0 : index
    %c0_835 = arith.constant 0 : index
    %965 = vector.load %arg3[%c1_832, %c0_833, %c0_834, %c0_835] : memref<2x3x128x128xf32, #tpu.memory_space<vmem>>, vector<1x1x128x128xf32>
    %966 = vector.shape_cast %965 : vector<1x1x128x128xf32> to vector<128x128xf32>
    %cst_836 = arith.constant dense<0.000000e+00> : vector<8x128xf32>
    %967 = tpu.matmul %943, %966, %cst_836 {dimension_numbers = #tpu.dot_dimension_numbers<[1], [0], [0], [1], [0, 0, 1, 1], [], []>} : vector<8x128xf32>, vector<128x128xf32>, vector<8x128xf32> -> vector<8x128xf32>
    %c1_837 = arith.constant 1 : index
    %c0_838 = arith.constant 0 : index
    %c0_839 = arith.constant 0 : index
    %c0_840 = arith.constant 0 : index
    %968 = vector.load %arg5[%c1_837, %c0_838, %c0_839, %c0_840] : memref<2x3x1x128xf32, #tpu.memory_space<vmem>>, vector<1x1x1x128xf32>
    %969 = vector.shape_cast %968 : vector<1x1x1x128xf32> to vector<1x128xf32>
    %970 = vector.broadcast %969 : vector<1x128xf32> to vector<8x128xf32>
    %971 = arith.addf %967, %970 : vector<8x128xf32>
    %c1_841 = arith.constant 1 : index
    %c1_842 = arith.constant 1 : index
    %c0_843 = arith.constant 0 : index
    %c0_844 = arith.constant 0 : index
    %972 = vector.load %arg3[%c1_841, %c1_842, %c0_843, %c0_844] : memref<2x3x128x128xf32, #tpu.memory_space<vmem>>, vector<1x1x128x128xf32>
    %973 = vector.shape_cast %972 : vector<1x1x128x128xf32> to vector<128x128xf32>
    %cst_845 = arith.constant dense<0.000000e+00> : vector<8x128xf32>
    %974 = tpu.matmul %943, %973, %cst_845 {dimension_numbers = #tpu.dot_dimension_numbers<[1], [0], [0], [1], [0, 0, 1, 1], [], []>} : vector<8x128xf32>, vector<128x128xf32>, vector<8x128xf32> -> vector<8x128xf32>
    %c1_846 = arith.constant 1 : index
    %c1_847 = arith.constant 1 : index
    %c0_848 = arith.constant 0 : index
    %c0_849 = arith.constant 0 : index
    %975 = vector.load %arg5[%c1_846, %c1_847, %c0_848, %c0_849] : memref<2x3x1x128xf32, #tpu.memory_space<vmem>>, vector<1x1x1x128xf32>
    %976 = vector.shape_cast %975 : vector<1x1x1x128xf32> to vector<1x128xf32>
    %977 = vector.broadcast %976 : vector<1x128xf32> to vector<8x128xf32>
    %978 = arith.addf %974, %977 : vector<8x128xf32>
    %c1_850 = arith.constant 1 : index
    %c2_851 = arith.constant 2 : index
    %c0_852 = arith.constant 0 : index
    %c0_853 = arith.constant 0 : index
    %979 = vector.load %arg3[%c1_850, %c2_851, %c0_852, %c0_853] : memref<2x3x128x128xf32, #tpu.memory_space<vmem>>, vector<1x1x128x128xf32>
    %980 = vector.shape_cast %979 : vector<1x1x128x128xf32> to vector<128x128xf32>
    %cst_854 = arith.constant dense<0.000000e+00> : vector<8x128xf32>
    %981 = tpu.matmul %943, %980, %cst_854 {dimension_numbers = #tpu.dot_dimension_numbers<[1], [0], [0], [1], [0, 0, 1, 1], [], []>} : vector<8x128xf32>, vector<128x128xf32>, vector<8x128xf32> -> vector<8x128xf32>
    %c1_855 = arith.constant 1 : index
    %c2_856 = arith.constant 2 : index
    %c0_857 = arith.constant 0 : index
    %c0_858 = arith.constant 0 : index
    %982 = vector.load %arg5[%c1_855, %c2_856, %c0_857, %c0_858] : memref<2x3x1x128xf32, #tpu.memory_space<vmem>>, vector<1x1x1x128xf32>
    %983 = vector.shape_cast %982 : vector<1x1x1x128xf32> to vector<1x128xf32>
    %984 = vector.broadcast %983 : vector<1x128xf32> to vector<8x128xf32>
    %985 = arith.addf %981, %984 : vector<8x128xf32>
    %986 = arith.addf %950, %971 : vector<8x128xf32>
    %987 = arith.negf %986 : vector<8x128xf32>
    %988 = math.exp %987 : vector<8x128xf32>
    %cst_859 = arith.constant 1.000000e+00 : f32
    %989 = vector.broadcast %cst_859 : f32 to vector<8x128xf32>
    %990 = arith.addf %989, %988 : vector<8x128xf32>
    %991 = arith.divf %989, %990 : vector<8x128xf32>
    %992 = arith.addf %957, %978 : vector<8x128xf32>
    %993 = arith.negf %992 : vector<8x128xf32>
    %994 = math.exp %993 : vector<8x128xf32>
    %cst_860 = arith.constant 1.000000e+00 : f32
    %995 = vector.broadcast %cst_860 : f32 to vector<8x128xf32>
    %996 = arith.addf %995, %994 : vector<8x128xf32>
    %997 = arith.divf %995, %996 : vector<8x128xf32>
    %998 = arith.mulf %991, %985 : vector<8x128xf32>
    %999 = arith.addf %964, %998 : vector<8x128xf32>
    %1000 = math.tanh %999 : vector<8x128xf32>
    %cst_861 = arith.constant 1.000000e+00 : f32
    %1001 = vector.broadcast %cst_861 : f32 to vector<8x128xf32>
    %1002 = arith.subf %1001, %997 : vector<8x128xf32>
    %1003 = arith.mulf %1002, %1000 : vector<8x128xf32>
    %1004 = arith.mulf %997, %943 : vector<8x128xf32>
    %1005 = arith.addf %1003, %1004 : vector<8x128xf32>
    %c1_862 = arith.constant 1 : index
    %c0_863 = arith.constant 0 : index
    %c0_864 = arith.constant 0 : index
    %1006 = vector.load %arg9[%c1_862, %c0_863, %c0_864] : memref<2x8x128xf32, #tpu.memory_space<vmem>>, vector<1x8x128xf32>
    %1007 = vector.shape_cast %1006 : vector<1x8x128xf32> to vector<8x128xf32>
    %1008 = vector.shape_cast %1005 : vector<8x128xf32> to vector<1x8x128xf32>
    tpu.vector_store %arg9[%c1_862, %c0_863, %c0_864], %1008 {strides = array<i32>} : memref<2x8x128xf32, #tpu.memory_space<vmem>>, vector<1x8x128xf32>,
    %1009 = arith.index_cast %889 : i32 to index
    %c0_865 = arith.constant 0 : index
    %1010 = vector.load %arg13[%1009, %c0_865] : memref<64x128xf32, #tpu.memory_space<vmem>>, vector<8x128xf32>
    tpu.vector_store %arg13[%1009, %c0_865], %1005 {strides = array<i32>} : memref<64x128xf32, #tpu.memory_space<vmem>>, vector<8x128xf32>,
    %c8_i32_866 = arith.constant 8 : i32
    %c0_867 = arith.constant 0 : index
    %c0_868 = arith.constant 0 : index
    %1011 = vector.load %arg13[%c0_867, %c0_868] : memref<64x128xf32, #tpu.memory_space<vmem>>, vector<64x128xf32>
    %c0_869 = arith.constant 0 : index
    %c0_870 = arith.constant 0 : index
    %1012 = vector.load %arg6[%c0_869, %c0_870] : memref<128x128xf32, #tpu.memory_space<vmem>>, vector<128x128xf32>
    %cst_871 = arith.constant dense<0.000000e+00> : vector<64x128xf32>
    %1013 = tpu.matmul %1011, %1012, %cst_871 {dimension_numbers = #tpu.dot_dimension_numbers<[1], [0], [0], [1], [0, 0, 1, 1], [], []>} : vector<64x128xf32>, vector<128x128xf32>, vector<64x128xf32> -> vector<64x128xf32>
    %c0_872 = arith.constant 0 : index
    %c0_873 = arith.constant 0 : index
    %1014 = vector.load %arg7[%c0_872, %c0_873] : memref<1x128xf32, #tpu.memory_space<vmem>>, vector<1x128xf32>
    %1015 = vector.broadcast %1014 : vector<1x128xf32> to vector<64x128xf32>
    %1016 = arith.addf %1013, %1015 : vector<64x128xf32>
    %cst_874 = arith.constant 1.500000e+00 : f32
    %1017 = vector.broadcast %cst_874 : f32 to vector<64x128xf32>
    %1018 = arith.mulf %1016, %1017 : vector<64x128xf32>
    %c0_875 = arith.constant 0 : index
    %c0_876 = arith.constant 0 : index
    %1019 = vector.load %arg8[%c0_875, %c0_876] : memref<64x128xf32, #tpu.memory_space<vmem>>, vector<64x128xf32>
    tpu.vector_store %arg8[%c0_875, %c0_876], %1018 {strides = array<i32>} : memref<64x128xf32, #tpu.memory_space<vmem>>, vector<64x128xf32>,
    return
  }
  func.func @transform_0(%arg0: i32) -> (i32, i32) {
    %c0_i32 = arith.constant 0 : i32
    %c0_i32_0 = arith.constant 0 : i32
    %c0_i32_1 = arith.constant 0 : i32
    return %c0_i32, %c0_i32_0 : i32, i32
  }
  func.func @transform_1(%arg0: i32) -> (i32, i32, i32, i32) {
    %c0_i32 = arith.constant 0 : i32
    %c0_i32_0 = arith.constant 0 : i32
    %c0_i32_1 = arith.constant 0 : i32
    %c0_i32_2 = arith.constant 0 : i32
    %c0_i32_3 = arith.constant 0 : i32
    return %c0_i32, %c0_i32_0, %c0_i32_1, %c0_i32_2 : i32, i32, i32, i32
  }
  func.func @transform_2(%arg0: i32) -> (i32, i32, i32, i32) {
    %c0_i32 = arith.constant 0 : i32
    %c0_i32_0 = arith.constant 0 : i32
    %c0_i32_1 = arith.constant 0 : i32
    %c0_i32_2 = arith.constant 0 : i32
    %c0_i32_3 = arith.constant 0 : i32
    return %c0_i32, %c0_i32_0, %c0_i32_1, %c0_i32_2 : i32, i32, i32, i32
  }
  func.func @transform_3(%arg0: i32) -> (i32, i32, i32, i32) {
    %c0_i32 = arith.constant 0 : i32
    %c0_i32_0 = arith.constant 0 : i32
    %c0_i32_1 = arith.constant 0 : i32
    %c0_i32_2 = arith.constant 0 : i32
    %c0_i32_3 = arith.constant 0 : i32
    return %c0_i32, %c0_i32_0, %c0_i32_1, %c0_i32_2 : i32, i32, i32, i32
  }
  func.func @transform_4(%arg0: i32) -> (i32, i32, i32, i32) {
    %c0_i32 = arith.constant 0 : i32
    %c0_i32_0 = arith.constant 0 : i32
    %c0_i32_1 = arith.constant 0 : i32
    %c0_i32_2 = arith.constant 0 : i32
    %c0_i32_3 = arith.constant 0 : i32
    return %c0_i32, %c0_i32_0, %c0_i32_1, %c0_i32_2 : i32, i32, i32, i32
  }
  func.func @transform_5(%arg0: i32) -> (i32, i32) {
    %c0_i32 = arith.constant 0 : i32
    %c0_i32_0 = arith.constant 0 : i32
    %c0_i32_1 = arith.constant 0 : i32
    return %c0_i32, %c0_i32_0 : i32, i32
  }
  func.func @transform_6(%arg0: i32) -> (i32, i32) {
    %c0_i32 = arith.constant 0 : i32
    %c0_i32_0 = arith.constant 0 : i32
    %c0_i32_1 = arith.constant 0 : i32
    return %c0_i32, %c0_i32_0 : i32, i32
  }
  func.func @transform_7(%arg0: i32) -> (i32, i32) {
    %c0_i32 = arith.constant 0 : i32
    %c0_i32_0 = arith.constant 0 : i32
    %c0_i32_1 = arith.constant 0 : i32
    return %c0_i32, %c0_i32_0 : i32, i32
  }
}

</mosaic_0001>

<llo_original>
// kernel: tpu_custom_call.1
$region0: #{tpu_custom_call.1}
  #allocation0 [shape = 'u32[]', space=smem, size = 0x4, offset = 0x4, fixed_abs, tag = 'smem constant byte address 0x4 - core index']
  #allocation1 [shape = 'u32[72,128]{1,0:T(1,128)}', space=vmem, size = 0x9000, scoped, tag = 'internal scratch']
  #allocation2 [shape = 'f32[2,8,128]{2,1,0:T(8,128)}', space=vmem, size = 0x2000, scoped, tag = 'scratch operand']
  #allocation3 [shape = 'f32[64,128]{1,0:T(8,128)}', space=vmem, size = 0x8000, scoped, tag = 'scratch operand']
  #allocation4 [shape = 'f32[64,128]{1,0:T(8,128)}', space=vmem, size = 0x8000, scoped, tag = 'scratch operand']
  #allocation5 [shape = 'f32[64,128]{1,0:T(8,128)}', space=vmem, size = 0x8000, scoped, tag = 'scratch operand']
  #allocation6 [shape = 'f32[64,128]{1,0:T(8,128)}', space=vmem, size = 0x8000, scoped, tag = 'scratch operand']
  %s0 = inlined_call_operand.hbm [shape: f32[64,128], index: 0, kind: input, shape index: {}]
  %s1 = inlined_call_operand.hbm [shape: f32[2,3,128,128], index: 1, kind: input, shape index: {}]
  %s2 = inlined_call_operand.hbm [shape: f32[2,3,128,128], index: 2, kind: input, shape index: {}]
  %s3 = inlined_call_operand.hbm [shape: f32[2,3,1,128], index: 3, kind: input, shape index: {}]
  %s4 = inlined_call_operand.hbm [shape: f32[2,3,1,128], index: 4, kind: input, shape index: {}]
  %s5 = inlined_call_operand.hbm [shape: f32[128,128], index: 5, kind: input, shape index: {}]
  %s6 = inlined_call_operand.vmem [shape: f32[1,128], index: 6, kind: input, shape index: {}]
  %s7 = inlined_call_operand.hbm [shape: f32[64,128], index: 7, kind: output, shape index: {}]
  %s8 = sld [smem:[#allocation0]]
  $region62: #{tpu_custom_call.1} parent=0
    _
  %s10 = ssub.s32 1, %s8
  %s11 = scalar_select 0, %s10, %s8
  $region1: #{tpu_custom_call.1} parent=0
    #allocation7 [shape = 'u8[32768]{0}', space=vmem, size = 0x8000, scoped, tag = 'input window, operand 0, single buffered']
    #allocation8 [shape = 's32[1]{0}', space=sflag, size = 0x4, scoped, tag = 'scoped memory for tpu_custom_call.1']
    #allocation9 [shape = 's32[1]{0}', space=sflag, size = 0x4, scoped, tag = 'scoped memory for tpu_custom_call.1']
    #allocation10 [shape = 'u8[393216]{0}', space=vmem, size = 0x60000, scoped, tag = 'input window, operand 1, single buffered']
    #allocation11 [shape = 's32[1]{0}', space=sflag, size = 0x4, scoped, tag = 'scoped memory for tpu_custom_call.1']
    #allocation12 [shape = 'u8[393216]{0}', space=vmem, size = 0x60000, scoped, tag = 'input window, operand 2, single buffered']
    #allocation13 [shape = 'u8[3072]{0}', space=vmem, size = 0xc00, scoped, tag = 'input window, operand 3, single buffered']
    #allocation14 [shape = 's32[1]{0}', space=sflag, size = 0x4, scoped, tag = 'scoped memory for tpu_custom_call.1']
    #allocation15 [shape = 'u8[3072]{0}', space=vmem, size = 0xc00, scoped, tag = 'input window, operand 4, single buffered']
    #allocation16 [shape = 'u8[65536]{0}', space=vmem, size = 0x10000, scoped, tag = 'input window, operand 5, single buffered']
    #allocation17 [shape = 's32[1]{0}', space=sflag, size = 0x4, scoped, tag = 'scoped memory for tpu_custom_call.1']
    #allocation18 [shape = 'u8[32768]{0}', space=vmem, size = 0x8000, scoped, tag = 'output window, operand 0, single buffered']
    %12 = vsyncpa [#allocation8], 0
    %13 = vsyncpa [#allocation11], 0
    %14 = vsyncpa [#allocation14], 0
    %15 = vsyncpa [#allocation17], 0
    %16 = vsyncpa [#allocation9], 0
    // Predicated region
    $region2: #{tpu_custom_call.1} parent=1 // pred_check
      _
    $region3: #{tpu_custom_call.1} parent=1 // pred_check_branch
      %18 = sbr.rel (0) target = $region5
    $region4: #{tpu_custom_call.1} parent=1 // pred_region
      %20 = vsyncadd [#allocation8], 0
      %s21 = sshll.u32 %s0, 4
      %s22 = int_to_ptr.hbm [resolvable:$true] %s21
      %s23 = sshll.u32 [#allocation7], 4
      %s24 = int_to_ptr.vmem [resolvable:$true] %s23
      %29 = dma.hbm_to_vmem [thread:$0]  %s22, 1024, %s24, [#allocation8], 128, 128, 8
    $region5: #{tpu_custom_call.1} parent=1 // pred_fallthru
      _
    // Predicated region
    $region6: #{tpu_custom_call.1} parent=1 // pred_check
      _
    $region7: #{tpu_custom_call.1} parent=1 // pred_check_branch
      %31 = sbr.rel (0) target = $region9
    $region8: #{tpu_custom_call.1} parent=1 // pred_region
      %33 = vsyncadd [#allocation11], 0
      %s34 = sshll.u32 %s1, 4
      %s35 = int_to_ptr.hbm [resolvable:$true] %s34
      %s36 = sshll.u32 [#allocation10], 4
      %s37 = int_to_ptr.vmem [resolvable:$true] %s36
      %42 = dma.hbm_to_vmem [thread:$0]  %s35, 12288, %s37, [#allocation11], 128, 128, 8
    $region9: #{tpu_custom_call.1} parent=1 // pred_fallthru
      _
    // Predicated region
    $region10: #{tpu_custom_call.1} parent=1 // pred_check
      _
    $region11: #{tpu_custom_call.1} parent=1 // pred_check_branch
      %44 = sbr.rel (0) target = $region13
    $region12: #{tpu_custom_call.1} parent=1 // pred_region
      %46 = vsyncadd [#allocation11], 0
      %s47 = sshll.u32 %s2, 4
      %s48 = int_to_ptr.hbm [resolvable:$true] %s47
      %s49 = sshll.u32 [#allocation12], 4
      %s50 = int_to_ptr.vmem [resolvable:$true] %s49
      %55 = dma.hbm_to_vmem [thread:$0]  %s48, 12288, %s50, [#allocation11], 128, 128, 8
    $region13: #{tpu_custom_call.1} parent=1 // pred_fallthru
      _
    // Predicated region
    $region14: #{tpu_custom_call.1} parent=1 // pred_check
      _
    $region15: #{tpu_custom_call.1} parent=1 // pred_check_branch
      %57 = sbr.rel (0) target = $region17
    $region16: #{tpu_custom_call.1} parent=1 // pred_region
      %59 = vsyncadd [#allocation14], 0
      %s60 = sshll.u32 %s3, 4
      %s61 = int_to_ptr.hbm [resolvable:$true] %s60
      %s62 = sshll.u32 [#allocation13], 4
      %s63 = int_to_ptr.vmem [resolvable:$true] %s62
      %68 = dma.hbm_to_vmem [thread:$0]  %s61, 96, %s63, [#allocation14], 16, 16, 1
    $region17: #{tpu_custom_call.1} parent=1 // pred_fallthru
      _
    // Predicated region
    $region18: #{tpu_custom_call.1} parent=1 // pred_check
      _
    $region19: #{tpu_custom_call.1} parent=1 // pred_check_branch
      %70 = sbr.rel (0) target = $region21
    $region20: #{tpu_custom_call.1} parent=1 // pred_region
      %72 = vsyncadd [#allocation14], 0
      %s73 = sshll.u32 %s4, 4
      %s74 = int_to_ptr.hbm [resolvable:$true] %s73
      %s75 = sshll.u32 [#allocation15], 4
      %s76 = int_to_ptr.vmem [resolvable:$true] %s75
      %81 = dma.hbm_to_vmem [thread:$0]  %s74, 96, %s76, [#allocation14], 16, 16, 1
    $region21: #{tpu_custom_call.1} parent=1 // pred_fallthru
      _
    // Predicated region
    $region22: #{tpu_custom_call.1} parent=1 // pred_check
      _
    $region23: #{tpu_custom_call.1} parent=1 // pred_check_branch
      %83 = sbr.rel (0) target = $region25
    $region24: #{tpu_custom_call.1} parent=1 // pred_region
      %85 = vsyncadd [#allocation17], 0
      %s86 = sshll.u32 %s5, 4
      %s87 = int_to_ptr.hbm [resolvable:$true] %s86
      %s88 = sshll.u32 [#allocation16], 4
      %s89 = int_to_ptr.vmem [resolvable:$true] %s88
      %94 = dma.hbm_to_vmem [thread:$0]  %s87, 2048, %s89, [#allocation17], 128, 128, 8
    $region25: #{tpu_custom_call.1} parent=1 // pred_fallthru
      _
    // Predicated region
    $region26: #{tpu_custom_call.1} parent=1 // pred_check
      _
    $region27: #{tpu_custom_call.1} parent=1 // pred_check_branch
      %96 = sbr.rel (0) target = $region29
    $region28: #{tpu_custom_call.1} parent=1 // pred_region
      _
    $region29: #{tpu_custom_call.1} parent=1 // pred_fallthru
      _
    // Predicated region
    $region30: #{tpu_custom_call.1} parent=1 // pred_check
      _
    $region31: #{tpu_custom_call.1} parent=1 // pred_check_branch
      %98 = sbr.rel (0) target = $region33
    $region32: #{tpu_custom_call.1} parent=1 // pred_region
      %100 = dma.done [#allocation8], 1024
    $region33: #{tpu_custom_call.1} parent=1 // pred_fallthru
      _
    // Predicated region
    $region34: #{tpu_custom_call.1} parent=1 // pred_check
      _
    $region35: #{tpu_custom_call.1} parent=1 // pred_check_branch
      %102 = sbr.rel (0) target = $region37
    $region36: #{tpu_custom_call.1} parent=1 // pred_region
      %104 = dma.done [#allocation11], 12288
    $region37: #{tpu_custom_call.1} parent=1 // pred_fallthru
      _
    // Predicated region
    $region38: #{tpu_custom_call.1} parent=1 // pred_check
      _
    $region39: #{tpu_custom_call.1} parent=1 // pred_check_branch
      %106 = sbr.rel (0) target = $region41
    $region40: #{tpu_custom_call.1} parent=1 // pred_region
      %108 = dma.done [#allocation11], 12288
    $region41: #{tpu_custom_call.1} parent=1 // pred_fallthru
      _
    // Predicated region
    $region42: #{tpu_custom_call.1} parent=1 // pred_check
      _
    $region43: #{tpu_custom_call.1} parent=1 // pred_check_branch
      %110 = sbr.rel (0) target = $region45
    $region44: #{tpu_custom_call.1} parent=1 // pred_region
      %112 = dma.done [#allocation14], 96
    $region45: #{tpu_custom_call.1} parent=1 // pred_fallthru
      _
    // Predicated region
    $region46: #{tpu_custom_call.1} parent=1 // pred_check
      _
    $region47: #{tpu_custom_call.1} parent=1 // pred_check_branch
      %114 = sbr.rel (0) target = $region49
    $region48: #{tpu_custom_call.1} parent=1 // pred_region
      %116 = dma.done [#allocation14], 96
    $region49: #{tpu_custom_call.1} parent=1 // pred_fallthru
      _
    // Predicated region
    $region50: #{tpu_custom_call.1} parent=1 // pred_check
      _
    $region51: #{tpu_custom_call.1} parent=1 // pred_check_branch
      %118 = sbr.rel (0) target = $region53
    $region52: #{tpu_custom_call.1} parent=1 // pred_region
      %120 = dma.done [#allocation17], 2048
    $region53: #{tpu_custom_call.1} parent=1 // pred_fallthru
      _
    %121 = vst [vmem:[#allocation2] sm:$0xff] 0.0
    %122 = vst [vmem:[#allocation2 + $0x8] sm:$0xff] 0.0
    %v123 = vld [vmem:[#allocation7] sm:$0xff]
    %v124 = vld [vmem:[#allocation7 + $0x8] sm:$0xff]
    %v125 = vld [vmem:[#allocation7 + $0x10] sm:$0xff]
    %v126 = vld [vmem:[#allocation7 + $0x18] sm:$0xff]
    %v127 = vld [vmem:[#allocation7 + $0x20] sm:$0xff]
    %v128 = vld [vmem:[#allocation7 + $0x28] sm:$0xff]
    %v129 = vld [vmem:[#allocation7 + $0x30] sm:$0xff]
    %v130 = vld [vmem:[#allocation7 + $0x38] sm:$0xff]
    %v131 = vld [vmem:[#allocation10] sm:$0xff]
    %v132 = vld [vmem:[#allocation10 + $0x8] sm:$0xff]
    %v133 = vld [vmem:[#allocation10 + $0x10] sm:$0xff]
    %v134 = vld [vmem:[#allocation10 + $0x18] sm:$0xff]
    %v135 = vld [vmem:[#allocation10 + $0x20] sm:$0xff]
    %v136 = vld [vmem:[#allocation10 + $0x28] sm:$0xff]
    %v137 = vld [vmem:[#allocation10 + $0x30] sm:$0xff]
    %v138 = vld [vmem:[#allocation10 + $0x38] sm:$0xff]
    %v139 = vld [vmem:[#allocation10 + $0x40] sm:$0xff]
    %v140 = vld [vmem:[#allocation10 + $0x48] sm:$0xff]
    %v141 = vld [vmem:[#allocation10 + $0x50] sm:$0xff]
    %v142 = vld [vmem:[#allocation10 + $0x58] sm:$0xff]
    %v143 = vld [vmem:[#allocation10 + $0x60] sm:$0xff]
    %v144 = vld [vmem:[#allocation10 + $0x68] sm:$0xff]
    %v145 = vld [vmem:[#allocation10 + $0x70] sm:$0xff]
    %v146 = vld [vmem:[#allocation10 + $0x78] sm:$0xff]
    %v147 = vld [vmem:[#allocation13] sm:$0x1]
    %v149 = vperm.slane %v147, 0
    %151 = vmatpush.msra.mxu0 %v146
    %152 = vmatpush.msra.mxu0 %v145
    %153 = vmatpush.msra.mxu0 %v144
    %154 = vmatpush.msra.mxu0 %v143
    %155 = vmatpush.msra.mxu0 %v142
    %156 = vmatpush.msra.mxu0 %v141
    %157 = vmatpush.msra.mxu0 %v140
    %158 = vmatpush.msra.mxu0 %v139
    %159 = vmatpush.msra.mxu0 %v138
    %160 = vmatpush.msra.mxu0 %v137
    %161 = vmatpush.msra.mxu0 %v136
    %162 = vmatpush.msra.mxu0 %v135
    %163 = vmatpush.msra.mxu0 %v134
    %164 = vmatpush.msra.mxu0 %v133
    %165 = vmatpush.msra.mxu0 %v132
    %166 = vmatpush.msra.mxu0 %v131
    %167 = vmatmul.f32.gmra.mxu0 %v123
    %v168 = vpop.f32.mrf.mxu0
    %v169 = vadd.f32 %v149, %v168
    %170 = vmatmul.f32.gmra.mxu0 %v124
    %v171 = vpop.f32.mrf.mxu0
    %v172 = vadd.f32 %v149, %v171
    %173 = vmatmul.f32.gmra.mxu0 %v125
    %v174 = vpop.f32.mrf.mxu0
    %v175 = vadd.f32 %v149, %v174
    %176 = vmatmul.f32.gmra.mxu0 %v126
    %v177 = vpop.f32.mrf.mxu0
    %v178 = vadd.f32 %v149, %v177
    %179 = vmatmul.f32.gmra.mxu0 %v127
    %v180 = vpop.f32.mrf.mxu0
    %v181 = vadd.f32 %v149, %v180
    %182 = vmatmul.f32.gmra.mxu0 %v128
    %v183 = vpop.f32.mrf.mxu0
    %v184 = vadd.f32 %v149, %v183
    %185 = vmatmul.f32.gmra.mxu0 %v129
    %v186 = vpop.f32.mrf.mxu0
    %v187 = vadd.f32 %v149, %v186
    %188 = vmatmul.f32.gmra.mxu0 %v130
    %v189 = vpop.f32.mrf.mxu0
    %v190 = vadd.f32 %v149, %v189
    %191 = vdwg.mxu0
    %192 = vst [vmem:[#allocation3] sm:$0xff] %v169
    %193 = vst [vmem:[#allocation3 + $0x8] sm:$0xff] %v172
    %194 = vst [vmem:[#allocation3 + $0x10] sm:$0xff] %v175
    %195 = vst [vmem:[#allocation3 + $0x18] sm:$0xff] %v178
    %196 = vst [vmem:[#allocation3 + $0x20] sm:$0xff] %v181
    %197 = vst [vmem:[#allocation3 + $0x28] sm:$0xff] %v184
    %198 = vst [vmem:[#allocation3 + $0x30] sm:$0xff] %v187
    %199 = vst [vmem:[#allocation3 + $0x38] sm:$0xff] %v190
    %s200 = scalar_lea.vmem [#allocation10], 128
    %v201 = vld [vmem:[%s200] sm:$0xff]
    %v202 = vld [vmem:[%s200 + $0x8] sm:$0xff]
    %v203 = vld [vmem:[%s200 + $0x10] sm:$0xff]
    %v204 = vld [vmem:[%s200 + $0x18] sm:$0xff]
    %v205 = vld [vmem:[%s200 + $0x20] sm:$0xff]
    %v206 = vld [vmem:[%s200 + $0x28] sm:$0xff]
    %v207 = vld [vmem:[%s200 + $0x30] sm:$0xff]
    %v208 = vld [vmem:[%s200 + $0x38] sm:$0xff]
    %v209 = vld [vmem:[%s200 + $0x40] sm:$0xff]
    %v210 = vld [vmem:[%s200 + $0x48] sm:$0xff]
    %v211 = vld [vmem:[%s200 + $0x50] sm:$0xff]
    %v212 = vld [vmem:[%s200 + $0x58] sm:$0xff]
    %v213 = vld [vmem:[%s200 + $0x60] sm:$0xff]
    %v214 = vld [vmem:[%s200 + $0x68] sm:$0xff]
    %v215 = vld [vmem:[%s200 + $0x70] sm:$0xff]
    %v216 = vld [vmem:[%s200 + $0x78] sm:$0xff]
    %s217 = scalar_lea.vmem [#allocation13], 1
    %v218 = vld [vmem:[%s217] sm:$0x1]
    %v220 = vperm.slane %v218, 0
    %222 = vmatpush.msra.mxu0 %v216
    %223 = vmatpush.msra.mxu0 %v215
    %224 = vmatpush.msra.mxu0 %v214
    %225 = vmatpush.msra.mxu0 %v213
    %226 = vmatpush.msra.mxu0 %v212
    %227 = vmatpush.msra.mxu0 %v211
    %228 = vmatpush.msra.mxu0 %v210
    %229 = vmatpush.msra.mxu0 %v209
    %230 = vmatpush.msra.mxu0 %v208
    %231 = vmatpush.msra.mxu0 %v207
    %232 = vmatpush.msra.mxu0 %v206
    %233 = vmatpush.msra.mxu0 %v205
    %234 = vmatpush.msra.mxu0 %v204
    %235 = vmatpush.msra.mxu0 %v203
    %236 = vmatpush.msra.mxu0 %v202
    %237 = vmatpush.msra.mxu0 %v201
    %238 = vmatmul.f32.gmra.mxu0 %v123
    %v239 = vpop.f32.mrf.mxu0
    %v240 = vadd.f32 %v220, %v239
    %241 = vmatmul.f32.gmra.mxu0 %v124
    %v242 = vpop.f32.mrf.mxu0
    %v243 = vadd.f32 %v220, %v242
    %244 = vmatmul.f32.gmra.mxu0 %v125
    %v245 = vpop.f32.mrf.mxu0
    %v246 = vadd.f32 %v220, %v245
    %247 = vmatmul.f32.gmra.mxu0 %v126
    %v248 = vpop.f32.mrf.mxu0
    %v249 = vadd.f32 %v220, %v248
    %250 = vmatmul.f32.gmra.mxu0 %v127
    %v251 = vpop.f32.mrf.mxu0
    %v252 = vadd.f32 %v220, %v251
    %253 = vmatmul.f32.gmra.mxu0 %v128
    %v254 = vpop.f32.mrf.mxu0
    %v255 = vadd.f32 %v220, %v254
    %256 = vmatmul.f32.gmra.mxu0 %v129
    %v257 = vpop.f32.mrf.mxu0
    %v258 = vadd.f32 %v220, %v257
    %259 = vmatmul.f32.gmra.mxu0 %v130
    %v260 = vpop.f32.mrf.mxu0
    %v261 = vadd.f32 %v220, %v260
    %262 = vdwg.mxu0
    %263 = vst [vmem:[#allocation4] sm:$0xff] %v240
    %264 = vst [vmem:[#allocation4 + $0x8] sm:$0xff] %v243
    %265 = vst [vmem:[#allocation4 + $0x10] sm:$0xff] %v246
    %266 = vst [vmem:[#allocation4 + $0x18] sm:$0xff] %v249
    %267 = vst [vmem:[#allocation4 + $0x20] sm:$0xff] %v252
    %268 = vst [vmem:[#allocation4 + $0x28] sm:$0xff] %v255
    %269 = vst [vmem:[#allocation4 + $0x30] sm:$0xff] %v258
    %270 = vst [vmem:[#allocation4 + $0x38] sm:$0xff] %v261
    %s271 = scalar_lea.vmem [#allocation10], 256
    %v272 = vld [vmem:[%s271] sm:$0xff]
    %v273 = vld [vmem:[%s271 + $0x8] sm:$0xff]
    %v274 = vld [vmem:[%s271 + $0x10] sm:$0xff]
    %v275 = vld [vmem:[%s271 + $0x18] sm:$0xff]
    %v276 = vld [vmem:[%s271 + $0x20] sm:$0xff]
    %v277 = vld [vmem:[%s271 + $0x28] sm:$0xff]
    %v278 = vld [vmem:[%s271 + $0x30] sm:$0xff]
    %v279 = vld [vmem:[%s271 + $0x38] sm:$0xff]
    %v280 = vld [vmem:[%s271 + $0x40] sm:$0xff]
    %v281 = vld [vmem:[%s271 + $0x48] sm:$0xff]
    %v282 = vld [vmem:[%s271 + $0x50] sm:$0xff]
    %v283 = vld [vmem:[%s271 + $0x58] sm:$0xff]
    %v284 = vld [vmem:[%s271 + $0x60] sm:$0xff]
    %v285 = vld [vmem:[%s271 + $0x68] sm:$0xff]
    %v286 = vld [vmem:[%s271 + $0x70] sm:$0xff]
    %v287 = vld [vmem:[%s271 + $0x78] sm:$0xff]
    %s288 = scalar_lea.vmem [#allocation13], 2
    %v289 = vld [vmem:[%s288] sm:$0x1]
    %v291 = vperm.slane %v289, 0
    %293 = vmatpush.msra.mxu0 %v287
    %294 = vmatpush.msra.mxu0 %v286
    %295 = vmatpush.msra.mxu0 %v285
    %296 = vmatpush.msra.mxu0 %v284
    %297 = vmatpush.msra.mxu0 %v283
    %298 = vmatpush.msra.mxu0 %v282
    %299 = vmatpush.msra.mxu0 %v281
    %300 = vmatpush.msra.mxu0 %v280
    %301 = vmatpush.msra.mxu0 %v279
    %302 = vmatpush.msra.mxu0 %v278
    %303 = vmatpush.msra.mxu0 %v277
    %304 = vmatpush.msra.mxu0 %v276
    %305 = vmatpush.msra.mxu0 %v275
    %306 = vmatpush.msra.mxu0 %v274
    %307 = vmatpush.msra.mxu0 %v273
    %308 = vmatpush.msra.mxu0 %v272
    %309 = vmatmul.f32.gmra.mxu0 %v123
    %v310 = vpop.f32.mrf.mxu0
    %v311 = vadd.f32 %v291, %v310
    %312 = vmatmul.f32.gmra.mxu0 %v124
    %v313 = vpop.f32.mrf.mxu0
    %v314 = vadd.f32 %v291, %v313
    %315 = vmatmul.f32.gmra.mxu0 %v125
    %v316 = vpop.f32.mrf.mxu0
    %v317 = vadd.f32 %v291, %v316
    %318 = vmatmul.f32.gmra.mxu0 %v126
    %v319 = vpop.f32.mrf.mxu0
    %v320 = vadd.f32 %v291, %v319
    %321 = vmatmul.f32.gmra.mxu0 %v127
    %v322 = vpop.f32.mrf.mxu0
    %v323 = vadd.f32 %v291, %v322
    %324 = vmatmul.f32.gmra.mxu0 %v128
    %v325 = vpop.f32.mrf.mxu0
    %v326 = vadd.f32 %v291, %v325
    %327 = vmatmul.f32.gmra.mxu0 %v129
    %v328 = vpop.f32.mrf.mxu0
    %v329 = vadd.f32 %v291, %v328
    %330 = vmatmul.f32.gmra.mxu0 %v130
    %v331 = vpop.f32.mrf.mxu0
    %v332 = vadd.f32 %v291, %v331
    %333 = vdwg.mxu0
    %334 = vst [vmem:[#allocation5] sm:$0xff] %v311
    %335 = vst [vmem:[#allocation5 + $0x8] sm:$0xff] %v314
    %336 = vst [vmem:[#allocation5 + $0x10] sm:$0xff] %v317
    %337 = vst [vmem:[#allocation5 + $0x18] sm:$0xff] %v320
    %338 = vst [vmem:[#allocation5 + $0x20] sm:$0xff] %v323
    %339 = vst [vmem:[#allocation5 + $0x28] sm:$0xff] %v326
    %340 = vst [vmem:[#allocation5 + $0x30] sm:$0xff] %v329
    %341 = vst [vmem:[#allocation5 + $0x38] sm:$0xff] %v332
    %v342 = vld [vmem:[#allocation2] sm:$0xff]
    %v343 = vld [vmem:[#allocation3] sm:$0xff]
    %v344 = vld [vmem:[#allocation4] sm:$0xff]
    %v345 = vld [vmem:[#allocation5] sm:$0xff]
    %v346 = vld [vmem:[#allocation12] sm:$0xff]
    %v347 = vld [vmem:[#allocation12 + $0x8] sm:$0xff]
    %v348 = vld [vmem:[#allocation12 + $0x10] sm:$0xff]
    %v349 = vld [vmem:[#allocation12 + $0x18] sm:$0xff]
    %v350 = vld [vmem:[#allocation12 + $0x20] sm:$0xff]
    %v351 = vld [vmem:[#allocation12 + $0x28] sm:$0xff]
    %v352 = vld [vmem:[#allocation12 + $0x30] sm:$0xff]
    %v353 = vld [vmem:[#allocation12 + $0x38] sm:$0xff]
    %v354 = vld [vmem:[#allocation12 + $0x40] sm:$0xff]
    %v355 = vld [vmem:[#allocation12 + $0x48] sm:$0xff]
    %v356 = vld [vmem:[#allocation12 + $0x50] sm:$0xff]
    %v357 = vld [vmem:[#allocation12 + $0x58] sm:$0xff]
    %v358 = vld [vmem:[#allocation12 + $0x60] sm:$0xff]
    %v359 = vld [vmem:[#allocation12 + $0x68] sm:$0xff]
    %v360 = vld [vmem:[#allocation12 + $0x70] sm:$0xff]
    %v361 = vld [vmem:[#allocation12 + $0x78] sm:$0xff]
    %v362 = vld [vmem:[#allocation15] sm:$0x1]
    %v364 = vperm.slane %v362, 0
    %366 = vmatpush.msra.mxu0 %v361
    %367 = vmatpush.msra.mxu0 %v360
    %368 = vmatpush.msra.mxu0 %v359
    %369 = vmatpush.msra.mxu0 %v358
    %370 = vmatpush.msra.mxu0 %v357
    %371 = vmatpush.msra.mxu0 %v356
    %372 = vmatpush.msra.mxu0 %v355
    %373 = vmatpush.msra.mxu0 %v354
    %374 = vmatpush.msra.mxu0 %v353
    %375 = vmatpush.msra.mxu0 %v352
    %376 = vmatpush.msra.mxu0 %v351
    %377 = vmatpush.msra.mxu0 %v350
    %378 = vmatpush.msra.mxu0 %v349
    %379 = vmatpush.msra.mxu0 %v348
    %380 = vmatpush.msra.mxu0 %v347
    %381 = vmatpush.msra.mxu0 %v346
    %382 = vmatmul.f32.gmra.mxu0 %v342
    %v383 = vpop.f32.mrf.mxu0
    %v384 = vadd.f32 %v364, %v383
    %385 = vdwg.mxu0
    %s386 = scalar_lea.vmem [#allocation12], 128
    %v387 = vld [vmem:[%s386] sm:$0xff]
    %v388 = vld [vmem:[%s386 + $0x8] sm:$0xff]
    %v389 = vld [vmem:[%s386 + $0x10] sm:$0xff]
    %v390 = vld [vmem:[%s386 + $0x18] sm:$0xff]
    %v391 = vld [vmem:[%s386 + $0x20] sm:$0xff]
    %v392 = vld [vmem:[%s386 + $0x28] sm:$0xff]
    %v393 = vld [vmem:[%s386 + $0x30] sm:$0xff]
    %v394 = vld [vmem:[%s386 + $0x38] sm:$0xff]
    %v395 = vld [vmem:[%s386 + $0x40] sm:$0xff]
    %v396 = vld [vmem:[%s386 + $0x48] sm:$0xff]
    %v397 = vld [vmem:[%s386 + $0x50] sm:$0xff]
    %v398 = vld [vmem:[%s386 + $0x58] sm:$0xff]
    %v399 = vld [vmem:[%s386 + $0x60] sm:$0xff]
    %v400 = vld [vmem:[%s386 + $0x68] sm:$0xff]
    %v401 = vld [vmem:[%s386 + $0x70] sm:$0xff]
    %v402 = vld [vmem:[%s386 + $0x78] sm:$0xff]
    %s403 = scalar_lea.vmem [#allocation15], 1
    %v404 = vld [vmem:[%s403] sm:$0x1]
    %v406 = vperm.slane %v404, 0
    %408 = vmatpush.msra.mxu0 %v402
    %409 = vmatpush.msra.mxu0 %v401
    %410 = vmatpush.msra.mxu0 %v400
    %411 = vmatpush.msra.mxu0 %v399
    %412 = vmatpush.msra.mxu0 %v398
    %413 = vmatpush.msra.mxu0 %v397
    %414 = vmatpush.msra.mxu0 %v396
    %415 = vmatpush.msra.mxu0 %v395
    %416 = vmatpush.msra.mxu0 %v394
    %417 = vmatpush.msra.mxu0 %v393
    %418 = vmatpush.msra.mxu0 %v392
    %419 = vmatpush.msra.mxu0 %v391
    %420 = vmatpush.msra.mxu0 %v390
    %421 = vmatpush.msra.mxu0 %v389
    %422 = vmatpush.msra.mxu0 %v388
    %423 = vmatpush.msra.mxu0 %v387
    %424 = vmatmul.f32.gmra.mxu0 %v342
    %v425 = vpop.f32.mrf.mxu0
    %v426 = vadd.f32 %v406, %v425
    %427 = vdwg.mxu0
    %s428 = scalar_lea.vmem [#allocation12], 256
    %v429 = vld [vmem:[%s428] sm:$0xff]
    %v430 = vld [vmem:[%s428 + $0x8] sm:$0xff]
    %v431 = vld [vmem:[%s428 + $0x10] sm:$0xff]
    %v432 = vld [vmem:[%s428 + $0x18] sm:$0xff]
    %v433 = vld [vmem:[%s428 + $0x20] sm:$0xff]
    %v434 = vld [vmem:[%s428 + $0x28] sm:$0xff]
    %v435 = vld [vmem:[%s428 + $0x30] sm:$0xff]
    %v436 = vld [vmem:[%s428 + $0x38] sm:$0xff]
    %v437 = vld [vmem:[%s428 + $0x40] sm:$0xff]
    %v438 = vld [vmem:[%s428 + $0x48] sm:$0xff]
    %v439 = vld [vmem:[%s428 + $0x50] sm:$0xff]
    %v440 = vld [vmem:[%s428 + $0x58] sm:$0xff]
    %v441 = vld [vmem:[%s428 + $0x60] sm:$0xff]
    %v442 = vld [vmem:[%s428 + $0x68] sm:$0xff]
    %v443 = vld [vmem:[%s428 + $0x70] sm:$0xff]
    %v444 = vld [vmem:[%s428 + $0x78] sm:$0xff]
    %s445 = scalar_lea.vmem [#allocation15], 2
    %v446 = vld [vmem:[%s445] sm:$0x1]
    %v448 = vperm.slane %v446, 0
    %450 = vmatpush.msra.mxu0 %v444
    %451 = vmatpush.msra.mxu0 %v443
    %452 = vmatpush.msra.mxu0 %v442
    %453 = vmatpush.msra.mxu0 %v441
    %454 = vmatpush.msra.mxu0 %v440
    %455 = vmatpush.msra.mxu0 %v439
    %456 = vmatpush.msra.mxu0 %v438
    %457 = vmatpush.msra.mxu0 %v437
    %458 = vmatpush.msra.mxu0 %v436
    %459 = vmatpush.msra.mxu0 %v435
    %460 = vmatpush.msra.mxu0 %v434
    %461 = vmatpush.msra.mxu0 %v433
    %462 = vmatpush.msra.mxu0 %v432
    %463 = vmatpush.msra.mxu0 %v431
    %464 = vmatpush.msra.mxu0 %v430
    %465 = vmatpush.msra.mxu0 %v429
    %466 = vmatmul.f32.gmra.mxu0 %v342
    %v467 = vpop.f32.mrf.mxu0
    %v468 = vadd.f32 %v448, %v467
    %469 = vdwg.mxu0
    %v470 = vadd.f32 %v343, %v384
    %v471 = vxor.u32 %v470, 2147483648
    %v472 = vmul.f32 %v471, 1.442695
    %v473 = vpow.pop %v472
    %v474 = vadd.f32 %v473, 1.0
    %v475 = vrcp.pop %v474
    %v476 = vmul.f32 %v474, %v475
    %v477 = vsub.f32 1.0, %v476
    %v478 = vmul.f32 %v475, %v477
    %v479 = vadd.f32 %v475, %v478
    %vm480 = vweird.f32 %v474
    %vm481 = vweird.f32 %v475
    %vm482 = vmor %vm480, %vm481
    %v483 = vsel %vm482, %v475, %v479
    %v484 = vand.u32 2147483647, %v474
    %vm485 = vcmp.eq.f32.partialorder %v484, 8.507059e+37
    %v486 = vand.u32 %v474, 2147483648
    %v487 = vor.u32 1.1754944e-38, %v486
    %v488 = vsel %vm485, %v487, %v483
    %v489 = vmul.f32 1.0, %v488
    %v490 = vadd.f32 %v344, %v426
    %v491 = vxor.u32 %v490, 2147483648
    %v492 = vmul.f32 %v491, 1.442695
    %v493 = vpow.pop %v492
    %v494 = vadd.f32 %v493, 1.0
    %v495 = vrcp.pop %v494
    %v496 = vmul.f32 %v494, %v495
    %v497 = vsub.f32 1.0, %v496
    %v498 = vmul.f32 %v495, %v497
    %v499 = vadd.f32 %v495, %v498
    %vm500 = vweird.f32 %v494
    %vm501 = vweird.f32 %v495
    %vm502 = vmor %vm500, %vm501
    %v503 = vsel %vm502, %v495, %v499
    %v504 = vand.u32 2147483647, %v494
    %vm505 = vcmp.eq.f32.partialorder %v504, 8.507059e+37
    %v506 = vand.u32 %v494, 2147483648
    %v507 = vor.u32 1.1754944e-38, %v506
    %v508 = vsel %vm505, %v507, %v503
    %v509 = vmul.f32 1.0, %v508
    %v510 = vmul.f32 %v489, %v468
    %v511 = vadd.f32 %v345, %v510
    %v512 = vtanh.pop %v511
    %v513 = vsub.f32 1.0, %v509
    %v514 = vmul.f32 %v513, %v512
    %v515 = vmul.f32 %v509, %v342
    %v516 = vadd.f32 %v514, %v515
    %517 = vst [vmem:[#allocation2] sm:$0xff] %v516
    %s518 = scalar_lea.vmem [#allocation2], 8
    %v519 = vld [vmem:[%s518] sm:$0xff]
    %s520 = scalar_lea.vmem [#allocation10], 384
    %v521 = vld [vmem:[%s520] sm:$0xff]
    %v522 = vld [vmem:[%s520 + $0x8] sm:$0xff]
    %v523 = vld [vmem:[%s520 + $0x10] sm:$0xff]
    %v524 = vld [vmem:[%s520 + $0x18] sm:$0xff]
    %v525 = vld [vmem:[%s520 + $0x20] sm:$0xff]
    %v526 = vld [vmem:[%s520 + $0x28] sm:$0xff]
    %v527 = vld [vmem:[%s520 + $0x30] sm:$0xff]
    %v528 = vld [vmem:[%s520 + $0x38] sm:$0xff]
    %v529 = vld [vmem:[%s520 + $0x40] sm:$0xff]
    %v530 = vld [vmem:[%s520 + $0x48] sm:$0xff]
    %v531 = vld [vmem:[%s520 + $0x50] sm:$0xff]
    %v532 = vld [vmem:[%s520 + $0x58] sm:$0xff]
    %v533 = vld [vmem:[%s520 + $0x60] sm:$0xff]
    %v534 = vld [vmem:[%s520 + $0x68] sm:$0xff]
    %v535 = vld [vmem:[%s520 + $0x70] sm:$0xff]
    %v536 = vld [vmem:[%s520 + $0x78] sm:$0xff]
    %s537 = scalar_lea.vmem [#allocation13], 3
    %v538 = vld [vmem:[%s537] sm:$0x1]
    %v540 = vperm.slane %v538, 0
    %542 = vmatpush.msra.mxu0 %v536
    %543 = vmatpush.msra.mxu0 %v535
    %544 = vmatpush.msra.mxu0 %v534
    %545 = vmatpush.msra.mxu0 %v533
    %546 = vmatpush.msra.mxu0 %v532
    %547 = vmatpush.msra.mxu0 %v531
    %548 = vmatpush.msra.mxu0 %v530
    %549 = vmatpush.msra.mxu0 %v529
    %550 = vmatpush.msra.mxu0 %v528
    %551 = vmatpush.msra.mxu0 %v527
    %552 = vmatpush.msra.mxu0 %v526
    %553 = vmatpush.msra.mxu0 %v525
    %554 = vmatpush.msra.mxu0 %v524
    %555 = vmatpush.msra.mxu0 %v523
    %556 = vmatpush.msra.mxu0 %v522
    %557 = vmatpush.msra.mxu0 %v521
    %558 = vmatmul.f32.gmra.mxu0 %v516
    %v559 = vpop.f32.mrf.mxu0
    %v560 = vadd.f32 %v540, %v559
    %561 = vdwg.mxu0
    %s562 = scalar_lea.vmem [#allocation10], 512
    %v563 = vld [vmem:[%s562] sm:$0xff]
    %v564 = vld [vmem:[%s562 + $0x8] sm:$0xff]
    %v565 = vld [vmem:[%s562 + $0x10] sm:$0xff]
    %v566 = vld [vmem:[%s562 + $0x18] sm:$0xff]
    %v567 = vld [vmem:[%s562 + $0x20] sm:$0xff]
    %v568 = vld [vmem:[%s562 + $0x28] sm:$0xff]
    %v569 = vld [vmem:[%s562 + $0x30] sm:$0xff]
    %v570 = vld [vmem:[%s562 + $0x38] sm:$0xff]
    %v571 = vld [vmem:[%s562 + $0x40] sm:$0xff]
    %v572 = vld [vmem:[%s562 + $0x48] sm:$0xff]
    %v573 = vld [vmem:[%s562 + $0x50] sm:$0xff]
    %v574 = vld [vmem:[%s562 + $0x58] sm:$0xff]
    %v575 = vld [vmem:[%s562 + $0x60] sm:$0xff]
    %v576 = vld [vmem:[%s562 + $0x68] sm:$0xff]
    %v577 = vld [vmem:[%s562 + $0x70] sm:$0xff]
    %v578 = vld [vmem:[%s562 + $0x78] sm:$0xff]
    %s579 = scalar_lea.vmem [#allocation13], 4
    %v580 = vld [vmem:[%s579] sm:$0x1]
    %v582 = vperm.slane %v580, 0
    %584 = vmatpush.msra.mxu0 %v578
    %585 = vmatpush.msra.mxu0 %v577
    %586 = vmatpush.msra.mxu0 %v576
    %587 = vmatpush.msra.mxu0 %v575
    %588 = vmatpush.msra.mxu0 %v574
    %589 = vmatpush.msra.mxu0 %v573
    %590 = vmatpush.msra.mxu0 %v572
    %591 = vmatpush.msra.mxu0 %v571
    %592 = vmatpush.msra.mxu0 %v570
    %593 = vmatpush.msra.mxu0 %v569
    %594 = vmatpush.msra.mxu0 %v568
    %595 = vmatpush.msra.mxu0 %v567
    %596 = vmatpush.msra.mxu0 %v566
    %597 = vmatpush.msra.mxu0 %v565
    %598 = vmatpush.msra.mxu0 %v564
    %599 = vmatpush.msra.mxu0 %v563
    %600 = vmatmul.f32.gmra.mxu0 %v516
    %v601 = vpop.f32.mrf.mxu0
    %v602 = vadd.f32 %v582, %v601
    %603 = vdwg.mxu0
    %s604 = scalar_lea.vmem [#allocation10], 640
    %v605 = vld [vmem:[%s604] sm:$0xff]
    %v606 = vld [vmem:[%s604 + $0x8] sm:$0xff]
    %v607 = vld [vmem:[%s604 + $0x10] sm:$0xff]
    %v608 = vld [vmem:[%s604 + $0x18] sm:$0xff]
    %v609 = vld [vmem:[%s604 + $0x20] sm:$0xff]
    %v610 = vld [vmem:[%s604 + $0x28] sm:$0xff]
    %v611 = vld [vmem:[%s604 + $0x30] sm:$0xff]
    %v612 = vld [vmem:[%s604 + $0x38] sm:$0xff]
    %v613 = vld [vmem:[%s604 + $0x40] sm:$0xff]
    %v614 = vld [vmem:[%s604 + $0x48] sm:$0xff]
    %v615 = vld [vmem:[%s604 + $0x50] sm:$0xff]
    %v616 = vld [vmem:[%s604 + $0x58] sm:$0xff]
    %v617 = vld [vmem:[%s604 + $0x60] sm:$0xff]
    %v618 = vld [vmem:[%s604 + $0x68] sm:$0xff]
    %v619 = vld [vmem:[%s604 + $0x70] sm:$0xff]
    %v620 = vld [vmem:[%s604 + $0x78] sm:$0xff]
    %s621 = scalar_lea.vmem [#allocation13], 5
    %v622 = vld [vmem:[%s621] sm:$0x1]
    %v624 = vperm.slane %v622, 0
    %626 = vmatpush.msra.mxu0 %v620
    %627 = vmatpush.msra.mxu0 %v619
    %628 = vmatpush.msra.mxu0 %v618
    %629 = vmatpush.msra.mxu0 %v617
    %630 = vmatpush.msra.mxu0 %v616
    %631 = vmatpush.msra.mxu0 %v615
    %632 = vmatpush.msra.mxu0 %v614
    %633 = vmatpush.msra.mxu0 %v613
    %634 = vmatpush.msra.mxu0 %v612
    %635 = vmatpush.msra.mxu0 %v611
    %636 = vmatpush.msra.mxu0 %v610
    %637 = vmatpush.msra.mxu0 %v609
    %638 = vmatpush.msra.mxu0 %v608
    %639 = vmatpush.msra.mxu0 %v607
    %640 = vmatpush.msra.mxu0 %v606
    %641 = vmatpush.msra.mxu0 %v605
    %642 = vmatmul.f32.gmra.mxu0 %v516
    %v643 = vpop.f32.mrf.mxu0
    %v644 = vadd.f32 %v624, %v643
    %645 = vdwg.mxu0
    %s646 = scalar_lea.vmem [#allocation12], 384
    %v647 = vld [vmem:[%s646] sm:$0xff]
    %v648 = vld [vmem:[%s646 + $0x8] sm:$0xff]
    %v649 = vld [vmem:[%s646 + $0x10] sm:$0xff]
    %v650 = vld [vmem:[%s646 + $0x18] sm:$0xff]
    %v651 = vld [vmem:[%s646 + $0x20] sm:$0xff]
    %v652 = vld [vmem:[%s646 + $0x28] sm:$0xff]
    %v653 = vld [vmem:[%s646 + $0x30] sm:$0xff]
    %v654 = vld [vmem:[%s646 + $0x38] sm:$0xff]
    %v655 = vld [vmem:[%s646 + $0x40] sm:$0xff]
    %v656 = vld [vmem:[%s646 + $0x48] sm:$0xff]
    %v657 = vld [vmem:[%s646 + $0x50] sm:$0xff]
    %v658 = vld [vmem:[%s646 + $0x58] sm:$0xff]
    %v659 = vld [vmem:[%s646 + $0x60] sm:$0xff]
    %v660 = vld [vmem:[%s646 + $0x68] sm:$0xff]
    %v661 = vld [vmem:[%s646 + $0x70] sm:$0xff]
    %v662 = vld [vmem:[%s646 + $0x78] sm:$0xff]
    %s663 = scalar_lea.vmem [#allocation15], 3
    %v664 = vld [vmem:[%s663] sm:$0x1]
    %v666 = vperm.slane %v664, 0
    %668 = vmatpush.msra.mxu0 %v662
    %669 = vmatpush.msra.mxu0 %v661
    %670 = vmatpush.msra.mxu0 %v660
    %671 = vmatpush.msra.mxu0 %v659
    %672 = vmatpush.msra.mxu0 %v658
    %673 = vmatpush.msra.mxu0 %v657
    %674 = vmatpush.msra.mxu0 %v656
    %675 = vmatpush.msra.mxu0 %v655
    %676 = vmatpush.msra.mxu0 %v654
    %677 = vmatpush.msra.mxu0 %v653
    %678 = vmatpush.msra.mxu0 %v652
    %679 = vmatpush.msra.mxu0 %v651
    %680 = vmatpush.msra.mxu0 %v650
    %681 = vmatpush.msra.mxu0 %v649
    %682 = vmatpush.msra.mxu0 %v648
    %683 = vmatpush.msra.mxu0 %v647
    %684 = vmatmul.f32.gmra.mxu0 %v519
    %v685 = vpop.f32.mrf.mxu0
    %v686 = vadd.f32 %v666, %v685
    %687 = vdwg.mxu0
    %s688 = scalar_lea.vmem [#allocation12], 512
    %v689 = vld [vmem:[%s688] sm:$0xff]
    %v690 = vld [vmem:[%s688 + $0x8] sm:$0xff]
    %v691 = vld [vmem:[%s688 + $0x10] sm:$0xff]
    %v692 = vld [vmem:[%s688 + $0x18] sm:$0xff]
    %v693 = vld [vmem:[%s688 + $0x20] sm:$0xff]
    %v694 = vld [vmem:[%s688 + $0x28] sm:$0xff]
    %v695 = vld [vmem:[%s688 + $0x30] sm:$0xff]
    %v696 = vld [vmem:[%s688 + $0x38] sm:$0xff]
    %v697 = vld [vmem:[%s688 + $0x40] sm:$0xff]
    %v698 = vld [vmem:[%s688 + $0x48] sm:$0xff]
    %v699 = vld [vmem:[%s688 + $0x50] sm:$0xff]
    %v700 = vld [vmem:[%s688 + $0x58] sm:$0xff]
    %v701 = vld [vmem:[%s688 + $0x60] sm:$0xff]
    %v702 = vld [vmem:[%s688 + $0x68] sm:$0xff]
    %v703 = vld [vmem:[%s688 + $0x70] sm:$0xff]
    %v704 = vld [vmem:[%s688 + $0x78] sm:$0xff]
    %s705 = scalar_lea.vmem [#allocation15], 4
    %v706 = vld [vmem:[%s705] sm:$0x1]
    %v708 = vperm.slane %v706, 0
    %710 = vmatpush.msra.mxu0 %v704
    %711 = vmatpush.msra.mxu0 %v703
    %712 = vmatpush.msra.mxu0 %v702
    %713 = vmatpush.msra.mxu0 %v701
    %714 = vmatpush.msra.mxu0 %v700
    %715 = vmatpush.msra.mxu0 %v699
    %716 = vmatpush.msra.mxu0 %v698
    %717 = vmatpush.msra.mxu0 %v697
    %718 = vmatpush.msra.mxu0 %v696
    %719 = vmatpush.msra.mxu0 %v695
    %720 = vmatpush.msra.mxu0 %v694
    %721 = vmatpush.msra.mxu0 %v693
    %722 = vmatpush.msra.mxu0 %v692
    %723 = vmatpush.msra.mxu0 %v691
    %724 = vmatpush.msra.mxu0 %v690
    %725 = vmatpush.msra.mxu0 %v689
    %726 = vmatmul.f32.gmra.mxu0 %v519
    %v727 = vpop.f32.mrf.mxu0
    %v728 = vadd.f32 %v708, %v727
    %729 = vdwg.mxu0
    %s730 = scalar_lea.vmem [#allocation12], 640
    %v731 = vld [vmem:[%s730] sm:$0xff]
    %v732 = vld [vmem:[%s730 + $0x8] sm:$0xff]
    %v733 = vld [vmem:[%s730 + $0x10] sm:$0xff]
    %v734 = vld [vmem:[%s730 + $0x18] sm:$0xff]
    %v735 = vld [vmem:[%s730 + $0x20] sm:$0xff]
    %v736 = vld [vmem:[%s730 + $0x28] sm:$0xff]
    %v737 = vld [vmem:[%s730 + $0x30] sm:$0xff]
    %v738 = vld [vmem:[%s730 + $0x38] sm:$0xff]
    %v739 = vld [vmem:[%s730 + $0x40] sm:$0xff]
    %v740 = vld [vmem:[%s730 + $0x48] sm:$0xff]
    %v741 = vld [vmem:[%s730 + $0x50] sm:$0xff]
    %v742 = vld [vmem:[%s730 + $0x58] sm:$0xff]
    %v743 = vld [vmem:[%s730 + $0x60] sm:$0xff]
    %v744 = vld [vmem:[%s730 + $0x68] sm:$0xff]
    %v745 = vld [vmem:[%s730 + $0x70] sm:$0xff]
    %v746 = vld [vmem:[%s730 + $0x78] sm:$0xff]
    %s747 = scalar_lea.vmem [#allocation15], 5
    %v748 = vld [vmem:[%s747] sm:$0x1]
    %v750 = vperm.slane %v748, 0
    %752 = vmatpush.msra.mxu0 %v746
    %753 = vmatpush.msra.mxu0 %v745
    %754 = vmatpush.msra.mxu0 %v744
    %755 = vmatpush.msra.mxu0 %v743
    %756 = vmatpush.msra.mxu0 %v742
    %757 = vmatpush.msra.mxu0 %v741
    %758 = vmatpush.msra.mxu0 %v740
    %759 = vmatpush.msra.mxu0 %v739
    %760 = vmatpush.msra.mxu0 %v738
    %761 = vmatpush.msra.mxu0 %v737
    %762 = vmatpush.msra.mxu0 %v736
    %763 = vmatpush.msra.mxu0 %v735
    %764 = vmatpush.msra.mxu0 %v734
    %765 = vmatpush.msra.mxu0 %v733
    %766 = vmatpush.msra.mxu0 %v732
    %767 = vmatpush.msra.mxu0 %v731
    %768 = vmatmul.f32.gmra.mxu0 %v519
    %v769 = vpop.f32.mrf.mxu0
    %v770 = vadd.f32 %v750, %v769
    %771 = vdwg.mxu0
    %v772 = vadd.f32 %v560, %v686
    %v773 = vxor.u32 %v772, 2147483648
    %v774 = vmul.f32 %v773, 1.442695
    %v775 = vpow.pop %v774
    %v776 = vadd.f32 %v775, 1.0
    %v777 = vrcp.pop %v776
    %v778 = vmul.f32 %v776, %v777
    %v779 = vsub.f32 1.0, %v778
    %v780 = vmul.f32 %v777, %v779
    %v781 = vadd.f32 %v777, %v780
    %vm782 = vweird.f32 %v776
    %vm783 = vweird.f32 %v777
    %vm784 = vmor %vm782, %vm783
    %v785 = vsel %vm784, %v777, %v781
    %v786 = vand.u32 2147483647, %v776
    %vm787 = vcmp.eq.f32.partialorder %v786, 8.507059e+37
    %v788 = vand.u32 %v776, 2147483648
    %v789 = vor.u32 1.1754944e-38, %v788
    %v790 = vsel %vm787, %v789, %v785
    %v791 = vmul.f32 1.0, %v790
    %v792 = vadd.f32 %v602, %v728
    %v793 = vxor.u32 %v792, 2147483648
    %v794 = vmul.f32 %v793, 1.442695
    %v795 = vpow.pop %v794
    %v796 = vadd.f32 %v795, 1.0
    %v797 = vrcp.pop %v796
    %v798 = vmul.f32 %v796, %v797
    %v799 = vsub.f32 1.0, %v798
    %v800 = vmul.f32 %v797, %v799
    %v801 = vadd.f32 %v797, %v800
    %vm802 = vweird.f32 %v796
    %vm803 = vweird.f32 %v797
    %vm804 = vmor %vm802, %vm803
    %v805 = vsel %vm804, %v797, %v801
    %v806 = vand.u32 2147483647, %v796
    %vm807 = vcmp.eq.f32.partialorder %v806, 8.507059e+37
    %v808 = vand.u32 %v796, 2147483648
    %v809 = vor.u32 1.1754944e-38, %v808
    %v810 = vsel %vm807, %v809, %v805
    %v811 = vmul.f32 1.0, %v810
    %v812 = vmul.f32 %v791, %v770
    %v813 = vadd.f32 %v644, %v812
    %v814 = vtanh.pop %v813
    %v815 = vsub.f32 1.0, %v811
    %v816 = vmul.f32 %v815, %v814
    %v817 = vmul.f32 %v811, %v519
    %v818 = vadd.f32 %v816, %v817
    %819 = vst [vmem:[%s518] sm:$0xff] %v818
    %820 = vst [vmem:[#allocation6] sm:$0xff] %v818
    %v821 = vld [vmem:[#allocation2] sm:$0xff]
    %s822 = scalar_lea.vmem [#allocation3], 8
    %v823 = vld [vmem:[%s822] sm:$0xff]
    %s824 = scalar_lea.vmem [#allocation4], 8
    %v825 = vld [vmem:[%s824] sm:$0xff]
    %s826 = scalar_lea.vmem [#allocation5], 8
    %v827 = vld [vmem:[%s826] sm:$0xff]
    %v828 = vld [vmem:[#allocation12] sm:$0xff]
    %v829 = vld [vmem:[#allocation12 + $0x8] sm:$0xff]
    %v830 = vld [vmem:[#allocation12 + $0x10] sm:$0xff]
    %v831 = vld [vmem:[#allocation12 + $0x18] sm:$0xff]
    %v832 = vld [vmem:[#allocation12 + $0x20] sm:$0xff]
    %v833 = vld [vmem:[#allocation12 + $0x28] sm:$0xff]
    %v834 = vld [vmem:[#allocation12 + $0x30] sm:$0xff]
    %v835 = vld [vmem:[#allocation12 + $0x38] sm:$0xff]
    %v836 = vld [vmem:[#allocation12 + $0x40] sm:$0xff]
    %v837 = vld [vmem:[#allocation12 + $0x48] sm:$0xff]
    %v838 = vld [vmem:[#allocation12 + $0x50] sm:$0xff]
    %v839 = vld [vmem:[#allocation12 + $0x58] sm:$0xff]
    %v840 = vld [vmem:[#allocation12 + $0x60] sm:$0xff]
    %v841 = vld [vmem:[#allocation12 + $0x68] sm:$0xff]
    %v842 = vld [vmem:[#allocation12 + $0x70] sm:$0xff]
    %v843 = vld [vmem:[#allocation12 + $0x78] sm:$0xff]
    %v844 = vld [vmem:[#allocation15] sm:$0x1]
    %v846 = vperm.slane %v844, 0
    %848 = vmatpush.msra.mxu0 %v843
    %849 = vmatpush.msra.mxu0 %v842
    %850 = vmatpush.msra.mxu0 %v841
    %851 = vmatpush.msra.mxu0 %v840
    %852 = vmatpush.msra.mxu0 %v839
    %853 = vmatpush.msra.mxu0 %v838
    %854 = vmatpush.msra.mxu0 %v837
    %855 = vmatpush.msra.mxu0 %v836
    %856 = vmatpush.msra.mxu0 %v835
    %857 = vmatpush.msra.mxu0 %v834
    %858 = vmatpush.msra.mxu0 %v833
    %859 = vmatpush.msra.mxu0 %v832
    %860 = vmatpush.msra.mxu0 %v831
    %861 = vmatpush.msra.mxu0 %v830
    %862 = vmatpush.msra.mxu0 %v829
    %863 = vmatpush.msra.mxu0 %v828
    %864 = vmatmul.f32.gmra.mxu0 %v821
    %v865 = vpop.f32.mrf.mxu0
    %v866 = vadd.f32 %v846, %v865
    %867 = vdwg.mxu0
    %v868 = vld [vmem:[%s386] sm:$0xff]
    %v869 = vld [vmem:[%s386 + $0x8] sm:$0xff]
    %v870 = vld [vmem:[%s386 + $0x10] sm:$0xff]
    %v871 = vld [vmem:[%s386 + $0x18] sm:$0xff]
    %v872 = vld [vmem:[%s386 + $0x20] sm:$0xff]
    %v873 = vld [vmem:[%s386 + $0x28] sm:$0xff]
    %v874 = vld [vmem:[%s386 + $0x30] sm:$0xff]
    %v875 = vld [vmem:[%s386 + $0x38] sm:$0xff]
    %v876 = vld [vmem:[%s386 + $0x40] sm:$0xff]
    %v877 = vld [vmem:[%s386 + $0x48] sm:$0xff]
    %v878 = vld [vmem:[%s386 + $0x50] sm:$0xff]
    %v879 = vld [vmem:[%s386 + $0x58] sm:$0xff]
    %v880 = vld [vmem:[%s386 + $0x60] sm:$0xff]
    %v881 = vld [vmem:[%s386 + $0x68] sm:$0xff]
    %v882 = vld [vmem:[%s386 + $0x70] sm:$0xff]
    %v883 = vld [vmem:[%s386 + $0x78] sm:$0xff]
    %v884 = vld [vmem:[%s403] sm:$0x1]
    %v886 = vperm.slane %v884, 0
    %888 = vmatpush.msra.mxu0 %v883
    %889 = vmatpush.msra.mxu0 %v882
    %890 = vmatpush.msra.mxu0 %v881
    %891 = vmatpush.msra.mxu0 %v880
    %892 = vmatpush.msra.mxu0 %v879
    %893 = vmatpush.msra.mxu0 %v878
    %894 = vmatpush.msra.mxu0 %v877
    %895 = vmatpush.msra.mxu0 %v876
    %896 = vmatpush.msra.mxu0 %v875
    %897 = vmatpush.msra.mxu0 %v874
    %898 = vmatpush.msra.mxu0 %v873
    %899 = vmatpush.msra.mxu0 %v872
    %900 = vmatpush.msra.mxu0 %v871
    %901 = vmatpush.msra.mxu0 %v870
    %902 = vmatpush.msra.mxu0 %v869
    %903 = vmatpush.msra.mxu0 %v868
    %904 = vmatmul.f32.gmra.mxu0 %v821
    %v905 = vpop.f32.mrf.mxu0
    %v906 = vadd.f32 %v886, %v905
    %907 = vdwg.mxu0
    %v908 = vld [vmem:[%s428] sm:$0xff]
    %v909 = vld [vmem:[%s428 + $0x8] sm:$0xff]
    %v910 = vld [vmem:[%s428 + $0x10] sm:$0xff]
    %v911 = vld [vmem:[%s428 + $0x18] sm:$0xff]
    %v912 = vld [vmem:[%s428 + $0x20] sm:$0xff]
    %v913 = vld [vmem:[%s428 + $0x28] sm:$0xff]
    %v914 = vld [vmem:[%s428 + $0x30] sm:$0xff]
    %v915 = vld [vmem:[%s428 + $0x38] sm:$0xff]
    %v916 = vld [vmem:[%s428 + $0x40] sm:$0xff]
    %v917 = vld [vmem:[%s428 + $0x48] sm:$0xff]
    %v918 = vld [vmem:[%s428 + $0x50] sm:$0xff]
    %v919 = vld [vmem:[%s428 + $0x58] sm:$0xff]
    %v920 = vld [vmem:[%s428 + $0x60] sm:$0xff]
    %v921 = vld [vmem:[%s428 + $0x68] sm:$0xff]
    %v922 = vld [vmem:[%s428 + $0x70] sm:$0xff]
    %v923 = vld [vmem:[%s428 + $0x78] sm:$0xff]
    %v924 = vld [vmem:[%s445] sm:$0x1]
    %v926 = vperm.slane %v924, 0
    %928 = vmatpush.msra.mxu0 %v923
    %929 = vmatpush.msra.mxu0 %v922
    %930 = vmatpush.msra.mxu0 %v921
    %931 = vmatpush.msra.mxu0 %v920
    %932 = vmatpush.msra.mxu0 %v919
    %933 = vmatpush.msra.mxu0 %v918
    %934 = vmatpush.msra.mxu0 %v917
    %935 = vmatpush.msra.mxu0 %v916
    %936 = vmatpush.msra.mxu0 %v915
    %937 = vmatpush.msra.mxu0 %v914
    %938 = vmatpush.msra.mxu0 %v913
    %939 = vmatpush.msra.mxu0 %v912
    %940 = vmatpush.msra.mxu0 %v911
    %941 = vmatpush.msra.mxu0 %v910
    %942 = vmatpush.msra.mxu0 %v909
    %943 = vmatpush.msra.mxu0 %v908
    %944 = vmatmul.f32.gmra.mxu0 %v821
    %v945 = vpop.f32.mrf.mxu0
    %v946 = vadd.f32 %v926, %v945
    %947 = vdwg.mxu0
    %v948 = vadd.f32 %v823, %v866
    %v949 = vxor.u32 %v948, 2147483648
    %v950 = vmul.f32 %v949, 1.442695
    %v951 = vpow.pop %v950
    %v952 = vadd.f32 %v951, 1.0
    %v953 = vrcp.pop %v952
    %v954 = vmul.f32 %v952, %v953
    %v955 = vsub.f32 1.0, %v954
    %v956 = vmul.f32 %v953, %v955
    %v957 = vadd.f32 %v953, %v956
    %vm958 = vweird.f32 %v952
    %vm959 = vweird.f32 %v953
    %vm960 = vmor %vm958, %vm959
    %v961 = vsel %vm960, %v953, %v957
    %v962 = vand.u32 2147483647, %v952
    %vm963 = vcmp.eq.f32.partialorder %v962, 8.507059e+37
    %v964 = vand.u32 %v952, 2147483648
    %v965 = vor.u32 1.1754944e-38, %v964
    %v966 = vsel %vm963, %v965, %v961
    %v967 = vmul.f32 1.0, %v966
    %v968 = vadd.f32 %v825, %v906
    %v969 = vxor.u32 %v968, 2147483648
    %v970 = vmul.f32 %v969, 1.442695
    %v971 = vpow.pop %v970
    %v972 = vadd.f32 %v971, 1.0
    %v973 = vrcp.pop %v972
    %v974 = vmul.f32 %v972, %v973
    %v975 = vsub.f32 1.0, %v974
    %v976 = vmul.f32 %v973, %v975
    %v977 = vadd.f32 %v973, %v976
    %vm978 = vweird.f32 %v972
    %vm979 = vweird.f32 %v973
    %vm980 = vmor %vm978, %vm979
    %v981 = vsel %vm980, %v973, %v977
    %v982 = vand.u32 2147483647, %v972
    %vm983 = vcmp.eq.f32.partialorder %v982, 8.507059e+37
    %v984 = vand.u32 %v972, 2147483648
    %v985 = vor.u32 1.1754944e-38, %v984
    %v986 = vsel %vm983, %v985, %v981
    %v987 = vmul.f32 1.0, %v986
    %v988 = vmul.f32 %v967, %v946
    %v989 = vadd.f32 %v827, %v988
    %v990 = vtanh.pop %v989
    %v991 = vsub.f32 1.0, %v987
    %v992 = vmul.f32 %v991, %v990
    %v993 = vmul.f32 %v987, %v821
    %v994 = vadd.f32 %v992, %v993
    %995 = vst [vmem:[#allocation2] sm:$0xff] %v994
    %v996 = vld [vmem:[%s518] sm:$0xff]
    %v997 = vld [vmem:[%s520] sm:$0xff]
    %v998 = vld [vmem:[%s520 + $0x8] sm:$0xff]
    %v999 = vld [vmem:[%s520 + $0x10] sm:$0xff]
    %v1000 = vld [vmem:[%s520 + $0x18] sm:$0xff]
    %v1001 = vld [vmem:[%s520 + $0x20] sm:$0xff]
    %v1002 = vld [vmem:[%s520 + $0x28] sm:$0xff]
    %v1003 = vld [vmem:[%s520 + $0x30] sm:$0xff]
    %v1004 = vld [vmem:[%s520 + $0x38] sm:$0xff]
    %v1005 = vld [vmem:[%s520 + $0x40] sm:$0xff]
    %v1006 = vld [vmem:[%s520 + $0x48] sm:$0xff]
    %v1007 = vld [vmem:[%s520 + $0x50] sm:$0xff]
    %v1008 = vld [vmem:[%s520 + $0x58] sm:$0xff]
    %v1009 = vld [vmem:[%s520 + $0x60] sm:$0xff]
    %v1010 = vld [vmem:[%s520 + $0x68] sm:$0xff]
    %v1011 = vld [vmem:[%s520 + $0x70] sm:$0xff]
    %v1012 = vld [vmem:[%s520 + $0x78] sm:$0xff]
    %v1013 = vld [vmem:[%s537] sm:$0x1]
    %v1015 = vperm.slane %v1013, 0
    %1017 = vmatpush.msra.mxu0 %v1012
    %1018 = vmatpush.msra.mxu0 %v1011
    %1019 = vmatpush.msra.mxu0 %v1010
    %1020 = vmatpush.msra.mxu0 %v1009
    %1021 = vmatpush.msra.mxu0 %v1008
    %1022 = vmatpush.msra.mxu0 %v1007
    %1023 = vmatpush.msra.mxu0 %v1006
    %1024 = vmatpush.msra.mxu0 %v1005
    %1025 = vmatpush.msra.mxu0 %v1004
    %1026 = vmatpush.msra.mxu0 %v1003
    %1027 = vmatpush.msra.mxu0 %v1002
    %1028 = vmatpush.msra.mxu0 %v1001
    %1029 = vmatpush.msra.mxu0 %v1000
    %1030 = vmatpush.msra.mxu0 %v999
    %1031 = vmatpush.msra.mxu0 %v998
    %1032 = vmatpush.msra.mxu0 %v997
    %1033 = vmatmul.f32.gmra.mxu0 %v994
    %v1034 = vpop.f32.mrf.mxu0
    %v1035 = vadd.f32 %v1015, %v1034
    %1036 = vdwg.mxu0
    %v1037 = vld [vmem:[%s562] sm:$0xff]
    %v1038 = vld [vmem:[%s562 + $0x8] sm:$0xff]
    %v1039 = vld [vmem:[%s562 + $0x10] sm:$0xff]
    %v1040 = vld [vmem:[%s562 + $0x18] sm:$0xff]
    %v1041 = vld [vmem:[%s562 + $0x20] sm:$0xff]
    %v1042 = vld [vmem:[%s562 + $0x28] sm:$0xff]
    %v1043 = vld [vmem:[%s562 + $0x30] sm:$0xff]
    %v1044 = vld [vmem:[%s562 + $0x38] sm:$0xff]
    %v1045 = vld [vmem:[%s562 + $0x40] sm:$0xff]
    %v1046 = vld [vmem:[%s562 + $0x48] sm:$0xff]
    %v1047 = vld [vmem:[%s562 + $0x50] sm:$0xff]
    %v1048 = vld [vmem:[%s562 + $0x58] sm:$0xff]
    %v1049 = vld [vmem:[%s562 + $0x60] sm:$0xff]
    %v1050 = vld [vmem:[%s562 + $0x68] sm:$0xff]
    %v1051 = vld [vmem:[%s562 + $0x70] sm:$0xff]
    %v1052 = vld [vmem:[%s562 + $0x78] sm:$0xff]
    %v1053 = vld [vmem:[%s579] sm:$0x1]
    %v1055 = vperm.slane %v1053, 0
    %1057 = vmatpush.msra.mxu0 %v1052
    %1058 = vmatpush.msra.mxu0 %v1051
    %1059 = vmatpush.msra.mxu0 %v1050
    %1060 = vmatpush.msra.mxu0 %v1049
    %1061 = vmatpush.msra.mxu0 %v1048
    %1062 = vmatpush.msra.mxu0 %v1047
    %1063 = vmatpush.msra.mxu0 %v1046
    %1064 = vmatpush.msra.mxu0 %v1045
    %1065 = vmatpush.msra.mxu0 %v1044
    %1066 = vmatpush.msra.mxu0 %v1043
    %1067 = vmatpush.msra.mxu0 %v1042
    %1068 = vmatpush.msra.mxu0 %v1041
    %1069 = vmatpush.msra.mxu0 %v1040
    %1070 = vmatpush.msra.mxu0 %v1039
    %1071 = vmatpush.msra.mxu0 %v1038
    %1072 = vmatpush.msra.mxu0 %v1037
    %1073 = vmatmul.f32.gmra.mxu0 %v994
    %v1074 = vpop.f32.mrf.mxu0
    %v1075 = vadd.f32 %v1055, %v1074
    %1076 = vdwg.mxu0
    %v1077 = vld [vmem:[%s604] sm:$0xff]
    %v1078 = vld [vmem:[%s604 + $0x8] sm:$0xff]
    %v1079 = vld [vmem:[%s604 + $0x10] sm:$0xff]
    %v1080 = vld [vmem:[%s604 + $0x18] sm:$0xff]
    %v1081 = vld [vmem:[%s604 + $0x20] sm:$0xff]
    %v1082 = vld [vmem:[%s604 + $0x28] sm:$0xff]
    %v1083 = vld [vmem:[%s604 + $0x30] sm:$0xff]
    %v1084 = vld [vmem:[%s604 + $0x38] sm:$0xff]
    %v1085 = vld [vmem:[%s604 + $0x40] sm:$0xff]
    %v1086 = vld [vmem:[%s604 + $0x48] sm:$0xff]
    %v1087 = vld [vmem:[%s604 + $0x50] sm:$0xff]
    %v1088 = vld [vmem:[%s604 + $0x58] sm:$0xff]
    %v1089 = vld [vmem:[%s604 + $0x60] sm:$0xff]
    %v1090 = vld [vmem:[%s604 + $0x68] sm:$0xff]
    %v1091 = vld [vmem:[%s604 + $0x70] sm:$0xff]
    %v1092 = vld [vmem:[%s604 + $0x78] sm:$0xff]
    %v1093 = vld [vmem:[%s621] sm:$0x1]
    %v1095 = vperm.slane %v1093, 0
    %1097 = vmatpush.msra.mxu0 %v1092
    %1098 = vmatpush.msra.mxu0 %v1091
    %1099 = vmatpush.msra.mxu0 %v1090
    %1100 = vmatpush.msra.mxu0 %v1089
    %1101 = vmatpush.msra.mxu0 %v1088
    %1102 = vmatpush.msra.mxu0 %v1087
    %1103 = vmatpush.msra.mxu0 %v1086
    %1104 = vmatpush.msra.mxu0 %v1085
    %1105 = vmatpush.msra.mxu0 %v1084
    %1106 = vmatpush.msra.mxu0 %v1083
    %1107 = vmatpush.msra.mxu0 %v1082
    %1108 = vmatpush.msra.mxu0 %v1081
    %1109 = vmatpush.msra.mxu0 %v1080
    %1110 = vmatpush.msra.mxu0 %v1079
    %1111 = vmatpush.msra.mxu0 %v1078
    %1112 = vmatpush.msra.mxu0 %v1077
    %1113 = vmatmul.f32.gmra.mxu0 %v994
    %v1114 = vpop.f32.mrf.mxu0
    %v1115 = vadd.f32 %v1095, %v1114
    %1116 = vdwg.mxu0
    %v1117 = vld [vmem:[%s646] sm:$0xff]
    %v1118 = vld [vmem:[%s646 + $0x8] sm:$0xff]
    %v1119 = vld [vmem:[%s646 + $0x10] sm:$0xff]
    %v1120 = vld [vmem:[%s646 + $0x18] sm:$0xff]
    %v1121 = vld [vmem:[%s646 + $0x20] sm:$0xff]
    %v1122 = vld [vmem:[%s646 + $0x28] sm:$0xff]
    %v1123 = vld [vmem:[%s646 + $0x30] sm:$0xff]
    %v1124 = vld [vmem:[%s646 + $0x38] sm:$0xff]
    %v1125 = vld [vmem:[%s646 + $0x40] sm:$0xff]
    %v1126 = vld [vmem:[%s646 + $0x48] sm:$0xff]
    %v1127 = vld [vmem:[%s646 + $0x50] sm:$0xff]
    %v1128 = vld [vmem:[%s646 + $0x58] sm:$0xff]
    %v1129 = vld [vmem:[%s646 + $0x60] sm:$0xff]
    %v1130 = vld [vmem:[%s646 + $0x68] sm:$0xff]
    %v1131 = vld [vmem:[%s646 + $0x70] sm:$0xff]
    %v1132 = vld [vmem:[%s646 + $0x78] sm:$0xff]
    %v1133 = vld [vmem:[%s663] sm:$0x1]
    %v1135 = vperm.slane %v1133, 0
    %1137 = vmatpush.msra.mxu0 %v1132
    %1138 = vmatpush.msra.mxu0 %v1131
    %1139 = vmatpush.msra.mxu0 %v1130
    %1140 = vmatpush.msra.mxu0 %v1129
    %1141 = vmatpush.msra.mxu0 %v1128
    %1142 = vmatpush.msra.mxu0 %v1127
    %1143 = vmatpush.msra.mxu0 %v1126
    %1144 = vmatpush.msra.mxu0 %v1125
    %1145 = vmatpush.msra.mxu0 %v1124
    %1146 = vmatpush.msra.mxu0 %v1123
    %1147 = vmatpush.msra.mxu0 %v1122
    %1148 = vmatpush.msra.mxu0 %v1121
    %1149 = vmatpush.msra.mxu0 %v1120
    %1150 = vmatpush.msra.mxu0 %v1119
    %1151 = vmatpush.msra.mxu0 %v1118
    %1152 = vmatpush.msra.mxu0 %v1117
    %1153 = vmatmul.f32.gmra.mxu0 %v996
    %v1154 = vpop.f32.mrf.mxu0
    %v1155 = vadd.f32 %v1135, %v1154
    %1156 = vdwg.mxu0
    %v1157 = vld [vmem:[%s688] sm:$0xff]
    %v1158 = vld [vmem:[%s688 + $0x8] sm:$0xff]
    %v1159 = vld [vmem:[%s688 + $0x10] sm:$0xff]
    %v1160 = vld [vmem:[%s688 + $0x18] sm:$0xff]
    %v1161 = vld [vmem:[%s688 + $0x20] sm:$0xff]
    %v1162 = vld [vmem:[%s688 + $0x28] sm:$0xff]
    %v1163 = vld [vmem:[%s688 + $0x30] sm:$0xff]
    %v1164 = vld [vmem:[%s688 + $0x38] sm:$0xff]
    %v1165 = vld [vmem:[%s688 + $0x40] sm:$0xff]
    %v1166 = vld [vmem:[%s688 + $0x48] sm:$0xff]
    %v1167 = vld [vmem:[%s688 + $0x50] sm:$0xff]
    %v1168 = vld [vmem:[%s688 + $0x58] sm:$0xff]
    %v1169 = vld [vmem:[%s688 + $0x60] sm:$0xff]
    %v1170 = vld [vmem:[%s688 + $0x68] sm:$0xff]
    %v1171 = vld [vmem:[%s688 + $0x70] sm:$0xff]
    %v1172 = vld [vmem:[%s688 + $0x78] sm:$0xff]
    %v1173 = vld [vmem:[%s705] sm:$0x1]
    %v1175 = vperm.slane %v1173, 0
    %1177 = vmatpush.msra.mxu0 %v1172
    %1178 = vmatpush.msra.mxu0 %v1171
    %1179 = vmatpush.msra.mxu0 %v1170
    %1180 = vmatpush.msra.mxu0 %v1169
    %1181 = vmatpush.msra.mxu0 %v1168
    %1182 = vmatpush.msra.mxu0 %v1167
    %1183 = vmatpush.msra.mxu0 %v1166
    %1184 = vmatpush.msra.mxu0 %v1165
    %1185 = vmatpush.msra.mxu0 %v1164
    %1186 = vmatpush.msra.mxu0 %v1163
    %1187 = vmatpush.msra.mxu0 %v1162
    %1188 = vmatpush.msra.mxu0 %v1161
    %1189 = vmatpush.msra.mxu0 %v1160
    %1190 = vmatpush.msra.mxu0 %v1159
    %1191 = vmatpush.msra.mxu0 %v1158
    %1192 = vmatpush.msra.mxu0 %v1157
    %1193 = vmatmul.f32.gmra.mxu0 %v996
    %v1194 = vpop.f32.mrf.mxu0
    %v1195 = vadd.f32 %v1175, %v1194
    %1196 = vdwg.mxu0
    %v1197 = vld [vmem:[%s730] sm:$0xff]
    %v1198 = vld [vmem:[%s730 + $0x8] sm:$0xff]
    %v1199 = vld [vmem:[%s730 + $0x10] sm:$0xff]
    %v1200 = vld [vmem:[%s730 + $0x18] sm:$0xff]
    %v1201 = vld [vmem:[%s730 + $0x20] sm:$0xff]
    %v1202 = vld [vmem:[%s730 + $0x28] sm:$0xff]
    %v1203 = vld [vmem:[%s730 + $0x30] sm:$0xff]
    %v1204 = vld [vmem:[%s730 + $0x38] sm:$0xff]
    %v1205 = vld [vmem:[%s730 + $0x40] sm:$0xff]
    %v1206 = vld [vmem:[%s730 + $0x48] sm:$0xff]
    %v1207 = vld [vmem:[%s730 + $0x50] sm:$0xff]
    %v1208 = vld [vmem:[%s730 + $0x58] sm:$0xff]
    %v1209 = vld [vmem:[%s730 + $0x60] sm:$0xff]
    %v1210 = vld [vmem:[%s730 + $0x68] sm:$0xff]
    %v1211 = vld [vmem:[%s730 + $0x70] sm:$0xff]
    %v1212 = vld [vmem:[%s730 + $0x78] sm:$0xff]
    %v1213 = vld [vmem:[%s747] sm:$0x1]
    %v1215 = vperm.slane %v1213, 0
    %1217 = vmatpush.msra.mxu0 %v1212
    %1218 = vmatpush.msra.mxu0 %v1211
    %1219 = vmatpush.msra.mxu0 %v1210
    %1220 = vmatpush.msra.mxu0 %v1209
    %1221 = vmatpush.msra.mxu0 %v1208
    %1222 = vmatpush.msra.mxu0 %v1207
    %1223 = vmatpush.msra.mxu0 %v1206
    %1224 = vmatpush.msra.mxu0 %v1205
    %1225 = vmatpush.msra.mxu0 %v1204
    %1226 = vmatpush.msra.mxu0 %v1203
    %1227 = vmatpush.msra.mxu0 %v1202
    %1228 = vmatpush.msra.mxu0 %v1201
    %1229 = vmatpush.msra.mxu0 %v1200
    %1230 = vmatpush.msra.mxu0 %v1199
    %1231 = vmatpush.msra.mxu0 %v1198
    %1232 = vmatpush.msra.mxu0 %v1197
    %1233 = vmatmul.f32.gmra.mxu0 %v996
    %v1234 = vpop.f32.mrf.mxu0
    %v1235 = vadd.f32 %v1215, %v1234
    %1236 = vdwg.mxu0
    %v1237 = vadd.f32 %v1035, %v1155
    %v1238 = vxor.u32 %v1237, 2147483648
    %v1239 = vmul.f32 %v1238, 1.442695
    %v1240 = vpow.pop %v1239
    %v1241 = vadd.f32 %v1240, 1.0
    %v1242 = vrcp.pop %v1241
    %v1243 = vmul.f32 %v1241, %v1242
    %v1244 = vsub.f32 1.0, %v1243
    %v1245 = vmul.f32 %v1242, %v1244
    %v1246 = vadd.f32 %v1242, %v1245
    %vm1247 = vweird.f32 %v1241
    %vm1248 = vweird.f32 %v1242
    %vm1249 = vmor %vm1247, %vm1248
    %v1250 = vsel %vm1249, %v1242, %v1246
    %v1251 = vand.u32 2147483647, %v1241
    %vm1252 = vcmp.eq.f32.partialorder %v1251, 8.507059e+37
    %v1253 = vand.u32 %v1241, 2147483648
    %v1254 = vor.u32 1.1754944e-38, %v1253
    %v1255 = vsel %vm1252, %v1254, %v1250
    %v1256 = vmul.f32 1.0, %v1255
    %v1257 = vadd.f32 %v1075, %v1195
    %v1258 = vxor.u32 %v1257, 2147483648
    %v1259 = vmul.f32 %v1258, 1.442695
    %v1260 = vpow.pop %v1259
    %v1261 = vadd.f32 %v1260, 1.0
    %v1262 = vrcp.pop %v1261
    %v1263 = vmul.f32 %v1261, %v1262
    %v1264 = vsub.f32 1.0, %v1263
    %v1265 = vmul.f32 %v1262, %v1264
    %v1266 = vadd.f32 %v1262, %v1265
    %vm1267 = vweird.f32 %v1261
    %vm1268 = vweird.f32 %v1262
    %vm1269 = vmor %vm1267, %vm1268
    %v1270 = vsel %vm1269, %v1262, %v1266
    %v1271 = vand.u32 2147483647, %v1261
    %vm1272 = vcmp.eq.f32.partialorder %v1271, 8.507059e+37
    %v1273 = vand.u32 %v1261, 2147483648
    %v1274 = vor.u32 1.1754944e-38, %v1273
    %v1275 = vsel %vm1272, %v1274, %v1270
    %v1276 = vmul.f32 1.0, %v1275
    %v1277 = vmul.f32 %v1256, %v1235
    %v1278 = vadd.f32 %v1115, %v1277
    %v1279 = vtanh.pop %v1278
    %v1280 = vsub.f32 1.0, %v1276
    %v1281 = vmul.f32 %v1280, %v1279
    %v1282 = vmul.f32 %v1276, %v996
    %v1283 = vadd.f32 %v1281, %v1282
    %1284 = vst [vmem:[%s518] sm:$0xff] %v1283
    %s1285 = scalar_lea.vmem [#allocation6], 8
    %1286 = vst [vmem:[%s1285] sm:$0xff] %v1283
    %v1287 = vld [vmem:[#allocation2] sm:$0xff]
    %s1288 = scalar_lea.vmem [#allocation3], 16
    %v1289 = vld [vmem:[%s1288] sm:$0xff]
    %s1290 = scalar_lea.vmem [#allocation4], 16
    %v1291 = vld [vmem:[%s1290] sm:$0xff]
    %s1292 = scalar_lea.vmem [#allocation5], 16
    %v1293 = vld [vmem:[%s1292] sm:$0xff]
    %v1294 = vld [vmem:[#allocation12] sm:$0xff]
    %v1295 = vld [vmem:[#allocation12 + $0x8] sm:$0xff]
    %v1296 = vld [vmem:[#allocation12 + $0x10] sm:$0xff]
    %v1297 = vld [vmem:[#allocation12 + $0x18] sm:$0xff]
    %v1298 = vld [vmem:[#allocation12 + $0x20] sm:$0xff]
    %v1299 = vld [vmem:[#allocation12 + $0x28] sm:$0xff]
    %v1300 = vld [vmem:[#allocation12 + $0x30] sm:$0xff]
    %v1301 = vld [vmem:[#allocation12 + $0x38] sm:$0xff]
    %v1302 = vld [vmem:[#allocation12 + $0x40] sm:$0xff]
    %v1303 = vld [vmem:[#allocation12 + $0x48] sm:$0xff]
    %v1304 = vld [vmem:[#allocation12 + $0x50] sm:$0xff]
    %v1305 = vld [vmem:[#allocation12 + $0x58] sm:$0xff]
    %v1306 = vld [vmem:[#allocation12 + $0x60] sm:$0xff]
    %v1307 = vld [vmem:[#allocation12 + $0x68] sm:$0xff]
    %v1308 = vld [vmem:[#allocation12 + $0x70] sm:$0xff]
    %v1309 = vld [vmem:[#allocation12 + $0x78] sm:$0xff]
    %v1310 = vld [vmem:[#allocation15] sm:$0x1]
    %v1312 = vperm.slane %v1310, 0
    %1314 = vmatpush.msra.mxu0 %v1309
    %1315 = vmatpush.msra.mxu0 %v1308
    %1316 = vmatpush.msra.mxu0 %v1307
    %1317 = vmatpush.msra.mxu0 %v1306
    %1318 = vmatpush.msra.mxu0 %v1305
    %1319 = vmatpush.msra.mxu0 %v1304
    %1320 = vmatpush.msra.mxu0 %v1303
    %1321 = vmatpush.msra.mxu0 %v1302
    %1322 = vmatpush.msra.mxu0 %v1301
    %1323 = vmatpush.msra.mxu0 %v1300
    %1324 = vmatpush.msra.mxu0 %v1299
    %1325 = vmatpush.msra.mxu0 %v1298
    %1326 = vmatpush.msra.mxu0 %v1297
    %1327 = vmatpush.msra.mxu0 %v1296
    %1328 = vmatpush.msra.mxu0 %v1295
    %1329 = vmatpush.msra.mxu0 %v1294
    %1330 = vmatmul.f32.gmra.mxu0 %v1287
    %v1331 = vpop.f32.mrf.mxu0
    %v1332 = vadd.f32 %v1312, %v1331
    %1333 = vdwg.mxu0
    %v1334 = vld [vmem:[%s386] sm:$0xff]
    %v1335 = vld [vmem:[%s386 + $0x8] sm:$0xff]
    %v1336 = vld [vmem:[%s386 + $0x10] sm:$0xff]
    %v1337 = vld [vmem:[%s386 + $0x18] sm:$0xff]
    %v1338 = vld [vmem:[%s386 + $0x20] sm:$0xff]
    %v1339 = vld [vmem:[%s386 + $0x28] sm:$0xff]
    %v1340 = vld [vmem:[%s386 + $0x30] sm:$0xff]
    %v1341 = vld [vmem:[%s386 + $0x38] sm:$0xff]
    %v1342 = vld [vmem:[%s386 + $0x40] sm:$0xff]
    %v1343 = vld [vmem:[%s386 + $0x48] sm:$0xff]
    %v1344 = vld [vmem:[%s386 + $0x50] sm:$0xff]
    %v1345 = vld [vmem:[%s386 + $0x58] sm:$0xff]
    %v1346 = vld [vmem:[%s386 + $0x60] sm:$0xff]
    %v1347 = vld [vmem:[%s386 + $0x68] sm:$0xff]
    %v1348 = vld [vmem:[%s386 + $0x70] sm:$0xff]
    %v1349 = vld [vmem:[%s386 + $0x78] sm:$0xff]
    %v1350 = vld [vmem:[%s403] sm:$0x1]
    %v1352 = vperm.slane %v1350, 0
    %1354 = vmatpush.msra.mxu0 %v1349
    %1355 = vmatpush.msra.mxu0 %v1348
    %1356 = vmatpush.msra.mxu0 %v1347
    %1357 = vmatpush.msra.mxu0 %v1346
    %1358 = vmatpush.msra.mxu0 %v1345
    %1359 = vmatpush.msra.mxu0 %v1344
    %1360 = vmatpush.msra.mxu0 %v1343
    %1361 = vmatpush.msra.mxu0 %v1342
    %1362 = vmatpush.msra.mxu0 %v1341
    %1363 = vmatpush.msra.mxu0 %v1340
    %1364 = vmatpush.msra.mxu0 %v1339
    %1365 = vmatpush.msra.mxu0 %v1338
    %1366 = vmatpush.msra.mxu0 %v1337
    %1367 = vmatpush.msra.mxu0 %v1336
    %1368 = vmatpush.msra.mxu0 %v1335
    %1369 = vmatpush.msra.mxu0 %v1334
    %1370 = vmatmul.f32.gmra.mxu0 %v1287
    %v1371 = vpop.f32.mrf.mxu0
    %v1372 = vadd.f32 %v1352, %v1371
    %1373 = vdwg.mxu0
    %v1374 = vld [vmem:[%s428] sm:$0xff]
    %v1375 = vld [vmem:[%s428 + $0x8] sm:$0xff]
    %v1376 = vld [vmem:[%s428 + $0x10] sm:$0xff]
    %v1377 = vld [vmem:[%s428 + $0x18] sm:$0xff]
    %v1378 = vld [vmem:[%s428 + $0x20] sm:$0xff]
    %v1379 = vld [vmem:[%s428 + $0x28] sm:$0xff]
    %v1380 = vld [vmem:[%s428 + $0x30] sm:$0xff]
    %v1381 = vld [vmem:[%s428 + $0x38] sm:$0xff]
    %v1382 = vld [vmem:[%s428 + $0x40] sm:$0xff]
    %v1383 = vld [vmem:[%s428 + $0x48] sm:$0xff]
    %v1384 = vld [vmem:[%s428 + $0x50] sm:$0xff]
    %v1385 = vld [vmem:[%s428 + $0x58] sm:$0xff]
    %v1386 = vld [vmem:[%s428 + $0x60] sm:$0xff]
    %v1387 = vld [vmem:[%s428 + $0x68] sm:$0xff]
    %v1388 = vld [vmem:[%s428 + $0x70] sm:$0xff]
    %v1389 = vld [vmem:[%s428 + $0x78] sm:$0xff]
    %v1390 = vld [vmem:[%s445] sm:$0x1]
    %v1392 = vperm.slane %v1390, 0
    %1394 = vmatpush.msra.mxu0 %v1389
    %1395 = vmatpush.msra.mxu0 %v1388
    %1396 = vmatpush.msra.mxu0 %v1387
    %1397 = vmatpush.msra.mxu0 %v1386
    %1398 = vmatpush.msra.mxu0 %v1385
    %1399 = vmatpush.msra.mxu0 %v1384
    %1400 = vmatpush.msra.mxu0 %v1383
    %1401 = vmatpush.msra.mxu0 %v1382
    %1402 = vmatpush.msra.mxu0 %v1381
    %1403 = vmatpush.msra.mxu0 %v1380
    %1404 = vmatpush.msra.mxu0 %v1379
    %1405 = vmatpush.msra.mxu0 %v1378
    %1406 = vmatpush.msra.mxu0 %v1377
    %1407 = vmatpush.msra.mxu0 %v1376
    %1408 = vmatpush.msra.mxu0 %v1375
    %1409 = vmatpush.msra.mxu0 %v1374
    %1410 = vmatmul.f32.gmra.mxu0 %v1287
    %v1411 = vpop.f32.mrf.mxu0
    %v1412 = vadd.f32 %v1392, %v1411
    %1413 = vdwg.mxu0
    %v1414 = vadd.f32 %v1289, %v1332
    %v1415 = vxor.u32 %v1414, 2147483648
    %v1416 = vmul.f32 %v1415, 1.442695
    %v1417 = vpow.pop %v1416
    %v1418 = vadd.f32 %v1417, 1.0
    %v1419 = vrcp.pop %v1418
    %v1420 = vmul.f32 %v1418, %v1419
    %v1421 = vsub.f32 1.0, %v1420
    %v1422 = vmul.f32 %v1419, %v1421
    %v1423 = vadd.f32 %v1419, %v1422
    %vm1424 = vweird.f32 %v1418
    %vm1425 = vweird.f32 %v1419
    %vm1426 = vmor %vm1424, %vm1425
    %v1427 = vsel %vm1426, %v1419, %v1423
    %v1428 = vand.u32 2147483647, %v1418
    %vm1429 = vcmp.eq.f32.partialorder %v1428, 8.507059e+37
    %v1430 = vand.u32 %v1418, 2147483648
    %v1431 = vor.u32 1.1754944e-38, %v1430
    %v1432 = vsel %vm1429, %v1431, %v1427
    %v1433 = vmul.f32 1.0, %v1432
    %v1434 = vadd.f32 %v1291, %v1372
    %v1435 = vxor.u32 %v1434, 2147483648
    %v1436 = vmul.f32 %v1435, 1.442695
    %v1437 = vpow.pop %v1436
    %v1438 = vadd.f32 %v1437, 1.0
    %v1439 = vrcp.pop %v1438
    %v1440 = vmul.f32 %v1438, %v1439
    %v1441 = vsub.f32 1.0, %v1440
    %v1442 = vmul.f32 %v1439, %v1441
    %v1443 = vadd.f32 %v1439, %v1442
    %vm1444 = vweird.f32 %v1438
    %vm1445 = vweird.f32 %v1439
    %vm1446 = vmor %vm1444, %vm1445
    %v1447 = vsel %vm1446, %v1439, %v1443
    %v1448 = vand.u32 2147483647, %v1438
    %vm1449 = vcmp.eq.f32.partialorder %v1448, 8.507059e+37
    %v1450 = vand.u32 %v1438, 2147483648
    %v1451 = vor.u32 1.1754944e-38, %v1450
    %v1452 = vsel %vm1449, %v1451, %v1447
    %v1453 = vmul.f32 1.0, %v1452
    %v1454 = vmul.f32 %v1433, %v1412
    %v1455 = vadd.f32 %v1293, %v1454
    %v1456 = vtanh.pop %v1455
    %v1457 = vsub.f32 1.0, %v1453
    %v1458 = vmul.f32 %v1457, %v1456
    %v1459 = vmul.f32 %v1453, %v1287
    %v1460 = vadd.f32 %v1458, %v1459
    %1461 = vst [vmem:[#allocation2] sm:$0xff] %v1460
    %v1462 = vld [vmem:[%s518] sm:$0xff]
    %v1463 = vld [vmem:[%s520] sm:$0xff]
    %v1464 = vld [vmem:[%s520 + $0x8] sm:$0xff]
    %v1465 = vld [vmem:[%s520 + $0x10] sm:$0xff]
    %v1466 = vld [vmem:[%s520 + $0x18] sm:$0xff]
    %v1467 = vld [vmem:[%s520 + $0x20] sm:$0xff]
    %v1468 = vld [vmem:[%s520 + $0x28] sm:$0xff]
    %v1469 = vld [vmem:[%s520 + $0x30] sm:$0xff]
    %v1470 = vld [vmem:[%s520 + $0x38] sm:$0xff]
    %v1471 = vld [vmem:[%s520 + $0x40] sm:$0xff]
    %v1472 = vld [vmem:[%s520 + $0x48] sm:$0xff]
    %v1473 = vld [vmem:[%s520 + $0x50] sm:$0xff]
    %v1474 = vld [vmem:[%s520 + $0x58] sm:$0xff]
    %v1475 = vld [vmem:[%s520 + $0x60] sm:$0xff]
    %v1476 = vld [vmem:[%s520 + $0x68] sm:$0xff]
    %v1477 = vld [vmem:[%s520 + $0x70] sm:$0xff]
    %v1478 = vld [vmem:[%s520 + $0x78] sm:$0xff]
    %v1479 = vld [vmem:[%s537] sm:$0x1]
    %v1481 = vperm.slane %v1479, 0
    %1483 = vmatpush.msra.mxu0 %v1478
    %1484 = vmatpush.msra.mxu0 %v1477
    %1485 = vmatpush.msra.mxu0 %v1476
    %1486 = vmatpush.msra.mxu0 %v1475
    %1487 = vmatpush.msra.mxu0 %v1474
    %1488 = vmatpush.msra.mxu0 %v1473
    %1489 = vmatpush.msra.mxu0 %v1472
    %1490 = vmatpush.msra.mxu0 %v1471
    %1491 = vmatpush.msra.mxu0 %v1470
    %1492 = vmatpush.msra.mxu0 %v1469
    %1493 = vmatpush.msra.mxu0 %v1468
    %1494 = vmatpush.msra.mxu0 %v1467
    %1495 = vmatpush.msra.mxu0 %v1466
    %1496 = vmatpush.msra.mxu0 %v1465
    %1497 = vmatpush.msra.mxu0 %v1464
    %1498 = vmatpush.msra.mxu0 %v1463
    %1499 = vmatmul.f32.gmra.mxu0 %v1460
    %v1500 = vpop.f32.mrf.mxu0
    %v1501 = vadd.f32 %v1481, %v1500
    %1502 = vdwg.mxu0
    %v1503 = vld [vmem:[%s562] sm:$0xff]
    %v1504 = vld [vmem:[%s562 + $0x8] sm:$0xff]
    %v1505 = vld [vmem:[%s562 + $0x10] sm:$0xff]
    %v1506 = vld [vmem:[%s562 + $0x18] sm:$0xff]
    %v1507 = vld [vmem:[%s562 + $0x20] sm:$0xff]
    %v1508 = vld [vmem:[%s562 + $0x28] sm:$0xff]
    %v1509 = vld [vmem:[%s562 + $0x30] sm:$0xff]
    %v1510 = vld [vmem:[%s562 + $0x38] sm:$0xff]
    %v1511 = vld [vmem:[%s562 + $0x40] sm:$0xff]
    %v1512 = vld [vmem:[%s562 + $0x48] sm:$0xff]
    %v1513 = vld [vmem:[%s562 + $0x50] sm:$0xff]
    %v1514 = vld [vmem:[%s562 + $0x58] sm:$0xff]
    %v1515 = vld [vmem:[%s562 + $0x60] sm:$0xff]
    %v1516 = vld [vmem:[%s562 + $0x68] sm:$0xff]
    %v1517 = vld [vmem:[%s562 + $0x70] sm:$0xff]
    %v1518 = vld [vmem:[%s562 + $0x78] sm:$0xff]
    %v1519 = vld [vmem:[%s579] sm:$0x1]
    %v1521 = vperm.slane %v1519, 0
    %1523 = vmatpush.msra.mxu0 %v1518
    %1524 = vmatpush.msra.mxu0 %v1517
    %1525 = vmatpush.msra.mxu0 %v1516
    %1526 = vmatpush.msra.mxu0 %v1515
    %1527 = vmatpush.msra.mxu0 %v1514
    %1528 = vmatpush.msra.mxu0 %v1513
    %1529 = vmatpush.msra.mxu0 %v1512
    %1530 = vmatpush.msra.mxu0 %v1511
    %1531 = vmatpush.msra.mxu0 %v1510
    %1532 = vmatpush.msra.mxu0 %v1509
    %1533 = vmatpush.msra.mxu0 %v1508
    %1534 = vmatpush.msra.mxu0 %v1507
    %1535 = vmatpush.msra.mxu0 %v1506
    %1536 = vmatpush.msra.mxu0 %v1505
    %1537 = vmatpush.msra.mxu0 %v1504
    %1538 = vmatpush.msra.mxu0 %v1503
    %1539 = vmatmul.f32.gmra.mxu0 %v1460
    %v1540 = vpop.f32.mrf.mxu0
    %v1541 = vadd.f32 %v1521, %v1540
    %1542 = vdwg.mxu0
    %v1543 = vld [vmem:[%s604] sm:$0xff]
    %v1544 = vld [vmem:[%s604 + $0x8] sm:$0xff]
    %v1545 = vld [vmem:[%s604 + $0x10] sm:$0xff]
    %v1546 = vld [vmem:[%s604 + $0x18] sm:$0xff]
    %v1547 = vld [vmem:[%s604 + $0x20] sm:$0xff]
    %v1548 = vld [vmem:[%s604 + $0x28] sm:$0xff]
    %v1549 = vld [vmem:[%s604 + $0x30] sm:$0xff]
    %v1550 = vld [vmem:[%s604 + $0x38] sm:$0xff]
    %v1551 = vld [vmem:[%s604 + $0x40] sm:$0xff]
    %v1552 = vld [vmem:[%s604 + $0x48] sm:$0xff]
    %v1553 = vld [vmem:[%s604 + $0x50] sm:$0xff]
    %v1554 = vld [vmem:[%s604 + $0x58] sm:$0xff]
    %v1555 = vld [vmem:[%s604 + $0x60] sm:$0xff]
    %v1556 = vld [vmem:[%s604 + $0x68] sm:$0xff]
    %v1557 = vld [vmem:[%s604 + $0x70] sm:$0xff]
    %v1558 = vld [vmem:[%s604 + $0x78] sm:$0xff]
    %v1559 = vld [vmem:[%s621] sm:$0x1]
    %v1561 = vperm.slane %v1559, 0
    %1563 = vmatpush.msra.mxu0 %v1558
    %1564 = vmatpush.msra.mxu0 %v1557
    %1565 = vmatpush.msra.mxu0 %v1556
    %1566 = vmatpush.msra.mxu0 %v1555
    %1567 = vmatpush.msra.mxu0 %v1554
    %1568 = vmatpush.msra.mxu0 %v1553
    %1569 = vmatpush.msra.mxu0 %v1552
    %1570 = vmatpush.msra.mxu0 %v1551
    %1571 = vmatpush.msra.mxu0 %v1550
    %1572 = vmatpush.msra.mxu0 %v1549
    %1573 = vmatpush.msra.mxu0 %v1548
    %1574 = vmatpush.msra.mxu0 %v1547
    %1575 = vmatpush.msra.mxu0 %v1546
    %1576 = vmatpush.msra.mxu0 %v1545
    %1577 = vmatpush.msra.mxu0 %v1544
    %1578 = vmatpush.msra.mxu0 %v1543
    %1579 = vmatmul.f32.gmra.mxu0 %v1460
    %v1580 = vpop.f32.mrf.mxu0
    %v1581 = vadd.f32 %v1561, %v1580
    %1582 = vdwg.mxu0
    %v1583 = vld [vmem:[%s646] sm:$0xff]
    %v1584 = vld [vmem:[%s646 + $0x8] sm:$0xff]
    %v1585 = vld [vmem:[%s646 + $0x10] sm:$0xff]
    %v1586 = vld [vmem:[%s646 + $0x18] sm:$0xff]
    %v1587 = vld [vmem:[%s646 + $0x20] sm:$0xff]
    %v1588 = vld [vmem:[%s646 + $0x28] sm:$0xff]
    %v1589 = vld [vmem:[%s646 + $0x30] sm:$0xff]
    %v1590 = vld [vmem:[%s646 + $0x38] sm:$0xff]
    %v1591 = vld [vmem:[%s646 + $0x40] sm:$0xff]
    %v1592 = vld [vmem:[%s646 + $0x48] sm:$0xff]
    %v1593 = vld [vmem:[%s646 + $0x50] sm:$0xff]
    %v1594 = vld [vmem:[%s646 + $0x58] sm:$0xff]
    %v1595 = vld [vmem:[%s646 + $0x60] sm:$0xff]
    %v1596 = vld [vmem:[%s646 + $0x68] sm:$0xff]
    %v1597 = vld [vmem:[%s646 + $0x70] sm:$0xff]
    %v1598 = vld [vmem:[%s646 + $0x78] sm:$0xff]
    %v1599 = vld [vmem:[%s663] sm:$0x1]
    %v1601 = vperm.slane %v1599, 0
    %1603 = vmatpush.msra.mxu0 %v1598
    %1604 = vmatpush.msra.mxu0 %v1597
    %1605 = vmatpush.msra.mxu0 %v1596
    %1606 = vmatpush.msra.mxu0 %v1595
    %1607 = vmatpush.msra.mxu0 %v1594
    %1608 = vmatpush.msra.mxu0 %v1593
    %1609 = vmatpush.msra.mxu0 %v1592
    %1610 = vmatpush.msra.mxu0 %v1591
    %1611 = vmatpush.msra.mxu0 %v1590
    %1612 = vmatpush.msra.mxu0 %v1589
    %1613 = vmatpush.msra.mxu0 %v1588
    %1614 = vmatpush.msra.mxu0 %v1587
    %1615 = vmatpush.msra.mxu0 %v1586
    %1616 = vmatpush.msra.mxu0 %v1585
    %1617 = vmatpush.msra.mxu0 %v1584
    %1618 = vmatpush.msra.mxu0 %v1583
    %1619 = vmatmul.f32.gmra.mxu0 %v1462
    %v1620 = vpop.f32.mrf.mxu0
    %v1621 = vadd.f32 %v1601, %v1620
    %1622 = vdwg.mxu0
    %v1623 = vld [vmem:[%s688] sm:$0xff]
    %v1624 = vld [vmem:[%s688 + $0x8] sm:$0xff]
    %v1625 = vld [vmem:[%s688 + $0x10] sm:$0xff]
    %v1626 = vld [vmem:[%s688 + $0x18] sm:$0xff]
    %v1627 = vld [vmem:[%s688 + $0x20] sm:$0xff]
    %v1628 = vld [vmem:[%s688 + $0x28] sm:$0xff]
    %v1629 = vld [vmem:[%s688 + $0x30] sm:$0xff]
    %v1630 = vld [vmem:[%s688 + $0x38] sm:$0xff]
    %v1631 = vld [vmem:[%s688 + $0x40] sm:$0xff]
    %v1632 = vld [vmem:[%s688 + $0x48] sm:$0xff]
    %v1633 = vld [vmem:[%s688 + $0x50] sm:$0xff]
    %v1634 = vld [vmem:[%s688 + $0x58] sm:$0xff]
    %v1635 = vld [vmem:[%s688 + $0x60] sm:$0xff]
    %v1636 = vld [vmem:[%s688 + $0x68] sm:$0xff]
    %v1637 = vld [vmem:[%s688 + $0x70] sm:$0xff]
    %v1638 = vld [vmem:[%s688 + $0x78] sm:$0xff]
    %v1639 = vld [vmem:[%s705] sm:$0x1]
    %v1641 = vperm.slane %v1639, 0
    %1643 = vmatpush.msra.mxu0 %v1638
    %1644 = vmatpush.msra.mxu0 %v1637
    %1645 = vmatpush.msra.mxu0 %v1636
    %1646 = vmatpush.msra.mxu0 %v1635
    %1647 = vmatpush.msra.mxu0 %v1634
    %1648 = vmatpush.msra.mxu0 %v1633
    %1649 = vmatpush.msra.mxu0 %v1632
    %1650 = vmatpush.msra.mxu0 %v1631
    %1651 = vmatpush.msra.mxu0 %v1630
    %1652 = vmatpush.msra.mxu0 %v1629
    %1653 = vmatpush.msra.mxu0 %v1628
    %1654 = vmatpush.msra.mxu0 %v1627
    %1655 = vmatpush.msra.mxu0 %v1626
    %1656 = vmatpush.msra.mxu0 %v1625
    %1657 = vmatpush.msra.mxu0 %v1624
    %1658 = vmatpush.msra.mxu0 %v1623
    %1659 = vmatmul.f32.gmra.mxu0 %v1462
    %v1660 = vpop.f32.mrf.mxu0
    %v1661 = vadd.f32 %v1641, %v1660
    %1662 = vdwg.mxu0
    %v1663 = vld [vmem:[%s730] sm:$0xff]
    %v1664 = vld [vmem:[%s730 + $0x8] sm:$0xff]
    %v1665 = vld [vmem:[%s730 + $0x10] sm:$0xff]
    %v1666 = vld [vmem:[%s730 + $0x18] sm:$0xff]
    %v1667 = vld [vmem:[%s730 + $0x20] sm:$0xff]
    %v1668 = vld [vmem:[%s730 + $0x28] sm:$0xff]
    %v1669 = vld [vmem:[%s730 + $0x30] sm:$0xff]
    %v1670 = vld [vmem:[%s730 + $0x38] sm:$0xff]
    %v1671 = vld [vmem:[%s730 + $0x40] sm:$0xff]
    %v1672 = vld [vmem:[%s730 + $0x48] sm:$0xff]
    %v1673 = vld [vmem:[%s730 + $0x50] sm:$0xff]
    %v1674 = vld [vmem:[%s730 + $0x58] sm:$0xff]
    %v1675 = vld [vmem:[%s730 + $0x60] sm:$0xff]
    %v1676 = vld [vmem:[%s730 + $0x68] sm:$0xff]
    %v1677 = vld [vmem:[%s730 + $0x70] sm:$0xff]
    %v1678 = vld [vmem:[%s730 + $0x78] sm:$0xff]
    %v1679 = vld [vmem:[%s747] sm:$0x1]
    %v1681 = vperm.slane %v1679, 0
    %1683 = vmatpush.msra.mxu0 %v1678
    %1684 = vmatpush.msra.mxu0 %v1677
    %1685 = vmatpush.msra.mxu0 %v1676
    %1686 = vmatpush.msra.mxu0 %v1675
    %1687 = vmatpush.msra.mxu0 %v1674
    %1688 = vmatpush.msra.mxu0 %v1673
    %1689 = vmatpush.msra.mxu0 %v1672
    %1690 = vmatpush.msra.mxu0 %v1671
    %1691 = vmatpush.msra.mxu0 %v1670
    %1692 = vmatpush.msra.mxu0 %v1669
    %1693 = vmatpush.msra.mxu0 %v1668
    %1694 = vmatpush.msra.mxu0 %v1667
    %1695 = vmatpush.msra.mxu0 %v1666
    %1696 = vmatpush.msra.mxu0 %v1665
    %1697 = vmatpush.msra.mxu0 %v1664
    %1698 = vmatpush.msra.mxu0 %v1663
    %1699 = vmatmul.f32.gmra.mxu0 %v1462
    %v1700 = vpop.f32.mrf.mxu0
    %v1701 = vadd.f32 %v1681, %v1700
    %1702 = vdwg.mxu0
    %v1703 = vadd.f32 %v1501, %v1621
    %v1704 = vxor.u32 %v1703, 2147483648
    %v1705 = vmul.f32 %v1704, 1.442695
    %v1706 = vpow.pop %v1705
    %v1707 = vadd.f32 %v1706, 1.0
    %v1708 = vrcp.pop %v1707
    %v1709 = vmul.f32 %v1707, %v1708
    %v1710 = vsub.f32 1.0, %v1709
    %v1711 = vmul.f32 %v1708, %v1710
    %v1712 = vadd.f32 %v1708, %v1711
    %vm1713 = vweird.f32 %v1707
    %vm1714 = vweird.f32 %v1708
    %vm1715 = vmor %vm1713, %vm1714
    %v1716 = vsel %vm1715, %v1708, %v1712
    %v1717 = vand.u32 2147483647, %v1707
    %vm1718 = vcmp.eq.f32.partialorder %v1717, 8.507059e+37
    %v1719 = vand.u32 %v1707, 2147483648
    %v1720 = vor.u32 1.1754944e-38, %v1719
    %v1721 = vsel %vm1718, %v1720, %v1716
    %v1722 = vmul.f32 1.0, %v1721
    %v1723 = vadd.f32 %v1541, %v1661
    %v1724 = vxor.u32 %v1723, 2147483648
    %v1725 = vmul.f32 %v1724, 1.442695
    %v1726 = vpow.pop %v1725
    %v1727 = vadd.f32 %v1726, 1.0
    %v1728 = vrcp.pop %v1727
    %v1729 = vmul.f32 %v1727, %v1728
    %v1730 = vsub.f32 1.0, %v1729
    %v1731 = vmul.f32 %v1728, %v1730
    %v1732 = vadd.f32 %v1728, %v1731
    %vm1733 = vweird.f32 %v1727
    %vm1734 = vweird.f32 %v1728
    %vm1735 = vmor %vm1733, %vm1734
    %v1736 = vsel %vm1735, %v1728, %v1732
    %v1737 = vand.u32 2147483647, %v1727
    %vm1738 = vcmp.eq.f32.partialorder %v1737, 8.507059e+37
    %v1739 = vand.u32 %v1727, 2147483648
    %v1740 = vor.u32 1.1754944e-38, %v1739
    %v1741 = vsel %vm1738, %v1740, %v1736
    %v1742 = vmul.f32 1.0, %v1741
    %v1743 = vmul.f32 %v1722, %v1701
    %v1744 = vadd.f32 %v1581, %v1743
    %v1745 = vtanh.pop %v1744
    %v1746 = vsub.f32 1.0, %v1742
    %v1747 = vmul.f32 %v1746, %v1745
    %v1748 = vmul.f32 %v1742, %v1462
    %v1749 = vadd.f32 %v1747, %v1748
    %1750 = vst [vmem:[%s518] sm:$0xff] %v1749
    %s1751 = scalar_lea.vmem [#allocation6], 16
    %1752 = vst [vmem:[%s1751] sm:$0xff] %v1749
    %v1753 = vld [vmem:[#allocation2] sm:$0xff]
    %s1754 = scalar_lea.vmem [#allocation3], 24
    %v1755 = vld [vmem:[%s1754] sm:$0xff]
    %s1756 = scalar_lea.vmem [#allocation4], 24
    %v1757 = vld [vmem:[%s1756] sm:$0xff]
    %s1758 = scalar_lea.vmem [#allocation5], 24
    %v1759 = vld [vmem:[%s1758] sm:$0xff]
    %v1760 = vld [vmem:[#allocation12] sm:$0xff]
    %v1761 = vld [vmem:[#allocation12 + $0x8] sm:$0xff]
    %v1762 = vld [vmem:[#allocation12 + $0x10] sm:$0xff]
    %v1763 = vld [vmem:[#allocation12 + $0x18] sm:$0xff]
    %v1764 = vld [vmem:[#allocation12 + $0x20] sm:$0xff]
    %v1765 = vld [vmem:[#allocation12 + $0x28] sm:$0xff]
    %v1766 = vld [vmem:[#allocation12 + $0x30] sm:$0xff]
    %v1767 = vld [vmem:[#allocation12 + $0x38] sm:$0xff]
    %v1768 = vld [vmem:[#allocation12 + $0x40] sm:$0xff]
    %v1769 = vld [vmem:[#allocation12 + $0x48] sm:$0xff]
    %v1770 = vld [vmem:[#allocation12 + $0x50] sm:$0xff]
    %v1771 = vld [vmem:[#allocation12 + $0x58] sm:$0xff]
    %v1772 = vld [vmem:[#allocation12 + $0x60] sm:$0xff]
    %v1773 = vld [vmem:[#allocation12 + $0x68] sm:$0xff]
    %v1774 = vld [vmem:[#allocation12 + $0x70] sm:$0xff]
    %v1775 = vld [vmem:[#allocation12 + $0x78] sm:$0xff]
    %v1776 = vld [vmem:[#allocation15] sm:$0x1]
    %v1778 = vperm.slane %v1776, 0
    %1780 = vmatpush.msra.mxu0 %v1775
    %1781 = vmatpush.msra.mxu0 %v1774
    %1782 = vmatpush.msra.mxu0 %v1773
    %1783 = vmatpush.msra.mxu0 %v1772
    %1784 = vmatpush.msra.mxu0 %v1771
    %1785 = vmatpush.msra.mxu0 %v1770
    %1786 = vmatpush.msra.mxu0 %v1769
    %1787 = vmatpush.msra.mxu0 %v1768
    %1788 = vmatpush.msra.mxu0 %v1767
    %1789 = vmatpush.msra.mxu0 %v1766
    %1790 = vmatpush.msra.mxu0 %v1765
    %1791 = vmatpush.msra.mxu0 %v1764
    %1792 = vmatpush.msra.mxu0 %v1763
    %1793 = vmatpush.msra.mxu0 %v1762
    %1794 = vmatpush.msra.mxu0 %v1761
    %1795 = vmatpush.msra.mxu0 %v1760
    %1796 = vmatmul.f32.gmra.mxu0 %v1753
    %v1797 = vpop.f32.mrf.mxu0
    %v1798 = vadd.f32 %v1778, %v1797
    %1799 = vdwg.mxu0
    %v1800 = vld [vmem:[%s386] sm:$0xff]
    %v1801 = vld [vmem:[%s386 + $0x8] sm:$0xff]
    %v1802 = vld [vmem:[%s386 + $0x10] sm:$0xff]
    %v1803 = vld [vmem:[%s386 + $0x18] sm:$0xff]
    %v1804 = vld [vmem:[%s386 + $0x20] sm:$0xff]
    %v1805 = vld [vmem:[%s386 + $0x28] sm:$0xff]
    %v1806 = vld [vmem:[%s386 + $0x30] sm:$0xff]
    %v1807 = vld [vmem:[%s386 + $0x38] sm:$0xff]
    %v1808 = vld [vmem:[%s386 + $0x40] sm:$0xff]
    %v1809 = vld [vmem:[%s386 + $0x48] sm:$0xff]
    %v1810 = vld [vmem:[%s386 + $0x50] sm:$0xff]
    %v1811 = vld [vmem:[%s386 + $0x58] sm:$0xff]
    %v1812 = vld [vmem:[%s386 + $0x60] sm:$0xff]
    %v1813 = vld [vmem:[%s386 + $0x68] sm:$0xff]
    %v1814 = vld [vmem:[%s386 + $0x70] sm:$0xff]
    %v1815 = vld [vmem:[%s386 + $0x78] sm:$0xff]
    %v1816 = vld [vmem:[%s403] sm:$0x1]
    %v1818 = vperm.slane %v1816, 0
    %1820 = vmatpush.msra.mxu0 %v1815
    %1821 = vmatpush.msra.mxu0 %v1814
    %1822 = vmatpush.msra.mxu0 %v1813
    %1823 = vmatpush.msra.mxu0 %v1812
    %1824 = vmatpush.msra.mxu0 %v1811
    %1825 = vmatpush.msra.mxu0 %v1810
    %1826 = vmatpush.msra.mxu0 %v1809
    %1827 = vmatpush.msra.mxu0 %v1808
    %1828 = vmatpush.msra.mxu0 %v1807
    %1829 = vmatpush.msra.mxu0 %v1806
    %1830 = vmatpush.msra.mxu0 %v1805
    %1831 = vmatpush.msra.mxu0 %v1804
    %1832 = vmatpush.msra.mxu0 %v1803
    %1833 = vmatpush.msra.mxu0 %v1802
    %1834 = vmatpush.msra.mxu0 %v1801
    %1835 = vmatpush.msra.mxu0 %v1800
    %1836 = vmatmul.f32.gmra.mxu0 %v1753
    %v1837 = vpop.f32.mrf.mxu0
    %v1838 = vadd.f32 %v1818, %v1837
    %1839 = vdwg.mxu0
    %v1840 = vld [vmem:[%s428] sm:$0xff]
    %v1841 = vld [vmem:[%s428 + $0x8] sm:$0xff]
    %v1842 = vld [vmem:[%s428 + $0x10] sm:$0xff]
    %v1843 = vld [vmem:[%s428 + $0x18] sm:$0xff]
    %v1844 = vld [vmem:[%s428 + $0x20] sm:$0xff]
    %v1845 = vld [vmem:[%s428 + $0x28] sm:$0xff]
    %v1846 = vld [vmem:[%s428 + $0x30] sm:$0xff]
    %v1847 = vld [vmem:[%s428 + $0x38] sm:$0xff]
    %v1848 = vld [vmem:[%s428 + $0x40] sm:$0xff]
    %v1849 = vld [vmem:[%s428 + $0x48] sm:$0xff]
    %v1850 = vld [vmem:[%s428 + $0x50] sm:$0xff]
    %v1851 = vld [vmem:[%s428 + $0x58] sm:$0xff]
    %v1852 = vld [vmem:[%s428 + $0x60] sm:$0xff]
    %v1853 = vld [vmem:[%s428 + $0x68] sm:$0xff]
    %v1854 = vld [vmem:[%s428 + $0x70] sm:$0xff]
    %v1855 = vld [vmem:[%s428 + $0x78] sm:$0xff]
    %v1856 = vld [vmem:[%s445] sm:$0x1]
    %v1858 = vperm.slane %v1856, 0
    %1860 = vmatpush.msra.mxu0 %v1855
    %1861 = vmatpush.msra.mxu0 %v1854
    %1862 = vmatpush.msra.mxu0 %v1853
    %1863 = vmatpush.msra.mxu0 %v1852
    %1864 = vmatpush.msra.mxu0 %v1851
    %1865 = vmatpush.msra.mxu0 %v1850
    %1866 = vmatpush.msra.mxu0 %v1849
    %1867 = vmatpush.msra.mxu0 %v1848
    %1868 = vmatpush.msra.mxu0 %v1847
    %1869 = vmatpush.msra.mxu0 %v1846
    %1870 = vmatpush.msra.mxu0 %v1845
    %1871 = vmatpush.msra.mxu0 %v1844
    %1872 = vmatpush.msra.mxu0 %v1843
    %1873 = vmatpush.msra.mxu0 %v1842
    %1874 = vmatpush.msra.mxu0 %v1841
    %1875 = vmatpush.msra.mxu0 %v1840
    %1876 = vmatmul.f32.gmra.mxu0 %v1753
    %v1877 = vpop.f32.mrf.mxu0
    %v1878 = vadd.f32 %v1858, %v1877
    %1879 = vdwg.mxu0
    %v1880 = vadd.f32 %v1755, %v1798
    %v1881 = vxor.u32 %v1880, 2147483648
    %v1882 = vmul.f32 %v1881, 1.442695
    %v1883 = vpow.pop %v1882
    %v1884 = vadd.f32 %v1883, 1.0
    %v1885 = vrcp.pop %v1884
    %v1886 = vmul.f32 %v1884, %v1885
    %v1887 = vsub.f32 1.0, %v1886
    %v1888 = vmul.f32 %v1885, %v1887
    %v1889 = vadd.f32 %v1885, %v1888
    %vm1890 = vweird.f32 %v1884
    %vm1891 = vweird.f32 %v1885
    %vm1892 = vmor %vm1890, %vm1891
    %v1893 = vsel %vm1892, %v1885, %v1889
    %v1894 = vand.u32 2147483647, %v1884
    %vm1895 = vcmp.eq.f32.partialorder %v1894, 8.507059e+37
    %v1896 = vand.u32 %v1884, 2147483648
    %v1897 = vor.u32 1.1754944e-38, %v1896
    %v1898 = vsel %vm1895, %v1897, %v1893
    %v1899 = vmul.f32 1.0, %v1898
    %v1900 = vadd.f32 %v1757, %v1838
    %v1901 = vxor.u32 %v1900, 2147483648
    %v1902 = vmul.f32 %v1901, 1.442695
    %v1903 = vpow.pop %v1902
    %v1904 = vadd.f32 %v1903, 1.0
    %v1905 = vrcp.pop %v1904
    %v1906 = vmul.f32 %v1904, %v1905
    %v1907 = vsub.f32 1.0, %v1906
    %v1908 = vmul.f32 %v1905, %v1907
    %v1909 = vadd.f32 %v1905, %v1908
    %vm1910 = vweird.f32 %v1904
    %vm1911 = vweird.f32 %v1905
    %vm1912 = vmor %vm1910, %vm1911
    %v1913 = vsel %vm1912, %v1905, %v1909
    %v1914 = vand.u32 2147483647, %v1904
    %vm1915 = vcmp.eq.f32.partialorder %v1914, 8.507059e+37
    %v1916 = vand.u32 %v1904, 2147483648
    %v1917 = vor.u32 1.1754944e-38, %v1916
    %v1918 = vsel %vm1915, %v1917, %v1913
    %v1919 = vmul.f32 1.0, %v1918
    %v1920 = vmul.f32 %v1899, %v1878
    %v1921 = vadd.f32 %v1759, %v1920
    %v1922 = vtanh.pop %v1921
    %v1923 = vsub.f32 1.0, %v1919
    %v1924 = vmul.f32 %v1923, %v1922
    %v1925 = vmul.f32 %v1919, %v1753
    %v1926 = vadd.f32 %v1924, %v1925
    %1927 = vst [vmem:[#allocation2] sm:$0xff] %v1926
    %v1928 = vld [vmem:[%s518] sm:$0xff]
    %v1929 = vld [vmem:[%s520] sm:$0xff]
    %v1930 = vld [vmem:[%s520 + $0x8] sm:$0xff]
    %v1931 = vld [vmem:[%s520 + $0x10] sm:$0xff]
    %v1932 = vld [vmem:[%s520 + $0x18] sm:$0xff]
    %v1933 = vld [vmem:[%s520 + $0x20] sm:$0xff]
    %v1934 = vld [vmem:[%s520 + $0x28] sm:$0xff]
    %v1935 = vld [vmem:[%s520 + $0x30] sm:$0xff]
    %v1936 = vld [vmem:[%s520 + $0x38] sm:$0xff]
    %v1937 = vld [vmem:[%s520 + $0x40] sm:$0xff]
    %v1938 = vld [vmem:[%s520 + $0x48] sm:$0xff]
    %v1939 = vld [vmem:[%s520 + $0x50] sm:$0xff]
    %v1940 = vld [vmem:[%s520 + $0x58] sm:$0xff]
    %v1941 = vld [vmem:[%s520 + $0x60] sm:$0xff]
    %v1942 = vld [vmem:[%s520 + $0x68] sm:$0xff]
    %v1943 = vld [vmem:[%s520 + $0x70] sm:$0xff]
    %v1944 = vld [vmem:[%s520 + $0x78] sm:$0xff]
    %v1945 = vld [vmem:[%s537] sm:$0x1]
    %v1947 = vperm.slane %v1945, 0
    %1949 = vmatpush.msra.mxu0 %v1944
    %1950 = vmatpush.msra.mxu0 %v1943
    %1951 = vmatpush.msra.mxu0 %v1942
    %1952 = vmatpush.msra.mxu0 %v1941
    %1953 = vmatpush.msra.mxu0 %v1940
    %1954 = vmatpush.msra.mxu0 %v1939
    %1955 = vmatpush.msra.mxu0 %v1938
    %1956 = vmatpush.msra.mxu0 %v1937
    %1957 = vmatpush.msra.mxu0 %v1936
    %1958 = vmatpush.msra.mxu0 %v1935
    %1959 = vmatpush.msra.mxu0 %v1934
    %1960 = vmatpush.msra.mxu0 %v1933
    %1961 = vmatpush.msra.mxu0 %v1932
    %1962 = vmatpush.msra.mxu0 %v1931
    %1963 = vmatpush.msra.mxu0 %v1930
    %1964 = vmatpush.msra.mxu0 %v1929
    %1965 = vmatmul.f32.gmra.mxu0 %v1926
    %v1966 = vpop.f32.mrf.mxu0
    %v1967 = vadd.f32 %v1947, %v1966
    %1968 = vdwg.mxu0
    %v1969 = vld [vmem:[%s562] sm:$0xff]
    %v1970 = vld [vmem:[%s562 + $0x8] sm:$0xff]
    %v1971 = vld [vmem:[%s562 + $0x10] sm:$0xff]
    %v1972 = vld [vmem:[%s562 + $0x18] sm:$0xff]
    %v1973 = vld [vmem:[%s562 + $0x20] sm:$0xff]
    %v1974 = vld [vmem:[%s562 + $0x28] sm:$0xff]
    %v1975 = vld [vmem:[%s562 + $0x30] sm:$0xff]
    %v1976 = vld [vmem:[%s562 + $0x38] sm:$0xff]
    %v1977 = vld [vmem:[%s562 + $0x40] sm:$0xff]
    %v1978 = vld [vmem:[%s562 + $0x48] sm:$0xff]
    %v1979 = vld [vmem:[%s562 + $0x50] sm:$0xff]
    %v1980 = vld [vmem:[%s562 + $0x58] sm:$0xff]
    %v1981 = vld [vmem:[%s562 + $0x60] sm:$0xff]
    %v1982 = vld [vmem:[%s562 + $0x68] sm:$0xff]
    %v1983 = vld [vmem:[%s562 + $0x70] sm:$0xff]
    %v1984 = vld [vmem:[%s562 + $0x78] sm:$0xff]
    %v1985 = vld [vmem:[%s579] sm:$0x1]
    %v1987 = vperm.slane %v1985, 0
    %1989 = vmatpush.msra.mxu0 %v1984
    %1990 = vmatpush.msra.mxu0 %v1983
    %1991 = vmatpush.msra.mxu0 %v1982
    %1992 = vmatpush.msra.mxu0 %v1981
    %1993 = vmatpush.msra.mxu0 %v1980
    %1994 = vmatpush.msra.mxu0 %v1979
    %1995 = vmatpush.msra.mxu0 %v1978
    %1996 = vmatpush.msra.mxu0 %v1977
    %1997 = vmatpush.msra.mxu0 %v1976
    %1998 = vmatpush.msra.mxu0 %v1975
    %1999 = vmatpush.msra.mxu0 %v1974
    %2000 = vmatpush.msra.mxu0 %v1973
    %2001 = vmatpush.msra.mxu0 %v1972
    %2002 = vmatpush.msra.mxu0 %v1971
    %2003 = vmatpush.msra.mxu0 %v1970
    %2004 = vmatpush.msra.mxu0 %v1969
    %2005 = vmatmul.f32.gmra.mxu0 %v1926
    %v2006 = vpop.f32.mrf.mxu0
    %v2007 = vadd.f32 %v1987, %v2006
    %2008 = vdwg.mxu0
    %v2009 = vld [vmem:[%s604] sm:$0xff]
    %v2010 = vld [vmem:[%s604 + $0x8] sm:$0xff]
    %v2011 = vld [vmem:[%s604 + $0x10] sm:$0xff]
    %v2012 = vld [vmem:[%s604 + $0x18] sm:$0xff]
    %v2013 = vld [vmem:[%s604 + $0x20] sm:$0xff]
    %v2014 = vld [vmem:[%s604 + $0x28] sm:$0xff]
    %v2015 = vld [vmem:[%s604 + $0x30] sm:$0xff]
    %v2016 = vld [vmem:[%s604 + $0x38] sm:$0xff]
    %v2017 = vld [vmem:[%s604 + $0x40] sm:$0xff]
    %v2018 = vld [vmem:[%s604 + $0x48] sm:$0xff]
    %v2019 = vld [vmem:[%s604 + $0x50] sm:$0xff]
    %v2020 = vld [vmem:[%s604 + $0x58] sm:$0xff]
    %v2021 = vld [vmem:[%s604 + $0x60] sm:$0xff]
    %v2022 = vld [vmem:[%s604 + $0x68] sm:$0xff]
    %v2023 = vld [vmem:[%s604 + $0x70] sm:$0xff]
    %v2024 = vld [vmem:[%s604 + $0x78] sm:$0xff]
    %v2025 = vld [vmem:[%s621] sm:$0x1]
    %v2027 = vperm.slane %v2025, 0
    %2029 = vmatpush.msra.mxu0 %v2024
    %2030 = vmatpush.msra.mxu0 %v2023
    %2031 = vmatpush.msra.mxu0 %v2022
    %2032 = vmatpush.msra.mxu0 %v2021
    %2033 = vmatpush.msra.mxu0 %v2020
    %2034 = vmatpush.msra.mxu0 %v2019
    %2035 = vmatpush.msra.mxu0 %v2018
    %2036 = vmatpush.msra.mxu0 %v2017
    %2037 = vmatpush.msra.mxu0 %v2016
    %2038 = vmatpush.msra.mxu0 %v2015
    %2039 = vmatpush.msra.mxu0 %v2014
    %2040 = vmatpush.msra.mxu0 %v2013
    %2041 = vmatpush.msra.mxu0 %v2012
    %2042 = vmatpush.msra.mxu0 %v2011
    %2043 = vmatpush.msra.mxu0 %v2010
    %2044 = vmatpush.msra.mxu0 %v2009
    %2045 = vmatmul.f32.gmra.mxu0 %v1926
    %v2046 = vpop.f32.mrf.mxu0
    %v2047 = vadd.f32 %v2027, %v2046
    %2048 = vdwg.mxu0
    %v2049 = vld [vmem:[%s646] sm:$0xff]
    %v2050 = vld [vmem:[%s646 + $0x8] sm:$0xff]
    %v2051 = vld [vmem:[%s646 + $0x10] sm:$0xff]
    %v2052 = vld [vmem:[%s646 + $0x18] sm:$0xff]
    %v2053 = vld [vmem:[%s646 + $0x20] sm:$0xff]
    %v2054 = vld [vmem:[%s646 + $0x28] sm:$0xff]
    %v2055 = vld [vmem:[%s646 + $0x30] sm:$0xff]
    %v2056 = vld [vmem:[%s646 + $0x38] sm:$0xff]
    %v2057 = vld [vmem:[%s646 + $0x40] sm:$0xff]
    %v2058 = vld [vmem:[%s646 + $0x48] sm:$0xff]
    %v2059 = vld [vmem:[%s646 + $0x50] sm:$0xff]
    %v2060 = vld [vmem:[%s646 + $0x58] sm:$0xff]
    %v2061 = vld [vmem:[%s646 + $0x60] sm:$0xff]
    %v2062 = vld [vmem:[%s646 + $0x68] sm:$0xff]
    %v2063 = vld [vmem:[%s646 + $0x70] sm:$0xff]
    %v2064 = vld [vmem:[%s646 + $0x78] sm:$0xff]
    %v2065 = vld [vmem:[%s663] sm:$0x1]
    %v2067 = vperm.slane %v2065, 0
    %2069 = vmatpush.msra.mxu0 %v2064
    %2070 = vmatpush.msra.mxu0 %v2063
    %2071 = vmatpush.msra.mxu0 %v2062
    %2072 = vmatpush.msra.mxu0 %v2061
    %2073 = vmatpush.msra.mxu0 %v2060
    %2074 = vmatpush.msra.mxu0 %v2059
    %2075 = vmatpush.msra.mxu0 %v2058
    %2076 = vmatpush.msra.mxu0 %v2057
    %2077 = vmatpush.msra.mxu0 %v2056
    %2078 = vmatpush.msra.mxu0 %v2055
    %2079 = vmatpush.msra.mxu0 %v2054
    %2080 = vmatpush.msra.mxu0 %v2053
    %2081 = vmatpush.msra.mxu0 %v2052
    %2082 = vmatpush.msra.mxu0 %v2051
    %2083 = vmatpush.msra.mxu0 %v2050
    %2084 = vmatpush.msra.mxu0 %v2049
    %2085 = vmatmul.f32.gmra.mxu0 %v1928
    %v2086 = vpop.f32.mrf.mxu0
    %v2087 = vadd.f32 %v2067, %v2086
    %2088 = vdwg.mxu0
    %v2089 = vld [vmem:[%s688] sm:$0xff]
    %v2090 = vld [vmem:[%s688 + $0x8] sm:$0xff]
    %v2091 = vld [vmem:[%s688 + $0x10] sm:$0xff]
    %v2092 = vld [vmem:[%s688 + $0x18] sm:$0xff]
    %v2093 = vld [vmem:[%s688 + $0x20] sm:$0xff]
    %v2094 = vld [vmem:[%s688 + $0x28] sm:$0xff]
    %v2095 = vld [vmem:[%s688 + $0x30] sm:$0xff]
    %v2096 = vld [vmem:[%s688 + $0x38] sm:$0xff]
    %v2097 = vld [vmem:[%s688 + $0x40] sm:$0xff]
    %v2098 = vld [vmem:[%s688 + $0x48] sm:$0xff]
    %v2099 = vld [vmem:[%s688 + $0x50] sm:$0xff]
    %v2100 = vld [vmem:[%s688 + $0x58] sm:$0xff]
    %v2101 = vld [vmem:[%s688 + $0x60] sm:$0xff]
    %v2102 = vld [vmem:[%s688 + $0x68] sm:$0xff]
    %v2103 = vld [vmem:[%s688 + $0x70] sm:$0xff]
    %v2104 = vld [vmem:[%s688 + $0x78] sm:$0xff]
    %v2105 = vld [vmem:[%s705] sm:$0x1]
    %v2107 = vperm.slane %v2105, 0
    %2109 = vmatpush.msra.mxu0 %v2104
    %2110 = vmatpush.msra.mxu0 %v2103
    %2111 = vmatpush.msra.mxu0 %v2102
    %2112 = vmatpush.msra.mxu0 %v2101
    %2113 = vmatpush.msra.mxu0 %v2100
    %2114 = vmatpush.msra.mxu0 %v2099
    %2115 = vmatpush.msra.mxu0 %v2098
    %2116 = vmatpush.msra.mxu0 %v2097
    %2117 = vmatpush.msra.mxu0 %v2096
    %2118 = vmatpush.msra.mxu0 %v2095
    %2119 = vmatpush.msra.mxu0 %v2094
    %2120 = vmatpush.msra.mxu0 %v2093
    %2121 = vmatpush.msra.mxu0 %v2092
    %2122 = vmatpush.msra.mxu0 %v2091
    %2123 = vmatpush.msra.mxu0 %v2090
    %2124 = vmatpush.msra.mxu0 %v2089
    %2125 = vmatmul.f32.gmra.mxu0 %v1928
    %v2126 = vpop.f32.mrf.mxu0
    %v2127 = vadd.f32 %v2107, %v2126
    %2128 = vdwg.mxu0
    %v2129 = vld [vmem:[%s730] sm:$0xff]
    %v2130 = vld [vmem:[%s730 + $0x8] sm:$0xff]
    %v2131 = vld [vmem:[%s730 + $0x10] sm:$0xff]
    %v2132 = vld [vmem:[%s730 + $0x18] sm:$0xff]
    %v2133 = vld [vmem:[%s730 + $0x20] sm:$0xff]
    %v2134 = vld [vmem:[%s730 + $0x28] sm:$0xff]
    %v2135 = vld [vmem:[%s730 + $0x30] sm:$0xff]
    %v2136 = vld [vmem:[%s730 + $0x38] sm:$0xff]
    %v2137 = vld [vmem:[%s730 + $0x40] sm:$0xff]
    %v2138 = vld [vmem:[%s730 + $0x48] sm:$0xff]
    %v2139 = vld [vmem:[%s730 + $0x50] sm:$0xff]
    %v2140 = vld [vmem:[%s730 + $0x58] sm:$0xff]
    %v2141 = vld [vmem:[%s730 + $0x60] sm:$0xff]
    %v2142 = vld [vmem:[%s730 + $0x68] sm:$0xff]
    %v2143 = vld [vmem:[%s730 + $0x70] sm:$0xff]
    %v2144 = vld [vmem:[%s730 + $0x78] sm:$0xff]
    %v2145 = vld [vmem:[%s747] sm:$0x1]
    %v2147 = vperm.slane %v2145, 0
    %2149 = vmatpush.msra.mxu0 %v2144
    %2150 = vmatpush.msra.mxu0 %v2143
    %2151 = vmatpush.msra.mxu0 %v2142
    %2152 = vmatpush.msra.mxu0 %v2141
    %2153 = vmatpush.msra.mxu0 %v2140
    %2154 = vmatpush.msra.mxu0 %v2139
    %2155 = vmatpush.msra.mxu0 %v2138
    %2156 = vmatpush.msra.mxu0 %v2137
    %2157 = vmatpush.msra.mxu0 %v2136
    %2158 = vmatpush.msra.mxu0 %v2135
    %2159 = vmatpush.msra.mxu0 %v2134
    %2160 = vmatpush.msra.mxu0 %v2133
    %2161 = vmatpush.msra.mxu0 %v2132
    %2162 = vmatpush.msra.mxu0 %v2131
    %2163 = vmatpush.msra.mxu0 %v2130
    %2164 = vmatpush.msra.mxu0 %v2129
    %2165 = vmatmul.f32.gmra.mxu0 %v1928
    %v2166 = vpop.f32.mrf.mxu0
    %v2167 = vadd.f32 %v2147, %v2166
    %2168 = vdwg.mxu0
    %v2169 = vadd.f32 %v1967, %v2087
    %v2170 = vxor.u32 %v2169, 2147483648
    %v2171 = vmul.f32 %v2170, 1.442695
    %v2172 = vpow.pop %v2171
    %v2173 = vadd.f32 %v2172, 1.0
    %v2174 = vrcp.pop %v2173
    %v2175 = vmul.f32 %v2173, %v2174
    %v2176 = vsub.f32 1.0, %v2175
    %v2177 = vmul.f32 %v2174, %v2176
    %v2178 = vadd.f32 %v2174, %v2177
    %vm2179 = vweird.f32 %v2173
    %vm2180 = vweird.f32 %v2174
    %vm2181 = vmor %vm2179, %vm2180
    %v2182 = vsel %vm2181, %v2174, %v2178
    %v2183 = vand.u32 2147483647, %v2173
    %vm2184 = vcmp.eq.f32.partialorder %v2183, 8.507059e+37
    %v2185 = vand.u32 %v2173, 2147483648
    %v2186 = vor.u32 1.1754944e-38, %v2185
    %v2187 = vsel %vm2184, %v2186, %v2182
    %v2188 = vmul.f32 1.0, %v2187
    %v2189 = vadd.f32 %v2007, %v2127
    %v2190 = vxor.u32 %v2189, 2147483648
    %v2191 = vmul.f32 %v2190, 1.442695
    %v2192 = vpow.pop %v2191
    %v2193 = vadd.f32 %v2192, 1.0
    %v2194 = vrcp.pop %v2193
    %v2195 = vmul.f32 %v2193, %v2194
    %v2196 = vsub.f32 1.0, %v2195
    %v2197 = vmul.f32 %v2194, %v2196
    %v2198 = vadd.f32 %v2194, %v2197
    %vm2199 = vweird.f32 %v2193
    %vm2200 = vweird.f32 %v2194
    %vm2201 = vmor %vm2199, %vm2200
    %v2202 = vsel %vm2201, %v2194, %v2198
    %v2203 = vand.u32 2147483647, %v2193
    %vm2204 = vcmp.eq.f32.partialorder %v2203, 8.507059e+37
    %v2205 = vand.u32 %v2193, 2147483648
    %v2206 = vor.u32 1.1754944e-38, %v2205
    %v2207 = vsel %vm2204, %v2206, %v2202
    %v2208 = vmul.f32 1.0, %v2207
    %v2209 = vmul.f32 %v2188, %v2167
    %v2210 = vadd.f32 %v2047, %v2209
    %v2211 = vtanh.pop %v2210
    %v2212 = vsub.f32 1.0, %v2208
    %v2213 = vmul.f32 %v2212, %v2211
    %v2214 = vmul.f32 %v2208, %v1928
    %v2215 = vadd.f32 %v2213, %v2214
    %2216 = vst [vmem:[%s518] sm:$0xff] %v2215
    %s2217 = scalar_lea.vmem [#allocation6], 24
    %2218 = vst [vmem:[%s2217] sm:$0xff] %v2215
    %v2219 = vld [vmem:[#allocation2] sm:$0xff]
    %s2220 = scalar_lea.vmem [#allocation3], 32
    %v2221 = vld [vmem:[%s2220] sm:$0xff]
    %s2222 = scalar_lea.vmem [#allocation4], 32
    %v2223 = vld [vmem:[%s2222] sm:$0xff]
    %s2224 = scalar_lea.vmem [#allocation5], 32
    %v2225 = vld [vmem:[%s2224] sm:$0xff]
    %v2226 = vld [vmem:[#allocation12] sm:$0xff]
    %v2227 = vld [vmem:[#allocation12 + $0x8] sm:$0xff]
    %v2228 = vld [vmem:[#allocation12 + $0x10] sm:$0xff]
    %v2229 = vld [vmem:[#allocation12 + $0x18] sm:$0xff]
    %v2230 = vld [vmem:[#allocation12 + $0x20] sm:$0xff]
    %v2231 = vld [vmem:[#allocation12 + $0x28] sm:$0xff]
    %v2232 = vld [vmem:[#allocation12 + $0x30] sm:$0xff]
    %v2233 = vld [vmem:[#allocation12 + $0x38] sm:$0xff]
    %v2234 = vld [vmem:[#allocation12 + $0x40] sm:$0xff]
    %v2235 = vld [vmem:[#allocation12 + $0x48] sm:$0xff]
    %v2236 = vld [vmem:[#allocation12 + $0x50] sm:$0xff]
    %v2237 = vld [vmem:[#allocation12 + $0x58] sm:$0xff]
    %v2238 = vld [vmem:[#allocation12 + $0x60] sm:$0xff]
    %v2239 = vld [vmem:[#allocation12 + $0x68] sm:$0xff]
    %v2240 = vld [vmem:[#allocation12 + $0x70] sm:$0xff]
    %v2241 = vld [vmem:[#allocation12 + $0x78] sm:$0xff]
    %v2242 = vld [vmem:[#allocation15] sm:$0x1]
    %v2244 = vperm.slane %v2242, 0
    %2246 = vmatpush.msra.mxu0 %v2241
    %2247 = vmatpush.msra.mxu0 %v2240
    %2248 = vmatpush.msra.mxu0 %v2239
    %2249 = vmatpush.msra.mxu0 %v2238
    %2250 = vmatpush.msra.mxu0 %v2237
    %2251 = vmatpush.msra.mxu0 %v2236
    %2252 = vmatpush.msra.mxu0 %v2235
    %2253 = vmatpush.msra.mxu0 %v2234
    %2254 = vmatpush.msra.mxu0 %v2233
    %2255 = vmatpush.msra.mxu0 %v2232
    %2256 = vmatpush.msra.mxu0 %v2231
    %2257 = vmatpush.msra.mxu0 %v2230
    %2258 = vmatpush.msra.mxu0 %v2229
    %2259 = vmatpush.msra.mxu0 %v2228
    %2260 = vmatpush.msra.mxu0 %v2227
    %2261 = vmatpush.msra.mxu0 %v2226
    %2262 = vmatmul.f32.gmra.mxu0 %v2219
    %v2263 = vpop.f32.mrf.mxu0
    %v2264 = vadd.f32 %v2244, %v2263
    %2265 = vdwg.mxu0
    %v2266 = vld [vmem:[%s386] sm:$0xff]
    %v2267 = vld [vmem:[%s386 + $0x8] sm:$0xff]
    %v2268 = vld [vmem:[%s386 + $0x10] sm:$0xff]
    %v2269 = vld [vmem:[%s386 + $0x18] sm:$0xff]
    %v2270 = vld [vmem:[%s386 + $0x20] sm:$0xff]
    %v2271 = vld [vmem:[%s386 + $0x28] sm:$0xff]
    %v2272 = vld [vmem:[%s386 + $0x30] sm:$0xff]
    %v2273 = vld [vmem:[%s386 + $0x38] sm:$0xff]
    %v2274 = vld [vmem:[%s386 + $0x40] sm:$0xff]
    %v2275 = vld [vmem:[%s386 + $0x48] sm:$0xff]
    %v2276 = vld [vmem:[%s386 + $0x50] sm:$0xff]
    %v2277 = vld [vmem:[%s386 + $0x58] sm:$0xff]
    %v2278 = vld [vmem:[%s386 + $0x60] sm:$0xff]
    %v2279 = vld [vmem:[%s386 + $0x68] sm:$0xff]
    %v2280 = vld [vmem:[%s386 + $0x70] sm:$0xff]
    %v2281 = vld [vmem:[%s386 + $0x78] sm:$0xff]
    %v2282 = vld [vmem:[%s403] sm:$0x1]
    %v2284 = vperm.slane %v2282, 0
    %2286 = vmatpush.msra.mxu0 %v2281
    %2287 = vmatpush.msra.mxu0 %v2280
    %2288 = vmatpush.msra.mxu0 %v2279
    %2289 = vmatpush.msra.mxu0 %v2278
    %2290 = vmatpush.msra.mxu0 %v2277
    %2291 = vmatpush.msra.mxu0 %v2276
    %2292 = vmatpush.msra.mxu0 %v2275
    %2293 = vmatpush.msra.mxu0 %v2274
    %2294 = vmatpush.msra.mxu0 %v2273
    %2295 = vmatpush.msra.mxu0 %v2272
    %2296 = vmatpush.msra.mxu0 %v2271
    %2297 = vmatpush.msra.mxu0 %v2270
    %2298 = vmatpush.msra.mxu0 %v2269
    %2299 = vmatpush.msra.mxu0 %v2268
    %2300 = vmatpush.msra.mxu0 %v2267
    %2301 = vmatpush.msra.mxu0 %v2266
    %2302 = vmatmul.f32.gmra.mxu0 %v2219
    %v2303 = vpop.f32.mrf.mxu0
    %v2304 = vadd.f32 %v2284, %v2303
    %2305 = vdwg.mxu0
    %v2306 = vld [vmem:[%s428] sm:$0xff]
    %v2307 = vld [vmem:[%s428 + $0x8] sm:$0xff]
    %v2308 = vld [vmem:[%s428 + $0x10] sm:$0xff]
    %v2309 = vld [vmem:[%s428 + $0x18] sm:$0xff]
    %v2310 = vld [vmem:[%s428 + $0x20] sm:$0xff]
    %v2311 = vld [vmem:[%s428 + $0x28] sm:$0xff]
    %v2312 = vld [vmem:[%s428 + $0x30] sm:$0xff]
    %v2313 = vld [vmem:[%s428 + $0x38] sm:$0xff]
    %v2314 = vld [vmem:[%s428 + $0x40] sm:$0xff]
    %v2315 = vld [vmem:[%s428 + $0x48] sm:$0xff]
    %v2316 = vld [vmem:[%s428 + $0x50] sm:$0xff]
    %v2317 = vld [vmem:[%s428 + $0x58] sm:$0xff]
    %v2318 = vld [vmem:[%s428 + $0x60] sm:$0xff]
    %v2319 = vld [vmem:[%s428 + $0x68] sm:$0xff]
    %v2320 = vld [vmem:[%s428 + $0x70] sm:$0xff]
    %v2321 = vld [vmem:[%s428 + $0x78] sm:$0xff]
    %v2322 = vld [vmem:[%s445] sm:$0x1]
    %v2324 = vperm.slane %v2322, 0
    %2326 = vmatpush.msra.mxu0 %v2321
    %2327 = vmatpush.msra.mxu0 %v2320
    %2328 = vmatpush.msra.mxu0 %v2319
    %2329 = vmatpush.msra.mxu0 %v2318
    %2330 = vmatpush.msra.mxu0 %v2317
    %2331 = vmatpush.msra.mxu0 %v2316
    %2332 = vmatpush.msra.mxu0 %v2315
    %2333 = vmatpush.msra.mxu0 %v2314
    %2334 = vmatpush.msra.mxu0 %v2313
    %2335 = vmatpush.msra.mxu0 %v2312
    %2336 = vmatpush.msra.mxu0 %v2311
    %2337 = vmatpush.msra.mxu0 %v2310
    %2338 = vmatpush.msra.mxu0 %v2309
    %2339 = vmatpush.msra.mxu0 %v2308
    %2340 = vmatpush.msra.mxu0 %v2307
    %2341 = vmatpush.msra.mxu0 %v2306
    %2342 = vmatmul.f32.gmra.mxu0 %v2219
    %v2343 = vpop.f32.mrf.mxu0
    %v2344 = vadd.f32 %v2324, %v2343
    %2345 = vdwg.mxu0
    %v2346 = vadd.f32 %v2221, %v2264
    %v2347 = vxor.u32 %v2346, 2147483648
    %v2348 = vmul.f32 %v2347, 1.442695
    %v2349 = vpow.pop %v2348
    %v2350 = vadd.f32 %v2349, 1.0
    %v2351 = vrcp.pop %v2350
    %v2352 = vmul.f32 %v2350, %v2351
    %v2353 = vsub.f32 1.0, %v2352
    %v2354 = vmul.f32 %v2351, %v2353
    %v2355 = vadd.f32 %v2351, %v2354
    %vm2356 = vweird.f32 %v2350
    %vm2357 = vweird.f32 %v2351
    %vm2358 = vmor %vm2356, %vm2357
    %v2359 = vsel %vm2358, %v2351, %v2355
    %v2360 = vand.u32 2147483647, %v2350
    %vm2361 = vcmp.eq.f32.partialorder %v2360, 8.507059e+37
    %v2362 = vand.u32 %v2350, 2147483648
    %v2363 = vor.u32 1.1754944e-38, %v2362
    %v2364 = vsel %vm2361, %v2363, %v2359
    %v2365 = vmul.f32 1.0, %v2364
    %v2366 = vadd.f32 %v2223, %v2304
    %v2367 = vxor.u32 %v2366, 2147483648
    %v2368 = vmul.f32 %v2367, 1.442695
    %v2369 = vpow.pop %v2368
    %v2370 = vadd.f32 %v2369, 1.0
    %v2371 = vrcp.pop %v2370
    %v2372 = vmul.f32 %v2370, %v2371
    %v2373 = vsub.f32 1.0, %v2372
    %v2374 = vmul.f32 %v2371, %v2373
    %v2375 = vadd.f32 %v2371, %v2374
    %vm2376 = vweird.f32 %v2370
    %vm2377 = vweird.f32 %v2371
    %vm2378 = vmor %vm2376, %vm2377
    %v2379 = vsel %vm2378, %v2371, %v2375
    %v2380 = vand.u32 2147483647, %v2370
    %vm2381 = vcmp.eq.f32.partialorder %v2380, 8.507059e+37
    %v2382 = vand.u32 %v2370, 2147483648
    %v2383 = vor.u32 1.1754944e-38, %v2382
    %v2384 = vsel %vm2381, %v2383, %v2379
    %v2385 = vmul.f32 1.0, %v2384
    %v2386 = vmul.f32 %v2365, %v2344
    %v2387 = vadd.f32 %v2225, %v2386
    %v2388 = vtanh.pop %v2387
    %v2389 = vsub.f32 1.0, %v2385
    %v2390 = vmul.f32 %v2389, %v2388
    %v2391 = vmul.f32 %v2385, %v2219
    %v2392 = vadd.f32 %v2390, %v2391
    %2393 = vst [vmem:[#allocation2] sm:$0xff] %v2392
    %v2394 = vld [vmem:[%s518] sm:$0xff]
    %v2395 = vld [vmem:[%s520] sm:$0xff]
    %v2396 = vld [vmem:[%s520 + $0x8] sm:$0xff]
    %v2397 = vld [vmem:[%s520 + $0x10] sm:$0xff]
    %v2398 = vld [vmem:[%s520 + $0x18] sm:$0xff]
    %v2399 = vld [vmem:[%s520 + $0x20] sm:$0xff]
    %v2400 = vld [vmem:[%s520 + $0x28] sm:$0xff]
    %v2401 = vld [vmem:[%s520 + $0x30] sm:$0xff]
    %v2402 = vld [vmem:[%s520 + $0x38] sm:$0xff]
    %v2403 = vld [vmem:[%s520 + $0x40] sm:$0xff]
    %v2404 = vld [vmem:[%s520 + $0x48] sm:$0xff]
    %v2405 = vld [vmem:[%s520 + $0x50] sm:$0xff]
    %v2406 = vld [vmem:[%s520 + $0x58] sm:$0xff]
    %v2407 = vld [vmem:[%s520 + $0x60] sm:$0xff]
    %v2408 = vld [vmem:[%s520 + $0x68] sm:$0xff]
    %v2409 = vld [vmem:[%s520 + $0x70] sm:$0xff]
    %v2410 = vld [vmem:[%s520 + $0x78] sm:$0xff]
    %v2411 = vld [vmem:[%s537] sm:$0x1]
    %v2413 = vperm.slane %v2411, 0
    %2415 = vmatpush.msra.mxu0 %v2410
    %2416 = vmatpush.msra.mxu0 %v2409
    %2417 = vmatpush.msra.mxu0 %v2408
    %2418 = vmatpush.msra.mxu0 %v2407
    %2419 = vmatpush.msra.mxu0 %v2406
    %2420 = vmatpush.msra.mxu0 %v2405
    %2421 = vmatpush.msra.mxu0 %v2404
    %2422 = vmatpush.msra.mxu0 %v2403
    %2423 = vmatpush.msra.mxu0 %v2402
    %2424 = vmatpush.msra.mxu0 %v2401
    %2425 = vmatpush.msra.mxu0 %v2400
    %2426 = vmatpush.msra.mxu0 %v2399
    %2427 = vmatpush.msra.mxu0 %v2398
    %2428 = vmatpush.msra.mxu0 %v2397
    %2429 = vmatpush.msra.mxu0 %v2396
    %2430 = vmatpush.msra.mxu0 %v2395
    %2431 = vmatmul.f32.gmra.mxu0 %v2392
    %v2432 = vpop.f32.mrf.mxu0
    %v2433 = vadd.f32 %v2413, %v2432
    %2434 = vdwg.mxu0
    %v2435 = vld [vmem:[%s562] sm:$0xff]
    %v2436 = vld [vmem:[%s562 + $0x8] sm:$0xff]
    %v2437 = vld [vmem:[%s562 + $0x10] sm:$0xff]
    %v2438 = vld [vmem:[%s562 + $0x18] sm:$0xff]
    %v2439 = vld [vmem:[%s562 + $0x20] sm:$0xff]
    %v2440 = vld [vmem:[%s562 + $0x28] sm:$0xff]
    %v2441 = vld [vmem:[%s562 + $0x30] sm:$0xff]
    %v2442 = vld [vmem:[%s562 + $0x38] sm:$0xff]
    %v2443 = vld [vmem:[%s562 + $0x40] sm:$0xff]
    %v2444 = vld [vmem:[%s562 + $0x48] sm:$0xff]
    %v2445 = vld [vmem:[%s562 + $0x50] sm:$0xff]
    %v2446 = vld [vmem:[%s562 + $0x58] sm:$0xff]
    %v2447 = vld [vmem:[%s562 + $0x60] sm:$0xff]
    %v2448 = vld [vmem:[%s562 + $0x68] sm:$0xff]
    %v2449 = vld [vmem:[%s562 + $0x70] sm:$0xff]
    %v2450 = vld [vmem:[%s562 + $0x78] sm:$0xff]
    %v2451 = vld [vmem:[%s579] sm:$0x1]
    %v2453 = vperm.slane %v2451, 0
    %2455 = vmatpush.msra.mxu0 %v2450
    %2456 = vmatpush.msra.mxu0 %v2449
    %2457 = vmatpush.msra.mxu0 %v2448
    %2458 = vmatpush.msra.mxu0 %v2447
    %2459 = vmatpush.msra.mxu0 %v2446
    %2460 = vmatpush.msra.mxu0 %v2445
    %2461 = vmatpush.msra.mxu0 %v2444
    %2462 = vmatpush.msra.mxu0 %v2443
    %2463 = vmatpush.msra.mxu0 %v2442
    %2464 = vmatpush.msra.mxu0 %v2441
    %2465 = vmatpush.msra.mxu0 %v2440
    %2466 = vmatpush.msra.mxu0 %v2439
    %2467 = vmatpush.msra.mxu0 %v2438
    %2468 = vmatpush.msra.mxu0 %v2437
    %2469 = vmatpush.msra.mxu0 %v2436
    %2470 = vmatpush.msra.mxu0 %v2435
    %2471 = vmatmul.f32.gmra.mxu0 %v2392
    %v2472 = vpop.f32.mrf.mxu0
    %v2473 = vadd.f32 %v2453, %v2472
    %2474 = vdwg.mxu0
    %v2475 = vld [vmem:[%s604] sm:$0xff]
    %v2476 = vld [vmem:[%s604 + $0x8] sm:$0xff]
    %v2477 = vld [vmem:[%s604 + $0x10] sm:$0xff]
    %v2478 = vld [vmem:[%s604 + $0x18] sm:$0xff]
    %v2479 = vld [vmem:[%s604 + $0x20] sm:$0xff]
    %v2480 = vld [vmem:[%s604 + $0x28] sm:$0xff]
    %v2481 = vld [vmem:[%s604 + $0x30] sm:$0xff]
    %v2482 = vld [vmem:[%s604 + $0x38] sm:$0xff]
    %v2483 = vld [vmem:[%s604 + $0x40] sm:$0xff]
    %v2484 = vld [vmem:[%s604 + $0x48] sm:$0xff]
    %v2485 = vld [vmem:[%s604 + $0x50] sm:$0xff]
    %v2486 = vld [vmem:[%s604 + $0x58] sm:$0xff]
    %v2487 = vld [vmem:[%s604 + $0x60] sm:$0xff]
    %v2488 = vld [vmem:[%s604 + $0x68] sm:$0xff]
    %v2489 = vld [vmem:[%s604 + $0x70] sm:$0xff]
    %v2490 = vld [vmem:[%s604 + $0x78] sm:$0xff]
    %v2491 = vld [vmem:[%s621] sm:$0x1]
    %v2493 = vperm.slane %v2491, 0
    %2495 = vmatpush.msra.mxu0 %v2490
    %2496 = vmatpush.msra.mxu0 %v2489
    %2497 = vmatpush.msra.mxu0 %v2488
    %2498 = vmatpush.msra.mxu0 %v2487
    %2499 = vmatpush.msra.mxu0 %v2486
    %2500 = vmatpush.msra.mxu0 %v2485
    %2501 = vmatpush.msra.mxu0 %v2484
    %2502 = vmatpush.msra.mxu0 %v2483
    %2503 = vmatpush.msra.mxu0 %v2482
    %2504 = vmatpush.msra.mxu0 %v2481
    %2505 = vmatpush.msra.mxu0 %v2480
    %2506 = vmatpush.msra.mxu0 %v2479
    %2507 = vmatpush.msra.mxu0 %v2478
    %2508 = vmatpush.msra.mxu0 %v2477
    %2509 = vmatpush.msra.mxu0 %v2476
    %2510 = vmatpush.msra.mxu0 %v2475
    %2511 = vmatmul.f32.gmra.mxu0 %v2392
    %v2512 = vpop.f32.mrf.mxu0
    %v2513 = vadd.f32 %v2493, %v2512
    %2514 = vdwg.mxu0
    %v2515 = vld [vmem:[%s646] sm:$0xff]
    %v2516 = vld [vmem:[%s646 + $0x8] sm:$0xff]
    %v2517 = vld [vmem:[%s646 + $0x10] sm:$0xff]
    %v2518 = vld [vmem:[%s646 + $0x18] sm:$0xff]
    %v2519 = vld [vmem:[%s646 + $0x20] sm:$0xff]
    %v2520 = vld [vmem:[%s646 + $0x28] sm:$0xff]
    %v2521 = vld [vmem:[%s646 + $0x30] sm:$0xff]
    %v2522 = vld [vmem:[%s646 + $0x38] sm:$0xff]
    %v2523 = vld [vmem:[%s646 + $0x40] sm:$0xff]
    %v2524 = vld [vmem:[%s646 + $0x48] sm:$0xff]
    %v2525 = vld [vmem:[%s646 + $0x50] sm:$0xff]
    %v2526 = vld [vmem:[%s646 + $0x58] sm:$0xff]
    %v2527 = vld [vmem:[%s646 + $0x60] sm:$0xff]
    %v2528 = vld [vmem:[%s646 + $0x68] sm:$0xff]
    %v2529 = vld [vmem:[%s646 + $0x70] sm:$0xff]
    %v2530 = vld [vmem:[%s646 + $0x78] sm:$0xff]
    %v2531 = vld [vmem:[%s663] sm:$0x1]
    %v2533 = vperm.slane %v2531, 0
    %2535 = vmatpush.msra.mxu0 %v2530
    %2536 = vmatpush.msra.mxu0 %v2529
    %2537 = vmatpush.msra.mxu0 %v2528
    %2538 = vmatpush.msra.mxu0 %v2527
    %2539 = vmatpush.msra.mxu0 %v2526
    %2540 = vmatpush.msra.mxu0 %v2525
    %2541 = vmatpush.msra.mxu0 %v2524
    %2542 = vmatpush.msra.mxu0 %v2523
    %2543 = vmatpush.msra.mxu0 %v2522
    %2544 = vmatpush.msra.mxu0 %v2521
    %2545 = vmatpush.msra.mxu0 %v2520
    %2546 = vmatpush.msra.mxu0 %v2519
    %2547 = vmatpush.msra.mxu0 %v2518
    %2548 = vmatpush.msra.mxu0 %v2517
    %2549 = vmatpush.msra.mxu0 %v2516
    %2550 = vmatpush.msra.mxu0 %v2515
    %2551 = vmatmul.f32.gmra.mxu0 %v2394
    %v2552 = vpop.f32.mrf.mxu0
    %v2553 = vadd.f32 %v2533, %v2552
    %2554 = vdwg.mxu0
    %v2555 = vld [vmem:[%s688] sm:$0xff]
    %v2556 = vld [vmem:[%s688 + $0x8] sm:$0xff]
    %v2557 = vld [vmem:[%s688 + $0x10] sm:$0xff]
    %v2558 = vld [vmem:[%s688 + $0x18] sm:$0xff]
    %v2559 = vld [vmem:[%s688 + $0x20] sm:$0xff]
    %v2560 = vld [vmem:[%s688 + $0x28] sm:$0xff]
    %v2561 = vld [vmem:[%s688 + $0x30] sm:$0xff]
    %v2562 = vld [vmem:[%s688 + $0x38] sm:$0xff]
    %v2563 = vld [vmem:[%s688 + $0x40] sm:$0xff]
    %v2564 = vld [vmem:[%s688 + $0x48] sm:$0xff]
    %v2565 = vld [vmem:[%s688 + $0x50] sm:$0xff]
    %v2566 = vld [vmem:[%s688 + $0x58] sm:$0xff]
    %v2567 = vld [vmem:[%s688 + $0x60] sm:$0xff]
    %v2568 = vld [vmem:[%s688 + $0x68] sm:$0xff]
    %v2569 = vld [vmem:[%s688 + $0x70] sm:$0xff]
    %v2570 = vld [vmem:[%s688 + $0x78] sm:$0xff]
    %v2571 = vld [vmem:[%s705] sm:$0x1]
    %v2573 = vperm.slane %v2571, 0
    %2575 = vmatpush.msra.mxu0 %v2570
    %2576 = vmatpush.msra.mxu0 %v2569
    %2577 = vmatpush.msra.mxu0 %v2568
    %2578 = vmatpush.msra.mxu0 %v2567
    %2579 = vmatpush.msra.mxu0 %v2566
    %2580 = vmatpush.msra.mxu0 %v2565
    %2581 = vmatpush.msra.mxu0 %v2564
    %2582 = vmatpush.msra.mxu0 %v2563
    %2583 = vmatpush.msra.mxu0 %v2562
    %2584 = vmatpush.msra.mxu0 %v2561
    %2585 = vmatpush.msra.mxu0 %v2560
    %2586 = vmatpush.msra.mxu0 %v2559
    %2587 = vmatpush.msra.mxu0 %v2558
    %2588 = vmatpush.msra.mxu0 %v2557
    %2589 = vmatpush.msra.mxu0 %v2556
    %2590 = vmatpush.msra.mxu0 %v2555
    %2591 = vmatmul.f32.gmra.mxu0 %v2394
    %v2592 = vpop.f32.mrf.mxu0
    %v2593 = vadd.f32 %v2573, %v2592
    %2594 = vdwg.mxu0
    %v2595 = vld [vmem:[%s730] sm:$0xff]
    %v2596 = vld [vmem:[%s730 + $0x8] sm:$0xff]
    %v2597 = vld [vmem:[%s730 + $0x10] sm:$0xff]
    %v2598 = vld [vmem:[%s730 + $0x18] sm:$0xff]
    %v2599 = vld [vmem:[%s730 + $0x20] sm:$0xff]
    %v2600 = vld [vmem:[%s730 + $0x28] sm:$0xff]
    %v2601 = vld [vmem:[%s730 + $0x30] sm:$0xff]
    %v2602 = vld [vmem:[%s730 + $0x38] sm:$0xff]
    %v2603 = vld [vmem:[%s730 + $0x40] sm:$0xff]
    %v2604 = vld [vmem:[%s730 + $0x48] sm:$0xff]
    %v2605 = vld [vmem:[%s730 + $0x50] sm:$0xff]
    %v2606 = vld [vmem:[%s730 + $0x58] sm:$0xff]
    %v2607 = vld [vmem:[%s730 + $0x60] sm:$0xff]
    %v2608 = vld [vmem:[%s730 + $0x68] sm:$0xff]
    %v2609 = vld [vmem:[%s730 + $0x70] sm:$0xff]
    %v2610 = vld [vmem:[%s730 + $0x78] sm:$0xff]
    %v2611 = vld [vmem:[%s747] sm:$0x1]
    %v2613 = vperm.slane %v2611, 0
    %2615 = vmatpush.msra.mxu0 %v2610
    %2616 = vmatpush.msra.mxu0 %v2609
    %2617 = vmatpush.msra.mxu0 %v2608
    %2618 = vmatpush.msra.mxu0 %v2607
    %2619 = vmatpush.msra.mxu0 %v2606
    %2620 = vmatpush.msra.mxu0 %v2605
    %2621 = vmatpush.msra.mxu0 %v2604
    %2622 = vmatpush.msra.mxu0 %v2603
    %2623 = vmatpush.msra.mxu0 %v2602
    %2624 = vmatpush.msra.mxu0 %v2601
    %2625 = vmatpush.msra.mxu0 %v2600
    %2626 = vmatpush.msra.mxu0 %v2599
    %2627 = vmatpush.msra.mxu0 %v2598
    %2628 = vmatpush.msra.mxu0 %v2597
    %2629 = vmatpush.msra.mxu0 %v2596
    %2630 = vmatpush.msra.mxu0 %v2595
    %2631 = vmatmul.f32.gmra.mxu0 %v2394
    %v2632 = vpop.f32.mrf.mxu0
    %v2633 = vadd.f32 %v2613, %v2632
    %2634 = vdwg.mxu0
    %v2635 = vadd.f32 %v2433, %v2553
    %v2636 = vxor.u32 %v2635, 2147483648
    %v2637 = vmul.f32 %v2636, 1.442695
    %v2638 = vpow.pop %v2637
    %v2639 = vadd.f32 %v2638, 1.0
    %v2640 = vrcp.pop %v2639
    %v2641 = vmul.f32 %v2639, %v2640
    %v2642 = vsub.f32 1.0, %v2641
    %v2643 = vmul.f32 %v2640, %v2642
    %v2644 = vadd.f32 %v2640, %v2643
    %vm2645 = vweird.f32 %v2639
    %vm2646 = vweird.f32 %v2640
    %vm2647 = vmor %vm2645, %vm2646
    %v2648 = vsel %vm2647, %v2640, %v2644
    %v2649 = vand.u32 2147483647, %v2639
    %vm2650 = vcmp.eq.f32.partialorder %v2649, 8.507059e+37
    %v2651 = vand.u32 %v2639, 2147483648
    %v2652 = vor.u32 1.1754944e-38, %v2651
    %v2653 = vsel %vm2650, %v2652, %v2648
    %v2654 = vmul.f32 1.0, %v2653
    %v2655 = vadd.f32 %v2473, %v2593
    %v2656 = vxor.u32 %v2655, 2147483648
    %v2657 = vmul.f32 %v2656, 1.442695
    %v2658 = vpow.pop %v2657
    %v2659 = vadd.f32 %v2658, 1.0
    %v2660 = vrcp.pop %v2659
    %v2661 = vmul.f32 %v2659, %v2660
    %v2662 = vsub.f32 1.0, %v2661
    %v2663 = vmul.f32 %v2660, %v2662
    %v2664 = vadd.f32 %v2660, %v2663
    %vm2665 = vweird.f32 %v2659
    %vm2666 = vweird.f32 %v2660
    %vm2667 = vmor %vm2665, %vm2666
    %v2668 = vsel %vm2667, %v2660, %v2664
    %v2669 = vand.u32 2147483647, %v2659
    %vm2670 = vcmp.eq.f32.partialorder %v2669, 8.507059e+37
    %v2671 = vand.u32 %v2659, 2147483648
    %v2672 = vor.u32 1.1754944e-38, %v2671
    %v2673 = vsel %vm2670, %v2672, %v2668
    %v2674 = vmul.f32 1.0, %v2673
    %v2675 = vmul.f32 %v2654, %v2633
    %v2676 = vadd.f32 %v2513, %v2675
    %v2677 = vtanh.pop %v2676
    %v2678 = vsub.f32 1.0, %v2674
    %v2679 = vmul.f32 %v2678, %v2677
    %v2680 = vmul.f32 %v2674, %v2394
    %v2681 = vadd.f32 %v2679, %v2680
    %2682 = vst [vmem:[%s518] sm:$0xff] %v2681
    %s2683 = scalar_lea.vmem [#allocation6], 32
    %2684 = vst [vmem:[%s2683] sm:$0xff] %v2681
    %v2685 = vld [vmem:[#allocation2] sm:$0xff]
    %s2686 = scalar_lea.vmem [#allocation3], 40
    %v2687 = vld [vmem:[%s2686] sm:$0xff]
    %s2688 = scalar_lea.vmem [#allocation4], 40
    %v2689 = vld [vmem:[%s2688] sm:$0xff]
    %s2690 = scalar_lea.vmem [#allocation5], 40
    %v2691 = vld [vmem:[%s2690] sm:$0xff]
    %v2692 = vld [vmem:[#allocation12] sm:$0xff]
    %v2693 = vld [vmem:[#allocation12 + $0x8] sm:$0xff]
    %v2694 = vld [vmem:[#allocation12 + $0x10] sm:$0xff]
    %v2695 = vld [vmem:[#allocation12 + $0x18] sm:$0xff]
    %v2696 = vld [vmem:[#allocation12 + $0x20] sm:$0xff]
    %v2697 = vld [vmem:[#allocation12 + $0x28] sm:$0xff]
    %v2698 = vld [vmem:[#allocation12 + $0x30] sm:$0xff]
    %v2699 = vld [vmem:[#allocation12 + $0x38] sm:$0xff]
    %v2700 = vld [vmem:[#allocation12 + $0x40] sm:$0xff]
    %v2701 = vld [vmem:[#allocation12 + $0x48] sm:$0xff]
    %v2702 = vld [vmem:[#allocation12 + $0x50] sm:$0xff]
    %v2703 = vld [vmem:[#allocation12 + $0x58] sm:$0xff]
    %v2704 = vld [vmem:[#allocation12 + $0x60] sm:$0xff]
    %v2705 = vld [vmem:[#allocation12 + $0x68] sm:$0xff]
    %v2706 = vld [vmem:[#allocation12 + $0x70] sm:$0xff]
    %v2707 = vld [vmem:[#allocation12 + $0x78] sm:$0xff]
    %v2708 = vld [vmem:[#allocation15] sm:$0x1]
    %v2710 = vperm.slane %v2708, 0
    %2712 = vmatpush.msra.mxu0 %v2707
    %2713 = vmatpush.msra.mxu0 %v2706
    %2714 = vmatpush.msra.mxu0 %v2705
    %2715 = vmatpush.msra.mxu0 %v2704
    %2716 = vmatpush.msra.mxu0 %v2703
    %2717 = vmatpush.msra.mxu0 %v2702
    %2718 = vmatpush.msra.mxu0 %v2701
    %2719 = vmatpush.msra.mxu0 %v2700
    %2720 = vmatpush.msra.mxu0 %v2699
    %2721 = vmatpush.msra.mxu0 %v2698
    %2722 = vmatpush.msra.mxu0 %v2697
    %2723 = vmatpush.msra.mxu0 %v2696
    %2724 = vmatpush.msra.mxu0 %v2695
    %2725 = vmatpush.msra.mxu0 %v2694
    %2726 = vmatpush.msra.mxu0 %v2693
    %2727 = vmatpush.msra.mxu0 %v2692
    %2728 = vmatmul.f32.gmra.mxu0 %v2685
    %v2729 = vpop.f32.mrf.mxu0
    %v2730 = vadd.f32 %v2710, %v2729
    %2731 = vdwg.mxu0
    %v2732 = vld [vmem:[%s386] sm:$0xff]
    %v2733 = vld [vmem:[%s386 + $0x8] sm:$0xff]
    %v2734 = vld [vmem:[%s386 + $0x10] sm:$0xff]
    %v2735 = vld [vmem:[%s386 + $0x18] sm:$0xff]
    %v2736 = vld [vmem:[%s386 + $0x20] sm:$0xff]
    %v2737 = vld [vmem:[%s386 + $0x28] sm:$0xff]
    %v2738 = vld [vmem:[%s386 + $0x30] sm:$0xff]
    %v2739 = vld [vmem:[%s386 + $0x38] sm:$0xff]
    %v2740 = vld [vmem:[%s386 + $0x40] sm:$0xff]
    %v2741 = vld [vmem:[%s386 + $0x48] sm:$0xff]
    %v2742 = vld [vmem:[%s386 + $0x50] sm:$0xff]
    %v2743 = vld [vmem:[%s386 + $0x58] sm:$0xff]
    %v2744 = vld [vmem:[%s386 + $0x60] sm:$0xff]
    %v2745 = vld [vmem:[%s386 + $0x68] sm:$0xff]
    %v2746 = vld [vmem:[%s386 + $0x70] sm:$0xff]
    %v2747 = vld [vmem:[%s386 + $0x78] sm:$0xff]
    %v2748 = vld [vmem:[%s403] sm:$0x1]
    %v2750 = vperm.slane %v2748, 0
    %2752 = vmatpush.msra.mxu0 %v2747
    %2753 = vmatpush.msra.mxu0 %v2746
    %2754 = vmatpush.msra.mxu0 %v2745
    %2755 = vmatpush.msra.mxu0 %v2744
    %2756 = vmatpush.msra.mxu0 %v2743
    %2757 = vmatpush.msra.mxu0 %v2742
    %2758 = vmatpush.msra.mxu0 %v2741
    %2759 = vmatpush.msra.mxu0 %v2740
    %2760 = vmatpush.msra.mxu0 %v2739
    %2761 = vmatpush.msra.mxu0 %v2738
    %2762 = vmatpush.msra.mxu0 %v2737
    %2763 = vmatpush.msra.mxu0 %v2736
    %2764 = vmatpush.msra.mxu0 %v2735
    %2765 = vmatpush.msra.mxu0 %v2734
    %2766 = vmatpush.msra.mxu0 %v2733
    %2767 = vmatpush.msra.mxu0 %v2732
    %2768 = vmatmul.f32.gmra.mxu0 %v2685
    %v2769 = vpop.f32.mrf.mxu0
    %v2770 = vadd.f32 %v2750, %v2769
    %2771 = vdwg.mxu0
    %v2772 = vld [vmem:[%s428] sm:$0xff]
    %v2773 = vld [vmem:[%s428 + $0x8] sm:$0xff]
    %v2774 = vld [vmem:[%s428 + $0x10] sm:$0xff]
    %v2775 = vld [vmem:[%s428 + $0x18] sm:$0xff]
    %v2776 = vld [vmem:[%s428 + $0x20] sm:$0xff]
    %v2777 = vld [vmem:[%s428 + $0x28] sm:$0xff]
    %v2778 = vld [vmem:[%s428 + $0x30] sm:$0xff]
    %v2779 = vld [vmem:[%s428 + $0x38] sm:$0xff]
    %v2780 = vld [vmem:[%s428 + $0x40] sm:$0xff]
    %v2781 = vld [vmem:[%s428 + $0x48] sm:$0xff]
    %v2782 = vld [vmem:[%s428 + $0x50] sm:$0xff]
    %v2783 = vld [vmem:[%s428 + $0x58] sm:$0xff]
    %v2784 = vld [vmem:[%s428 + $0x60] sm:$0xff]
    %v2785 = vld [vmem:[%s428 + $0x68] sm:$0xff]
    %v2786 = vld [vmem:[%s428 + $0x70] sm:$0xff]
    %v2787 = vld [vmem:[%s428 + $0x78] sm:$0xff]
    %v2788 = vld [vmem:[%s445] sm:$0x1]
    %v2790 = vperm.slane %v2788, 0
    %2792 = vmatpush.msra.mxu0 %v2787
    %2793 = vmatpush.msra.mxu0 %v2786
    %2794 = vmatpush.msra.mxu0 %v2785
    %2795 = vmatpush.msra.mxu0 %v2784
    %2796 = vmatpush.msra.mxu0 %v2783
    %2797 = vmatpush.msra.mxu0 %v2782
    %2798 = vmatpush.msra.mxu0 %v2781
    %2799 = vmatpush.msra.mxu0 %v2780
    %2800 = vmatpush.msra.mxu0 %v2779
    %2801 = vmatpush.msra.mxu0 %v2778
    %2802 = vmatpush.msra.mxu0 %v2777
    %2803 = vmatpush.msra.mxu0 %v2776
    %2804 = vmatpush.msra.mxu0 %v2775
    %2805 = vmatpush.msra.mxu0 %v2774
    %2806 = vmatpush.msra.mxu0 %v2773
    %2807 = vmatpush.msra.mxu0 %v2772
    %2808 = vmatmul.f32.gmra.mxu0 %v2685
    %v2809 = vpop.f32.mrf.mxu0
    %v2810 = vadd.f32 %v2790, %v2809
    %2811 = vdwg.mxu0
    %v2812 = vadd.f32 %v2687, %v2730
    %v2813 = vxor.u32 %v2812, 2147483648
    %v2814 = vmul.f32 %v2813, 1.442695
    %v2815 = vpow.pop %v2814
    %v2816 = vadd.f32 %v2815, 1.0
    %v2817 = vrcp.pop %v2816
    %v2818 = vmul.f32 %v2816, %v2817
    %v2819 = vsub.f32 1.0, %v2818
    %v2820 = vmul.f32 %v2817, %v2819
    %v2821 = vadd.f32 %v2817, %v2820
    %vm2822 = vweird.f32 %v2816
    %vm2823 = vweird.f32 %v2817
    %vm2824 = vmor %vm2822, %vm2823
    %v2825 = vsel %vm2824, %v2817, %v2821
    %v2826 = vand.u32 2147483647, %v2816
    %vm2827 = vcmp.eq.f32.partialorder %v2826, 8.507059e+37
    %v2828 = vand.u32 %v2816, 2147483648
    %v2829 = vor.u32 1.1754944e-38, %v2828
    %v2830 = vsel %vm2827, %v2829, %v2825
    %v2831 = vmul.f32 1.0, %v2830
    %v2832 = vadd.f32 %v2689, %v2770
    %v2833 = vxor.u32 %v2832, 2147483648
    %v2834 = vmul.f32 %v2833, 1.442695
    %v2835 = vpow.pop %v2834
    %v2836 = vadd.f32 %v2835, 1.0
    %v2837 = vrcp.pop %v2836
    %v2838 = vmul.f32 %v2836, %v2837
    %v2839 = vsub.f32 1.0, %v2838
    %v2840 = vmul.f32 %v2837, %v2839
    %v2841 = vadd.f32 %v2837, %v2840
    %vm2842 = vweird.f32 %v2836
    %vm2843 = vweird.f32 %v2837
    %vm2844 = vmor %vm2842, %vm2843
    %v2845 = vsel %vm2844, %v2837, %v2841
    %v2846 = vand.u32 2147483647, %v2836
    %vm2847 = vcmp.eq.f32.partialorder %v2846, 8.507059e+37
    %v2848 = vand.u32 %v2836, 2147483648
    %v2849 = vor.u32 1.1754944e-38, %v2848
    %v2850 = vsel %vm2847, %v2849, %v2845
    %v2851 = vmul.f32 1.0, %v2850
    %v2852 = vmul.f32 %v2831, %v2810
    %v2853 = vadd.f32 %v2691, %v2852
    %v2854 = vtanh.pop %v2853
    %v2855 = vsub.f32 1.0, %v2851
    %v2856 = vmul.f32 %v2855, %v2854
    %v2857 = vmul.f32 %v2851, %v2685
    %v2858 = vadd.f32 %v2856, %v2857
    %2859 = vst [vmem:[#allocation2] sm:$0xff] %v2858
    %v2860 = vld [vmem:[%s518] sm:$0xff]
    %v2861 = vld [vmem:[%s520] sm:$0xff]
    %v2862 = vld [vmem:[%s520 + $0x8] sm:$0xff]
    %v2863 = vld [vmem:[%s520 + $0x10] sm:$0xff]
    %v2864 = vld [vmem:[%s520 + $0x18] sm:$0xff]
    %v2865 = vld [vmem:[%s520 + $0x20] sm:$0xff]
    %v2866 = vld [vmem:[%s520 + $0x28] sm:$0xff]
    %v2867 = vld [vmem:[%s520 + $0x30] sm:$0xff]
    %v2868 = vld [vmem:[%s520 + $0x38] sm:$0xff]
    %v2869 = vld [vmem:[%s520 + $0x40] sm:$0xff]
    %v2870 = vld [vmem:[%s520 + $0x48] sm:$0xff]
    %v2871 = vld [vmem:[%s520 + $0x50] sm:$0xff]
    %v2872 = vld [vmem:[%s520 + $0x58] sm:$0xff]
    %v2873 = vld [vmem:[%s520 + $0x60] sm:$0xff]
    %v2874 = vld [vmem:[%s520 + $0x68] sm:$0xff]
    %v2875 = vld [vmem:[%s520 + $0x70] sm:$0xff]
    %v2876 = vld [vmem:[%s520 + $0x78] sm:$0xff]
    %v2877 = vld [vmem:[%s537] sm:$0x1]
    %v2879 = vperm.slane %v2877, 0
    %2881 = vmatpush.msra.mxu0 %v2876
    %2882 = vmatpush.msra.mxu0 %v2875
    %2883 = vmatpush.msra.mxu0 %v2874
    %2884 = vmatpush.msra.mxu0 %v2873
    %2885 = vmatpush.msra.mxu0 %v2872
    %2886 = vmatpush.msra.mxu0 %v2871
    %2887 = vmatpush.msra.mxu0 %v2870
    %2888 = vmatpush.msra.mxu0 %v2869
    %2889 = vmatpush.msra.mxu0 %v2868
    %2890 = vmatpush.msra.mxu0 %v2867
    %2891 = vmatpush.msra.mxu0 %v2866
    %2892 = vmatpush.msra.mxu0 %v2865
    %2893 = vmatpush.msra.mxu0 %v2864
    %2894 = vmatpush.msra.mxu0 %v2863
    %2895 = vmatpush.msra.mxu0 %v2862
    %2896 = vmatpush.msra.mxu0 %v2861
    %2897 = vmatmul.f32.gmra.mxu0 %v2858
    %v2898 = vpop.f32.mrf.mxu0
    %v2899 = vadd.f32 %v2879, %v2898
    %2900 = vdwg.mxu0
    %v2901 = vld [vmem:[%s562] sm:$0xff]
    %v2902 = vld [vmem:[%s562 + $0x8] sm:$0xff]
    %v2903 = vld [vmem:[%s562 + $0x10] sm:$0xff]
    %v2904 = vld [vmem:[%s562 + $0x18] sm:$0xff]
    %v2905 = vld [vmem:[%s562 + $0x20] sm:$0xff]
    %v2906 = vld [vmem:[%s562 + $0x28] sm:$0xff]
    %v2907 = vld [vmem:[%s562 + $0x30] sm:$0xff]
    %v2908 = vld [vmem:[%s562 + $0x38] sm:$0xff]
    %v2909 = vld [vmem:[%s562 + $0x40] sm:$0xff]
    %v2910 = vld [vmem:[%s562 + $0x48] sm:$0xff]
    %v2911 = vld [vmem:[%s562 + $0x50] sm:$0xff]
    %v2912 = vld [vmem:[%s562 + $0x58] sm:$0xff]
    %v2913 = vld [vmem:[%s562 + $0x60] sm:$0xff]
    %v2914 = vld [vmem:[%s562 + $0x68] sm:$0xff]
    %v2915 = vld [vmem:[%s562 + $0x70] sm:$0xff]
    %v2916 = vld [vmem:[%s562 + $0x78] sm:$0xff]
    %v2917 = vld [vmem:[%s579] sm:$0x1]
    %v2919 = vperm.slane %v2917, 0
    %2921 = vmatpush.msra.mxu0 %v2916
    %2922 = vmatpush.msra.mxu0 %v2915
    %2923 = vmatpush.msra.mxu0 %v2914
    %2924 = vmatpush.msra.mxu0 %v2913
    %2925 = vmatpush.msra.mxu0 %v2912
    %2926 = vmatpush.msra.mxu0 %v2911
    %2927 = vmatpush.msra.mxu0 %v2910
    %2928 = vmatpush.msra.mxu0 %v2909
    %2929 = vmatpush.msra.mxu0 %v2908
    %2930 = vmatpush.msra.mxu0 %v2907
    %2931 = vmatpush.msra.mxu0 %v2906
    %2932 = vmatpush.msra.mxu0 %v2905
    %2933 = vmatpush.msra.mxu0 %v2904
    %2934 = vmatpush.msra.mxu0 %v2903
    %2935 = vmatpush.msra.mxu0 %v2902
    %2936 = vmatpush.msra.mxu0 %v2901
    %2937 = vmatmul.f32.gmra.mxu0 %v2858
    %v2938 = vpop.f32.mrf.mxu0
    %v2939 = vadd.f32 %v2919, %v2938
    %2940 = vdwg.mxu0
    %v2941 = vld [vmem:[%s604] sm:$0xff]
    %v2942 = vld [vmem:[%s604 + $0x8] sm:$0xff]
    %v2943 = vld [vmem:[%s604 + $0x10] sm:$0xff]
    %v2944 = vld [vmem:[%s604 + $0x18] sm:$0xff]
    %v2945 = vld [vmem:[%s604 + $0x20] sm:$0xff]
    %v2946 = vld [vmem:[%s604 + $0x28] sm:$0xff]
    %v2947 = vld [vmem:[%s604 + $0x30] sm:$0xff]
    %v2948 = vld [vmem:[%s604 + $0x38] sm:$0xff]
    %v2949 = vld [vmem:[%s604 + $0x40] sm:$0xff]
    %v2950 = vld [vmem:[%s604 + $0x48] sm:$0xff]
    %v2951 = vld [vmem:[%s604 + $0x50] sm:$0xff]
    %v2952 = vld [vmem:[%s604 + $0x58] sm:$0xff]
    %v2953 = vld [vmem:[%s604 + $0x60] sm:$0xff]
    %v2954 = vld [vmem:[%s604 + $0x68] sm:$0xff]
    %v2955 = vld [vmem:[%s604 + $0x70] sm:$0xff]
    %v2956 = vld [vmem:[%s604 + $0x78] sm:$0xff]
    %v2957 = vld [vmem:[%s621] sm:$0x1]
    %v2959 = vperm.slane %v2957, 0
    %2961 = vmatpush.msra.mxu0 %v2956
    %2962 = vmatpush.msra.mxu0 %v2955
    %2963 = vmatpush.msra.mxu0 %v2954
    %2964 = vmatpush.msra.mxu0 %v2953
    %2965 = vmatpush.msra.mxu0 %v2952
    %2966 = vmatpush.msra.mxu0 %v2951
    %2967 = vmatpush.msra.mxu0 %v2950
    %2968 = vmatpush.msra.mxu0 %v2949
    %2969 = vmatpush.msra.mxu0 %v2948
    %2970 = vmatpush.msra.mxu0 %v2947
    %2971 = vmatpush.msra.mxu0 %v2946
    %2972 = vmatpush.msra.mxu0 %v2945
    %2973 = vmatpush.msra.mxu0 %v2944
    %2974 = vmatpush.msra.mxu0 %v2943
    %2975 = vmatpush.msra.mxu0 %v2942
    %2976 = vmatpush.msra.mxu0 %v2941
    %2977 = vmatmul.f32.gmra.mxu0 %v2858
    %v2978 = vpop.f32.mrf.mxu0
    %v2979 = vadd.f32 %v2959, %v2978
    %2980 = vdwg.mxu0
    %v2981 = vld [vmem:[%s646] sm:$0xff]
    %v2982 = vld [vmem:[%s646 + $0x8] sm:$0xff]
    %v2983 = vld [vmem:[%s646 + $0x10] sm:$0xff]
    %v2984 = vld [vmem:[%s646 + $0x18] sm:$0xff]
    %v2985 = vld [vmem:[%s646 + $0x20] sm:$0xff]
    %v2986 = vld [vmem:[%s646 + $0x28] sm:$0xff]
    %v2987 = vld [vmem:[%s646 + $0x30] sm:$0xff]
    %v2988 = vld [vmem:[%s646 + $0x38] sm:$0xff]
    %v2989 = vld [vmem:[%s646 + $0x40] sm:$0xff]
    %v2990 = vld [vmem:[%s646 + $0x48] sm:$0xff]
    %v2991 = vld [vmem:[%s646 + $0x50] sm:$0xff]
    %v2992 = vld [vmem:[%s646 + $0x58] sm:$0xff]
    %v2993 = vld [vmem:[%s646 + $0x60] sm:$0xff]
    %v2994 = vld [vmem:[%s646 + $0x68] sm:$0xff]
    %v2995 = vld [vmem:[%s646 + $0x70] sm:$0xff]
    %v2996 = vld [vmem:[%s646 + $0x78] sm:$0xff]
    %v2997 = vld [vmem:[%s663] sm:$0x1]
    %v2999 = vperm.slane %v2997, 0
    %3001 = vmatpush.msra.mxu0 %v2996
    %3002 = vmatpush.msra.mxu0 %v2995
    %3003 = vmatpush.msra.mxu0 %v2994
    %3004 = vmatpush.msra.mxu0 %v2993
    %3005 = vmatpush.msra.mxu0 %v2992
    %3006 = vmatpush.msra.mxu0 %v2991
    %3007 = vmatpush.msra.mxu0 %v2990
    %3008 = vmatpush.msra.mxu0 %v2989
    %3009 = vmatpush.msra.mxu0 %v2988
    %3010 = vmatpush.msra.mxu0 %v2987
    %3011 = vmatpush.msra.mxu0 %v2986
    %3012 = vmatpush.msra.mxu0 %v2985
    %3013 = vmatpush.msra.mxu0 %v2984
    %3014 = vmatpush.msra.mxu0 %v2983
    %3015 = vmatpush.msra.mxu0 %v2982
    %3016 = vmatpush.msra.mxu0 %v2981
    %3017 = vmatmul.f32.gmra.mxu0 %v2860
    %v3018 = vpop.f32.mrf.mxu0
    %v3019 = vadd.f32 %v2999, %v3018
    %3020 = vdwg.mxu0
    %v3021 = vld [vmem:[%s688] sm:$0xff]
    %v3022 = vld [vmem:[%s688 + $0x8] sm:$0xff]
    %v3023 = vld [vmem:[%s688 + $0x10] sm:$0xff]
    %v3024 = vld [vmem:[%s688 + $0x18] sm:$0xff]
    %v3025 = vld [vmem:[%s688 + $0x20] sm:$0xff]
    %v3026 = vld [vmem:[%s688 + $0x28] sm:$0xff]
    %v3027 = vld [vmem:[%s688 + $0x30] sm:$0xff]
    %v3028 = vld [vmem:[%s688 + $0x38] sm:$0xff]
    %v3029 = vld [vmem:[%s688 + $0x40] sm:$0xff]
    %v3030 = vld [vmem:[%s688 + $0x48] sm:$0xff]
    %v3031 = vld [vmem:[%s688 + $0x50] sm:$0xff]
    %v3032 = vld [vmem:[%s688 + $0x58] sm:$0xff]
    %v3033 = vld [vmem:[%s688 + $0x60] sm:$0xff]
    %v3034 = vld [vmem:[%s688 + $0x68] sm:$0xff]
    %v3035 = vld [vmem:[%s688 + $0x70] sm:$0xff]
    %v3036 = vld [vmem:[%s688 + $0x78] sm:$0xff]
    %v3037 = vld [vmem:[%s705] sm:$0x1]
    %v3039 = vperm.slane %v3037, 0
    %3041 = vmatpush.msra.mxu0 %v3036
    %3042 = vmatpush.msra.mxu0 %v3035
    %3043 = vmatpush.msra.mxu0 %v3034
    %3044 = vmatpush.msra.mxu0 %v3033
    %3045 = vmatpush.msra.mxu0 %v3032
    %3046 = vmatpush.msra.mxu0 %v3031
    %3047 = vmatpush.msra.mxu0 %v3030
    %3048 = vmatpush.msra.mxu0 %v3029
    %3049 = vmatpush.msra.mxu0 %v3028
    %3050 = vmatpush.msra.mxu0 %v3027
    %3051 = vmatpush.msra.mxu0 %v3026
    %3052 = vmatpush.msra.mxu0 %v3025
    %3053 = vmatpush.msra.mxu0 %v3024
    %3054 = vmatpush.msra.mxu0 %v3023
    %3055 = vmatpush.msra.mxu0 %v3022
    %3056 = vmatpush.msra.mxu0 %v3021
    %3057 = vmatmul.f32.gmra.mxu0 %v2860
    %v3058 = vpop.f32.mrf.mxu0
    %v3059 = vadd.f32 %v3039, %v3058
    %3060 = vdwg.mxu0
    %v3061 = vld [vmem:[%s730] sm:$0xff]
    %v3062 = vld [vmem:[%s730 + $0x8] sm:$0xff]
    %v3063 = vld [vmem:[%s730 + $0x10] sm:$0xff]
    %v3064 = vld [vmem:[%s730 + $0x18] sm:$0xff]
    %v3065 = vld [vmem:[%s730 + $0x20] sm:$0xff]
    %v3066 = vld [vmem:[%s730 + $0x28] sm:$0xff]
    %v3067 = vld [vmem:[%s730 + $0x30] sm:$0xff]
    %v3068 = vld [vmem:[%s730 + $0x38] sm:$0xff]
    %v3069 = vld [vmem:[%s730 + $0x40] sm:$0xff]
    %v3070 = vld [vmem:[%s730 + $0x48] sm:$0xff]
    %v3071 = vld [vmem:[%s730 + $0x50] sm:$0xff]
    %v3072 = vld [vmem:[%s730 + $0x58] sm:$0xff]
    %v3073 = vld [vmem:[%s730 + $0x60] sm:$0xff]
    %v3074 = vld [vmem:[%s730 + $0x68] sm:$0xff]
    %v3075 = vld [vmem:[%s730 + $0x70] sm:$0xff]
    %v3076 = vld [vmem:[%s730 + $0x78] sm:$0xff]
    %v3077 = vld [vmem:[%s747] sm:$0x1]
    %v3079 = vperm.slane %v3077, 0
    %3081 = vmatpush.msra.mxu0 %v3076
    %3082 = vmatpush.msra.mxu0 %v3075
    %3083 = vmatpush.msra.mxu0 %v3074
    %3084 = vmatpush.msra.mxu0 %v3073
    %3085 = vmatpush.msra.mxu0 %v3072
    %3086 = vmatpush.msra.mxu0 %v3071
    %3087 = vmatpush.msra.mxu0 %v3070
    %3088 = vmatpush.msra.mxu0 %v3069
    %3089 = vmatpush.msra.mxu0 %v3068
    %3090 = vmatpush.msra.mxu0 %v3067
    %3091 = vmatpush.msra.mxu0 %v3066
    %3092 = vmatpush.msra.mxu0 %v3065
    %3093 = vmatpush.msra.mxu0 %v3064
    %3094 = vmatpush.msra.mxu0 %v3063
    %3095 = vmatpush.msra.mxu0 %v3062
    %3096 = vmatpush.msra.mxu0 %v3061
    %3097 = vmatmul.f32.gmra.mxu0 %v2860
    %v3098 = vpop.f32.mrf.mxu0
    %v3099 = vadd.f32 %v3079, %v3098
    %3100 = vdwg.mxu0
    %v3101 = vadd.f32 %v2899, %v3019
    %v3102 = vxor.u32 %v3101, 2147483648
    %v3103 = vmul.f32 %v3102, 1.442695
    %v3104 = vpow.pop %v3103
    %v3105 = vadd.f32 %v3104, 1.0
    %v3106 = vrcp.pop %v3105
    %v3107 = vmul.f32 %v3105, %v3106
    %v3108 = vsub.f32 1.0, %v3107
    %v3109 = vmul.f32 %v3106, %v3108
    %v3110 = vadd.f32 %v3106, %v3109
    %vm3111 = vweird.f32 %v3105
    %vm3112 = vweird.f32 %v3106
    %vm3113 = vmor %vm3111, %vm3112
    %v3114 = vsel %vm3113, %v3106, %v3110
    %v3115 = vand.u32 2147483647, %v3105
    %vm3116 = vcmp.eq.f32.partialorder %v3115, 8.507059e+37
    %v3117 = vand.u32 %v3105, 2147483648
    %v3118 = vor.u32 1.1754944e-38, %v3117
    %v3119 = vsel %vm3116, %v3118, %v3114
    %v3120 = vmul.f32 1.0, %v3119
    %v3121 = vadd.f32 %v2939, %v3059
    %v3122 = vxor.u32 %v3121, 2147483648
    %v3123 = vmul.f32 %v3122, 1.442695
    %v3124 = vpow.pop %v3123
    %v3125 = vadd.f32 %v3124, 1.0
    %v3126 = vrcp.pop %v3125
    %v3127 = vmul.f32 %v3125, %v3126
    %v3128 = vsub.f32 1.0, %v3127
    %v3129 = vmul.f32 %v3126, %v3128
    %v3130 = vadd.f32 %v3126, %v3129
    %vm3131 = vweird.f32 %v3125
    %vm3132 = vweird.f32 %v3126
    %vm3133 = vmor %vm3131, %vm3132
    %v3134 = vsel %vm3133, %v3126, %v3130
    %v3135 = vand.u32 2147483647, %v3125
    %vm3136 = vcmp.eq.f32.partialorder %v3135, 8.507059e+37
    %v3137 = vand.u32 %v3125, 2147483648
    %v3138 = vor.u32 1.1754944e-38, %v3137
    %v3139 = vsel %vm3136, %v3138, %v3134
    %v3140 = vmul.f32 1.0, %v3139
    %v3141 = vmul.f32 %v3120, %v3099
    %v3142 = vadd.f32 %v2979, %v3141
    %v3143 = vtanh.pop %v3142
    %v3144 = vsub.f32 1.0, %v3140
    %v3145 = vmul.f32 %v3144, %v3143
    %v3146 = vmul.f32 %v3140, %v2860
    %v3147 = vadd.f32 %v3145, %v3146
    %3148 = vst [vmem:[%s518] sm:$0xff] %v3147
    %s3149 = scalar_lea.vmem [#allocation6], 40
    %3150 = vst [vmem:[%s3149] sm:$0xff] %v3147
    %v3151 = vld [vmem:[#allocation2] sm:$0xff]
    %s3152 = scalar_lea.vmem [#allocation3], 48
    %v3153 = vld [vmem:[%s3152] sm:$0xff]
    %s3154 = scalar_lea.vmem [#allocation4], 48
    %v3155 = vld [vmem:[%s3154] sm:$0xff]
    %s3156 = scalar_lea.vmem [#allocation5], 48
    %v3157 = vld [vmem:[%s3156] sm:$0xff]
    %v3158 = vld [vmem:[#allocation12] sm:$0xff]
    %v3159 = vld [vmem:[#allocation12 + $0x8] sm:$0xff]
    %v3160 = vld [vmem:[#allocation12 + $0x10] sm:$0xff]
    %v3161 = vld [vmem:[#allocation12 + $0x18] sm:$0xff]
    %v3162 = vld [vmem:[#allocation12 + $0x20] sm:$0xff]
    %v3163 = vld [vmem:[#allocation12 + $0x28] sm:$0xff]
    %v3164 = vld [vmem:[#allocation12 + $0x30] sm:$0xff]
    %v3165 = vld [vmem:[#allocation12 + $0x38] sm:$0xff]
    %v3166 = vld [vmem:[#allocation12 + $0x40] sm:$0xff]
    %v3167 = vld [vmem:[#allocation12 + $0x48] sm:$0xff]
    %v3168 = vld [vmem:[#allocation12 + $0x50] sm:$0xff]
    %v3169 = vld [vmem:[#allocation12 + $0x58] sm:$0xff]
    %v3170 = vld [vmem:[#allocation12 + $0x60] sm:$0xff]
    %v3171 = vld [vmem:[#allocation12 + $0x68] sm:$0xff]
    %v3172 = vld [vmem:[#allocation12 + $0x70] sm:$0xff]
    %v3173 = vld [vmem:[#allocation12 + $0x78] sm:$0xff]
    %v3174 = vld [vmem:[#allocation15] sm:$0x1]
    %v3176 = vperm.slane %v3174, 0
    %3178 = vmatpush.msra.mxu0 %v3173
    %3179 = vmatpush.msra.mxu0 %v3172
    %3180 = vmatpush.msra.mxu0 %v3171
    %3181 = vmatpush.msra.mxu0 %v3170
    %3182 = vmatpush.msra.mxu0 %v3169
    %3183 = vmatpush.msra.mxu0 %v3168
    %3184 = vmatpush.msra.mxu0 %v3167
    %3185 = vmatpush.msra.mxu0 %v3166
    %3186 = vmatpush.msra.mxu0 %v3165
    %3187 = vmatpush.msra.mxu0 %v3164
    %3188 = vmatpush.msra.mxu0 %v3163
    %3189 = vmatpush.msra.mxu0 %v3162
    %3190 = vmatpush.msra.mxu0 %v3161
    %3191 = vmatpush.msra.mxu0 %v3160
    %3192 = vmatpush.msra.mxu0 %v3159
    %3193 = vmatpush.msra.mxu0 %v3158
    %3194 = vmatmul.f32.gmra.mxu0 %v3151
    %v3195 = vpop.f32.mrf.mxu0
    %v3196 = vadd.f32 %v3176, %v3195
    %3197 = vdwg.mxu0
    %v3198 = vld [vmem:[%s386] sm:$0xff]
    %v3199 = vld [vmem:[%s386 + $0x8] sm:$0xff]
    %v3200 = vld [vmem:[%s386 + $0x10] sm:$0xff]
    %v3201 = vld [vmem:[%s386 + $0x18] sm:$0xff]
    %v3202 = vld [vmem:[%s386 + $0x20] sm:$0xff]
    %v3203 = vld [vmem:[%s386 + $0x28] sm:$0xff]
    %v3204 = vld [vmem:[%s386 + $0x30] sm:$0xff]
    %v3205 = vld [vmem:[%s386 + $0x38] sm:$0xff]
    %v3206 = vld [vmem:[%s386 + $0x40] sm:$0xff]
    %v3207 = vld [vmem:[%s386 + $0x48] sm:$0xff]
    %v3208 = vld [vmem:[%s386 + $0x50] sm:$0xff]
    %v3209 = vld [vmem:[%s386 + $0x58] sm:$0xff]
    %v3210 = vld [vmem:[%s386 + $0x60] sm:$0xff]
    %v3211 = vld [vmem:[%s386 + $0x68] sm:$0xff]
    %v3212 = vld [vmem:[%s386 + $0x70] sm:$0xff]
    %v3213 = vld [vmem:[%s386 + $0x78] sm:$0xff]
    %v3214 = vld [vmem:[%s403] sm:$0x1]
    %v3216 = vperm.slane %v3214, 0
    %3218 = vmatpush.msra.mxu0 %v3213
    %3219 = vmatpush.msra.mxu0 %v3212
    %3220 = vmatpush.msra.mxu0 %v3211
    %3221 = vmatpush.msra.mxu0 %v3210
    %3222 = vmatpush.msra.mxu0 %v3209
    %3223 = vmatpush.msra.mxu0 %v3208
    %3224 = vmatpush.msra.mxu0 %v3207
    %3225 = vmatpush.msra.mxu0 %v3206
    %3226 = vmatpush.msra.mxu0 %v3205
    %3227 = vmatpush.msra.mxu0 %v3204
    %3228 = vmatpush.msra.mxu0 %v3203
    %3229 = vmatpush.msra.mxu0 %v3202
    %3230 = vmatpush.msra.mxu0 %v3201
    %3231 = vmatpush.msra.mxu0 %v3200
    %3232 = vmatpush.msra.mxu0 %v3199
    %3233 = vmatpush.msra.mxu0 %v3198
    %3234 = vmatmul.f32.gmra.mxu0 %v3151
    %v3235 = vpop.f32.mrf.mxu0
    %v3236 = vadd.f32 %v3216, %v3235
    %3237 = vdwg.mxu0
    %v3238 = vld [vmem:[%s428] sm:$0xff]
    %v3239 = vld [vmem:[%s428 + $0x8] sm:$0xff]
    %v3240 = vld [vmem:[%s428 + $0x10] sm:$0xff]
    %v3241 = vld [vmem:[%s428 + $0x18] sm:$0xff]
    %v3242 = vld [vmem:[%s428 + $0x20] sm:$0xff]
    %v3243 = vld [vmem:[%s428 + $0x28] sm:$0xff]
    %v3244 = vld [vmem:[%s428 + $0x30] sm:$0xff]
    %v3245 = vld [vmem:[%s428 + $0x38] sm:$0xff]
    %v3246 = vld [vmem:[%s428 + $0x40] sm:$0xff]
    %v3247 = vld [vmem:[%s428 + $0x48] sm:$0xff]
    %v3248 = vld [vmem:[%s428 + $0x50] sm:$0xff]
    %v3249 = vld [vmem:[%s428 + $0x58] sm:$0xff]
    %v3250 = vld [vmem:[%s428 + $0x60] sm:$0xff]
    %v3251 = vld [vmem:[%s428 + $0x68] sm:$0xff]
    %v3252 = vld [vmem:[%s428 + $0x70] sm:$0xff]
    %v3253 = vld [vmem:[%s428 + $0x78] sm:$0xff]
    %v3254 = vld [vmem:[%s445] sm:$0x1]
    %v3256 = vperm.slane %v3254, 0
    %3258 = vmatpush.msra.mxu0 %v3253
    %3259 = vmatpush.msra.mxu0 %v3252
    %3260 = vmatpush.msra.mxu0 %v3251
    %3261 = vmatpush.msra.mxu0 %v3250
    %3262 = vmatpush.msra.mxu0 %v3249
    %3263 = vmatpush.msra.mxu0 %v3248
    %3264 = vmatpush.msra.mxu0 %v3247
    %3265 = vmatpush.msra.mxu0 %v3246
    %3266 = vmatpush.msra.mxu0 %v3245
    %3267 = vmatpush.msra.mxu0 %v3244
    %3268 = vmatpush.msra.mxu0 %v3243
    %3269 = vmatpush.msra.mxu0 %v3242
    %3270 = vmatpush.msra.mxu0 %v3241
    %3271 = vmatpush.msra.mxu0 %v3240
    %3272 = vmatpush.msra.mxu0 %v3239
    %3273 = vmatpush.msra.mxu0 %v3238
    %3274 = vmatmul.f32.gmra.mxu0 %v3151
    %v3275 = vpop.f32.mrf.mxu0
    %v3276 = vadd.f32 %v3256, %v3275
    %3277 = vdwg.mxu0
    %v3278 = vadd.f32 %v3153, %v3196
    %v3279 = vxor.u32 %v3278, 2147483648
    %v3280 = vmul.f32 %v3279, 1.442695
    %v3281 = vpow.pop %v3280
    %v3282 = vadd.f32 %v3281, 1.0
    %v3283 = vrcp.pop %v3282
    %v3284 = vmul.f32 %v3282, %v3283
    %v3285 = vsub.f32 1.0, %v3284
    %v3286 = vmul.f32 %v3283, %v3285
    %v3287 = vadd.f32 %v3283, %v3286
    %vm3288 = vweird.f32 %v3282
    %vm3289 = vweird.f32 %v3283
    %vm3290 = vmor %vm3288, %vm3289
    %v3291 = vsel %vm3290, %v3283, %v3287
    %v3292 = vand.u32 2147483647, %v3282
    %vm3293 = vcmp.eq.f32.partialorder %v3292, 8.507059e+37
    %v3294 = vand.u32 %v3282, 2147483648
    %v3295 = vor.u32 1.1754944e-38, %v3294
    %v3296 = vsel %vm3293, %v3295, %v3291
    %v3297 = vmul.f32 1.0, %v3296
    %v3298 = vadd.f32 %v3155, %v3236
    %v3299 = vxor.u32 %v3298, 2147483648
    %v3300 = vmul.f32 %v3299, 1.442695
    %v3301 = vpow.pop %v3300
    %v3302 = vadd.f32 %v3301, 1.0
    %v3303 = vrcp.pop %v3302
    %v3304 = vmul.f32 %v3302, %v3303
    %v3305 = vsub.f32 1.0, %v3304
    %v3306 = vmul.f32 %v3303, %v3305
    %v3307 = vadd.f32 %v3303, %v3306
    %vm3308 = vweird.f32 %v3302
    %vm3309 = vweird.f32 %v3303
    %vm3310 = vmor %vm3308, %vm3309
    %v3311 = vsel %vm3310, %v3303, %v3307
    %v3312 = vand.u32 2147483647, %v3302
    %vm3313 = vcmp.eq.f32.partialorder %v3312, 8.507059e+37
    %v3314 = vand.u32 %v3302, 2147483648
    %v3315 = vor.u32 1.1754944e-38, %v3314
    %v3316 = vsel %vm3313, %v3315, %v3311
    %v3317 = vmul.f32 1.0, %v3316
    %v3318 = vmul.f32 %v3297, %v3276
    %v3319 = vadd.f32 %v3157, %v3318
    %v3320 = vtanh.pop %v3319
    %v3321 = vsub.f32 1.0, %v3317
    %v3322 = vmul.f32 %v3321, %v3320
    %v3323 = vmul.f32 %v3317, %v3151
    %v3324 = vadd.f32 %v3322, %v3323
    %3325 = vst [vmem:[#allocation2] sm:$0xff] %v3324
    %v3326 = vld [vmem:[%s518] sm:$0xff]
    %v3327 = vld [vmem:[%s520] sm:$0xff]
    %v3328 = vld [vmem:[%s520 + $0x8] sm:$0xff]
    %v3329 = vld [vmem:[%s520 + $0x10] sm:$0xff]
    %v3330 = vld [vmem:[%s520 + $0x18] sm:$0xff]
    %v3331 = vld [vmem:[%s520 + $0x20] sm:$0xff]
    %v3332 = vld [vmem:[%s520 + $0x28] sm:$0xff]
    %v3333 = vld [vmem:[%s520 + $0x30] sm:$0xff]
    %v3334 = vld [vmem:[%s520 + $0x38] sm:$0xff]
    %v3335 = vld [vmem:[%s520 + $0x40] sm:$0xff]
    %v3336 = vld [vmem:[%s520 + $0x48] sm:$0xff]
    %v3337 = vld [vmem:[%s520 + $0x50] sm:$0xff]
    %v3338 = vld [vmem:[%s520 + $0x58] sm:$0xff]
    %v3339 = vld [vmem:[%s520 + $0x60] sm:$0xff]
    %v3340 = vld [vmem:[%s520 + $0x68] sm:$0xff]
    %v3341 = vld [vmem:[%s520 + $0x70] sm:$0xff]
    %v3342 = vld [vmem:[%s520 + $0x78] sm:$0xff]
    %v3343 = vld [vmem:[%s537] sm:$0x1]
    %v3345 = vperm.slane %v3343, 0
    %3347 = vmatpush.msra.mxu0 %v3342
    %3348 = vmatpush.msra.mxu0 %v3341
    %3349 = vmatpush.msra.mxu0 %v3340
    %3350 = vmatpush.msra.mxu0 %v3339
    %3351 = vmatpush.msra.mxu0 %v3338
    %3352 = vmatpush.msra.mxu0 %v3337
    %3353 = vmatpush.msra.mxu0 %v3336
    %3354 = vmatpush.msra.mxu0 %v3335
    %3355 = vmatpush.msra.mxu0 %v3334
    %3356 = vmatpush.msra.mxu0 %v3333
    %3357 = vmatpush.msra.mxu0 %v3332
    %3358 = vmatpush.msra.mxu0 %v3331
    %3359 = vmatpush.msra.mxu0 %v3330
    %3360 = vmatpush.msra.mxu0 %v3329
    %3361 = vmatpush.msra.mxu0 %v3328
    %3362 = vmatpush.msra.mxu0 %v3327
    %3363 = vmatmul.f32.gmra.mxu0 %v3324
    %v3364 = vpop.f32.mrf.mxu0
    %v3365 = vadd.f32 %v3345, %v3364
    %3366 = vdwg.mxu0
    %v3367 = vld [vmem:[%s562] sm:$0xff]
    %v3368 = vld [vmem:[%s562 + $0x8] sm:$0xff]
    %v3369 = vld [vmem:[%s562 + $0x10] sm:$0xff]
    %v3370 = vld [vmem:[%s562 + $0x18] sm:$0xff]
    %v3371 = vld [vmem:[%s562 + $0x20] sm:$0xff]
    %v3372 = vld [vmem:[%s562 + $0x28] sm:$0xff]
    %v3373 = vld [vmem:[%s562 + $0x30] sm:$0xff]
    %v3374 = vld [vmem:[%s562 + $0x38] sm:$0xff]
    %v3375 = vld [vmem:[%s562 + $0x40] sm:$0xff]
    %v3376 = vld [vmem:[%s562 + $0x48] sm:$0xff]
    %v3377 = vld [vmem:[%s562 + $0x50] sm:$0xff]
    %v3378 = vld [vmem:[%s562 + $0x58] sm:$0xff]
    %v3379 = vld [vmem:[%s562 + $0x60] sm:$0xff]
    %v3380 = vld [vmem:[%s562 + $0x68] sm:$0xff]
    %v3381 = vld [vmem:[%s562 + $0x70] sm:$0xff]
    %v3382 = vld [vmem:[%s562 + $0x78] sm:$0xff]
    %v3383 = vld [vmem:[%s579] sm:$0x1]
    %v3385 = vperm.slane %v3383, 0
    %3387 = vmatpush.msra.mxu0 %v3382
    %3388 = vmatpush.msra.mxu0 %v3381
    %3389 = vmatpush.msra.mxu0 %v3380
    %3390 = vmatpush.msra.mxu0 %v3379
    %3391 = vmatpush.msra.mxu0 %v3378
    %3392 = vmatpush.msra.mxu0 %v3377
    %3393 = vmatpush.msra.mxu0 %v3376
    %3394 = vmatpush.msra.mxu0 %v3375
    %3395 = vmatpush.msra.mxu0 %v3374
    %3396 = vmatpush.msra.mxu0 %v3373
    %3397 = vmatpush.msra.mxu0 %v3372
    %3398 = vmatpush.msra.mxu0 %v3371
    %3399 = vmatpush.msra.mxu0 %v3370
    %3400 = vmatpush.msra.mxu0 %v3369
    %3401 = vmatpush.msra.mxu0 %v3368
    %3402 = vmatpush.msra.mxu0 %v3367
    %3403 = vmatmul.f32.gmra.mxu0 %v3324
    %v3404 = vpop.f32.mrf.mxu0
    %v3405 = vadd.f32 %v3385, %v3404
    %3406 = vdwg.mxu0
    %v3407 = vld [vmem:[%s604] sm:$0xff]
    %v3408 = vld [vmem:[%s604 + $0x8] sm:$0xff]
    %v3409 = vld [vmem:[%s604 + $0x10] sm:$0xff]
    %v3410 = vld [vmem:[%s604 + $0x18] sm:$0xff]
    %v3411 = vld [vmem:[%s604 + $0x20] sm:$0xff]
    %v3412 = vld [vmem:[%s604 + $0x28] sm:$0xff]
    %v3413 = vld [vmem:[%s604 + $0x30] sm:$0xff]
    %v3414 = vld [vmem:[%s604 + $0x38] sm:$0xff]
    %v3415 = vld [vmem:[%s604 + $0x40] sm:$0xff]
    %v3416 = vld [vmem:[%s604 + $0x48] sm:$0xff]
    %v3417 = vld [vmem:[%s604 + $0x50] sm:$0xff]
    %v3418 = vld [vmem:[%s604 + $0x58] sm:$0xff]
    %v3419 = vld [vmem:[%s604 + $0x60] sm:$0xff]
    %v3420 = vld [vmem:[%s604 + $0x68] sm:$0xff]
    %v3421 = vld [vmem:[%s604 + $0x70] sm:$0xff]
    %v3422 = vld [vmem:[%s604 + $0x78] sm:$0xff]
    %v3423 = vld [vmem:[%s621] sm:$0x1]
    %v3425 = vperm.slane %v3423, 0
    %3427 = vmatpush.msra.mxu0 %v3422
    %3428 = vmatpush.msra.mxu0 %v3421
    %3429 = vmatpush.msra.mxu0 %v3420
    %3430 = vmatpush.msra.mxu0 %v3419
    %3431 = vmatpush.msra.mxu0 %v3418
    %3432 = vmatpush.msra.mxu0 %v3417
    %3433 = vmatpush.msra.mxu0 %v3416
    %3434 = vmatpush.msra.mxu0 %v3415
    %3435 = vmatpush.msra.mxu0 %v3414
    %3436 = vmatpush.msra.mxu0 %v3413
    %3437 = vmatpush.msra.mxu0 %v3412
    %3438 = vmatpush.msra.mxu0 %v3411
    %3439 = vmatpush.msra.mxu0 %v3410
    %3440 = vmatpush.msra.mxu0 %v3409
    %3441 = vmatpush.msra.mxu0 %v3408
    %3442 = vmatpush.msra.mxu0 %v3407
    %3443 = vmatmul.f32.gmra.mxu0 %v3324
    %v3444 = vpop.f32.mrf.mxu0
    %v3445 = vadd.f32 %v3425, %v3444
    %3446 = vdwg.mxu0
    %v3447 = vld [vmem:[%s646] sm:$0xff]
    %v3448 = vld [vmem:[%s646 + $0x8] sm:$0xff]
    %v3449 = vld [vmem:[%s646 + $0x10] sm:$0xff]
    %v3450 = vld [vmem:[%s646 + $0x18] sm:$0xff]
    %v3451 = vld [vmem:[%s646 + $0x20] sm:$0xff]
    %v3452 = vld [vmem:[%s646 + $0x28] sm:$0xff]
    %v3453 = vld [vmem:[%s646 + $0x30] sm:$0xff]
    %v3454 = vld [vmem:[%s646 + $0x38] sm:$0xff]
    %v3455 = vld [vmem:[%s646 + $0x40] sm:$0xff]
    %v3456 = vld [vmem:[%s646 + $0x48] sm:$0xff]
    %v3457 = vld [vmem:[%s646 + $0x50] sm:$0xff]
    %v3458 = vld [vmem:[%s646 + $0x58] sm:$0xff]
    %v3459 = vld [vmem:[%s646 + $0x60] sm:$0xff]
    %v3460 = vld [vmem:[%s646 + $0x68] sm:$0xff]
    %v3461 = vld [vmem:[%s646 + $0x70] sm:$0xff]
    %v3462 = vld [vmem:[%s646 + $0x78] sm:$0xff]
    %v3463 = vld [vmem:[%s663] sm:$0x1]
    %v3465 = vperm.slane %v3463, 0
    %3467 = vmatpush.msra.mxu0 %v3462
    %3468 = vmatpush.msra.mxu0 %v3461
    %3469 = vmatpush.msra.mxu0 %v3460
    %3470 = vmatpush.msra.mxu0 %v3459
    %3471 = vmatpush.msra.mxu0 %v3458
    %3472 = vmatpush.msra.mxu0 %v3457
    %3473 = vmatpush.msra.mxu0 %v3456
    %3474 = vmatpush.msra.mxu0 %v3455
    %3475 = vmatpush.msra.mxu0 %v3454
    %3476 = vmatpush.msra.mxu0 %v3453
    %3477 = vmatpush.msra.mxu0 %v3452
    %3478 = vmatpush.msra.mxu0 %v3451
    %3479 = vmatpush.msra.mxu0 %v3450
    %3480 = vmatpush.msra.mxu0 %v3449
    %3481 = vmatpush.msra.mxu0 %v3448
    %3482 = vmatpush.msra.mxu0 %v3447
    %3483 = vmatmul.f32.gmra.mxu0 %v3326
    %v3484 = vpop.f32.mrf.mxu0
    %v3485 = vadd.f32 %v3465, %v3484
    %3486 = vdwg.mxu0
    %v3487 = vld [vmem:[%s688] sm:$0xff]
    %v3488 = vld [vmem:[%s688 + $0x8] sm:$0xff]
    %v3489 = vld [vmem:[%s688 + $0x10] sm:$0xff]
    %v3490 = vld [vmem:[%s688 + $0x18] sm:$0xff]
    %v3491 = vld [vmem:[%s688 + $0x20] sm:$0xff]
    %v3492 = vld [vmem:[%s688 + $0x28] sm:$0xff]
    %v3493 = vld [vmem:[%s688 + $0x30] sm:$0xff]
    %v3494 = vld [vmem:[%s688 + $0x38] sm:$0xff]
    %v3495 = vld [vmem:[%s688 + $0x40] sm:$0xff]
    %v3496 = vld [vmem:[%s688 + $0x48] sm:$0xff]
    %v3497 = vld [vmem:[%s688 + $0x50] sm:$0xff]
    %v3498 = vld [vmem:[%s688 + $0x58] sm:$0xff]
    %v3499 = vld [vmem:[%s688 + $0x60] sm:$0xff]
    %v3500 = vld [vmem:[%s688 + $0x68] sm:$0xff]
    %v3501 = vld [vmem:[%s688 + $0x70] sm:$0xff]
    %v3502 = vld [vmem:[%s688 + $0x78] sm:$0xff]
    %v3503 = vld [vmem:[%s705] sm:$0x1]
    %v3505 = vperm.slane %v3503, 0
    %3507 = vmatpush.msra.mxu0 %v3502
    %3508 = vmatpush.msra.mxu0 %v3501
    %3509 = vmatpush.msra.mxu0 %v3500
    %3510 = vmatpush.msra.mxu0 %v3499
    %3511 = vmatpush.msra.mxu0 %v3498
    %3512 = vmatpush.msra.mxu0 %v3497
    %3513 = vmatpush.msra.mxu0 %v3496
    %3514 = vmatpush.msra.mxu0 %v3495
    %3515 = vmatpush.msra.mxu0 %v3494
    %3516 = vmatpush.msra.mxu0 %v3493
    %3517 = vmatpush.msra.mxu0 %v3492
    %3518 = vmatpush.msra.mxu0 %v3491
    %3519 = vmatpush.msra.mxu0 %v3490
    %3520 = vmatpush.msra.mxu0 %v3489
    %3521 = vmatpush.msra.mxu0 %v3488
    %3522 = vmatpush.msra.mxu0 %v3487
    %3523 = vmatmul.f32.gmra.mxu0 %v3326
    %v3524 = vpop.f32.mrf.mxu0
    %v3525 = vadd.f32 %v3505, %v3524
    %3526 = vdwg.mxu0
    %v3527 = vld [vmem:[%s730] sm:$0xff]
    %v3528 = vld [vmem:[%s730 + $0x8] sm:$0xff]
    %v3529 = vld [vmem:[%s730 + $0x10] sm:$0xff]
    %v3530 = vld [vmem:[%s730 + $0x18] sm:$0xff]
    %v3531 = vld [vmem:[%s730 + $0x20] sm:$0xff]
    %v3532 = vld [vmem:[%s730 + $0x28] sm:$0xff]
    %v3533 = vld [vmem:[%s730 + $0x30] sm:$0xff]
    %v3534 = vld [vmem:[%s730 + $0x38] sm:$0xff]
    %v3535 = vld [vmem:[%s730 + $0x40] sm:$0xff]
    %v3536 = vld [vmem:[%s730 + $0x48] sm:$0xff]
    %v3537 = vld [vmem:[%s730 + $0x50] sm:$0xff]
    %v3538 = vld [vmem:[%s730 + $0x58] sm:$0xff]
    %v3539 = vld [vmem:[%s730 + $0x60] sm:$0xff]
    %v3540 = vld [vmem:[%s730 + $0x68] sm:$0xff]
    %v3541 = vld [vmem:[%s730 + $0x70] sm:$0xff]
    %v3542 = vld [vmem:[%s730 + $0x78] sm:$0xff]
    %v3543 = vld [vmem:[%s747] sm:$0x1]
    %v3545 = vperm.slane %v3543, 0
    %3547 = vmatpush.msra.mxu0 %v3542
    %3548 = vmatpush.msra.mxu0 %v3541
    %3549 = vmatpush.msra.mxu0 %v3540
    %3550 = vmatpush.msra.mxu0 %v3539
    %3551 = vmatpush.msra.mxu0 %v3538
    %3552 = vmatpush.msra.mxu0 %v3537
    %3553 = vmatpush.msra.mxu0 %v3536
    %3554 = vmatpush.msra.mxu0 %v3535
    %3555 = vmatpush.msra.mxu0 %v3534
    %3556 = vmatpush.msra.mxu0 %v3533
    %3557 = vmatpush.msra.mxu0 %v3532
    %3558 = vmatpush.msra.mxu0 %v3531
    %3559 = vmatpush.msra.mxu0 %v3530
    %3560 = vmatpush.msra.mxu0 %v3529
    %3561 = vmatpush.msra.mxu0 %v3528
    %3562 = vmatpush.msra.mxu0 %v3527
    %3563 = vmatmul.f32.gmra.mxu0 %v3326
    %v3564 = vpop.f32.mrf.mxu0
    %v3565 = vadd.f32 %v3545, %v3564
    %3566 = vdwg.mxu0
    %v3567 = vadd.f32 %v3365, %v3485
    %v3568 = vxor.u32 %v3567, 2147483648
    %v3569 = vmul.f32 %v3568, 1.442695
    %v3570 = vpow.pop %v3569
    %v3571 = vadd.f32 %v3570, 1.0
    %v3572 = vrcp.pop %v3571
    %v3573 = vmul.f32 %v3571, %v3572
    %v3574 = vsub.f32 1.0, %v3573
    %v3575 = vmul.f32 %v3572, %v3574
    %v3576 = vadd.f32 %v3572, %v3575
    %vm3577 = vweird.f32 %v3571
    %vm3578 = vweird.f32 %v3572
    %vm3579 = vmor %vm3577, %vm3578
    %v3580 = vsel %vm3579, %v3572, %v3576
    %v3581 = vand.u32 2147483647, %v3571
    %vm3582 = vcmp.eq.f32.partialorder %v3581, 8.507059e+37
    %v3583 = vand.u32 %v3571, 2147483648
    %v3584 = vor.u32 1.1754944e-38, %v3583
    %v3585 = vsel %vm3582, %v3584, %v3580
    %v3586 = vmul.f32 1.0, %v3585
    %v3587 = vadd.f32 %v3405, %v3525
    %v3588 = vxor.u32 %v3587, 2147483648
    %v3589 = vmul.f32 %v3588, 1.442695
    %v3590 = vpow.pop %v3589
    %v3591 = vadd.f32 %v3590, 1.0
    %v3592 = vrcp.pop %v3591
    %v3593 = vmul.f32 %v3591, %v3592
    %v3594 = vsub.f32 1.0, %v3593
    %v3595 = vmul.f32 %v3592, %v3594
    %v3596 = vadd.f32 %v3592, %v3595
    %vm3597 = vweird.f32 %v3591
    %vm3598 = vweird.f32 %v3592
    %vm3599 = vmor %vm3597, %vm3598
    %v3600 = vsel %vm3599, %v3592, %v3596
    %v3601 = vand.u32 2147483647, %v3591
    %vm3602 = vcmp.eq.f32.partialorder %v3601, 8.507059e+37
    %v3603 = vand.u32 %v3591, 2147483648
    %v3604 = vor.u32 1.1754944e-38, %v3603
    %v3605 = vsel %vm3602, %v3604, %v3600
    %v3606 = vmul.f32 1.0, %v3605
    %v3607 = vmul.f32 %v3586, %v3565
    %v3608 = vadd.f32 %v3445, %v3607
    %v3609 = vtanh.pop %v3608
    %v3610 = vsub.f32 1.0, %v3606
    %v3611 = vmul.f32 %v3610, %v3609
    %v3612 = vmul.f32 %v3606, %v3326
    %v3613 = vadd.f32 %v3611, %v3612
    %3614 = vst [vmem:[%s518] sm:$0xff] %v3613
    %s3615 = scalar_lea.vmem [#allocation6], 48
    %3616 = vst [vmem:[%s3615] sm:$0xff] %v3613
    %v3617 = vld [vmem:[#allocation2] sm:$0xff]
    %s3618 = scalar_lea.vmem [#allocation3], 56
    %v3619 = vld [vmem:[%s3618] sm:$0xff]
    %s3620 = scalar_lea.vmem [#allocation4], 56
    %v3621 = vld [vmem:[%s3620] sm:$0xff]
    %s3622 = scalar_lea.vmem [#allocation5], 56
    %v3623 = vld [vmem:[%s3622] sm:$0xff]
    %v3624 = vld [vmem:[#allocation12] sm:$0xff]
    %v3625 = vld [vmem:[#allocation12 + $0x8] sm:$0xff]
    %v3626 = vld [vmem:[#allocation12 + $0x10] sm:$0xff]
    %v3627 = vld [vmem:[#allocation12 + $0x18] sm:$0xff]
    %v3628 = vld [vmem:[#allocation12 + $0x20] sm:$0xff]
    %v3629 = vld [vmem:[#allocation12 + $0x28] sm:$0xff]
    %v3630 = vld [vmem:[#allocation12 + $0x30] sm:$0xff]
    %v3631 = vld [vmem:[#allocation12 + $0x38] sm:$0xff]
    %v3632 = vld [vmem:[#allocation12 + $0x40] sm:$0xff]
    %v3633 = vld [vmem:[#allocation12 + $0x48] sm:$0xff]
    %v3634 = vld [vmem:[#allocation12 + $0x50] sm:$0xff]
    %v3635 = vld [vmem:[#allocation12 + $0x58] sm:$0xff]
    %v3636 = vld [vmem:[#allocation12 + $0x60] sm:$0xff]
    %v3637 = vld [vmem:[#allocation12 + $0x68] sm:$0xff]
    %v3638 = vld [vmem:[#allocation12 + $0x70] sm:$0xff]
    %v3639 = vld [vmem:[#allocation12 + $0x78] sm:$0xff]
    %v3640 = vld [vmem:[#allocation15] sm:$0x1]
    %v3642 = vperm.slane %v3640, 0
    %3644 = vmatpush.msra.mxu0 %v3639
    %3645 = vmatpush.msra.mxu0 %v3638
    %3646 = vmatpush.msra.mxu0 %v3637
    %3647 = vmatpush.msra.mxu0 %v3636
    %3648 = vmatpush.msra.mxu0 %v3635
    %3649 = vmatpush.msra.mxu0 %v3634
    %3650 = vmatpush.msra.mxu0 %v3633
    %3651 = vmatpush.msra.mxu0 %v3632
    %3652 = vmatpush.msra.mxu0 %v3631
    %3653 = vmatpush.msra.mxu0 %v3630
    %3654 = vmatpush.msra.mxu0 %v3629
    %3655 = vmatpush.msra.mxu0 %v3628
    %3656 = vmatpush.msra.mxu0 %v3627
    %3657 = vmatpush.msra.mxu0 %v3626
    %3658 = vmatpush.msra.mxu0 %v3625
    %3659 = vmatpush.msra.mxu0 %v3624
    %3660 = vmatmul.f32.gmra.mxu0 %v3617
    %v3661 = vpop.f32.mrf.mxu0
    %v3662 = vadd.f32 %v3642, %v3661
    %3663 = vdwg.mxu0
    %v3664 = vld [vmem:[%s386] sm:$0xff]
    %v3665 = vld [vmem:[%s386 + $0x8] sm:$0xff]
    %v3666 = vld [vmem:[%s386 + $0x10] sm:$0xff]
    %v3667 = vld [vmem:[%s386 + $0x18] sm:$0xff]
    %v3668 = vld [vmem:[%s386 + $0x20] sm:$0xff]
    %v3669 = vld [vmem:[%s386 + $0x28] sm:$0xff]
    %v3670 = vld [vmem:[%s386 + $0x30] sm:$0xff]
    %v3671 = vld [vmem:[%s386 + $0x38] sm:$0xff]
    %v3672 = vld [vmem:[%s386 + $0x40] sm:$0xff]
    %v3673 = vld [vmem:[%s386 + $0x48] sm:$0xff]
    %v3674 = vld [vmem:[%s386 + $0x50] sm:$0xff]
    %v3675 = vld [vmem:[%s386 + $0x58] sm:$0xff]
    %v3676 = vld [vmem:[%s386 + $0x60] sm:$0xff]
    %v3677 = vld [vmem:[%s386 + $0x68] sm:$0xff]
    %v3678 = vld [vmem:[%s386 + $0x70] sm:$0xff]
    %v3679 = vld [vmem:[%s386 + $0x78] sm:$0xff]
    %v3680 = vld [vmem:[%s403] sm:$0x1]
    %v3682 = vperm.slane %v3680, 0
    %3684 = vmatpush.msra.mxu0 %v3679
    %3685 = vmatpush.msra.mxu0 %v3678
    %3686 = vmatpush.msra.mxu0 %v3677
    %3687 = vmatpush.msra.mxu0 %v3676
    %3688 = vmatpush.msra.mxu0 %v3675
    %3689 = vmatpush.msra.mxu0 %v3674
    %3690 = vmatpush.msra.mxu0 %v3673
    %3691 = vmatpush.msra.mxu0 %v3672
    %3692 = vmatpush.msra.mxu0 %v3671
    %3693 = vmatpush.msra.mxu0 %v3670
    %3694 = vmatpush.msra.mxu0 %v3669
    %3695 = vmatpush.msra.mxu0 %v3668
    %3696 = vmatpush.msra.mxu0 %v3667
    %3697 = vmatpush.msra.mxu0 %v3666
    %3698 = vmatpush.msra.mxu0 %v3665
    %3699 = vmatpush.msra.mxu0 %v3664
    %3700 = vmatmul.f32.gmra.mxu0 %v3617
    %v3701 = vpop.f32.mrf.mxu0
    %v3702 = vadd.f32 %v3682, %v3701
    %3703 = vdwg.mxu0
    %v3704 = vld [vmem:[%s428] sm:$0xff]
    %v3705 = vld [vmem:[%s428 + $0x8] sm:$0xff]
    %v3706 = vld [vmem:[%s428 + $0x10] sm:$0xff]
    %v3707 = vld [vmem:[%s428 + $0x18] sm:$0xff]
    %v3708 = vld [vmem:[%s428 + $0x20] sm:$0xff]
    %v3709 = vld [vmem:[%s428 + $0x28] sm:$0xff]
    %v3710 = vld [vmem:[%s428 + $0x30] sm:$0xff]
    %v3711 = vld [vmem:[%s428 + $0x38] sm:$0xff]
    %v3712 = vld [vmem:[%s428 + $0x40] sm:$0xff]
    %v3713 = vld [vmem:[%s428 + $0x48] sm:$0xff]
    %v3714 = vld [vmem:[%s428 + $0x50] sm:$0xff]
    %v3715 = vld [vmem:[%s428 + $0x58] sm:$0xff]
    %v3716 = vld [vmem:[%s428 + $0x60] sm:$0xff]
    %v3717 = vld [vmem:[%s428 + $0x68] sm:$0xff]
    %v3718 = vld [vmem:[%s428 + $0x70] sm:$0xff]
    %v3719 = vld [vmem:[%s428 + $0x78] sm:$0xff]
    %v3720 = vld [vmem:[%s445] sm:$0x1]
    %v3722 = vperm.slane %v3720, 0
    %3724 = vmatpush.msra.mxu0 %v3719
    %3725 = vmatpush.msra.mxu0 %v3718
    %3726 = vmatpush.msra.mxu0 %v3717
    %3727 = vmatpush.msra.mxu0 %v3716
    %3728 = vmatpush.msra.mxu0 %v3715
    %3729 = vmatpush.msra.mxu0 %v3714
    %3730 = vmatpush.msra.mxu0 %v3713
    %3731 = vmatpush.msra.mxu0 %v3712
    %3732 = vmatpush.msra.mxu0 %v3711
    %3733 = vmatpush.msra.mxu0 %v3710
    %3734 = vmatpush.msra.mxu0 %v3709
    %3735 = vmatpush.msra.mxu0 %v3708
    %3736 = vmatpush.msra.mxu0 %v3707
    %3737 = vmatpush.msra.mxu0 %v3706
    %3738 = vmatpush.msra.mxu0 %v3705
    %3739 = vmatpush.msra.mxu0 %v3704
    %3740 = vmatmul.f32.gmra.mxu0 %v3617
    %v3741 = vpop.f32.mrf.mxu0
    %v3742 = vadd.f32 %v3722, %v3741
    %3743 = vdwg.mxu0
    %v3744 = vadd.f32 %v3619, %v3662
    %v3745 = vxor.u32 %v3744, 2147483648
    %v3746 = vmul.f32 %v3745, 1.442695
    %v3747 = vpow.pop %v3746
    %v3748 = vadd.f32 %v3747, 1.0
    %v3749 = vrcp.pop %v3748
    %v3750 = vmul.f32 %v3748, %v3749
    %v3751 = vsub.f32 1.0, %v3750
    %v3752 = vmul.f32 %v3749, %v3751
    %v3753 = vadd.f32 %v3749, %v3752
    %vm3754 = vweird.f32 %v3748
    %vm3755 = vweird.f32 %v3749
    %vm3756 = vmor %vm3754, %vm3755
    %v3757 = vsel %vm3756, %v3749, %v3753
    %v3758 = vand.u32 2147483647, %v3748
    %vm3759 = vcmp.eq.f32.partialorder %v3758, 8.507059e+37
    %v3760 = vand.u32 %v3748, 2147483648
    %v3761 = vor.u32 1.1754944e-38, %v3760
    %v3762 = vsel %vm3759, %v3761, %v3757
    %v3763 = vmul.f32 1.0, %v3762
    %v3764 = vadd.f32 %v3621, %v3702
    %v3765 = vxor.u32 %v3764, 2147483648
    %v3766 = vmul.f32 %v3765, 1.442695
    %v3767 = vpow.pop %v3766
    %v3768 = vadd.f32 %v3767, 1.0
    %v3769 = vrcp.pop %v3768
    %v3770 = vmul.f32 %v3768, %v3769
    %v3771 = vsub.f32 1.0, %v3770
    %v3772 = vmul.f32 %v3769, %v3771
    %v3773 = vadd.f32 %v3769, %v3772
    %vm3774 = vweird.f32 %v3768
    %vm3775 = vweird.f32 %v3769
    %vm3776 = vmor %vm3774, %vm3775
    %v3777 = vsel %vm3776, %v3769, %v3773
    %v3778 = vand.u32 2147483647, %v3768
    %vm3779 = vcmp.eq.f32.partialorder %v3778, 8.507059e+37
    %v3780 = vand.u32 %v3768, 2147483648
    %v3781 = vor.u32 1.1754944e-38, %v3780
    %v3782 = vsel %vm3779, %v3781, %v3777
    %v3783 = vmul.f32 1.0, %v3782
    %v3784 = vmul.f32 %v3763, %v3742
    %v3785 = vadd.f32 %v3623, %v3784
    %v3786 = vtanh.pop %v3785
    %v3787 = vsub.f32 1.0, %v3783
    %v3788 = vmul.f32 %v3787, %v3786
    %v3789 = vmul.f32 %v3783, %v3617
    %v3790 = vadd.f32 %v3788, %v3789
    %3791 = vst [vmem:[#allocation2] sm:$0xff] %v3790
    %v3792 = vld [vmem:[%s518] sm:$0xff]
    %v3793 = vld [vmem:[%s520] sm:$0xff]
    %v3794 = vld [vmem:[%s520 + $0x8] sm:$0xff]
    %v3795 = vld [vmem:[%s520 + $0x10] sm:$0xff]
    %v3796 = vld [vmem:[%s520 + $0x18] sm:$0xff]
    %v3797 = vld [vmem:[%s520 + $0x20] sm:$0xff]
    %v3798 = vld [vmem:[%s520 + $0x28] sm:$0xff]
    %v3799 = vld [vmem:[%s520 + $0x30] sm:$0xff]
    %v3800 = vld [vmem:[%s520 + $0x38] sm:$0xff]
    %v3801 = vld [vmem:[%s520 + $0x40] sm:$0xff]
    %v3802 = vld [vmem:[%s520 + $0x48] sm:$0xff]
    %v3803 = vld [vmem:[%s520 + $0x50] sm:$0xff]
    %v3804 = vld [vmem:[%s520 + $0x58] sm:$0xff]
    %v3805 = vld [vmem:[%s520 + $0x60] sm:$0xff]
    %v3806 = vld [vmem:[%s520 + $0x68] sm:$0xff]
    %v3807 = vld [vmem:[%s520 + $0x70] sm:$0xff]
    %v3808 = vld [vmem:[%s520 + $0x78] sm:$0xff]
    %v3809 = vld [vmem:[%s537] sm:$0x1]
    %v3811 = vperm.slane %v3809, 0
    %3813 = vmatpush.msra.mxu0 %v3808
    %3814 = vmatpush.msra.mxu0 %v3807
    %3815 = vmatpush.msra.mxu0 %v3806
    %3816 = vmatpush.msra.mxu0 %v3805
    %3817 = vmatpush.msra.mxu0 %v3804
    %3818 = vmatpush.msra.mxu0 %v3803
    %3819 = vmatpush.msra.mxu0 %v3802
    %3820 = vmatpush.msra.mxu0 %v3801
    %3821 = vmatpush.msra.mxu0 %v3800
    %3822 = vmatpush.msra.mxu0 %v3799
    %3823 = vmatpush.msra.mxu0 %v3798
    %3824 = vmatpush.msra.mxu0 %v3797
    %3825 = vmatpush.msra.mxu0 %v3796
    %3826 = vmatpush.msra.mxu0 %v3795
    %3827 = vmatpush.msra.mxu0 %v3794
    %3828 = vmatpush.msra.mxu0 %v3793
    %3829 = vmatmul.f32.gmra.mxu0 %v3790
    %v3830 = vpop.f32.mrf.mxu0
    %v3831 = vadd.f32 %v3811, %v3830
    %3832 = vdwg.mxu0
    %v3833 = vld [vmem:[%s562] sm:$0xff]
    %v3834 = vld [vmem:[%s562 + $0x8] sm:$0xff]
    %v3835 = vld [vmem:[%s562 + $0x10] sm:$0xff]
    %v3836 = vld [vmem:[%s562 + $0x18] sm:$0xff]
    %v3837 = vld [vmem:[%s562 + $0x20] sm:$0xff]
    %v3838 = vld [vmem:[%s562 + $0x28] sm:$0xff]
    %v3839 = vld [vmem:[%s562 + $0x30] sm:$0xff]
    %v3840 = vld [vmem:[%s562 + $0x38] sm:$0xff]
    %v3841 = vld [vmem:[%s562 + $0x40] sm:$0xff]
    %v3842 = vld [vmem:[%s562 + $0x48] sm:$0xff]
    %v3843 = vld [vmem:[%s562 + $0x50] sm:$0xff]
    %v3844 = vld [vmem:[%s562 + $0x58] sm:$0xff]
    %v3845 = vld [vmem:[%s562 + $0x60] sm:$0xff]
    %v3846 = vld [vmem:[%s562 + $0x68] sm:$0xff]
    %v3847 = vld [vmem:[%s562 + $0x70] sm:$0xff]
    %v3848 = vld [vmem:[%s562 + $0x78] sm:$0xff]
    %v3849 = vld [vmem:[%s579] sm:$0x1]
    %v3851 = vperm.slane %v3849, 0
    %3853 = vmatpush.msra.mxu0 %v3848
    %3854 = vmatpush.msra.mxu0 %v3847
    %3855 = vmatpush.msra.mxu0 %v3846
    %3856 = vmatpush.msra.mxu0 %v3845
    %3857 = vmatpush.msra.mxu0 %v3844
    %3858 = vmatpush.msra.mxu0 %v3843
    %3859 = vmatpush.msra.mxu0 %v3842
    %3860 = vmatpush.msra.mxu0 %v3841
    %3861 = vmatpush.msra.mxu0 %v3840
    %3862 = vmatpush.msra.mxu0 %v3839
    %3863 = vmatpush.msra.mxu0 %v3838
    %3864 = vmatpush.msra.mxu0 %v3837
    %3865 = vmatpush.msra.mxu0 %v3836
    %3866 = vmatpush.msra.mxu0 %v3835
    %3867 = vmatpush.msra.mxu0 %v3834
    %3868 = vmatpush.msra.mxu0 %v3833
    %3869 = vmatmul.f32.gmra.mxu0 %v3790
    %v3870 = vpop.f32.mrf.mxu0
    %v3871 = vadd.f32 %v3851, %v3870
    %3872 = vdwg.mxu0
    %v3873 = vld [vmem:[%s604] sm:$0xff]
    %v3874 = vld [vmem:[%s604 + $0x8] sm:$0xff]
    %v3875 = vld [vmem:[%s604 + $0x10] sm:$0xff]
    %v3876 = vld [vmem:[%s604 + $0x18] sm:$0xff]
    %v3877 = vld [vmem:[%s604 + $0x20] sm:$0xff]
    %v3878 = vld [vmem:[%s604 + $0x28] sm:$0xff]
    %v3879 = vld [vmem:[%s604 + $0x30] sm:$0xff]
    %v3880 = vld [vmem:[%s604 + $0x38] sm:$0xff]
    %v3881 = vld [vmem:[%s604 + $0x40] sm:$0xff]
    %v3882 = vld [vmem:[%s604 + $0x48] sm:$0xff]
    %v3883 = vld [vmem:[%s604 + $0x50] sm:$0xff]
    %v3884 = vld [vmem:[%s604 + $0x58] sm:$0xff]
    %v3885 = vld [vmem:[%s604 + $0x60] sm:$0xff]
    %v3886 = vld [vmem:[%s604 + $0x68] sm:$0xff]
    %v3887 = vld [vmem:[%s604 + $0x70] sm:$0xff]
    %v3888 = vld [vmem:[%s604 + $0x78] sm:$0xff]
    %v3889 = vld [vmem:[%s621] sm:$0x1]
    %v3891 = vperm.slane %v3889, 0
    %3893 = vmatpush.msra.mxu0 %v3888
    %3894 = vmatpush.msra.mxu0 %v3887
    %3895 = vmatpush.msra.mxu0 %v3886
    %3896 = vmatpush.msra.mxu0 %v3885
    %3897 = vmatpush.msra.mxu0 %v3884
    %3898 = vmatpush.msra.mxu0 %v3883
    %3899 = vmatpush.msra.mxu0 %v3882
    %3900 = vmatpush.msra.mxu0 %v3881
    %3901 = vmatpush.msra.mxu0 %v3880
    %3902 = vmatpush.msra.mxu0 %v3879
    %3903 = vmatpush.msra.mxu0 %v3878
    %3904 = vmatpush.msra.mxu0 %v3877
    %3905 = vmatpush.msra.mxu0 %v3876
    %3906 = vmatpush.msra.mxu0 %v3875
    %3907 = vmatpush.msra.mxu0 %v3874
    %3908 = vmatpush.msra.mxu0 %v3873
    %3909 = vmatmul.f32.gmra.mxu0 %v3790
    %v3910 = vpop.f32.mrf.mxu0
    %v3911 = vadd.f32 %v3891, %v3910
    %3912 = vdwg.mxu0
    %v3913 = vld [vmem:[%s646] sm:$0xff]
    %v3914 = vld [vmem:[%s646 + $0x8] sm:$0xff]
    %v3915 = vld [vmem:[%s646 + $0x10] sm:$0xff]
    %v3916 = vld [vmem:[%s646 + $0x18] sm:$0xff]
    %v3917 = vld [vmem:[%s646 + $0x20] sm:$0xff]
    %v3918 = vld [vmem:[%s646 + $0x28] sm:$0xff]
    %v3919 = vld [vmem:[%s646 + $0x30] sm:$0xff]
    %v3920 = vld [vmem:[%s646 + $0x38] sm:$0xff]
    %v3921 = vld [vmem:[%s646 + $0x40] sm:$0xff]
    %v3922 = vld [vmem:[%s646 + $0x48] sm:$0xff]
    %v3923 = vld [vmem:[%s646 + $0x50] sm:$0xff]
    %v3924 = vld [vmem:[%s646 + $0x58] sm:$0xff]
    %v3925 = vld [vmem:[%s646 + $0x60] sm:$0xff]
    %v3926 = vld [vmem:[%s646 + $0x68] sm:$0xff]
    %v3927 = vld [vmem:[%s646 + $0x70] sm:$0xff]
    %v3928 = vld [vmem:[%s646 + $0x78] sm:$0xff]
    %v3929 = vld [vmem:[%s663] sm:$0x1]
    %v3931 = vperm.slane %v3929, 0
    %3933 = vmatpush.msra.mxu0 %v3928
    %3934 = vmatpush.msra.mxu0 %v3927
    %3935 = vmatpush.msra.mxu0 %v3926
    %3936 = vmatpush.msra.mxu0 %v3925
    %3937 = vmatpush.msra.mxu0 %v3924
    %3938 = vmatpush.msra.mxu0 %v3923
    %3939 = vmatpush.msra.mxu0 %v3922
    %3940 = vmatpush.msra.mxu0 %v3921
    %3941 = vmatpush.msra.mxu0 %v3920
    %3942 = vmatpush.msra.mxu0 %v3919
    %3943 = vmatpush.msra.mxu0 %v3918
    %3944 = vmatpush.msra.mxu0 %v3917
    %3945 = vmatpush.msra.mxu0 %v3916
    %3946 = vmatpush.msra.mxu0 %v3915
    %3947 = vmatpush.msra.mxu0 %v3914
    %3948 = vmatpush.msra.mxu0 %v3913
    %3949 = vmatmul.f32.gmra.mxu0 %v3792
    %v3950 = vpop.f32.mrf.mxu0
    %v3951 = vadd.f32 %v3931, %v3950
    %3952 = vdwg.mxu0
    %v3953 = vld [vmem:[%s688] sm:$0xff]
    %v3954 = vld [vmem:[%s688 + $0x8] sm:$0xff]
    %v3955 = vld [vmem:[%s688 + $0x10] sm:$0xff]
    %v3956 = vld [vmem:[%s688 + $0x18] sm:$0xff]
    %v3957 = vld [vmem:[%s688 + $0x20] sm:$0xff]
    %v3958 = vld [vmem:[%s688 + $0x28] sm:$0xff]
    %v3959 = vld [vmem:[%s688 + $0x30] sm:$0xff]
    %v3960 = vld [vmem:[%s688 + $0x38] sm:$0xff]
    %v3961 = vld [vmem:[%s688 + $0x40] sm:$0xff]
    %v3962 = vld [vmem:[%s688 + $0x48] sm:$0xff]
    %v3963 = vld [vmem:[%s688 + $0x50] sm:$0xff]
    %v3964 = vld [vmem:[%s688 + $0x58] sm:$0xff]
    %v3965 = vld [vmem:[%s688 + $0x60] sm:$0xff]
    %v3966 = vld [vmem:[%s688 + $0x68] sm:$0xff]
    %v3967 = vld [vmem:[%s688 + $0x70] sm:$0xff]
    %v3968 = vld [vmem:[%s688 + $0x78] sm:$0xff]
    %v3969 = vld [vmem:[%s705] sm:$0x1]
    %v3971 = vperm.slane %v3969, 0
    %3973 = vmatpush.msra.mxu0 %v3968
    %3974 = vmatpush.msra.mxu0 %v3967
    %3975 = vmatpush.msra.mxu0 %v3966
    %3976 = vmatpush.msra.mxu0 %v3965
    %3977 = vmatpush.msra.mxu0 %v3964
    %3978 = vmatpush.msra.mxu0 %v3963
    %3979 = vmatpush.msra.mxu0 %v3962
    %3980 = vmatpush.msra.mxu0 %v3961
    %3981 = vmatpush.msra.mxu0 %v3960
    %3982 = vmatpush.msra.mxu0 %v3959
    %3983 = vmatpush.msra.mxu0 %v3958
    %3984 = vmatpush.msra.mxu0 %v3957
    %3985 = vmatpush.msra.mxu0 %v3956
    %3986 = vmatpush.msra.mxu0 %v3955
    %3987 = vmatpush.msra.mxu0 %v3954
    %3988 = vmatpush.msra.mxu0 %v3953
    %3989 = vmatmul.f32.gmra.mxu0 %v3792
    %v3990 = vpop.f32.mrf.mxu0
    %v3991 = vadd.f32 %v3971, %v3990
    %3992 = vdwg.mxu0
    %v3993 = vld [vmem:[%s730] sm:$0xff]
    %v3994 = vld [vmem:[%s730 + $0x8] sm:$0xff]
    %v3995 = vld [vmem:[%s730 + $0x10] sm:$0xff]
    %v3996 = vld [vmem:[%s730 + $0x18] sm:$0xff]
    %v3997 = vld [vmem:[%s730 + $0x20] sm:$0xff]
    %v3998 = vld [vmem:[%s730 + $0x28] sm:$0xff]
    %v3999 = vld [vmem:[%s730 + $0x30] sm:$0xff]
    %v4000 = vld [vmem:[%s730 + $0x38] sm:$0xff]
    %v4001 = vld [vmem:[%s730 + $0x40] sm:$0xff]
    %v4002 = vld [vmem:[%s730 + $0x48] sm:$0xff]
    %v4003 = vld [vmem:[%s730 + $0x50] sm:$0xff]
    %v4004 = vld [vmem:[%s730 + $0x58] sm:$0xff]
    %v4005 = vld [vmem:[%s730 + $0x60] sm:$0xff]
    %v4006 = vld [vmem:[%s730 + $0x68] sm:$0xff]
    %v4007 = vld [vmem:[%s730 + $0x70] sm:$0xff]
    %v4008 = vld [vmem:[%s730 + $0x78] sm:$0xff]
    %v4009 = vld [vmem:[%s747] sm:$0x1]
    %v4011 = vperm.slane %v4009, 0
    %4013 = vmatpush.msra.mxu0 %v4008
    %4014 = vmatpush.msra.mxu0 %v4007
    %4015 = vmatpush.msra.mxu0 %v4006
    %4016 = vmatpush.msra.mxu0 %v4005
    %4017 = vmatpush.msra.mxu0 %v4004
    %4018 = vmatpush.msra.mxu0 %v4003
    %4019 = vmatpush.msra.mxu0 %v4002
    %4020 = vmatpush.msra.mxu0 %v4001
    %4021 = vmatpush.msra.mxu0 %v4000
    %4022 = vmatpush.msra.mxu0 %v3999
    %4023 = vmatpush.msra.mxu0 %v3998
    %4024 = vmatpush.msra.mxu0 %v3997
    %4025 = vmatpush.msra.mxu0 %v3996
    %4026 = vmatpush.msra.mxu0 %v3995
    %4027 = vmatpush.msra.mxu0 %v3994
    %4028 = vmatpush.msra.mxu0 %v3993
    %4029 = vmatmul.f32.gmra.mxu0 %v3792
    %v4030 = vpop.f32.mrf.mxu0
    %v4031 = vadd.f32 %v4011, %v4030
    %4032 = vdwg.mxu0
    %v4033 = vadd.f32 %v3831, %v3951
    %v4034 = vxor.u32 %v4033, 2147483648
    %v4035 = vmul.f32 %v4034, 1.442695
    %v4036 = vpow.pop %v4035
    %v4037 = vadd.f32 %v4036, 1.0
    %v4038 = vrcp.pop %v4037
    %v4039 = vmul.f32 %v4037, %v4038
    %v4040 = vsub.f32 1.0, %v4039
    %v4041 = vmul.f32 %v4038, %v4040
    %v4042 = vadd.f32 %v4038, %v4041
    %vm4043 = vweird.f32 %v4037
    %vm4044 = vweird.f32 %v4038
    %vm4045 = vmor %vm4043, %vm4044
    %v4046 = vsel %vm4045, %v4038, %v4042
    %v4047 = vand.u32 2147483647, %v4037
    %vm4048 = vcmp.eq.f32.partialorder %v4047, 8.507059e+37
    %v4049 = vand.u32 %v4037, 2147483648
    %v4050 = vor.u32 1.1754944e-38, %v4049
    %v4051 = vsel %vm4048, %v4050, %v4046
    %v4052 = vmul.f32 1.0, %v4051
    %v4053 = vadd.f32 %v3871, %v3991
    %v4054 = vxor.u32 %v4053, 2147483648
    %v4055 = vmul.f32 %v4054, 1.442695
    %v4056 = vpow.pop %v4055
    %v4057 = vadd.f32 %v4056, 1.0
    %v4058 = vrcp.pop %v4057
    %v4059 = vmul.f32 %v4057, %v4058
    %v4060 = vsub.f32 1.0, %v4059
    %v4061 = vmul.f32 %v4058, %v4060
    %v4062 = vadd.f32 %v4058, %v4061
    %vm4063 = vweird.f32 %v4057
    %vm4064 = vweird.f32 %v4058
    %vm4065 = vmor %vm4063, %vm4064
    %v4066 = vsel %vm4065, %v4058, %v4062
    %v4067 = vand.u32 2147483647, %v4057
    %vm4068 = vcmp.eq.f32.partialorder %v4067, 8.507059e+37
    %v4069 = vand.u32 %v4057, 2147483648
    %v4070 = vor.u32 1.1754944e-38, %v4069
    %v4071 = vsel %vm4068, %v4070, %v4066
    %v4072 = vmul.f32 1.0, %v4071
    %v4073 = vmul.f32 %v4052, %v4031
    %v4074 = vadd.f32 %v3911, %v4073
    %v4075 = vtanh.pop %v4074
    %v4076 = vsub.f32 1.0, %v4072
    %v4077 = vmul.f32 %v4076, %v4075
    %v4078 = vmul.f32 %v4072, %v3792
    %v4079 = vadd.f32 %v4077, %v4078
    %4080 = vst [vmem:[%s518] sm:$0xff] %v4079
    %s4081 = scalar_lea.vmem [#allocation6], 56
    %4082 = vst [vmem:[%s4081] sm:$0xff] %v4079
    %v4083 = vld [vmem:[#allocation6] sm:$0xff]
    %v4084 = vld [vmem:[#allocation6 + $0x8] sm:$0xff]
    %v4085 = vld [vmem:[#allocation6 + $0x10] sm:$0xff]
    %v4086 = vld [vmem:[#allocation6 + $0x18] sm:$0xff]
    %v4087 = vld [vmem:[#allocation6 + $0x20] sm:$0xff]
    %v4088 = vld [vmem:[#allocation6 + $0x28] sm:$0xff]
    %v4089 = vld [vmem:[#allocation6 + $0x30] sm:$0xff]
    %v4090 = vld [vmem:[#allocation6 + $0x38] sm:$0xff]
    %v4091 = vld [vmem:[#allocation16] sm:$0xff]
    %v4092 = vld [vmem:[#allocation16 + $0x8] sm:$0xff]
    %v4093 = vld [vmem:[#allocation16 + $0x10] sm:$0xff]
    %v4094 = vld [vmem:[#allocation16 + $0x18] sm:$0xff]
    %v4095 = vld [vmem:[#allocation16 + $0x20] sm:$0xff]
    %v4096 = vld [vmem:[#allocation16 + $0x28] sm:$0xff]
    %v4097 = vld [vmem:[#allocation16 + $0x30] sm:$0xff]
    %v4098 = vld [vmem:[#allocation16 + $0x38] sm:$0xff]
    %v4099 = vld [vmem:[#allocation16 + $0x40] sm:$0xff]
    %v4100 = vld [vmem:[#allocation16 + $0x48] sm:$0xff]
    %v4101 = vld [vmem:[#allocation16 + $0x50] sm:$0xff]
    %v4102 = vld [vmem:[#allocation16 + $0x58] sm:$0xff]
    %v4103 = vld [vmem:[#allocation16 + $0x60] sm:$0xff]
    %v4104 = vld [vmem:[#allocation16 + $0x68] sm:$0xff]
    %v4105 = vld [vmem:[#allocation16 + $0x70] sm:$0xff]
    %v4106 = vld [vmem:[#allocation16 + $0x78] sm:$0xff]
    %v4107 = vld [vmem:[%s6] sm:$0x1]
    %v4109 = vperm.slane %v4107, 0
    %4111 = vmatpush.msra.mxu0 %v4106
    %4112 = vmatpush.msra.mxu0 %v4105
    %4113 = vmatpush.msra.mxu0 %v4104
    %4114 = vmatpush.msra.mxu0 %v4103
    %4115 = vmatpush.msra.mxu0 %v4102
    %4116 = vmatpush.msra.mxu0 %v4101
    %4117 = vmatpush.msra.mxu0 %v4100
    %4118 = vmatpush.msra.mxu0 %v4099
    %4119 = vmatpush.msra.mxu0 %v4098
    %4120 = vmatpush.msra.mxu0 %v4097
    %4121 = vmatpush.msra.mxu0 %v4096
    %4122 = vmatpush.msra.mxu0 %v4095
    %4123 = vmatpush.msra.mxu0 %v4094
    %4124 = vmatpush.msra.mxu0 %v4093
    %4125 = vmatpush.msra.mxu0 %v4092
    %4126 = vmatpush.msra.mxu0 %v4091
    %4127 = vmatmul.f32.gmra.mxu0 %v4083
    %v4128 = vpop.f32.mrf.mxu0
    %v4129 = vadd.f32 %v4109, %v4128
    %4130 = vmatmul.f32.gmra.mxu0 %v4084
    %v4131 = vpop.f32.mrf.mxu0
    %v4132 = vadd.f32 %v4109, %v4131
    %4133 = vmatmul.f32.gmra.mxu0 %v4085
    %v4134 = vpop.f32.mrf.mxu0
    %v4135 = vadd.f32 %v4109, %v4134
    %4136 = vmatmul.f32.gmra.mxu0 %v4086
    %v4137 = vpop.f32.mrf.mxu0
    %v4138 = vadd.f32 %v4109, %v4137
    %4139 = vmatmul.f32.gmra.mxu0 %v4087
    %v4140 = vpop.f32.mrf.mxu0
    %v4141 = vadd.f32 %v4109, %v4140
    %4142 = vmatmul.f32.gmra.mxu0 %v4088
    %v4143 = vpop.f32.mrf.mxu0
    %v4144 = vadd.f32 %v4109, %v4143
    %4145 = vmatmul.f32.gmra.mxu0 %v4089
    %v4146 = vpop.f32.mrf.mxu0
    %v4147 = vadd.f32 %v4109, %v4146
    %4148 = vmatmul.f32.gmra.mxu0 %v4090
    %v4149 = vpop.f32.mrf.mxu0
    %v4150 = vadd.f32 %v4109, %v4149
    %4151 = vdwg.mxu0
    %v4152 = vmul.f32 %v4129, 1.5
    %v4153 = vmul.f32 %v4132, 1.5
    %v4154 = vmul.f32 %v4135, 1.5
    %v4155 = vmul.f32 %v4138, 1.5
    %v4156 = vmul.f32 %v4141, 1.5
    %v4157 = vmul.f32 %v4144, 1.5
    %v4158 = vmul.f32 %v4147, 1.5
    %v4159 = vmul.f32 %v4150, 1.5
    %4160 = vst [vmem:[#allocation18] sm:$0xff] %v4152
    %4161 = vst [vmem:[#allocation18 + $0x8] sm:$0xff] %v4153
    %4162 = vst [vmem:[#allocation18 + $0x10] sm:$0xff] %v4154
    %4163 = vst [vmem:[#allocation18 + $0x18] sm:$0xff] %v4155
    %4164 = vst [vmem:[#allocation18 + $0x20] sm:$0xff] %v4156
    %4165 = vst [vmem:[#allocation18 + $0x28] sm:$0xff] %v4157
    %4166 = vst [vmem:[#allocation18 + $0x30] sm:$0xff] %v4158
    %4167 = vst [vmem:[#allocation18 + $0x38] sm:$0xff] %v4159
    // Predicated region
    $region54: #{tpu_custom_call.1} parent=1 // pred_check
      _
    $region55: #{tpu_custom_call.1} parent=1 // pred_check_branch
      %4169 = sbr.rel (0) target = $region57
    $region56: #{tpu_custom_call.1} parent=1 // pred_region
      %4171 = vsyncadd [#allocation9], 0
      %s4172 = sshll.u32 [#allocation18], 4
      %s4173 = int_to_ptr.vmem [resolvable:$true] %s4172
      %s4174 = sshll.u32 %s7, 4
      %s4175 = int_to_ptr.hbm [resolvable:$true] %s4174
      %4180 = dma.vmem_to_hbm [thread:$0]  %s4173, 1024, %s4175, [#allocation9], 128, 128, 8
    $region57: #{tpu_custom_call.1} parent=1 // pred_fallthru
      _
    // Predicated region
    $region58: #{tpu_custom_call.1} parent=1 // pred_check
      _
    $region59: #{tpu_custom_call.1} parent=1 // pred_check_branch
      %4182 = sbr.rel (0) target = $region61
    $region60: #{tpu_custom_call.1} parent=1 // pred_region
      %4184 = dma.done [#allocation9], 1024
    $region61: #{tpu_custom_call.1} parent=1 // pred_fallthru
      _
    %4185 = vsyncpa [#allocation8], 1
    %4186 = vsyncpa [#allocation11], 1
    %4187 = vsyncpa [#allocation14], 1
    %4188 = vsyncpa [#allocation17], 1
    %4189 = vsyncpa [#allocation9], 1

</llo_original>
